<compile_context>
chip_gen: v7x
topology: tpu7x:2x2x1
jax: 0.10.0
libtpu: 0.0.40
codegen_flags: <defaults>
</compile_context>

<pallas_src>
import functools

import jax
import jax.numpy as jnp
from jax.experimental import pallas as pl
from jax.experimental.pallas import tpu as pltpu


def _round_up(x, m):
    return (x + m - 1) // m * m


# ----------------------------------------------------------------------------
# Pallas kernel: one conv layer for one sample.
#   x_ref : (m_pad, K)            bf16  flattened (padded) input slab
#   w_ref : (taps*taps, K, Cout)  bf16  per-tap weight matrices
#   b_ref : (1, Cout)             f32   only for norm=False layers
#   o_ref : (Ho*Wg, Cout)               conv [+ InstanceNorm] + activation
# Accumulator rows with (row % Wg) >= Wo are out-of-window garbage; they are
# masked out of the InstanceNorm statistics here and sliced off in the
# wrapper.
# ----------------------------------------------------------------------------
def _conv_layer_kernel(x_ref, w_ref, *args, taps, wg, wo, ho, norm, act):
    if norm:
        (o_ref,) = args
        bias = None                      # bias cancels under InstanceNorm
    else:
        b_ref, o_ref = args
        bias = b_ref[...].astype(jnp.float32)

    m_acc = ho * wg
    cout = o_ref.shape[-1]
    acc = jnp.zeros((m_acc, cout), jnp.float32)

    # 4x4 conv as taps*taps shifted (M, K) @ (K, Cout) MXU matmuls, f32 acc.
    for dh in range(taps):
        for dw in range(taps):
            base = dh * wg + dw                      # static offset
            xt = x_ref[pl.ds(base, m_acc), :]        # (M, K) bf16
            wt = w_ref[dh * taps + dw]               # (K, Cout) bf16
            acc += jnp.dot(xt, wt, preferred_element_type=jnp.float32)

    if bias is not None:
        acc = acc + bias

    if norm:
        # InstanceNorm2d(affine=False, eps=1e-5): per-channel over the valid
        # spatial positions of this sample, biased variance (PyTorch default).
        row = jax.lax.broadcasted_iota(jnp.int32, (m_acc, 1), 0)
        valid = (row % wg) < wo
        inv_cnt = 1.0 / float(ho * wo)
        mean = jnp.sum(jnp.where(valid, acc, 0.0), axis=0, keepdims=True) * inv_cnt
        cen = jnp.where(valid, acc - mean, 0.0)
        var = jnp.sum(cen * cen, axis=0, keepdims=True) * inv_cnt
        acc = (acc - mean) * jax.lax.rsqrt(var + 1e-5)

    if act == "leaky":
        acc = jnp.maximum(acc, 0.2 * acc)            # LeakyReLU(0.2)
    elif act == "sigmoid":
        # exp rides the EUP; the divide is negligible at the tiny Cout=1 layer.
        acc = 1.0 / (1.0 + jnp.exp(-acc))

    o_ref[...] = acc.astype(o_ref.dtype)


# ----------------------------------------------------------------------------
# Wrapper for one block: reflect pad + layout prep (cheap data movement)
# + fused Pallas conv / norm / activation kernel.
# ----------------------------------------------------------------------------
def conv_block(x_nhwc, w_oihw, b, *, stride, norm, act, out_dtype):
    N, H, W, Cin = x_nhwc.shape
    Cout = w_oihw.shape[0]

    x = x_nhwc.astype(jnp.bfloat16)
    # padding=1, padding_mode='reflect' (as in the PyTorch Conv2d)
    xp = jnp.pad(x, ((0, 0), (1, 1), (1, 1), (0, 0)), mode="reflect")
    Hp, Wp = H + 2, W + 2
    Ho = (Hp - 4) // stride + 1
    Wo = (Wp - 4) // stride + 1

    w_hwio = jnp.transpose(w_oihw, (2, 3, 1, 0))          # (4, 4, Cin, Cout)

    if stride == 2:
        # 2x2 space-to-depth: stride-2 4x4 conv -> stride-1 2x2 conv with
        # K = 4*Cin per tap.  Pure reshape/transpose, no data blowup.
        Hp2, Wp2 = _round_up(Hp, 2), _round_up(Wp, 2)
        xp = jnp.pad(xp, ((0, 0), (0, Hp2 - Hp), (0, Wp2 - Wp), (0, 0)))
        Hg, Wg = Hp2 // 2, Wp2 // 2
        x2 = xp.reshape(N, Hg, 2, Wg, 2, Cin)
        x2 = x2.transpose(0, 1, 3, 2, 4, 5).reshape(N, Hg, Wg, 4 * Cin)
        taps, K = 2, 4 * Cin
        wt = w_hwio.reshape(2, 2, 2, 2, Cin, Cout)        # (dh, ph, dw, pw, I, O)
        wt = wt.transpose(0, 2, 1, 3, 4, 5).reshape(taps * taps, K, Cout)
    else:
        Hg, Wg = Hp, Wp
        x2 = xp
        taps, K = 4, Cin
        wt = w_hwio.reshape(taps * taps, K, Cout)

    # Flatten spatial; pad M so every shifted tap slice stays in bounds.
    m_acc = Ho * Wg
    m_pad = _round_up((taps - 1) * (Wg + 1) + m_acc, 8)
    xf = x2.reshape(N, Hg * Wg, K)
    xf = jnp.pad(xf, ((0, 0), (0, m_pad - Hg * Wg), (0, 0)))
    wt = wt.astype(jnp.bfloat16)

    kernel = functools.partial(
        _conv_layer_kernel, taps=taps, wg=Wg, wo=Wo, ho=Ho, norm=norm, act=act)

    operands = [xf, wt]
    in_specs = [
        pl.BlockSpec((None, m_pad, K), lambda n: (n, 0, 0)),        # per-sample slab
        pl.BlockSpec((taps * taps, K, Cout), lambda n: (0, 0, 0)),  # shared weights
    ]
    if not norm:
        operands.append(b.reshape(1, Cout).astype(jnp.float32))
        in_specs.append(pl.BlockSpec((1, Cout), lambda n: (0, 0)))

    out = pl.pallas_call(
        kernel,
        out_shape=jax.ShapeDtypeStruct((N, m_acc, Cout), out_dtype),
        grid_spec=pltpu.PrefetchScalarGridSpec(
            num_scalar_prefetch=0,
            grid=(N,),
            in_specs=in_specs,
            out_specs=pl.BlockSpec((None, m_acc, Cout), lambda n: (n, 0, 0)),
        ),
        compiler_params=pltpu.CompilerParams(dimension_semantics=("parallel",)),
    )(*operands)

    # (N, Ho*Wg, Cout) -> drop the Wg-Wo garbage columns -> NHWC
    return out.reshape(N, Ho, Wg, Cout)[:, :, :Wo, :]


# ----------------------------------------------------------------------------
# Parameter init (deterministic, synthetic) + full forward pass
# ----------------------------------------------------------------------------
_LAYER_CFG = [
    # (stride, norm, act)
    (2, False, "leaky"),     # conv1
    (2, True, "leaky"),      # conv2
    (2, True, "leaky"),      # conv3
    (1, True, "leaky"),      # conv4
    (1, False, "sigmoid"),   # conv5 + torch.sigmoid
]


def init_discriminator_params(key, in_channels=3, features=8):
    layer_defs = [
        (in_channels, features),
        (features, features * 2),
        (features * 2, features * 4),
        (features * 4, features * 8),
        (features * 8, 1),
    ]
    params = []
    for i, (cin, cout) in enumerate(layer_defs):
        kw_key, kb_key = jax.random.split(jax.random.fold_in(key, i))
        w = 0.05 * jax.random.normal(kw_key, (cout, cin, 4, 4), jnp.float32)
        b = 0.01 * jax.random.normal(kb_key, (cout,), jnp.float32)
        params.append((w, b))
    return params


@jax.jit
def discriminator_forward(x_nchw, params):
    x = jnp.transpose(x_nchw, (0, 2, 3, 1))     # NCHW -> NHWC (channels on lanes)
    n_layers = len(_LAYER_CFG)
    # TODO(synk): fuse conv3-conv5 (spatial <= 8x8) into one pallas_call with
    # VMEM-resident intermediates to remove two launches + HBM round trips.
    for i, ((w, b), (stride, norm, act)) in enumerate(zip(params, _LAYER_CFG)):
        last = i == n_layers - 1
        x = conv_block(x, w, b, stride=stride, norm=norm, act=act,
                       out_dtype=jnp.float32 if last else jnp.bfloat16)
    return jnp.transpose(x, (0, 3, 1, 2))       # back to NCHW


def _reference_forward(x_nchw, params):
    """Pure-JAX f32 reference matching the PyTorch module (sanity check)."""
    x = jnp.transpose(x_nchw, (0, 2, 3, 1)).astype(jnp.float32)
    for (w, b), (stride, norm, act) in zip(params, _LAYER_CFG):
        xp = jnp.pad(x, ((0, 0), (1, 1), (1, 1), (0, 0)), mode="reflect")
        y = jax.lax.conv_general_dilated(
            xp, jnp.transpose(w, (2, 3, 1, 0)).astype(jnp.float32),
            (stride, stride), "VALID",
            dimension_numbers=("NHWC", "HWIO", "NHWC"))
        y = y + b.reshape(1, 1, 1, -1)
        if norm:
            mean = jnp.mean(y, axis=(1, 2), keepdims=True)
            var = jnp.mean(jnp.square(y - mean), axis=(1, 2), keepdims=True)
            y = (y - mean) * jax.lax.rsqrt(var + 1e-5)
        x = jnp.where(y > 0, y, 0.2 * y) if act == "leaky" else jax.nn.sigmoid(y)
    return jnp.transpose(x, (0, 3, 1, 2))


if __name__ == "__main__":
    key = jax.random.PRNGKey(0)
    k_x, k_p = jax.random.split(key)

    # Small shapes consistent with the module: batch=2, in_channels=3,
    # spatial=32, features=8 (scaled-down analogue of the default 64).
    batch, in_channels, spatial, features = 2, 3, 32, 8
    x = jax.random.normal(k_x, (batch, in_channels, spatial, spatial), jnp.float32)
    params = init_discriminator_params(k_p, in_channels=in_channels, features=features)

    out = jax.block_until_ready(discriminator_forward(x, params))

    # 32 -> 16 -> 8 -> 4 -> 3 -> 2 spatially, 1 output channel.
    assert out.shape == (batch, 1, 2, 2), out.shape
    assert bool(jnp.all((out >= 0.0) & (out <= 1.0)))   # sigmoid range

    # bf16-matmul kernels vs. f32 pure-JAX reference of the same module.
    ref = _reference_forward(x, params)
    assert float(jnp.max(jnp.abs(out.astype(jnp.float32) - ref))) < 0.1

    print("KERNEL_OK")
</pallas_src>

<mosaic_0001>
module attributes {stable_mosaic.version = 11 : i64} {
  func.func @_conv_layer_kernel(%arg0: i32, %arg1: memref<1x296x12xbf16, #tpu.memory_space<vmem>>, %arg2: memref<4x12x8xbf16, #tpu.memory_space<vmem>>, %arg3: memref<1x8xf32, #tpu.memory_space<vmem>>, %arg4: memref<1x272x8xbf16, #tpu.memory_space<vmem>>) attributes {dimension_semantics = [#tpu.dimension_semantics<parallel>], iteration_bounds = array<i64: 2>, scalar_prefetch = 0 : i64, scratch_operands = 0 : i64, tpu.core_type = #tpu.core_type<tc>, window_params = [{transform_indices = @transform_0, window_bounds = array<i64: 1, 296, 12>}, {pipeline_mode = #tpu.pipeline_mode<synchronous>, transform_indices = @transform_1, window_bounds = array<i64: 4, 12, 8>}, {pipeline_mode = #tpu.pipeline_mode<synchronous>, transform_indices = @transform_2, window_bounds = array<i64: 1, 8>}, {transform_indices = @transform_3, window_bounds = array<i64: 1, 272, 8>}]} {
    %c0 = arith.constant 0 : index
    %c0_0 = arith.constant 0 : index
    %0 = vector.load %arg3[%c0, %c0_0] : memref<1x8xf32, #tpu.memory_space<vmem>>, vector<1x8xf32>
    %cst = arith.constant 0.000000e+00 : f32
    %1 = vector.broadcast %cst : f32 to vector<272x8xf32>
    %c0_1 = arith.constant 0 : index
    %c0_2 = arith.constant 0 : index
    %c0_3 = arith.constant 0 : index
    %2 = vector.load %arg1[%c0_1, %c0_2, %c0_3] : memref<1x296x12xbf16, #tpu.memory_space<vmem>>, vector<1x272x12xbf16>
    %3 = vector.shape_cast %2 : vector<1x272x12xbf16> to vector<272x12xbf16>
    %c0_4 = arith.constant 0 : index
    %c0_5 = arith.constant 0 : index
    %c0_6 = arith.constant 0 : index
    %4 = vector.load %arg2[%c0_4, %c0_5, %c0_6] : memref<4x12x8xbf16, #tpu.memory_space<vmem>>, vector<1x12x8xbf16>
    %5 = vector.shape_cast %4 : vector<1x12x8xbf16> to vector<12x8xbf16>
    %cst_7 = arith.constant dense<0.000000e+00> : vector<272x8xf32>
    %6 = tpu.matmul %3, %5, %cst_7 {dimension_numbers = #tpu.dot_dimension_numbers<[1], [0], [0], [1], [0, 0, 1, 1], [], []>} : vector<272x12xbf16>, vector<12x8xbf16>, vector<272x8xf32> -> vector<272x8xf32>
    %7 = arith.addf %1, %6 : vector<272x8xf32>
    %c0_8 = arith.constant 0 : index
    %c1 = arith.constant 1 : index
    %c0_9 = arith.constant 0 : index
    %8 = vector.load %arg1[%c0_8, %c1, %c0_9] : memref<1x296x12xbf16, #tpu.memory_space<vmem>>, vector<1x272x12xbf16>
    %9 = vector.shape_cast %8 : vector<1x272x12xbf16> to vector<272x12xbf16>
    %c1_10 = arith.constant 1 : index
    %c0_11 = arith.constant 0 : index
    %c0_12 = arith.constant 0 : index
    %10 = vector.load %arg2[%c1_10, %c0_11, %c0_12] : memref<4x12x8xbf16, #tpu.memory_space<vmem>>, vector<1x12x8xbf16>
    %11 = vector.shape_cast %10 : vector<1x12x8xbf16> to vector<12x8xbf16>
    %cst_13 = arith.constant dense<0.000000e+00> : vector<272x8xf32>
    %12 = tpu.matmul %9, %11, %cst_13 {dimension_numbers = #tpu.dot_dimension_numbers<[1], [0], [0], [1], [0, 0, 1, 1], [], []>} : vector<272x12xbf16>, vector<12x8xbf16>, vector<272x8xf32> -> vector<272x8xf32>
    %13 = arith.addf %7, %12 : vector<272x8xf32>
    %c0_14 = arith.constant 0 : index
    %c17 = arith.constant 17 : index
    %c0_15 = arith.constant 0 : index
    %14 = vector.load %arg1[%c0_14, %c17, %c0_15] : memref<1x296x12xbf16, #tpu.memory_space<vmem>>, vector<1x272x12xbf16>
    %15 = vector.shape_cast %14 : vector<1x272x12xbf16> to vector<272x12xbf16>
    %c2 = arith.constant 2 : index
    %c0_16 = arith.constant 0 : index
    %c0_17 = arith.constant 0 : index
    %16 = vector.load %arg2[%c2, %c0_16, %c0_17] : memref<4x12x8xbf16, #tpu.memory_space<vmem>>, vector<1x12x8xbf16>
    %17 = vector.shape_cast %16 : vector<1x12x8xbf16> to vector<12x8xbf16>
    %cst_18 = arith.constant dense<0.000000e+00> : vector<272x8xf32>
    %18 = tpu.matmul %15, %17, %cst_18 {dimension_numbers = #tpu.dot_dimension_numbers<[1], [0], [0], [1], [0, 0, 1, 1], [], []>} : vector<272x12xbf16>, vector<12x8xbf16>, vector<272x8xf32> -> vector<272x8xf32>
    %19 = arith.addf %13, %18 : vector<272x8xf32>
    %c0_19 = arith.constant 0 : index
    %c18 = arith.constant 18 : index
    %c0_20 = arith.constant 0 : index
    %20 = vector.load %arg1[%c0_19, %c18, %c0_20] : memref<1x296x12xbf16, #tpu.memory_space<vmem>>, vector<1x272x12xbf16>
    %21 = vector.shape_cast %20 : vector<1x272x12xbf16> to vector<272x12xbf16>
    %c3 = arith.constant 3 : index
    %c0_21 = arith.constant 0 : index
    %c0_22 = arith.constant 0 : index
    %22 = vector.load %arg2[%c3, %c0_21, %c0_22] : memref<4x12x8xbf16, #tpu.memory_space<vmem>>, vector<1x12x8xbf16>
    %23 = vector.shape_cast %22 : vector<1x12x8xbf16> to vector<12x8xbf16>
    %cst_23 = arith.constant dense<0.000000e+00> : vector<272x8xf32>
    %24 = tpu.matmul %21, %23, %cst_23 {dimension_numbers = #tpu.dot_dimension_numbers<[1], [0], [0], [1], [0, 0, 1, 1], [], []>} : vector<272x12xbf16>, vector<12x8xbf16>, vector<272x8xf32> -> vector<272x8xf32>
    %25 = arith.addf %19, %24 : vector<272x8xf32>
    %26 = vector.broadcast %0 : vector<1x8xf32> to vector<272x8xf32>
    %27 = arith.addf %25, %26 : vector<272x8xf32>
    %cst_24 = arith.constant 2.000000e-01 : f32
    %28 = vector.broadcast %cst_24 : f32 to vector<272x8xf32>
    %29 = arith.mulf %28, %27 : vector<272x8xf32>
    %30 = arith.maximumf %27, %29 : vector<272x8xf32>
    %31 = arith.truncf %30 : vector<272x8xf32> to vector<272x8xbf16>
    %c0_25 = arith.constant 0 : index
    %c0_26 = arith.constant 0 : index
    %c0_27 = arith.constant 0 : index
    %32 = vector.load %arg4[%c0_25, %c0_26, %c0_27] : memref<1x272x8xbf16, #tpu.memory_space<vmem>>, vector<1x272x8xbf16>
    %33 = vector.shape_cast %32 : vector<1x272x8xbf16> to vector<272x8xbf16>
    %34 = vector.shape_cast %31 : vector<272x8xbf16> to vector<1x272x8xbf16>
    tpu.vector_store %arg4[%c0_25, %c0_26, %c0_27], %34 {strides = array<i32>} : memref<1x272x8xbf16, #tpu.memory_space<vmem>>, vector<1x272x8xbf16>,
    return
  }
  func.func @transform_0(%arg0: i32) -> (i32, i32, i32) {
    %c0_i32 = arith.constant 0 : i32
    %c0_i32_0 = arith.constant 0 : i32
    %c0_i32_1 = arith.constant 0 : i32
    return %arg0, %c0_i32, %c0_i32_0 : i32, i32, i32
  }
  func.func @transform_1(%arg0: i32) -> (i32, i32, i32) {
    %c0_i32 = arith.constant 0 : i32
    %c0_i32_0 = arith.constant 0 : i32
    %c0_i32_1 = arith.constant 0 : i32
    %c0_i32_2 = arith.constant 0 : i32
    return %c0_i32, %c0_i32_0, %c0_i32_1 : i32, i32, i32
  }
  func.func @transform_2(%arg0: i32) -> (i32, i32) {
    %c0_i32 = arith.constant 0 : i32
    %c0_i32_0 = arith.constant 0 : i32
    %c0_i32_1 = arith.constant 0 : i32
    return %c0_i32, %c0_i32_0 : i32, i32
  }
  func.func @transform_3(%arg0: i32) -> (i32, i32, i32) {
    %c0_i32 = arith.constant 0 : i32
    %c0_i32_0 = arith.constant 0 : i32
    %c0_i32_1 = arith.constant 0 : i32
    return %arg0, %c0_i32, %c0_i32_0 : i32, i32, i32
  }
}

module attributes {stable_mosaic.version = 11 : i64} {
  func.func @_conv_layer_kernel(%arg0: i32, %arg1: memref<1x88x32xbf16, #tpu.memory_space<vmem>>, %arg2: memref<4x32x16xbf16, #tpu.memory_space<vmem>>, %arg3: memref<1x72x16xbf16, #tpu.memory_space<vmem>>) attributes {dimension_semantics = [#tpu.dimension_semantics<parallel>], iteration_bounds = array<i64: 2>, scalar_prefetch = 0 : i64, scratch_operands = 0 : i64, tpu.core_type = #tpu.core_type<tc>, window_params = [{transform_indices = @transform_0, window_bounds = array<i64: 1, 88, 32>}, {pipeline_mode = #tpu.pipeline_mode<synchronous>, transform_indices = @transform_1, window_bounds = array<i64: 4, 32, 16>}, {transform_indices = @transform_2, window_bounds = array<i64: 1, 72, 16>}]} {
    %cst = arith.constant 0.000000e+00 : f32
    %0 = vector.broadcast %cst : f32 to vector<72x16xf32>
    %c0 = arith.constant 0 : index
    %c0_0 = arith.constant 0 : index
    %c0_1 = arith.constant 0 : index
    %1 = vector.load %arg1[%c0, %c0_0, %c0_1] : memref<1x88x32xbf16, #tpu.memory_space<vmem>>, vector<1x72x32xbf16>
    %2 = vector.shape_cast %1 : vector<1x72x32xbf16> to vector<72x32xbf16>
    %c0_2 = arith.constant 0 : index
    %c0_3 = arith.constant 0 : index
    %c0_4 = arith.constant 0 : index
    %3 = vector.load %arg2[%c0_2, %c0_3, %c0_4] : memref<4x32x16xbf16, #tpu.memory_space<vmem>>, vector<1x32x16xbf16>
    %4 = vector.shape_cast %3 : vector<1x32x16xbf16> to vector<32x16xbf16>
    %cst_5 = arith.constant dense<0.000000e+00> : vector<72x16xf32>
    %5 = tpu.matmul %2, %4, %cst_5 {dimension_numbers = #tpu.dot_dimension_numbers<[1], [0], [0], [1], [0, 0, 1, 1], [], []>} : vector<72x32xbf16>, vector<32x16xbf16>, vector<72x16xf32> -> vector<72x16xf32>
    %6 = arith.addf %0, %5 : vector<72x16xf32>
    %c0_6 = arith.constant 0 : index
    %c1 = arith.constant 1 : index
    %c0_7 = arith.constant 0 : index
    %7 = vector.load %arg1[%c0_6, %c1, %c0_7] : memref<1x88x32xbf16, #tpu.memory_space<vmem>>, vector<1x72x32xbf16>
    %8 = vector.shape_cast %7 : vector<1x72x32xbf16> to vector<72x32xbf16>
    %c1_8 = arith.constant 1 : index
    %c0_9 = arith.constant 0 : index
    %c0_10 = arith.constant 0 : index
    %9 = vector.load %arg2[%c1_8, %c0_9, %c0_10] : memref<4x32x16xbf16, #tpu.memory_space<vmem>>, vector<1x32x16xbf16>
    %10 = vector.shape_cast %9 : vector<1x32x16xbf16> to vector<32x16xbf16>
    %cst_11 = arith.constant dense<0.000000e+00> : vector<72x16xf32>
    %11 = tpu.matmul %8, %10, %cst_11 {dimension_numbers = #tpu.dot_dimension_numbers<[1], [0], [0], [1], [0, 0, 1, 1], [], []>} : vector<72x32xbf16>, vector<32x16xbf16>, vector<72x16xf32> -> vector<72x16xf32>
    %12 = arith.addf %6, %11 : vector<72x16xf32>
    %c0_12 = arith.constant 0 : index
    %c9 = arith.constant 9 : index
    %c0_13 = arith.constant 0 : index
    %13 = vector.load %arg1[%c0_12, %c9, %c0_13] : memref<1x88x32xbf16, #tpu.memory_space<vmem>>, vector<1x72x32xbf16>
    %14 = vector.shape_cast %13 : vector<1x72x32xbf16> to vector<72x32xbf16>
    %c2 = arith.constant 2 : index
    %c0_14 = arith.constant 0 : index
    %c0_15 = arith.constant 0 : index
    %15 = vector.load %arg2[%c2, %c0_14, %c0_15] : memref<4x32x16xbf16, #tpu.memory_space<vmem>>, vector<1x32x16xbf16>
    %16 = vector.shape_cast %15 : vector<1x32x16xbf16> to vector<32x16xbf16>
    %cst_16 = arith.constant dense<0.000000e+00> : vector<72x16xf32>
    %17 = tpu.matmul %14, %16, %cst_16 {dimension_numbers = #tpu.dot_dimension_numbers<[1], [0], [0], [1], [0, 0, 1, 1], [], []>} : vector<72x32xbf16>, vector<32x16xbf16>, vector<72x16xf32> -> vector<72x16xf32>
    %18 = arith.addf %12, %17 : vector<72x16xf32>
    %c0_17 = arith.constant 0 : index
    %c10 = arith.constant 10 : index
    %c0_18 = arith.constant 0 : index
    %19 = vector.load %arg1[%c0_17, %c10, %c0_18] : memref<1x88x32xbf16, #tpu.memory_space<vmem>>, vector<1x72x32xbf16>
    %20 = vector.shape_cast %19 : vector<1x72x32xbf16> to vector<72x32xbf16>
    %c3 = arith.constant 3 : index
    %c0_19 = arith.constant 0 : index
    %c0_20 = arith.constant 0 : index
    %21 = vector.load %arg2[%c3, %c0_19, %c0_20] : memref<4x32x16xbf16, #tpu.memory_space<vmem>>, vector<1x32x16xbf16>
    %22 = vector.shape_cast %21 : vector<1x32x16xbf16> to vector<32x16xbf16>
    %cst_21 = arith.constant dense<0.000000e+00> : vector<72x16xf32>
    %23 = tpu.matmul %20, %22, %cst_21 {dimension_numbers = #tpu.dot_dimension_numbers<[1], [0], [0], [1], [0, 0, 1, 1], [], []>} : vector<72x32xbf16>, vector<32x16xbf16>, vector<72x16xf32> -> vector<72x16xf32>
    %24 = arith.addf %18, %23 : vector<72x16xf32>
    %25 = tpu.iota {dimensions = array<i32: 0>} : vector<72x1xi32>
    %c9_i32 = arith.constant 9 : i32
    %c0_i32 = arith.constant 0 : i32
    %26 = arith.cmpi eq, %c9_i32, %c0_i32 : i32
    %c1_i32 = arith.constant 1 : i32
    %27 = arith.select %26, %c1_i32, %c9_i32 : i32
    %28 = vector.broadcast %27 : i32 to vector<72x1xi32>
    %29 = arith.remsi %25, %28 : vector<72x1xi32>
    %c0_i32_22 = arith.constant 0 : i32
    %30 = vector.broadcast %c0_i32_22 : i32 to vector<72x1xi32>
    %31 = arith.cmpi ne, %29, %30 : vector<72x1xi32>
    %c0_i32_23 = arith.constant 0 : i32
    %32 = vector.broadcast %c0_i32_23 : i32 to vector<72x1xi32>
    %33 = arith.cmpi slt, %29, %32 : vector<72x1xi32>
    %c0_i32_24 = arith.constant 0 : i32
    %34 = arith.cmpi slt, %27, %c0_i32_24 : i32
    %35 = vector.broadcast %34 : i1 to vector<72x1xi1>
    %36 = vector.broadcast %35 : vector<72x1xi1> to vector<72x1xi1>
    %37 = arith.xori %33, %36 : vector<72x1xi1>
    %38 = arith.andi %37, %31 : vector<72x1xi1>
    %39 = vector.broadcast %27 : i32 to vector<72x1xi32>
    %40 = arith.addi %29, %39 : vector<72x1xi32>
    %41 = arith.select %38, %40, %29 : vector<72x1xi1>, vector<72x1xi32>
    %c8_i32 = arith.constant 8 : i32
    %42 = vector.broadcast %c8_i32 : i32 to vector<72x1xi32>
    %43 = arith.cmpi slt, %41, %42 : vector<72x1xi32>
    %cst_25 = arith.constant 0.000000e+00 : f32
    %44 = vector.shape_cast %43 : vector<72x1xi1> to vector<72x1xi1>
    %45 = vector.broadcast %44 : vector<72x1xi1> to vector<72x16xi1>
    %46 = vector.broadcast %cst_25 : f32 to vector<72x16xf32>
    %47 = arith.select %45, %24, %46 : vector<72x16xi1>, vector<72x16xf32>
    %cst_26 = arith.constant dense<0.000000e+00> : vector<16xf32>
    %48 = vector.multi_reduction <add>, %47, %cst_26 [0] : vector<72x16xf32> to vector<16xf32>
    %49 = vector.shape_cast %48 : vector<16xf32> to vector<1x16xf32>
    %cst_27 = arith.constant 1.562500e-02 : f32
    %50 = vector.broadcast %cst_27 : f32 to vector<1x16xf32>
    %51 = arith.mulf %49, %50 : vector<1x16xf32>
    %52 = vector.broadcast %51 : vector<1x16xf32> to vector<72x16xf32>
    %53 = arith.subf %24, %52 : vector<72x16xf32>
    %cst_28 = arith.constant 0.000000e+00 : f32
    %54 = vector.shape_cast %43 : vector<72x1xi1> to vector<72x1xi1>
    %55 = vector.broadcast %54 : vector<72x1xi1> to vector<72x16xi1>
    %56 = vector.broadcast %cst_28 : f32 to vector<72x16xf32>
    %57 = arith.select %55, %53, %56 : vector<72x16xi1>, vector<72x16xf32>
    %58 = arith.mulf %57, %57 : vector<72x16xf32>
    %cst_29 = arith.constant dense<0.000000e+00> : vector<16xf32>
    %59 = vector.multi_reduction <add>, %58, %cst_29 [0] : vector<72x16xf32> to vector<16xf32>
    %60 = vector.shape_cast %59 : vector<16xf32> to vector<1x16xf32>
    %cst_30 = arith.constant 1.562500e-02 : f32
    %61 = vector.broadcast %cst_30 : f32 to vector<1x16xf32>
    %62 = arith.mulf %60, %61 : vector<1x16xf32>
    %63 = vector.broadcast %51 : vector<1x16xf32> to vector<72x16xf32>
    %64 = arith.subf %24, %63 : vector<72x16xf32>
    %cst_31 = arith.constant 9.99999974E-6 : f32
    %65 = vector.broadcast %cst_31 : f32 to vector<1x16xf32>
    %66 = arith.addf %62, %65 : vector<1x16xf32>
    %67 = math.rsqrt %66 : vector<1x16xf32>
    %68 = vector.broadcast %67 : vector<1x16xf32> to vector<72x16xf32>
    %69 = arith.mulf %64, %68 : vector<72x16xf32>
    %cst_32 = arith.constant 2.000000e-01 : f32
    %70 = vector.broadcast %cst_32 : f32 to vector<72x16xf32>
    %71 = arith.mulf %70, %69 : vector<72x16xf32>
    %72 = arith.maximumf %69, %71 : vector<72x16xf32>
    %73 = arith.truncf %72 : vector<72x16xf32> to vector<72x16xbf16>
    %c0_33 = arith.constant 0 : index
    %c0_34 = arith.constant 0 : index
    %c0_35 = arith.constant 0 : index
    %74 = vector.load %arg3[%c0_33, %c0_34, %c0_35] : memref<1x72x16xbf16, #tpu.memory_space<vmem>>, vector<1x72x16xbf16>
    %75 = vector.shape_cast %74 : vector<1x72x16xbf16> to vector<72x16xbf16>
    %76 = vector.shape_cast %73 : vector<72x16xbf16> to vector<1x72x16xbf16>
    tpu.vector_store %arg3[%c0_33, %c0_34, %c0_35], %76 {strides = array<i32>} : memref<1x72x16xbf16, #tpu.memory_space<vmem>>, vector<1x72x16xbf16>,
    return
  }
  func.func @transform_0(%arg0: i32) -> (i32, i32, i32) {
    %c0_i32 = arith.constant 0 : i32
    %c0_i32_0 = arith.constant 0 : i32
    %c0_i32_1 = arith.constant 0 : i32
    return %arg0, %c0_i32, %c0_i32_0 : i32, i32, i32
  }
  func.func @transform_1(%arg0: i32) -> (i32, i32, i32) {
    %c0_i32 = arith.constant 0 : i32
    %c0_i32_0 = arith.constant 0 : i32
    %c0_i32_1 = arith.constant 0 : i32
    %c0_i32_2 = arith.constant 0 : i32
    return %c0_i32, %c0_i32_0, %c0_i32_1 : i32, i32, i32
  }
  func.func @transform_2(%arg0: i32) -> (i32, i32, i32) {
    %c0_i32 = arith.constant 0 : i32
    %c0_i32_0 = arith.constant 0 : i32
    %c0_i32_1 = arith.constant 0 : i32
    return %arg0, %c0_i32, %c0_i32_0 : i32, i32, i32
  }
}

module attributes {stable_mosaic.version = 11 : i64} {
  func.func @_conv_layer_kernel(%arg0: i32, %arg1: memref<1x32x64xbf16, #tpu.memory_space<vmem>>, %arg2: memref<4x64x32xbf16, #tpu.memory_space<vmem>>, %arg3: memref<1x20x32xbf16, #tpu.memory_space<vmem>>) attributes {dimension_semantics = [#tpu.dimension_semantics<parallel>], iteration_bounds = array<i64: 2>, scalar_prefetch = 0 : i64, scratch_operands = 0 : i64, tpu.core_type = #tpu.core_type<tc>, window_params = [{transform_indices = @transform_0, window_bounds = array<i64: 1, 32, 64>}, {pipeline_mode = #tpu.pipeline_mode<synchronous>, transform_indices = @transform_1, window_bounds = array<i64: 4, 64, 32>}, {transform_indices = @transform_2, window_bounds = array<i64: 1, 20, 32>}]} {
    %cst = arith.constant 0.000000e+00 : f32
    %0 = vector.broadcast %cst : f32 to vector<20x32xf32>
    %c0 = arith.constant 0 : index
    %c0_0 = arith.constant 0 : index
    %c0_1 = arith.constant 0 : index
    %1 = vector.load %arg1[%c0, %c0_0, %c0_1] : memref<1x32x64xbf16, #tpu.memory_space<vmem>>, vector<1x20x64xbf16>
    %2 = vector.shape_cast %1 : vector<1x20x64xbf16> to vector<20x64xbf16>
    %c0_2 = arith.constant 0 : index
    %c0_3 = arith.constant 0 : index
    %c0_4 = arith.constant 0 : index
    %3 = vector.load %arg2[%c0_2, %c0_3, %c0_4] : memref<4x64x32xbf16, #tpu.memory_space<vmem>>, vector<1x64x32xbf16>
    %4 = vector.shape_cast %3 : vector<1x64x32xbf16> to vector<64x32xbf16>
    %cst_5 = arith.constant dense<0.000000e+00> : vector<20x32xf32>
    %5 = tpu.matmul %2, %4, %cst_5 {dimension_numbers = #tpu.dot_dimension_numbers<[1], [0], [0], [1], [0, 0, 1, 1], [], []>} : vector<20x64xbf16>, vector<64x32xbf16>, vector<20x32xf32> -> vector<20x32xf32>
    %6 = arith.addf %0, %5 : vector<20x32xf32>
    %c0_6 = arith.constant 0 : index
    %c1 = arith.constant 1 : index
    %c0_7 = arith.constant 0 : index
    %7 = vector.load %arg1[%c0_6, %c1, %c0_7] : memref<1x32x64xbf16, #tpu.memory_space<vmem>>, vector<1x20x64xbf16>
    %8 = vector.shape_cast %7 : vector<1x20x64xbf16> to vector<20x64xbf16>
    %c1_8 = arith.constant 1 : index
    %c0_9 = arith.constant 0 : index
    %c0_10 = arith.constant 0 : index
    %9 = vector.load %arg2[%c1_8, %c0_9, %c0_10] : memref<4x64x32xbf16, #tpu.memory_space<vmem>>, vector<1x64x32xbf16>
    %10 = vector.shape_cast %9 : vector<1x64x32xbf16> to vector<64x32xbf16>
    %cst_11 = arith.constant dense<0.000000e+00> : vector<20x32xf32>
    %11 = tpu.matmul %8, %10, %cst_11 {dimension_numbers = #tpu.dot_dimension_numbers<[1], [0], [0], [1], [0, 0, 1, 1], [], []>} : vector<20x64xbf16>, vector<64x32xbf16>, vector<20x32xf32> -> vector<20x32xf32>
    %12 = arith.addf %6, %11 : vector<20x32xf32>
    %c0_12 = arith.constant 0 : index
    %c5 = arith.constant 5 : index
    %c0_13 = arith.constant 0 : index
    %13 = vector.load %arg1[%c0_12, %c5, %c0_13] : memref<1x32x64xbf16, #tpu.memory_space<vmem>>, vector<1x20x64xbf16>
    %14 = vector.shape_cast %13 : vector<1x20x64xbf16> to vector<20x64xbf16>
    %c2 = arith.constant 2 : index
    %c0_14 = arith.constant 0 : index
    %c0_15 = arith.constant 0 : index
    %15 = vector.load %arg2[%c2, %c0_14, %c0_15] : memref<4x64x32xbf16, #tpu.memory_space<vmem>>, vector<1x64x32xbf16>
    %16 = vector.shape_cast %15 : vector<1x64x32xbf16> to vector<64x32xbf16>
    %cst_16 = arith.constant dense<0.000000e+00> : vector<20x32xf32>
    %17 = tpu.matmul %14, %16, %cst_16 {dimension_numbers = #tpu.dot_dimension_numbers<[1], [0], [0], [1], [0, 0, 1, 1], [], []>} : vector<20x64xbf16>, vector<64x32xbf16>, vector<20x32xf32> -> vector<20x32xf32>
    %18 = arith.addf %12, %17 : vector<20x32xf32>
    %c0_17 = arith.constant 0 : index
    %c6 = arith.constant 6 : index
    %c0_18 = arith.constant 0 : index
    %19 = vector.load %arg1[%c0_17, %c6, %c0_18] : memref<1x32x64xbf16, #tpu.memory_space<vmem>>, vector<1x20x64xbf16>
    %20 = vector.shape_cast %19 : vector<1x20x64xbf16> to vector<20x64xbf16>
    %c3 = arith.constant 3 : index
    %c0_19 = arith.constant 0 : index
    %c0_20 = arith.constant 0 : index
    %21 = vector.load %arg2[%c3, %c0_19, %c0_20] : memref<4x64x32xbf16, #tpu.memory_space<vmem>>, vector<1x64x32xbf16>
    %22 = vector.shape_cast %21 : vector<1x64x32xbf16> to vector<64x32xbf16>
    %cst_21 = arith.constant dense<0.000000e+00> : vector<20x32xf32>
    %23 = tpu.matmul %20, %22, %cst_21 {dimension_numbers = #tpu.dot_dimension_numbers<[1], [0], [0], [1], [0, 0, 1, 1], [], []>} : vector<20x64xbf16>, vector<64x32xbf16>, vector<20x32xf32> -> vector<20x32xf32>
    %24 = arith.addf %18, %23 : vector<20x32xf32>
    %25 = tpu.iota {dimensions = array<i32: 0>} : vector<20x1xi32>
    %c5_i32 = arith.constant 5 : i32
    %c0_i32 = arith.constant 0 : i32
    %26 = arith.cmpi eq, %c5_i32, %c0_i32 : i32
    %c1_i32 = arith.constant 1 : i32
    %27 = arith.select %26, %c1_i32, %c5_i32 : i32
    %28 = vector.broadcast %27 : i32 to vector<20x1xi32>
    %29 = arith.remsi %25, %28 : vector<20x1xi32>
    %c0_i32_22 = arith.constant 0 : i32
    %30 = vector.broadcast %c0_i32_22 : i32 to vector<20x1xi32>
    %31 = arith.cmpi ne, %29, %30 : vector<20x1xi32>
    %c0_i32_23 = arith.constant 0 : i32
    %32 = vector.broadcast %c0_i32_23 : i32 to vector<20x1xi32>
    %33 = arith.cmpi slt, %29, %32 : vector<20x1xi32>
    %c0_i32_24 = arith.constant 0 : i32
    %34 = arith.cmpi slt, %27, %c0_i32_24 : i32
    %35 = vector.broadcast %34 : i1 to vector<20x1xi1>
    %36 = vector.broadcast %35 : vector<20x1xi1> to vector<20x1xi1>
    %37 = arith.xori %33, %36 : vector<20x1xi1>
    %38 = arith.andi %37, %31 : vector<20x1xi1>
    %39 = vector.broadcast %27 : i32 to vector<20x1xi32>
    %40 = arith.addi %29, %39 : vector<20x1xi32>
    %41 = arith.select %38, %40, %29 : vector<20x1xi1>, vector<20x1xi32>
    %c4_i32 = arith.constant 4 : i32
    %42 = vector.broadcast %c4_i32 : i32 to vector<20x1xi32>
    %43 = arith.cmpi slt, %41, %42 : vector<20x1xi32>
    %cst_25 = arith.constant 0.000000e+00 : f32
    %44 = vector.shape_cast %43 : vector<20x1xi1> to vector<20x1xi1>
    %45 = vector.broadcast %44 : vector<20x1xi1> to vector<20x32xi1>
    %46 = vector.broadcast %cst_25 : f32 to vector<20x32xf32>
    %47 = arith.select %45, %24, %46 : vector<20x32xi1>, vector<20x32xf32>
    %cst_26 = arith.constant dense<0.000000e+00> : vector<32xf32>
    %48 = vector.multi_reduction <add>, %47, %cst_26 [0] : vector<20x32xf32> to vector<32xf32>
    %49 = vector.shape_cast %48 : vector<32xf32> to vector<1x32xf32>
    %cst_27 = arith.constant 6.250000e-02 : f32
    %50 = vector.broadcast %cst_27 : f32 to vector<1x32xf32>
    %51 = arith.mulf %49, %50 : vector<1x32xf32>
    %52 = vector.broadcast %51 : vector<1x32xf32> to vector<20x32xf32>
    %53 = arith.subf %24, %52 : vector<20x32xf32>
    %cst_28 = arith.constant 0.000000e+00 : f32
    %54 = vector.shape_cast %43 : vector<20x1xi1> to vector<20x1xi1>
    %55 = vector.broadcast %54 : vector<20x1xi1> to vector<20x32xi1>
    %56 = vector.broadcast %cst_28 : f32 to vector<20x32xf32>
    %57 = arith.select %55, %53, %56 : vector<20x32xi1>, vector<20x32xf32>
    %58 = arith.mulf %57, %57 : vector<20x32xf32>
    %cst_29 = arith.constant dense<0.000000e+00> : vector<32xf32>
    %59 = vector.multi_reduction <add>, %58, %cst_29 [0] : vector<20x32xf32> to vector<32xf32>
    %60 = vector.shape_cast %59 : vector<32xf32> to vector<1x32xf32>
    %cst_30 = arith.constant 6.250000e-02 : f32
    %61 = vector.broadcast %cst_30 : f32 to vector<1x32xf32>
    %62 = arith.mulf %60, %61 : vector<1x32xf32>
    %63 = vector.broadcast %51 : vector<1x32xf32> to vector<20x32xf32>
    %64 = arith.subf %24, %63 : vector<20x32xf32>
    %cst_31 = arith.constant 9.99999974E-6 : f32
    %65 = vector.broadcast %cst_31 : f32 to vector<1x32xf32>
    %66 = arith.addf %62, %65 : vector<1x32xf32>
    %67 = math.rsqrt %66 : vector<1x32xf32>
    %68 = vector.broadcast %67 : vector<1x32xf32> to vector<20x32xf32>
    %69 = arith.mulf %64, %68 : vector<20x32xf32>
    %cst_32 = arith.constant 2.000000e-01 : f32
    %70 = vector.broadcast %cst_32 : f32 to vector<20x32xf32>
    %71 = arith.mulf %70, %69 : vector<20x32xf32>
    %72 = arith.maximumf %69, %71 : vector<20x32xf32>
    %73 = arith.truncf %72 : vector<20x32xf32> to vector<20x32xbf16>
    %c0_33 = arith.constant 0 : index
    %c0_34 = arith.constant 0 : index
    %c0_35 = arith.constant 0 : index
    %74 = vector.load %arg3[%c0_33, %c0_34, %c0_35] : memref<1x20x32xbf16, #tpu.memory_space<vmem>>, vector<1x20x32xbf16>
    %75 = vector.shape_cast %74 : vector<1x20x32xbf16> to vector<20x32xbf16>
    %76 = vector.shape_cast %73 : vector<20x32xbf16> to vector<1x20x32xbf16>
    tpu.vector_store %arg3[%c0_33, %c0_34, %c0_35], %76 {strides = array<i32>} : memref<1x20x32xbf16, #tpu.memory_space<vmem>>, vector<1x20x32xbf16>,
    return
  }
  func.func @transform_0(%arg0: i32) -> (i32, i32, i32) {
    %c0_i32 = arith.constant 0 : i32
    %c0_i32_0 = arith.constant 0 : i32
    %c0_i32_1 = arith.constant 0 : i32
    return %arg0, %c0_i32, %c0_i32_0 : i32, i32, i32
  }
  func.func @transform_1(%arg0: i32) -> (i32, i32, i32) {
    %c0_i32 = arith.constant 0 : i32
    %c0_i32_0 = arith.constant 0 : i32
    %c0_i32_1 = arith.constant 0 : i32
    %c0_i32_2 = arith.constant 0 : i32
    return %c0_i32, %c0_i32_0, %c0_i32_1 : i32, i32, i32
  }
  func.func @transform_2(%arg0: i32) -> (i32, i32, i32) {
    %c0_i32 = arith.constant 0 : i32
    %c0_i32_0 = arith.constant 0 : i32
    %c0_i32_1 = arith.constant 0 : i32
    return %arg0, %c0_i32, %c0_i32_0 : i32, i32, i32
  }
}

module attributes {stable_mosaic.version = 11 : i64} {
  func.func @_conv_layer_kernel(%arg0: i32, %arg1: memref<1x40x32xbf16, #tpu.memory_space<vmem>>, %arg2: memref<16x32x64xbf16, #tpu.memory_space<vmem>>, %arg3: memref<1x18x64xbf16, #tpu.memory_space<vmem>>) attributes {dimension_semantics = [#tpu.dimension_semantics<parallel>], iteration_bounds = array<i64: 2>, scalar_prefetch = 0 : i64, scratch_operands = 0 : i64, tpu.core_type = #tpu.core_type<tc>, window_params = [{transform_indices = @transform_0, window_bounds = array<i64: 1, 40, 32>}, {pipeline_mode = #tpu.pipeline_mode<synchronous>, transform_indices = @transform_1, window_bounds = array<i64: 16, 32, 64>}, {transform_indices = @transform_2, window_bounds = array<i64: 1, 18, 64>}]} {
    %cst = arith.constant 0.000000e+00 : f32
    %0 = vector.broadcast %cst : f32 to vector<18x64xf32>
    %c0 = arith.constant 0 : index
    %c0_0 = arith.constant 0 : index
    %c0_1 = arith.constant 0 : index
    %1 = vector.load %arg1[%c0, %c0_0, %c0_1] : memref<1x40x32xbf16, #tpu.memory_space<vmem>>, vector<1x18x32xbf16>
    %2 = vector.shape_cast %1 : vector<1x18x32xbf16> to vector<18x32xbf16>
    %c0_2 = arith.constant 0 : index
    %c0_3 = arith.constant 0 : index
    %c0_4 = arith.constant 0 : index
    %3 = vector.load %arg2[%c0_2, %c0_3, %c0_4] : memref<16x32x64xbf16, #tpu.memory_space<vmem>>, vector<1x32x64xbf16>
    %4 = vector.shape_cast %3 : vector<1x32x64xbf16> to vector<32x64xbf16>
    %cst_5 = arith.constant dense<0.000000e+00> : vector<18x64xf32>
    %5 = tpu.matmul %2, %4, %cst_5 {dimension_numbers = #tpu.dot_dimension_numbers<[1], [0], [0], [1], [0, 0, 1, 1], [], []>} : vector<18x32xbf16>, vector<32x64xbf16>, vector<18x64xf32> -> vector<18x64xf32>
    %6 = arith.addf %0, %5 : vector<18x64xf32>
    %c0_6 = arith.constant 0 : index
    %c1 = arith.constant 1 : index
    %c0_7 = arith.constant 0 : index
    %7 = vector.load %arg1[%c0_6, %c1, %c0_7] : memref<1x40x32xbf16, #tpu.memory_space<vmem>>, vector<1x18x32xbf16>
    %8 = vector.shape_cast %7 : vector<1x18x32xbf16> to vector<18x32xbf16>
    %c1_8 = arith.constant 1 : index
    %c0_9 = arith.constant 0 : index
    %c0_10 = arith.constant 0 : index
    %9 = vector.load %arg2[%c1_8, %c0_9, %c0_10] : memref<16x32x64xbf16, #tpu.memory_space<vmem>>, vector<1x32x64xbf16>
    %10 = vector.shape_cast %9 : vector<1x32x64xbf16> to vector<32x64xbf16>
    %cst_11 = arith.constant dense<0.000000e+00> : vector<18x64xf32>
    %11 = tpu.matmul %8, %10, %cst_11 {dimension_numbers = #tpu.dot_dimension_numbers<[1], [0], [0], [1], [0, 0, 1, 1], [], []>} : vector<18x32xbf16>, vector<32x64xbf16>, vector<18x64xf32> -> vector<18x64xf32>
    %12 = arith.addf %6, %11 : vector<18x64xf32>
    %c0_12 = arith.constant 0 : index
    %c2 = arith.constant 2 : index
    %c0_13 = arith.constant 0 : index
    %13 = vector.load %arg1[%c0_12, %c2, %c0_13] : memref<1x40x32xbf16, #tpu.memory_space<vmem>>, vector<1x18x32xbf16>
    %14 = vector.shape_cast %13 : vector<1x18x32xbf16> to vector<18x32xbf16>
    %c2_14 = arith.constant 2 : index
    %c0_15 = arith.constant 0 : index
    %c0_16 = arith.constant 0 : index
    %15 = vector.load %arg2[%c2_14, %c0_15, %c0_16] : memref<16x32x64xbf16, #tpu.memory_space<vmem>>, vector<1x32x64xbf16>
    %16 = vector.shape_cast %15 : vector<1x32x64xbf16> to vector<32x64xbf16>
    %cst_17 = arith.constant dense<0.000000e+00> : vector<18x64xf32>
    %17 = tpu.matmul %14, %16, %cst_17 {dimension_numbers = #tpu.dot_dimension_numbers<[1], [0], [0], [1], [0, 0, 1, 1], [], []>} : vector<18x32xbf16>, vector<32x64xbf16>, vector<18x64xf32> -> vector<18x64xf32>
    %18 = arith.addf %12, %17 : vector<18x64xf32>
    %c0_18 = arith.constant 0 : index
    %c3 = arith.constant 3 : index
    %c0_19 = arith.constant 0 : index
    %19 = vector.load %arg1[%c0_18, %c3, %c0_19] : memref<1x40x32xbf16, #tpu.memory_space<vmem>>, vector<1x18x32xbf16>
    %20 = vector.shape_cast %19 : vector<1x18x32xbf16> to vector<18x32xbf16>
    %c3_20 = arith.constant 3 : index
    %c0_21 = arith.constant 0 : index
    %c0_22 = arith.constant 0 : index
    %21 = vector.load %arg2[%c3_20, %c0_21, %c0_22] : memref<16x32x64xbf16, #tpu.memory_space<vmem>>, vector<1x32x64xbf16>
    %22 = vector.shape_cast %21 : vector<1x32x64xbf16> to vector<32x64xbf16>
    %cst_23 = arith.constant dense<0.000000e+00> : vector<18x64xf32>
    %23 = tpu.matmul %20, %22, %cst_23 {dimension_numbers = #tpu.dot_dimension_numbers<[1], [0], [0], [1], [0, 0, 1, 1], [], []>} : vector<18x32xbf16>, vector<32x64xbf16>, vector<18x64xf32> -> vector<18x64xf32>
    %24 = arith.addf %18, %23 : vector<18x64xf32>
    %c0_24 = arith.constant 0 : index
    %c6 = arith.constant 6 : index
    %c0_25 = arith.constant 0 : index
    %25 = vector.load %arg1[%c0_24, %c6, %c0_25] : memref<1x40x32xbf16, #tpu.memory_space<vmem>>, vector<1x18x32xbf16>
    %26 = vector.shape_cast %25 : vector<1x18x32xbf16> to vector<18x32xbf16>
    %c4 = arith.constant 4 : index
    %c0_26 = arith.constant 0 : index
    %c0_27 = arith.constant 0 : index
    %27 = vector.load %arg2[%c4, %c0_26, %c0_27] : memref<16x32x64xbf16, #tpu.memory_space<vmem>>, vector<1x32x64xbf16>
    %28 = vector.shape_cast %27 : vector<1x32x64xbf16> to vector<32x64xbf16>
    %cst_28 = arith.constant dense<0.000000e+00> : vector<18x64xf32>
    %29 = tpu.matmul %26, %28, %cst_28 {dimension_numbers = #tpu.dot_dimension_numbers<[1], [0], [0], [1], [0, 0, 1, 1], [], []>} : vector<18x32xbf16>, vector<32x64xbf16>, vector<18x64xf32> -> vector<18x64xf32>
    %30 = arith.addf %24, %29 : vector<18x64xf32>
    %c0_29 = arith.constant 0 : index
    %c7 = arith.constant 7 : index
    %c0_30 = arith.constant 0 : index
    %31 = vector.load %arg1[%c0_29, %c7, %c0_30] : memref<1x40x32xbf16, #tpu.memory_space<vmem>>, vector<1x18x32xbf16>
    %32 = vector.shape_cast %31 : vector<1x18x32xbf16> to vector<18x32xbf16>
    %c5 = arith.constant 5 : index
    %c0_31 = arith.constant 0 : index
    %c0_32 = arith.constant 0 : index
    %33 = vector.load %arg2[%c5, %c0_31, %c0_32] : memref<16x32x64xbf16, #tpu.memory_space<vmem>>, vector<1x32x64xbf16>
    %34 = vector.shape_cast %33 : vector<1x32x64xbf16> to vector<32x64xbf16>
    %cst_33 = arith.constant dense<0.000000e+00> : vector<18x64xf32>
    %35 = tpu.matmul %32, %34, %cst_33 {dimension_numbers = #tpu.dot_dimension_numbers<[1], [0], [0], [1], [0, 0, 1, 1], [], []>} : vector<18x32xbf16>, vector<32x64xbf16>, vector<18x64xf32> -> vector<18x64xf32>
    %36 = arith.addf %30, %35 : vector<18x64xf32>
    %c0_34 = arith.constant 0 : index
    %c8 = arith.constant 8 : index
    %c0_35 = arith.constant 0 : index
    %37 = vector.load %arg1[%c0_34, %c8, %c0_35] : memref<1x40x32xbf16, #tpu.memory_space<vmem>>, vector<1x18x32xbf16>
    %38 = vector.shape_cast %37 : vector<1x18x32xbf16> to vector<18x32xbf16>
    %c6_36 = arith.constant 6 : index
    %c0_37 = arith.constant 0 : index
    %c0_38 = arith.constant 0 : index
    %39 = vector.load %arg2[%c6_36, %c0_37, %c0_38] : memref<16x32x64xbf16, #tpu.memory_space<vmem>>, vector<1x32x64xbf16>
    %40 = vector.shape_cast %39 : vector<1x32x64xbf16> to vector<32x64xbf16>
    %cst_39 = arith.constant dense<0.000000e+00> : vector<18x64xf32>
    %41 = tpu.matmul %38, %40, %cst_39 {dimension_numbers = #tpu.dot_dimension_numbers<[1], [0], [0], [1], [0, 0, 1, 1], [], []>} : vector<18x32xbf16>, vector<32x64xbf16>, vector<18x64xf32> -> vector<18x64xf32>
    %42 = arith.addf %36, %41 : vector<18x64xf32>
    %c0_40 = arith.constant 0 : index
    %c9 = arith.constant 9 : index
    %c0_41 = arith.constant 0 : index
    %43 = vector.load %arg1[%c0_40, %c9, %c0_41] : memref<1x40x32xbf16, #tpu.memory_space<vmem>>, vector<1x18x32xbf16>
    %44 = vector.shape_cast %43 : vector<1x18x32xbf16> to vector<18x32xbf16>
    %c7_42 = arith.constant 7 : index
    %c0_43 = arith.constant 0 : index
    %c0_44 = arith.constant 0 : index
    %45 = vector.load %arg2[%c7_42, %c0_43, %c0_44] : memref<16x32x64xbf16, #tpu.memory_space<vmem>>, vector<1x32x64xbf16>
    %46 = vector.shape_cast %45 : vector<1x32x64xbf16> to vector<32x64xbf16>
    %cst_45 = arith.constant dense<0.000000e+00> : vector<18x64xf32>
    %47 = tpu.matmul %44, %46, %cst_45 {dimension_numbers = #tpu.dot_dimension_numbers<[1], [0], [0], [1], [0, 0, 1, 1], [], []>} : vector<18x32xbf16>, vector<32x64xbf16>, vector<18x64xf32> -> vector<18x64xf32>
    %48 = arith.addf %42, %47 : vector<18x64xf32>
    %c0_46 = arith.constant 0 : index
    %c12 = arith.constant 12 : index
    %c0_47 = arith.constant 0 : index
    %49 = vector.load %arg1[%c0_46, %c12, %c0_47] : memref<1x40x32xbf16, #tpu.memory_space<vmem>>, vector<1x18x32xbf16>
    %50 = vector.shape_cast %49 : vector<1x18x32xbf16> to vector<18x32xbf16>
    %c8_48 = arith.constant 8 : index
    %c0_49 = arith.constant 0 : index
    %c0_50 = arith.constant 0 : index
    %51 = vector.load %arg2[%c8_48, %c0_49, %c0_50] : memref<16x32x64xbf16, #tpu.memory_space<vmem>>, vector<1x32x64xbf16>
    %52 = vector.shape_cast %51 : vector<1x32x64xbf16> to vector<32x64xbf16>
    %cst_51 = arith.constant dense<0.000000e+00> : vector<18x64xf32>
    %53 = tpu.matmul %50, %52, %cst_51 {dimension_numbers = #tpu.dot_dimension_numbers<[1], [0], [0], [1], [0, 0, 1, 1], [], []>} : vector<18x32xbf16>, vector<32x64xbf16>, vector<18x64xf32> -> vector<18x64xf32>
    %54 = arith.addf %48, %53 : vector<18x64xf32>
    %c0_52 = arith.constant 0 : index
    %c13 = arith.constant 13 : index
    %c0_53 = arith.constant 0 : index
    %55 = vector.load %arg1[%c0_52, %c13, %c0_53] : memref<1x40x32xbf16, #tpu.memory_space<vmem>>, vector<1x18x32xbf16>
    %56 = vector.shape_cast %55 : vector<1x18x32xbf16> to vector<18x32xbf16>
    %c9_54 = arith.constant 9 : index
    %c0_55 = arith.constant 0 : index
    %c0_56 = arith.constant 0 : index
    %57 = vector.load %arg2[%c9_54, %c0_55, %c0_56] : memref<16x32x64xbf16, #tpu.memory_space<vmem>>, vector<1x32x64xbf16>
    %58 = vector.shape_cast %57 : vector<1x32x64xbf16> to vector<32x64xbf16>
    %cst_57 = arith.constant dense<0.000000e+00> : vector<18x64xf32>
    %59 = tpu.matmul %56, %58, %cst_57 {dimension_numbers = #tpu.dot_dimension_numbers<[1], [0], [0], [1], [0, 0, 1, 1], [], []>} : vector<18x32xbf16>, vector<32x64xbf16>, vector<18x64xf32> -> vector<18x64xf32>
    %60 = arith.addf %54, %59 : vector<18x64xf32>
    %c0_58 = arith.constant 0 : index
    %c14 = arith.constant 14 : index
    %c0_59 = arith.constant 0 : index
    %61 = vector.load %arg1[%c0_58, %c14, %c0_59] : memref<1x40x32xbf16, #tpu.memory_space<vmem>>, vector<1x18x32xbf16>
    %62 = vector.shape_cast %61 : vector<1x18x32xbf16> to vector<18x32xbf16>
    %c10 = arith.constant 10 : index
    %c0_60 = arith.constant 0 : index
    %c0_61 = arith.constant 0 : index
    %63 = vector.load %arg2[%c10, %c0_60, %c0_61] : memref<16x32x64xbf16, #tpu.memory_space<vmem>>, vector<1x32x64xbf16>
    %64 = vector.shape_cast %63 : vector<1x32x64xbf16> to vector<32x64xbf16>
    %cst_62 = arith.constant dense<0.000000e+00> : vector<18x64xf32>
    %65 = tpu.matmul %62, %64, %cst_62 {dimension_numbers = #tpu.dot_dimension_numbers<[1], [0], [0], [1], [0, 0, 1, 1], [], []>} : vector<18x32xbf16>, vector<32x64xbf16>, vector<18x64xf32> -> vector<18x64xf32>
    %66 = arith.addf %60, %65 : vector<18x64xf32>
    %c0_63 = arith.constant 0 : index
    %c15 = arith.constant 15 : index
    %c0_64 = arith.constant 0 : index
    %67 = vector.load %arg1[%c0_63, %c15, %c0_64] : memref<1x40x32xbf16, #tpu.memory_space<vmem>>, vector<1x18x32xbf16>
    %68 = vector.shape_cast %67 : vector<1x18x32xbf16> to vector<18x32xbf16>
    %c11 = arith.constant 11 : index
    %c0_65 = arith.constant 0 : index
    %c0_66 = arith.constant 0 : index
    %69 = vector.load %arg2[%c11, %c0_65, %c0_66] : memref<16x32x64xbf16, #tpu.memory_space<vmem>>, vector<1x32x64xbf16>
    %70 = vector.shape_cast %69 : vector<1x32x64xbf16> to vector<32x64xbf16>
    %cst_67 = arith.constant dense<0.000000e+00> : vector<18x64xf32>
    %71 = tpu.matmul %68, %70, %cst_67 {dimension_numbers = #tpu.dot_dimension_numbers<[1], [0], [0], [1], [0, 0, 1, 1], [], []>} : vector<18x32xbf16>, vector<32x64xbf16>, vector<18x64xf32> -> vector<18x64xf32>
    %72 = arith.addf %66, %71 : vector<18x64xf32>
    %c0_68 = arith.constant 0 : index
    %c18 = arith.constant 18 : index
    %c0_69 = arith.constant 0 : index
    %73 = vector.load %arg1[%c0_68, %c18, %c0_69] : memref<1x40x32xbf16, #tpu.memory_space<vmem>>, vector<1x18x32xbf16>
    %74 = vector.shape_cast %73 : vector<1x18x32xbf16> to vector<18x32xbf16>
    %c12_70 = arith.constant 12 : index
    %c0_71 = arith.constant 0 : index
    %c0_72 = arith.constant 0 : index
    %75 = vector.load %arg2[%c12_70, %c0_71, %c0_72] : memref<16x32x64xbf16, #tpu.memory_space<vmem>>, vector<1x32x64xbf16>
    %76 = vector.shape_cast %75 : vector<1x32x64xbf16> to vector<32x64xbf16>
    %cst_73 = arith.constant dense<0.000000e+00> : vector<18x64xf32>
    %77 = tpu.matmul %74, %76, %cst_73 {dimension_numbers = #tpu.dot_dimension_numbers<[1], [0], [0], [1], [0, 0, 1, 1], [], []>} : vector<18x32xbf16>, vector<32x64xbf16>, vector<18x64xf32> -> vector<18x64xf32>
    %78 = arith.addf %72, %77 : vector<18x64xf32>
    %c0_74 = arith.constant 0 : index
    %c19 = arith.constant 19 : index
    %c0_75 = arith.constant 0 : index
    %79 = vector.load %arg1[%c0_74, %c19, %c0_75] : memref<1x40x32xbf16, #tpu.memory_space<vmem>>, vector<1x18x32xbf16>
    %80 = vector.shape_cast %79 : vector<1x18x32xbf16> to vector<18x32xbf16>
    %c13_76 = arith.constant 13 : index
    %c0_77 = arith.constant 0 : index
    %c0_78 = arith.constant 0 : index
    %81 = vector.load %arg2[%c13_76, %c0_77, %c0_78] : memref<16x32x64xbf16, #tpu.memory_space<vmem>>, vector<1x32x64xbf16>
    %82 = vector.shape_cast %81 : vector<1x32x64xbf16> to vector<32x64xbf16>
    %cst_79 = arith.constant dense<0.000000e+00> : vector<18x64xf32>
    %83 = tpu.matmul %80, %82, %cst_79 {dimension_numbers = #tpu.dot_dimension_numbers<[1], [0], [0], [1], [0, 0, 1, 1], [], []>} : vector<18x32xbf16>, vector<32x64xbf16>, vector<18x64xf32> -> vector<18x64xf32>
    %84 = arith.addf %78, %83 : vector<18x64xf32>
    %c0_80 = arith.constant 0 : index
    %c20 = arith.constant 20 : index
    %c0_81 = arith.constant 0 : index
    %85 = vector.load %arg1[%c0_80, %c20, %c0_81] : memref<1x40x32xbf16, #tpu.memory_space<vmem>>, vector<1x18x32xbf16>
    %86 = vector.shape_cast %85 : vector<1x18x32xbf16> to vector<18x32xbf16>
    %c14_82 = arith.constant 14 : index
    %c0_83 = arith.constant 0 : index
    %c0_84 = arith.constant 0 : index
    %87 = vector.load %arg2[%c14_82, %c0_83, %c0_84] : memref<16x32x64xbf16, #tpu.memory_space<vmem>>, vector<1x32x64xbf16>
    %88 = vector.shape_cast %87 : vector<1x32x64xbf16> to vector<32x64xbf16>
    %cst_85 = arith.constant dense<0.000000e+00> : vector<18x64xf32>
    %89 = tpu.matmul %86, %88, %cst_85 {dimension_numbers = #tpu.dot_dimension_numbers<[1], [0], [0], [1], [0, 0, 1, 1], [], []>} : vector<18x32xbf16>, vector<32x64xbf16>, vector<18x64xf32> -> vector<18x64xf32>
    %90 = arith.addf %84, %89 : vector<18x64xf32>
    %c0_86 = arith.constant 0 : index
    %c21 = arith.constant 21 : index
    %c0_87 = arith.constant 0 : index
    %91 = vector.load %arg1[%c0_86, %c21, %c0_87] : memref<1x40x32xbf16, #tpu.memory_space<vmem>>, vector<1x18x32xbf16>
    %92 = vector.shape_cast %91 : vector<1x18x32xbf16> to vector<18x32xbf16>
    %c15_88 = arith.constant 15 : index
    %c0_89 = arith.constant 0 : index
    %c0_90 = arith.constant 0 : index
    %93 = vector.load %arg2[%c15_88, %c0_89, %c0_90] : memref<16x32x64xbf16, #tpu.memory_space<vmem>>, vector<1x32x64xbf16>
    %94 = vector.shape_cast %93 : vector<1x32x64xbf16> to vector<32x64xbf16>
    %cst_91 = arith.constant dense<0.000000e+00> : vector<18x64xf32>
    %95 = tpu.matmul %92, %94, %cst_91 {dimension_numbers = #tpu.dot_dimension_numbers<[1], [0], [0], [1], [0, 0, 1, 1], [], []>} : vector<18x32xbf16>, vector<32x64xbf16>, vector<18x64xf32> -> vector<18x64xf32>
    %96 = arith.addf %90, %95 : vector<18x64xf32>
    %97 = tpu.iota {dimensions = array<i32: 0>} : vector<18x1xi32>
    %c6_i32 = arith.constant 6 : i32
    %c0_i32 = arith.constant 0 : i32
    %98 = arith.cmpi eq, %c6_i32, %c0_i32 : i32
    %c1_i32 = arith.constant 1 : i32
    %99 = arith.select %98, %c1_i32, %c6_i32 : i32
    %100 = vector.broadcast %99 : i32 to vector<18x1xi32>
    %101 = arith.remsi %97, %100 : vector<18x1xi32>
    %c0_i32_92 = arith.constant 0 : i32
    %102 = vector.broadcast %c0_i32_92 : i32 to vector<18x1xi32>
    %103 = arith.cmpi ne, %101, %102 : vector<18x1xi32>
    %c0_i32_93 = arith.constant 0 : i32
    %104 = vector.broadcast %c0_i32_93 : i32 to vector<18x1xi32>
    %105 = arith.cmpi slt, %101, %104 : vector<18x1xi32>
    %c0_i32_94 = arith.constant 0 : i32
    %106 = arith.cmpi slt, %99, %c0_i32_94 : i32
    %107 = vector.broadcast %106 : i1 to vector<18x1xi1>
    %108 = vector.broadcast %107 : vector<18x1xi1> to vector<18x1xi1>
    %109 = arith.xori %105, %108 : vector<18x1xi1>
    %110 = arith.andi %109, %103 : vector<18x1xi1>
    %111 = vector.broadcast %99 : i32 to vector<18x1xi32>
    %112 = arith.addi %101, %111 : vector<18x1xi32>
    %113 = arith.select %110, %112, %101 : vector<18x1xi1>, vector<18x1xi32>
    %c3_i32 = arith.constant 3 : i32
    %114 = vector.broadcast %c3_i32 : i32 to vector<18x1xi32>
    %115 = arith.cmpi slt, %113, %114 : vector<18x1xi32>
    %cst_95 = arith.constant 0.000000e+00 : f32
    %116 = vector.shape_cast %115 : vector<18x1xi1> to vector<18x1xi1>
    %117 = vector.broadcast %116 : vector<18x1xi1> to vector<18x64xi1>
    %118 = vector.broadcast %cst_95 : f32 to vector<18x64xf32>
    %119 = arith.select %117, %96, %118 : vector<18x64xi1>, vector<18x64xf32>
    %cst_96 = arith.constant dense<0.000000e+00> : vector<64xf32>
    %120 = vector.multi_reduction <add>, %119, %cst_96 [0] : vector<18x64xf32> to vector<64xf32>
    %121 = vector.shape_cast %120 : vector<64xf32> to vector<1x64xf32>
    %cst_97 = arith.constant 0.111111112 : f32
    %122 = vector.broadcast %cst_97 : f32 to vector<1x64xf32>
    %123 = arith.mulf %121, %122 : vector<1x64xf32>
    %124 = vector.broadcast %123 : vector<1x64xf32> to vector<18x64xf32>
    %125 = arith.subf %96, %124 : vector<18x64xf32>
    %cst_98 = arith.constant 0.000000e+00 : f32
    %126 = vector.shape_cast %115 : vector<18x1xi1> to vector<18x1xi1>
    %127 = vector.broadcast %126 : vector<18x1xi1> to vector<18x64xi1>
    %128 = vector.broadcast %cst_98 : f32 to vector<18x64xf32>
    %129 = arith.select %127, %125, %128 : vector<18x64xi1>, vector<18x64xf32>
    %130 = arith.mulf %129, %129 : vector<18x64xf32>
    %cst_99 = arith.constant dense<0.000000e+00> : vector<64xf32>
    %131 = vector.multi_reduction <add>, %130, %cst_99 [0] : vector<18x64xf32> to vector<64xf32>
    %132 = vector.shape_cast %131 : vector<64xf32> to vector<1x64xf32>
    %cst_100 = arith.constant 0.111111112 : f32
    %133 = vector.broadcast %cst_100 : f32 to vector<1x64xf32>
    %134 = arith.mulf %132, %133 : vector<1x64xf32>
    %135 = vector.broadcast %123 : vector<1x64xf32> to vector<18x64xf32>
    %136 = arith.subf %96, %135 : vector<18x64xf32>
    %cst_101 = arith.constant 9.99999974E-6 : f32
    %137 = vector.broadcast %cst_101 : f32 to vector<1x64xf32>
    %138 = arith.addf %134, %137 : vector<1x64xf32>
    %139 = math.rsqrt %138 : vector<1x64xf32>
    %140 = vector.broadcast %139 : vector<1x64xf32> to vector<18x64xf32>
    %141 = arith.mulf %136, %140 : vector<18x64xf32>
    %cst_102 = arith.constant 2.000000e-01 : f32
    %142 = vector.broadcast %cst_102 : f32 to vector<18x64xf32>
    %143 = arith.mulf %142, %141 : vector<18x64xf32>
    %144 = arith.maximumf %141, %143 : vector<18x64xf32>
    %145 = arith.truncf %144 : vector<18x64xf32> to vector<18x64xbf16>
    %c0_103 = arith.constant 0 : index
    %c0_104 = arith.constant 0 : index
    %c0_105 = arith.constant 0 : index
    %146 = vector.load %arg3[%c0_103, %c0_104, %c0_105] : memref<1x18x64xbf16, #tpu.memory_space<vmem>>, vector<1x18x64xbf16>
    %147 = vector.shape_cast %146 : vector<1x18x64xbf16> to vector<18x64xbf16>
    %148 = vector.shape_cast %145 : vector<18x64xbf16> to vector<1x18x64xbf16>
    tpu.vector_store %arg3[%c0_103, %c0_104, %c0_105], %148 {strides = array<i32>} : memref<1x18x64xbf16, #tpu.memory_space<vmem>>, vector<1x18x64xbf16>,
    return
  }
  func.func @transform_0(%arg0: i32) -> (i32, i32, i32) {
    %c0_i32 = arith.constant 0 : i32
    %c0_i32_0 = arith.constant 0 : i32
    %c0_i32_1 = arith.constant 0 : i32
    return %arg0, %c0_i32, %c0_i32_0 : i32, i32, i32
  }
  func.func @transform_1(%arg0: i32) -> (i32, i32, i32) {
    %c0_i32 = arith.constant 0 : i32
    %c0_i32_0 = arith.constant 0 : i32
    %c0_i32_1 = arith.constant 0 : i32
    %c0_i32_2 = arith.constant 0 : i32
    return %c0_i32, %c0_i32_0, %c0_i32_1 : i32, i32, i32
  }
  func.func @transform_2(%arg0: i32) -> (i32, i32, i32) {
    %c0_i32 = arith.constant 0 : i32
    %c0_i32_0 = arith.constant 0 : i32
    %c0_i32_1 = arith.constant 0 : i32
    return %arg0, %c0_i32, %c0_i32_0 : i32, i32, i32
  }
}

module attributes {stable_mosaic.version = 11 : i64} {
  func.func @_conv_layer_kernel(%arg0: i32, %arg1: memref<1x32x64xbf16, #tpu.memory_space<vmem>>, %arg2: memref<16x64x1xbf16, #tpu.memory_space<vmem>>, %arg3: memref<1x1xf32, #tpu.memory_space<vmem>>, %arg4: memref<1x10x1xf32, #tpu.memory_space<vmem>>) attributes {dimension_semantics = [#tpu.dimension_semantics<parallel>], iteration_bounds = array<i64: 2>, scalar_prefetch = 0 : i64, scratch_operands = 0 : i64, tpu.core_type = #tpu.core_type<tc>, window_params = [{transform_indices = @transform_0, window_bounds = array<i64: 1, 32, 64>}, {pipeline_mode = #tpu.pipeline_mode<synchronous>, transform_indices = @transform_1, window_bounds = array<i64: 16, 64, 1>}, {pipeline_mode = #tpu.pipeline_mode<synchronous>, transform_indices = @transform_2, window_bounds = array<i64: 1, 1>}, {transform_indices = @transform_3, window_bounds = array<i64: 1, 10, 1>}]} {
    %c0 = arith.constant 0 : index
    %c0_0 = arith.constant 0 : index
    %0 = vector.load %arg3[%c0, %c0_0] : memref<1x1xf32, #tpu.memory_space<vmem>>, vector<1x1xf32>
    %cst = arith.constant 0.000000e+00 : f32
    %1 = vector.broadcast %cst : f32 to vector<10x1xf32>
    %c0_1 = arith.constant 0 : index
    %c0_2 = arith.constant 0 : index
    %c0_3 = arith.constant 0 : index
    %2 = vector.load %arg1[%c0_1, %c0_2, %c0_3] : memref<1x32x64xbf16, #tpu.memory_space<vmem>>, vector<1x10x64xbf16>
    %3 = vector.shape_cast %2 : vector<1x10x64xbf16> to vector<10x64xbf16>
    %c0_4 = arith.constant 0 : index
    %c0_5 = arith.constant 0 : index
    %c0_6 = arith.constant 0 : index
    %4 = vector.load %arg2[%c0_4, %c0_5, %c0_6] : memref<16x64x1xbf16, #tpu.memory_space<vmem>>, vector<1x64x1xbf16>
    %5 = vector.shape_cast %4 : vector<1x64x1xbf16> to vector<64x1xbf16>
    %cst_7 = arith.constant dense<0.000000e+00> : vector<10x1xf32>
    %6 = tpu.matmul %3, %5, %cst_7 {dimension_numbers = #tpu.dot_dimension_numbers<[1], [0], [0], [1], [0, 0, 1, 1], [], []>} : vector<10x64xbf16>, vector<64x1xbf16>, vector<10x1xf32> -> vector<10x1xf32>
    %7 = arith.addf %1, %6 : vector<10x1xf32>
    %c0_8 = arith.constant 0 : index
    %c1 = arith.constant 1 : index
    %c0_9 = arith.constant 0 : index
    %8 = vector.load %arg1[%c0_8, %c1, %c0_9] : memref<1x32x64xbf16, #tpu.memory_space<vmem>>, vector<1x10x64xbf16>
    %9 = vector.shape_cast %8 : vector<1x10x64xbf16> to vector<10x64xbf16>
    %c1_10 = arith.constant 1 : index
    %c0_11 = arith.constant 0 : index
    %c0_12 = arith.constant 0 : index
    %10 = vector.load %arg2[%c1_10, %c0_11, %c0_12] : memref<16x64x1xbf16, #tpu.memory_space<vmem>>, vector<1x64x1xbf16>
    %11 = vector.shape_cast %10 : vector<1x64x1xbf16> to vector<64x1xbf16>
    %cst_13 = arith.constant dense<0.000000e+00> : vector<10x1xf32>
    %12 = tpu.matmul %9, %11, %cst_13 {dimension_numbers = #tpu.dot_dimension_numbers<[1], [0], [0], [1], [0, 0, 1, 1], [], []>} : vector<10x64xbf16>, vector<64x1xbf16>, vector<10x1xf32> -> vector<10x1xf32>
    %13 = arith.addf %7, %12 : vector<10x1xf32>
    %c0_14 = arith.constant 0 : index
    %c2 = arith.constant 2 : index
    %c0_15 = arith.constant 0 : index
    %14 = vector.load %arg1[%c0_14, %c2, %c0_15] : memref<1x32x64xbf16, #tpu.memory_space<vmem>>, vector<1x10x64xbf16>
    %15 = vector.shape_cast %14 : vector<1x10x64xbf16> to vector<10x64xbf16>
    %c2_16 = arith.constant 2 : index
    %c0_17 = arith.constant 0 : index
    %c0_18 = arith.constant 0 : index
    %16 = vector.load %arg2[%c2_16, %c0_17, %c0_18] : memref<16x64x1xbf16, #tpu.memory_space<vmem>>, vector<1x64x1xbf16>
    %17 = vector.shape_cast %16 : vector<1x64x1xbf16> to vector<64x1xbf16>
    %cst_19 = arith.constant dense<0.000000e+00> : vector<10x1xf32>
    %18 = tpu.matmul %15, %17, %cst_19 {dimension_numbers = #tpu.dot_dimension_numbers<[1], [0], [0], [1], [0, 0, 1, 1], [], []>} : vector<10x64xbf16>, vector<64x1xbf16>, vector<10x1xf32> -> vector<10x1xf32>
    %19 = arith.addf %13, %18 : vector<10x1xf32>
    %c0_20 = arith.constant 0 : index
    %c3 = arith.constant 3 : index
    %c0_21 = arith.constant 0 : index
    %20 = vector.load %arg1[%c0_20, %c3, %c0_21] : memref<1x32x64xbf16, #tpu.memory_space<vmem>>, vector<1x10x64xbf16>
    %21 = vector.shape_cast %20 : vector<1x10x64xbf16> to vector<10x64xbf16>
    %c3_22 = arith.constant 3 : index
    %c0_23 = arith.constant 0 : index
    %c0_24 = arith.constant 0 : index
    %22 = vector.load %arg2[%c3_22, %c0_23, %c0_24] : memref<16x64x1xbf16, #tpu.memory_space<vmem>>, vector<1x64x1xbf16>
    %23 = vector.shape_cast %22 : vector<1x64x1xbf16> to vector<64x1xbf16>
    %cst_25 = arith.constant dense<0.000000e+00> : vector<10x1xf32>
    %24 = tpu.matmul %21, %23, %cst_25 {dimension_numbers = #tpu.dot_dimension_numbers<[1], [0], [0], [1], [0, 0, 1, 1], [], []>} : vector<10x64xbf16>, vector<64x1xbf16>, vector<10x1xf32> -> vector<10x1xf32>
    %25 = arith.addf %19, %24 : vector<10x1xf32>
    %c0_26 = arith.constant 0 : index
    %c5 = arith.constant 5 : index
    %c0_27 = arith.constant 0 : index
    %26 = vector.load %arg1[%c0_26, %c5, %c0_27] : memref<1x32x64xbf16, #tpu.memory_space<vmem>>, vector<1x10x64xbf16>
    %27 = vector.shape_cast %26 : vector<1x10x64xbf16> to vector<10x64xbf16>
    %c4 = arith.constant 4 : index
    %c0_28 = arith.constant 0 : index
    %c0_29 = arith.constant 0 : index
    %28 = vector.load %arg2[%c4, %c0_28, %c0_29] : memref<16x64x1xbf16, #tpu.memory_space<vmem>>, vector<1x64x1xbf16>
    %29 = vector.shape_cast %28 : vector<1x64x1xbf16> to vector<64x1xbf16>
    %cst_30 = arith.constant dense<0.000000e+00> : vector<10x1xf32>
    %30 = tpu.matmul %27, %29, %cst_30 {dimension_numbers = #tpu.dot_dimension_numbers<[1], [0], [0], [1], [0, 0, 1, 1], [], []>} : vector<10x64xbf16>, vector<64x1xbf16>, vector<10x1xf32> -> vector<10x1xf32>
    %31 = arith.addf %25, %30 : vector<10x1xf32>
    %c0_31 = arith.constant 0 : index
    %c6 = arith.constant 6 : index
    %c0_32 = arith.constant 0 : index
    %32 = vector.load %arg1[%c0_31, %c6, %c0_32] : memref<1x32x64xbf16, #tpu.memory_space<vmem>>, vector<1x10x64xbf16>
    %33 = vector.shape_cast %32 : vector<1x10x64xbf16> to vector<10x64xbf16>
    %c5_33 = arith.constant 5 : index
    %c0_34 = arith.constant 0 : index
    %c0_35 = arith.constant 0 : index
    %34 = vector.load %arg2[%c5_33, %c0_34, %c0_35] : memref<16x64x1xbf16, #tpu.memory_space<vmem>>, vector<1x64x1xbf16>
    %35 = vector.shape_cast %34 : vector<1x64x1xbf16> to vector<64x1xbf16>
    %cst_36 = arith.constant dense<0.000000e+00> : vector<10x1xf32>
    %36 = tpu.matmul %33, %35, %cst_36 {dimension_numbers = #tpu.dot_dimension_numbers<[1], [0], [0], [1], [0, 0, 1, 1], [], []>} : vector<10x64xbf16>, vector<64x1xbf16>, vector<10x1xf32> -> vector<10x1xf32>
    %37 = arith.addf %31, %36 : vector<10x1xf32>
    %c0_37 = arith.constant 0 : index
    %c7 = arith.constant 7 : index
    %c0_38 = arith.constant 0 : index
    %38 = vector.load %arg1[%c0_37, %c7, %c0_38] : memref<1x32x64xbf16, #tpu.memory_space<vmem>>, vector<1x10x64xbf16>
    %39 = vector.shape_cast %38 : vector<1x10x64xbf16> to vector<10x64xbf16>
    %c6_39 = arith.constant 6 : index
    %c0_40 = arith.constant 0 : index
    %c0_41 = arith.constant 0 : index
    %40 = vector.load %arg2[%c6_39, %c0_40, %c0_41] : memref<16x64x1xbf16, #tpu.memory_space<vmem>>, vector<1x64x1xbf16>
    %41 = vector.shape_cast %40 : vector<1x64x1xbf16> to vector<64x1xbf16>
    %cst_42 = arith.constant dense<0.000000e+00> : vector<10x1xf32>
    %42 = tpu.matmul %39, %41, %cst_42 {dimension_numbers = #tpu.dot_dimension_numbers<[1], [0], [0], [1], [0, 0, 1, 1], [], []>} : vector<10x64xbf16>, vector<64x1xbf16>, vector<10x1xf32> -> vector<10x1xf32>
    %43 = arith.addf %37, %42 : vector<10x1xf32>
    %c0_43 = arith.constant 0 : index
    %c8 = arith.constant 8 : index
    %c0_44 = arith.constant 0 : index
    %44 = vector.load %arg1[%c0_43, %c8, %c0_44] : memref<1x32x64xbf16, #tpu.memory_space<vmem>>, vector<1x10x64xbf16>
    %45 = vector.shape_cast %44 : vector<1x10x64xbf16> to vector<10x64xbf16>
    %c7_45 = arith.constant 7 : index
    %c0_46 = arith.constant 0 : index
    %c0_47 = arith.constant 0 : index
    %46 = vector.load %arg2[%c7_45, %c0_46, %c0_47] : memref<16x64x1xbf16, #tpu.memory_space<vmem>>, vector<1x64x1xbf16>
    %47 = vector.shape_cast %46 : vector<1x64x1xbf16> to vector<64x1xbf16>
    %cst_48 = arith.constant dense<0.000000e+00> : vector<10x1xf32>
    %48 = tpu.matmul %45, %47, %cst_48 {dimension_numbers = #tpu.dot_dimension_numbers<[1], [0], [0], [1], [0, 0, 1, 1], [], []>} : vector<10x64xbf16>, vector<64x1xbf16>, vector<10x1xf32> -> vector<10x1xf32>
    %49 = arith.addf %43, %48 : vector<10x1xf32>
    %c0_49 = arith.constant 0 : index
    %c10 = arith.constant 10 : index
    %c0_50 = arith.constant 0 : index
    %50 = vector.load %arg1[%c0_49, %c10, %c0_50] : memref<1x32x64xbf16, #tpu.memory_space<vmem>>, vector<1x10x64xbf16>
    %51 = vector.shape_cast %50 : vector<1x10x64xbf16> to vector<10x64xbf16>
    %c8_51 = arith.constant 8 : index
    %c0_52 = arith.constant 0 : index
    %c0_53 = arith.constant 0 : index
    %52 = vector.load %arg2[%c8_51, %c0_52, %c0_53] : memref<16x64x1xbf16, #tpu.memory_space<vmem>>, vector<1x64x1xbf16>
    %53 = vector.shape_cast %52 : vector<1x64x1xbf16> to vector<64x1xbf16>
    %cst_54 = arith.constant dense<0.000000e+00> : vector<10x1xf32>
    %54 = tpu.matmul %51, %53, %cst_54 {dimension_numbers = #tpu.dot_dimension_numbers<[1], [0], [0], [1], [0, 0, 1, 1], [], []>} : vector<10x64xbf16>, vector<64x1xbf16>, vector<10x1xf32> -> vector<10x1xf32>
    %55 = arith.addf %49, %54 : vector<10x1xf32>
    %c0_55 = arith.constant 0 : index
    %c11 = arith.constant 11 : index
    %c0_56 = arith.constant 0 : index
    %56 = vector.load %arg1[%c0_55, %c11, %c0_56] : memref<1x32x64xbf16, #tpu.memory_space<vmem>>, vector<1x10x64xbf16>
    %57 = vector.shape_cast %56 : vector<1x10x64xbf16> to vector<10x64xbf16>
    %c9 = arith.constant 9 : index
    %c0_57 = arith.constant 0 : index
    %c0_58 = arith.constant 0 : index
    %58 = vector.load %arg2[%c9, %c0_57, %c0_58] : memref<16x64x1xbf16, #tpu.memory_space<vmem>>, vector<1x64x1xbf16>
    %59 = vector.shape_cast %58 : vector<1x64x1xbf16> to vector<64x1xbf16>
    %cst_59 = arith.constant dense<0.000000e+00> : vector<10x1xf32>
    %60 = tpu.matmul %57, %59, %cst_59 {dimension_numbers = #tpu.dot_dimension_numbers<[1], [0], [0], [1], [0, 0, 1, 1], [], []>} : vector<10x64xbf16>, vector<64x1xbf16>, vector<10x1xf32> -> vector<10x1xf32>
    %61 = arith.addf %55, %60 : vector<10x1xf32>
    %c0_60 = arith.constant 0 : index
    %c12 = arith.constant 12 : index
    %c0_61 = arith.constant 0 : index
    %62 = vector.load %arg1[%c0_60, %c12, %c0_61] : memref<1x32x64xbf16, #tpu.memory_space<vmem>>, vector<1x10x64xbf16>
    %63 = vector.shape_cast %62 : vector<1x10x64xbf16> to vector<10x64xbf16>
    %c10_62 = arith.constant 10 : index
    %c0_63 = arith.constant 0 : index
    %c0_64 = arith.constant 0 : index
    %64 = vector.load %arg2[%c10_62, %c0_63, %c0_64] : memref<16x64x1xbf16, #tpu.memory_space<vmem>>, vector<1x64x1xbf16>
    %65 = vector.shape_cast %64 : vector<1x64x1xbf16> to vector<64x1xbf16>
    %cst_65 = arith.constant dense<0.000000e+00> : vector<10x1xf32>
    %66 = tpu.matmul %63, %65, %cst_65 {dimension_numbers = #tpu.dot_dimension_numbers<[1], [0], [0], [1], [0, 0, 1, 1], [], []>} : vector<10x64xbf16>, vector<64x1xbf16>, vector<10x1xf32> -> vector<10x1xf32>
    %67 = arith.addf %61, %66 : vector<10x1xf32>
    %c0_66 = arith.constant 0 : index
    %c13 = arith.constant 13 : index
    %c0_67 = arith.constant 0 : index
    %68 = vector.load %arg1[%c0_66, %c13, %c0_67] : memref<1x32x64xbf16, #tpu.memory_space<vmem>>, vector<1x10x64xbf16>
    %69 = vector.shape_cast %68 : vector<1x10x64xbf16> to vector<10x64xbf16>
    %c11_68 = arith.constant 11 : index
    %c0_69 = arith.constant 0 : index
    %c0_70 = arith.constant 0 : index
    %70 = vector.load %arg2[%c11_68, %c0_69, %c0_70] : memref<16x64x1xbf16, #tpu.memory_space<vmem>>, vector<1x64x1xbf16>
    %71 = vector.shape_cast %70 : vector<1x64x1xbf16> to vector<64x1xbf16>
    %cst_71 = arith.constant dense<0.000000e+00> : vector<10x1xf32>
    %72 = tpu.matmul %69, %71, %cst_71 {dimension_numbers = #tpu.dot_dimension_numbers<[1], [0], [0], [1], [0, 0, 1, 1], [], []>} : vector<10x64xbf16>, vector<64x1xbf16>, vector<10x1xf32> -> vector<10x1xf32>
    %73 = arith.addf %67, %72 : vector<10x1xf32>
    %c0_72 = arith.constant 0 : index
    %c15 = arith.constant 15 : index
    %c0_73 = arith.constant 0 : index
    %74 = vector.load %arg1[%c0_72, %c15, %c0_73] : memref<1x32x64xbf16, #tpu.memory_space<vmem>>, vector<1x10x64xbf16>
    %75 = vector.shape_cast %74 : vector<1x10x64xbf16> to vector<10x64xbf16>
    %c12_74 = arith.constant 12 : index
    %c0_75 = arith.constant 0 : index
    %c0_76 = arith.constant 0 : index
    %76 = vector.load %arg2[%c12_74, %c0_75, %c0_76] : memref<16x64x1xbf16, #tpu.memory_space<vmem>>, vector<1x64x1xbf16>
    %77 = vector.shape_cast %76 : vector<1x64x1xbf16> to vector<64x1xbf16>
    %cst_77 = arith.constant dense<0.000000e+00> : vector<10x1xf32>
    %78 = tpu.matmul %75, %77, %cst_77 {dimension_numbers = #tpu.dot_dimension_numbers<[1], [0], [0], [1], [0, 0, 1, 1], [], []>} : vector<10x64xbf16>, vector<64x1xbf16>, vector<10x1xf32> -> vector<10x1xf32>
    %79 = arith.addf %73, %78 : vector<10x1xf32>
    %c0_78 = arith.constant 0 : index
    %c16 = arith.constant 16 : index
    %c0_79 = arith.constant 0 : index
    %80 = vector.load %arg1[%c0_78, %c16, %c0_79] : memref<1x32x64xbf16, #tpu.memory_space<vmem>>, vector<1x10x64xbf16>
    %81 = vector.shape_cast %80 : vector<1x10x64xbf16> to vector<10x64xbf16>
    %c13_80 = arith.constant 13 : index
    %c0_81 = arith.constant 0 : index
    %c0_82 = arith.constant 0 : index
    %82 = vector.load %arg2[%c13_80, %c0_81, %c0_82] : memref<16x64x1xbf16, #tpu.memory_space<vmem>>, vector<1x64x1xbf16>
    %83 = vector.shape_cast %82 : vector<1x64x1xbf16> to vector<64x1xbf16>
    %cst_83 = arith.constant dense<0.000000e+00> : vector<10x1xf32>
    %84 = tpu.matmul %81, %83, %cst_83 {dimension_numbers = #tpu.dot_dimension_numbers<[1], [0], [0], [1], [0, 0, 1, 1], [], []>} : vector<10x64xbf16>, vector<64x1xbf16>, vector<10x1xf32> -> vector<10x1xf32>
    %85 = arith.addf %79, %84 : vector<10x1xf32>
    %c0_84 = arith.constant 0 : index
    %c17 = arith.constant 17 : index
    %c0_85 = arith.constant 0 : index
    %86 = vector.load %arg1[%c0_84, %c17, %c0_85] : memref<1x32x64xbf16, #tpu.memory_space<vmem>>, vector<1x10x64xbf16>
    %87 = vector.shape_cast %86 : vector<1x10x64xbf16> to vector<10x64xbf16>
    %c14 = arith.constant 14 : index
    %c0_86 = arith.constant 0 : index
    %c0_87 = arith.constant 0 : index
    %88 = vector.load %arg2[%c14, %c0_86, %c0_87] : memref<16x64x1xbf16, #tpu.memory_space<vmem>>, vector<1x64x1xbf16>
    %89 = vector.shape_cast %88 : vector<1x64x1xbf16> to vector<64x1xbf16>
    %cst_88 = arith.constant dense<0.000000e+00> : vector<10x1xf32>
    %90 = tpu.matmul %87, %89, %cst_88 {dimension_numbers = #tpu.dot_dimension_numbers<[1], [0], [0], [1], [0, 0, 1, 1], [], []>} : vector<10x64xbf16>, vector<64x1xbf16>, vector<10x1xf32> -> vector<10x1xf32>
    %91 = arith.addf %85, %90 : vector<10x1xf32>
    %c0_89 = arith.constant 0 : index
    %c18 = arith.constant 18 : index
    %c0_90 = arith.constant 0 : index
    %92 = vector.load %arg1[%c0_89, %c18, %c0_90] : memref<1x32x64xbf16, #tpu.memory_space<vmem>>, vector<1x10x64xbf16>
    %93 = vector.shape_cast %92 : vector<1x10x64xbf16> to vector<10x64xbf16>
    %c15_91 = arith.constant 15 : index
    %c0_92 = arith.constant 0 : index
    %c0_93 = arith.constant 0 : index
    %94 = vector.load %arg2[%c15_91, %c0_92, %c0_93] : memref<16x64x1xbf16, #tpu.memory_space<vmem>>, vector<1x64x1xbf16>
    %95 = vector.shape_cast %94 : vector<1x64x1xbf16> to vector<64x1xbf16>
    %cst_94 = arith.constant dense<0.000000e+00> : vector<10x1xf32>
    %96 = tpu.matmul %93, %95, %cst_94 {dimension_numbers = #tpu.dot_dimension_numbers<[1], [0], [0], [1], [0, 0, 1, 1], [], []>} : vector<10x64xbf16>, vector<64x1xbf16>, vector<10x1xf32> -> vector<10x1xf32>
    %97 = arith.addf %91, %96 : vector<10x1xf32>
    %98 = vector.broadcast %0 : vector<1x1xf32> to vector<10x1xf32>
    %99 = arith.addf %97, %98 : vector<10x1xf32>
    %cst_95 = arith.constant 0.000000e+00 : f32
    %100 = vector.broadcast %cst_95 : f32 to vector<10x1xf32>
    %101 = arith.subf %100, %99 : vector<10x1xf32>
    %102 = math.exp %101 : vector<10x1xf32>
    %cst_96 = arith.constant 1.000000e+00 : f32
    %103 = vector.broadcast %cst_96 : f32 to vector<10x1xf32>
    %104 = arith.addf %103, %102 : vector<10x1xf32>
    %cst_97 = arith.constant 1.000000e+00 : f32
    %105 = vector.broadcast %cst_97 : f32 to vector<10x1xf32>
    %106 = arith.divf %105, %104 : vector<10x1xf32>
    %c0_98 = arith.constant 0 : index
    %c0_99 = arith.constant 0 : index
    %c0_100 = arith.constant 0 : index
    %107 = vector.load %arg4[%c0_98, %c0_99, %c0_100] : memref<1x10x1xf32, #tpu.memory_space<vmem>>, vector<1x10x1xf32>
    %108 = vector.shape_cast %107 : vector<1x10x1xf32> to vector<10x1xf32>
    %109 = vector.shape_cast %106 : vector<10x1xf32> to vector<1x10x1xf32>
    tpu.vector_store %arg4[%c0_98, %c0_99, %c0_100], %109 {strides = array<i32>} : memref<1x10x1xf32, #tpu.memory_space<vmem>>, vector<1x10x1xf32>,
    return
  }
  func.func @transform_0(%arg0: i32) -> (i32, i32, i32) {
    %c0_i32 = arith.constant 0 : i32
    %c0_i32_0 = arith.constant 0 : i32
    %c0_i32_1 = arith.constant 0 : i32
    return %arg0, %c0_i32, %c0_i32_0 : i32, i32, i32
  }
  func.func @transform_1(%arg0: i32) -> (i32, i32, i32) {
    %c0_i32 = arith.constant 0 : i32
    %c0_i32_0 = arith.constant 0 : i32
    %c0_i32_1 = arith.constant 0 : i32
    %c0_i32_2 = arith.constant 0 : i32
    return %c0_i32, %c0_i32_0, %c0_i32_1 : i32, i32, i32
  }
  func.func @transform_2(%arg0: i32) -> (i32, i32) {
    %c0_i32 = arith.constant 0 : i32
    %c0_i32_0 = arith.constant 0 : i32
    %c0_i32_1 = arith.constant 0 : i32
    return %c0_i32, %c0_i32_0 : i32, i32
  }
  func.func @transform_3(%arg0: i32) -> (i32, i32, i32) {
    %c0_i32 = arith.constant 0 : i32
    %c0_i32_0 = arith.constant 0 : i32
    %c0_i32_1 = arith.constant 0 : i32
    return %arg0, %c0_i32, %c0_i32_0 : i32, i32, i32
  }
}

</mosaic_0001>

<llo_original>
// kernel: discriminator_forward.5
$region0: #{discriminator_forward.5}
  #allocation0 [shape = 'u32[]', space=smem, size = 0x4, offset = 0x4, fixed_abs, tag = 'smem constant byte address 0x4 - core index']
  #allocation1 [shape = 'u32[144,128]{1,0:T(1,128)}', space=vmem, size = 0x12000, scoped, tag = 'internal scratch']
  %s0 = inlined_call_operand.vmem [shape: bf16[2,296,12], index: 0, kind: input, shape index: {}]
  %s1 = inlined_call_operand.vmem [shape: bf16[4,12,8], index: 1, kind: input, shape index: {}]
  %s2 = inlined_call_operand.vmem [shape: f32[1,8], index: 2, kind: input, shape index: {}]
  %s3 = inlined_call_operand.vmem [shape: bf16[2,272,8], index: 3, kind: output, shape index: {}]
  %s4 = sld [smem:[#allocation0]]
  $region45: #{discriminator_forward.5} parent=0
    _
  %s6 = ssub.s32 1, %s4
  %s7 = scalar_select 0, %s6, %s4
  loop: start=0, step=1, limit=4
  $region2: #{discriminator_forward.5} parent=0 // loop_pre_header
    _
  $region3: #{discriminator_forward.5} parent=0 // loop_header
    %s9 = sphi 0, %s13
    %p10 = scmp.ge.s32.totalorder %s9, 4
    %s19 = sphi 0, %s21
    %s22 = sphi 0, %s19
    %s23 = sphi 0, %s22
    %s39 = sphi 0, %s23
    %s43 = sphi 0, %s43
    %s45 = sphi 0, %s43
    %s46 = sphi 0, %s45
    %s60 = sphi 0, %s46
    %s64 = sphi 0, %s64
    %s66 = sphi 0, %s64
    %s67 = sphi 0, %s66
    %s81 = sphi 0, %s67
    %s87 = sphi 0, %s89
    %s90 = sphi 0, %s87
    %s91 = sphi 0, %s90
    %s107 = sphi 0, %s91
  $region4: #{discriminator_forward.5} parent=0 // loop_header_branch
    %12 = sbr.rel (%p10) target = $region8
  $region5: #{discriminator_forward.5} parent=0 // loop_body
    %s14 = ssub.s32 %s9, 1
    %s15 = ssub.s32 %s9, 2
    %s16 = sadd.s32 %s9, 1
    %s17 = ssub.s32 %s9, %s16
    %p18 = scmp.eq.s32.totalorder %s17, 0
    %s20 = sadd.s32 %s19, 1
    %s21 = scalar_select %p18, %s19, %s20
    %p24 = pneg %p18
    %p25 = scmp.eq.s32.totalorder %s9, 1
    %p26 = por %p24, %p25
    %p27 = scmp.ne.s32.totalorder %s19, %s22
    %p28 = scmp.eq.s32.totalorder %s9, 0
    %p29 = por %p27, %p28
    %p30 = scmp.ne.s32.totalorder %s19, %s22
    %p31 = scmp.eq.s32.totalorder %s14, 1
    %p32 = por %p30, %p31
    %p33 = scmp.ne.s32.totalorder %s22, %s23
    %p34 = scmp.eq.s32.totalorder %s14, 0
    %p35 = por %p33, %p34
    %p36 = scmp.ne.s32.totalorder %s22, %s23
    %p37 = scmp.eq.s32.totalorder %s15, 1
    %p38 = por %p36, %p37
    %p40 = scmp.ne.s32.totalorder %s23, %s39
    %p41 = scmp.eq.s32.totalorder %s15, 0
    %p42 = por %p40, %p41
    %s44 = sadd.s32 %s43, 1
    %p47 = scmp.eq.s32.totalorder %s9, 1
    %p48 = scmp.ne.s32.totalorder %s43, %s45
    %p49 = scmp.eq.s32.totalorder %s9, 0
    %p50 = por %p48, %p49
    %p51 = scmp.ne.s32.totalorder %s43, %s45
    %p52 = scmp.eq.s32.totalorder %s14, 1
    %p53 = por %p51, %p52
    %p54 = scmp.ne.s32.totalorder %s45, %s46
    %p55 = scmp.eq.s32.totalorder %s14, 0
    %p56 = por %p54, %p55
    %p57 = scmp.ne.s32.totalorder %s45, %s46
    %p58 = scmp.eq.s32.totalorder %s15, 1
    %p59 = por %p57, %p58
    %p61 = scmp.ne.s32.totalorder %s46, %s60
    %p62 = scmp.eq.s32.totalorder %s15, 0
    %p63 = por %p61, %p62
    %s65 = sadd.s32 %s64, 1
    %p68 = scmp.eq.s32.totalorder %s9, 1
    %p69 = scmp.ne.s32.totalorder %s64, %s66
    %p70 = scmp.eq.s32.totalorder %s9, 0
    %p71 = por %p69, %p70
    %p72 = scmp.ne.s32.totalorder %s64, %s66
    %p73 = scmp.eq.s32.totalorder %s14, 1
    %p74 = por %p72, %p73
    %p75 = scmp.ne.s32.totalorder %s66, %s67
    %p76 = scmp.eq.s32.totalorder %s14, 0
    %p77 = por %p75, %p76
    %p78 = scmp.ne.s32.totalorder %s66, %s67
    %p79 = scmp.eq.s32.totalorder %s15, 1
    %p80 = por %p78, %p79
    %p82 = scmp.ne.s32.totalorder %s67, %s81
    %p83 = scmp.eq.s32.totalorder %s15, 0
    %p84 = por %p82, %p83
    %s85 = ssub.s32 %s9, %s16
    %p86 = scmp.eq.s32.totalorder %s85, 0
    %s88 = sadd.s32 %s87, 1
    %s89 = scalar_select %p86, %s87, %s88
    %p92 = pneg %p86
    %p93 = scmp.eq.s32.totalorder %s9, 1
    %p94 = por %p92, %p93
    %p95 = scmp.ne.s32.totalorder %s87, %s90
    %p96 = scmp.eq.s32.totalorder %s9, 0
    %p97 = por %p95, %p96
    %p98 = scmp.ne.s32.totalorder %s87, %s90
    %p99 = scmp.eq.s32.totalorder %s14, 1
    %p100 = por %p98, %p99
    %p101 = scmp.ne.s32.totalorder %s90, %s91
    %p102 = scmp.eq.s32.totalorder %s14, 0
    %p103 = por %p101, %p102
    %p104 = scmp.ne.s32.totalorder %s90, %s91
    %p105 = scmp.eq.s32.totalorder %s15, 1
    %p106 = por %p104, %p105
    %p108 = scmp.ne.s32.totalorder %s91, %s107
    %p109 = scmp.eq.s32.totalorder %s15, 0
    %p110 = por %p108, %p109
    %p111 = scmp.le.s32.totalorder 1, %s9
    %p112 = scmp.lt.s32.totalorder %s9, 3
    %p113 = pnand %p111, %p112
    %p114 = pneg %p113
    // Predicated region
    $region9: #{discriminator_forward.5} parent=5 // pred_check
      _
    $region10: #{discriminator_forward.5} parent=5 // pred_check_branch
      %116 = sbr.rel (%p113) target = $region12
    $region11: #{discriminator_forward.5} parent=5 // pred_region
      %s117 = ssub.s32 %s9, 1
      // Predicated region
      $region13: #{discriminator_forward.5} parent=11 // pred_check
        %p118 = pneg %p56
      $region14: #{discriminator_forward.5} parent=11 // pred_check_branch
        %120 = sbr.rel (%p118) target = $region16
      $region15: #{discriminator_forward.5} parent=11 // pred_region
        _
      $region16: #{discriminator_forward.5} parent=11 // pred_fallthru
        _
      // Predicated region
      $region17: #{discriminator_forward.5} parent=11 // pred_check
        %p121 = pneg %p77
      $region18: #{discriminator_forward.5} parent=11 // pred_check_branch
        %123 = sbr.rel (%p121) target = $region20
      $region19: #{discriminator_forward.5} parent=11 // pred_region
        _
      $region20: #{discriminator_forward.5} parent=11 // pred_fallthru
        _
    $region12: #{discriminator_forward.5} parent=5 // pred_fallthru
      _
    %p124 = scmp.lt.s32.totalorder %s9, 2
    // Predicated region
    $region21: #{discriminator_forward.5} parent=5 // pred_check
      %p125 = pneg %p124
    $region22: #{discriminator_forward.5} parent=5 // pred_check_branch
      %127 = sbr.rel (%p125) target = $region24
    $region23: #{discriminator_forward.5} parent=5 // pred_region
      // Predicated region
      $region25: #{discriminator_forward.5} parent=23 // pred_check
        %p128 = pneg %p29
      $region26: #{discriminator_forward.5} parent=23 // pred_check_branch
        %130 = sbr.rel (%p128) target = $region28
      $region27: #{discriminator_forward.5} parent=23 // pred_region
        %p131 = scmp.lt.s32.totalorder %s9, 1
        %s132 = scalar_select %p131, %s9, 1
        %s133 = smul.addr %s132, 37
        %s134 = smul.addr %s133, 4
        %s135 = scalar_lea.vmem %s0, %s134
      $region28: #{discriminator_forward.5} parent=23 // pred_fallthru
        _
    $region24: #{discriminator_forward.5} parent=5 // pred_fallthru
      _
    %p136 = scmp.le.s32.totalorder 1, %s9
    %p137 = scmp.lt.s32.totalorder %s9, 3
    %p138 = pnand %p136, %p137
    %p139 = pneg %p138
    // Predicated region
    $region29: #{discriminator_forward.5} parent=5 // pred_check
      _
    $region30: #{discriminator_forward.5} parent=5 // pred_check_branch
      %141 = sbr.rel (%p138) target = $region32
    $region31: #{discriminator_forward.5} parent=5 // pred_region
      %s142 = ssub.s32 %s9, 1
      %p143 = scmp.lt.s32.totalorder %s14, 1
      %s144 = scalar_select %p143, %s14, 1
      %s145 = smul.addr %s144, 37
      %s146 = smul.addr %s145, 4
      %s147 = scalar_lea.vmem %s0, %s146
      %p148 = pneg %p35
      %p149 = pneg %p32
      %p150 = pneg %p56
      %p151 = pneg %p53
      %p152 = pneg %p77
      %p153 = pneg %p74
      %p154 = pneg %p103
      %p155 = pneg %p100
      %p156 = scmp.lt.s32.totalorder %s14, 1
      %s157 = scalar_select %p156, %s14, 1
      %s158 = smul.addr %s157, 34
      %s159 = smul.addr %s158, 4
      %s160 = scalar_lea.vmem %s3, %s159
      %p161 = scmp.lt.s32.totalorder %s14, 1
      %s162 = scalar_select %p161, %s14, 1
      %s163 = smul.addr %s162, 37
      %s164 = smul.addr %s163, 4
      %s165 = scalar_lea.vmem %s0, %s164
      %p166 = scmp.lt.s32.totalorder %s14, 1
      %s167 = scalar_select %p166, %s14, 1
      %s168 = smul.addr %s167, 34
      %s169 = smul.addr %s168, 4
      %s170 = scalar_lea.vmem %s3, %s169
      %v172 = vld [vmem:[%s2] sm:$0x1]
      %v173 = vld [vmem:[%s165] sm:$0xf]
      %v174 = vld [vmem:[%s165 + $0x4] sm:$0xf]
      %v175 = vld [vmem:[%s165 + $0x8] sm:$0xf]
      %v176 = vld [vmem:[%s165 + $0xc] sm:$0xf]
      %v177 = vld [vmem:[%s165 + $0x10] sm:$0xf]
      %v178 = vld [vmem:[%s165 + $0x14] sm:$0xf]
      %v179 = vld [vmem:[%s165 + $0x18] sm:$0xf]
      %v180 = vld [vmem:[%s165 + $0x1c] sm:$0xf]
      %v181 = vld [vmem:[%s165 + $0x20] sm:$0xf]
      %v182 = vld [vmem:[%s165 + $0x24] sm:$0xf]
      %v183 = vld [vmem:[%s165 + $0x28] sm:$0xf]
      %v184 = vld [vmem:[%s165 + $0x2c] sm:$0xf]
      %v185 = vld [vmem:[%s165 + $0x30] sm:$0xf]
      %v186 = vld [vmem:[%s165 + $0x34] sm:$0xf]
      %v187 = vld [vmem:[%s165 + $0x38] sm:$0xf]
      %v188 = vld [vmem:[%s165 + $0x3c] sm:$0xf]
      %v189 = vld [vmem:[%s165 + $0x40] sm:$0xf]
      %v190 = vld [vmem:[%s165 + $0x44] sm:$0xf]
      %v191 = vld [vmem:[%s165 + $0x48] sm:$0xf]
      %v192 = vld [vmem:[%s165 + $0x4c] sm:$0xf]
      %v193 = vld [vmem:[%s165 + $0x50] sm:$0xf]
      %v194 = vld [vmem:[%s165 + $0x54] sm:$0xf]
      %v195 = vld [vmem:[%s165 + $0x58] sm:$0xf]
      %v196 = vld [vmem:[%s165 + $0x5c] sm:$0xf]
      %v197 = vld [vmem:[%s165 + $0x60] sm:$0xf]
      %v198 = vld [vmem:[%s165 + $0x64] sm:$0xf]
      %v199 = vld [vmem:[%s165 + $0x68] sm:$0xf]
      %v200 = vld [vmem:[%s165 + $0x6c] sm:$0xf]
      %v201 = vld [vmem:[%s165 + $0x70] sm:$0xf]
      %v202 = vld [vmem:[%s165 + $0x74] sm:$0xf]
      %v203 = vld [vmem:[%s165 + $0x78] sm:$0xf]
      %v204 = vld [vmem:[%s165 + $0x7c] sm:$0xf]
      %v205 = vld [vmem:[%s165 + $0x80] sm:$0xf]
      %v206 = vld [vmem:[%s165 + $0x84] sm:$0xf]
      %v207 = vld [vmem:[%s1] sm:$0xf]
      %v208 = vld [vmem:[%s1 + $0x4] sm:$0x3]
      %v209 = vld [vmem:[%s165 + $0x88] sm:$0x1]
      %s210 = scalar_lea.vmem %s1, 8
      %v211 = vld [vmem:[%s210] sm:$0xf]
      %v212 = vld [vmem:[%s210 + $0x4] sm:$0x3]
      %v248 = vunpack.c.l.b16 %v173
      %v249 = vunpack.c.l.b16 %v174
      %v250 = vunpack.c.l.b16 %v175
      %v251 = vunpack.c.l.b16 %v176
      %v252 = vunpack.c.l.b16 %v177
      %v253 = vunpack.c.l.b16 %v178
      %v254 = vunpack.c.l.b16 %v179
      %v255 = vunpack.c.l.b16 %v180
      %v256 = vunpack.c.l.b16 %v181
      %v257 = vunpack.c.l.b16 %v182
      %v258 = vunpack.c.l.b16 %v183
      %v259 = vunpack.c.l.b16 %v184
      %v260 = vunpack.c.l.b16 %v185
      %v261 = vunpack.c.l.b16 %v186
      %v262 = vunpack.c.l.b16 %v187
      %v263 = vunpack.c.l.b16 %v188
      %v264 = vunpack.c.l.b16 %v189
      %v265 = vunpack.c.l.b16 %v190
      %v266 = vunpack.c.l.b16 %v191
      %v267 = vunpack.c.l.b16 %v192
      %v268 = vunpack.c.l.b16 %v193
      %v269 = vunpack.c.l.b16 %v194
      %v270 = vunpack.c.l.b16 %v195
      %v271 = vunpack.c.l.b16 %v196
      %v272 = vunpack.c.l.b16 %v197
      %v273 = vunpack.c.l.b16 %v198
      %v274 = vunpack.c.l.b16 %v199
      %v275 = vunpack.c.l.b16 %v200
      %v276 = vunpack.c.l.b16 %v201
      %v277 = vunpack.c.l.b16 %v202
      %v278 = vunpack.c.l.b16 %v203
      %v279 = vunpack.c.l.b16 %v204
      %v280 = vunpack.c.l.b16 %v205
      %v281 = vunpack.c.l.b16 %v206
      %v282 = vunpack.c.l.b16 %v209
      %v283 = vpack.c.b16 %v249, %v248
      %v284 = vpack.c.b16 %v251, %v250
      %v285 = vpack.c.b16 %v253, %v252
      %v286 = vpack.c.b16 %v255, %v254
      %v287 = vpack.c.b16 %v257, %v256
      %v288 = vpack.c.b16 %v259, %v258
      %v289 = vpack.c.b16 %v261, %v260
      %v290 = vpack.c.b16 %v263, %v262
      %v291 = vpack.c.b16 %v265, %v264
      %v292 = vpack.c.b16 %v267, %v266
      %v293 = vpack.c.b16 %v269, %v268
      %v294 = vpack.c.b16 %v271, %v270
      %v295 = vpack.c.b16 %v273, %v272
      %v296 = vpack.c.b16 %v275, %v274
      %v297 = vpack.c.b16 %v277, %v276
      %v298 = vpack.c.b16 %v279, %v278
      %v299 = vpack.c.b16 %v281, %v280
      %v300 = vpack.c.b16 %v282, %v282
      %vm301 = vsmask.f32 7424
      %v303 = vshrl.u32 %v283, 16
      %v305 = vshll.u32 %v283, 16
      %v307 = vrot.slane %v305, 1
      %v308 = vor.u32 %v303, %v307
      %v310 = vshll.u32 %v284, 16
      %v312 = vrot.slane %v310, 1
      %v313 = vsel %vm301, %v308, %v312
      %v314 = vshrl.u32 %v284, 16
      %v316 = vor.u32 %v314, %v312
      %v318 = vshll.u32 %v285, 16
      %v320 = vrot.slane %v318, 1
      %v321 = vsel %vm301, %v316, %v320
      %v322 = vshrl.u32 %v285, 16
      %v324 = vor.u32 %v322, %v320
      %v326 = vshll.u32 %v286, 16
      %v328 = vrot.slane %v326, 1
      %v329 = vsel %vm301, %v324, %v328
      %v330 = vshrl.u32 %v286, 16
      %v332 = vor.u32 %v330, %v328
      %v334 = vshll.u32 %v287, 16
      %v336 = vrot.slane %v334, 1
      %v337 = vsel %vm301, %v332, %v336
      %v338 = vshrl.u32 %v287, 16
      %v340 = vor.u32 %v338, %v336
      %v342 = vshll.u32 %v288, 16
      %v344 = vrot.slane %v342, 1
      %v345 = vsel %vm301, %v340, %v344
      %v346 = vshrl.u32 %v288, 16
      %v348 = vor.u32 %v346, %v344
      %v350 = vshll.u32 %v289, 16
      %v352 = vrot.slane %v350, 1
      %v353 = vsel %vm301, %v348, %v352
      %v354 = vshrl.u32 %v289, 16
      %v356 = vor.u32 %v354, %v352
      %v358 = vshll.u32 %v290, 16
      %v360 = vrot.slane %v358, 1
      %v361 = vsel %vm301, %v356, %v360
      %v362 = vshrl.u32 %v290, 16
      %v364 = vor.u32 %v362, %v360
      %v366 = vshll.u32 %v291, 16
      %v368 = vrot.slane %v366, 1
      %v369 = vsel %vm301, %v364, %v368
      %v370 = vshrl.u32 %v291, 16
      %v372 = vor.u32 %v370, %v368
      %v374 = vshll.u32 %v292, 16
      %v376 = vrot.slane %v374, 1
      %v377 = vsel %vm301, %v372, %v376
      %v378 = vshrl.u32 %v292, 16
      %v380 = vor.u32 %v378, %v376
      %v382 = vshll.u32 %v293, 16
      %v384 = vrot.slane %v382, 1
      %v385 = vsel %vm301, %v380, %v384
      %v386 = vshrl.u32 %v293, 16
      %v388 = vor.u32 %v386, %v384
      %v390 = vshll.u32 %v294, 16
      %v392 = vrot.slane %v390, 1
      %v393 = vsel %vm301, %v388, %v392
      %v394 = vshrl.u32 %v294, 16
      %v396 = vor.u32 %v394, %v392
      %v398 = vshll.u32 %v295, 16
      %v400 = vrot.slane %v398, 1
      %v401 = vsel %vm301, %v396, %v400
      %v402 = vshrl.u32 %v295, 16
      %v404 = vor.u32 %v402, %v400
      %v406 = vshll.u32 %v296, 16
      %v408 = vrot.slane %v406, 1
      %v409 = vsel %vm301, %v404, %v408
      %v410 = vshrl.u32 %v296, 16
      %v412 = vor.u32 %v410, %v408
      %v414 = vshll.u32 %v297, 16
      %v416 = vrot.slane %v414, 1
      %v417 = vsel %vm301, %v412, %v416
      %v418 = vshrl.u32 %v297, 16
      %v420 = vor.u32 %v418, %v416
      %v422 = vshll.u32 %v298, 16
      %v424 = vrot.slane %v422, 1
      %v425 = vsel %vm301, %v420, %v424
      %v426 = vshrl.u32 %v298, 16
      %v428 = vor.u32 %v426, %v424
      %v430 = vshll.u32 %v299, 16
      %v432 = vrot.slane %v430, 1
      %v433 = vsel %vm301, %v428, %v432
      %v434 = vshrl.u32 %v299, 16
      %v436 = vor.u32 %v434, %v432
      %v438 = vshll.u32 %v300, 16
      %v440 = vrot.slane %v438, 1
      %v441 = vsel %vm301, %v436, %v440
      %v444 = vunpack.c.l.b16 %v211
      %v445 = vunpack.c.l.b16 %v212
      %v446 = vpack.c.b16 %v445, %v444
      %vm447 = vcmask 97280
      %v449 = vsel %vm447, %v313, 0
      %v452 = vsel %vm447, %v321, 0
      %v455 = vsel %vm447, %v329, 0
      %v458 = vsel %vm447, %v337, 0
      %v461 = vsel %vm447, %v345, 0
      %v464 = vsel %vm447, %v353, 0
      %v467 = vsel %vm447, %v361, 0
      %v470 = vsel %vm447, %v369, 0
      %v473 = vsel %vm447, %v377, 0
      %v476 = vsel %vm447, %v385, 0
      %v479 = vsel %vm447, %v393, 0
      %v482 = vsel %vm447, %v401, 0
      %v485 = vsel %vm447, %v409, 0
      %v488 = vsel %vm447, %v417, 0
      %v491 = vsel %vm447, %v425, 0
      %v494 = vsel %vm447, %v433, 0
      %v497 = vsel %vm447, %v441, 0
      %vm499 = vcmask 1045504
      %v501 = vsel %vm499, %v446, 0
      %503 = vmatprep.subr.bf16.mxu0 0
      %504 = vmatpush1.bf16.msra.mxu0 %v501
      %505 = vmatprep.subr.bf16.mxu0 0
      %506 = vmatpush1.bf16.msra.mxu0 0
      %507 = vmatprep.subr.bf16.mxu0 0
      %508 = vmatpush1.bf16.msra.mxu0 0
      %509 = vmatprep.subr.bf16.mxu0 0
      %510 = vmatpush1.bf16.msra.mxu0 0
      %511 = vmatprep.subr.bf16.mxu0 0
      %512 = vmatpush1.bf16.msra.mxu0 0
      %513 = vmatprep.subr.bf16.mxu0 0
      %514 = vmatpush1.bf16.msra.mxu0 0
      %515 = vmatprep.subr.bf16.mxu0 0
      %516 = vmatpush1.bf16.msra.mxu0 0
      %517 = vmatprep.subr.bf16.mxu0 0
      %518 = vmatpush1.bf16.msra.mxu0 0
      %519 = vmatprep.subr.bf16.mxu0 0
      %520 = vmatpush1.bf16.msra.mxu0 0
      %521 = vmatprep.subr.bf16.mxu0 0
      %522 = vmatpush1.bf16.msra.mxu0 0
      %523 = vmatprep.subr.bf16.mxu0 0
      %524 = vmatpush1.bf16.msra.mxu0 0
      %525 = vmatprep.subr.bf16.mxu0 0
      %526 = vmatpush1.bf16.msra.mxu0 0
      %527 = vmatprep.subr.bf16.mxu0 0
      %528 = vmatpush1.bf16.msra.mxu0 0
      %529 = vmatprep.subr.bf16.mxu0 0
      %530 = vmatpush1.bf16.msra.mxu0 0
      %531 = vmatprep.subr.bf16.mxu0 0
      %532 = vmatpush1.bf16.msra.mxu0 0
      %533 = vmatprep.subr.bf16.mxu0 0
      %534 = vmatpush1.bf16.msra.mxu0 0
      %535 = vmatprep.mubr.bf16.mxu0 0
      %536 = vmatmul.mubr.bf16.gmra.mrb[0].mxu0 %v449
      %v537 = vpop.f32.mrb[0].mxu0
      %v538 = vadd.f32 0.0, %v537
      %v539 = vpop.f32.mrb[0].mxu0
      %v540 = vpop.f32.mrb[0].mxu0
      %v541 = vadd.f32 0.0, %v540
      %v542 = vpop.f32.mrb[0].mxu0
      %543 = vmatprep.mubr.bf16.mxu0 0
      %544 = vmatmul.mubr.bf16.gmra.mrb[0].mxu0 %v452
      %v545 = vpop.f32.mrb[0].mxu0
      %v546 = vadd.f32 0.0, %v545
      %v547 = vpop.f32.mrb[0].mxu0
      %v548 = vpop.f32.mrb[0].mxu0
      %v549 = vadd.f32 0.0, %v548
      %v550 = vpop.f32.mrb[0].mxu0
      %551 = vmatprep.mubr.bf16.mxu0 0
      %552 = vmatmul.mubr.bf16.gmra.mrb[0].mxu0 %v455
      %v553 = vpop.f32.mrb[0].mxu0
      %v554 = vadd.f32 0.0, %v553
      %v555 = vpop.f32.mrb[0].mxu0
      %v556 = vpop.f32.mrb[0].mxu0
      %v557 = vadd.f32 0.0, %v556
      %v558 = vpop.f32.mrb[0].mxu0
      %559 = vmatprep.mubr.bf16.mxu0 0
      %560 = vmatmul.mubr.bf16.gmra.mrb[0].mxu0 %v458
      %v561 = vpop.f32.mrb[0].mxu0
      %v562 = vadd.f32 0.0, %v561
      %v563 = vpop.f32.mrb[0].mxu0
      %v564 = vpop.f32.mrb[0].mxu0
      %v565 = vadd.f32 0.0, %v564
      %v566 = vpop.f32.mrb[0].mxu0
      %567 = vmatprep.mubr.bf16.mxu0 0
      %568 = vmatmul.mubr.bf16.gmra.mrb[0].mxu0 %v461
      %v569 = vpop.f32.mrb[0].mxu0
      %v570 = vadd.f32 0.0, %v569
      %v571 = vpop.f32.mrb[0].mxu0
      %v572 = vpop.f32.mrb[0].mxu0
      %v573 = vadd.f32 0.0, %v572
      %v574 = vpop.f32.mrb[0].mxu0
      %575 = vmatprep.mubr.bf16.mxu0 0
      %576 = vmatmul.mubr.bf16.gmra.mrb[0].mxu0 %v464
      %v577 = vpop.f32.mrb[0].mxu0
      %v578 = vadd.f32 0.0, %v577
      %v579 = vpop.f32.mrb[0].mxu0
      %v580 = vpop.f32.mrb[0].mxu0
      %v581 = vadd.f32 0.0, %v580
      %v582 = vpop.f32.mrb[0].mxu0
      %583 = vmatprep.mubr.bf16.mxu0 0
      %584 = vmatmul.mubr.bf16.gmra.mrb[0].mxu0 %v467
      %v585 = vpop.f32.mrb[0].mxu0
      %v586 = vadd.f32 0.0, %v585
      %v587 = vpop.f32.mrb[0].mxu0
      %v588 = vpop.f32.mrb[0].mxu0
      %v589 = vadd.f32 0.0, %v588
      %v590 = vpop.f32.mrb[0].mxu0
      %591 = vmatprep.mubr.bf16.mxu0 0
      %592 = vmatmul.mubr.bf16.gmra.mrb[0].mxu0 %v470
      %v593 = vpop.f32.mrb[0].mxu0
      %v594 = vadd.f32 0.0, %v593
      %v595 = vpop.f32.mrb[0].mxu0
      %v596 = vpop.f32.mrb[0].mxu0
      %v597 = vadd.f32 0.0, %v596
      %v598 = vpop.f32.mrb[0].mxu0
      %599 = vmatprep.mubr.bf16.mxu0 0
      %600 = vmatmul.mubr.bf16.gmra.mrb[0].mxu0 %v473
      %v601 = vpop.f32.mrb[0].mxu0
      %v602 = vadd.f32 0.0, %v601
      %v603 = vpop.f32.mrb[0].mxu0
      %v604 = vpop.f32.mrb[0].mxu0
      %v605 = vadd.f32 0.0, %v604
      %v606 = vpop.f32.mrb[0].mxu0
      %607 = vmatprep.mubr.bf16.mxu0 0
      %608 = vmatmul.mubr.bf16.gmra.mrb[0].mxu0 %v476
      %v609 = vpop.f32.mrb[0].mxu0
      %v610 = vadd.f32 0.0, %v609
      %v611 = vpop.f32.mrb[0].mxu0
      %v612 = vpop.f32.mrb[0].mxu0
      %v613 = vadd.f32 0.0, %v612
      %v614 = vpop.f32.mrb[0].mxu0
      %615 = vmatprep.mubr.bf16.mxu0 0
      %616 = vmatmul.mubr.bf16.gmra.mrb[0].mxu0 %v479
      %v617 = vpop.f32.mrb[0].mxu0
      %v618 = vadd.f32 0.0, %v617
      %v619 = vpop.f32.mrb[0].mxu0
      %v620 = vpop.f32.mrb[0].mxu0
      %v621 = vadd.f32 0.0, %v620
      %v622 = vpop.f32.mrb[0].mxu0
      %623 = vmatprep.mubr.bf16.mxu0 0
      %624 = vmatmul.mubr.bf16.gmra.mrb[0].mxu0 %v482
      %v625 = vpop.f32.mrb[0].mxu0
      %v626 = vadd.f32 0.0, %v625
      %v627 = vpop.f32.mrb[0].mxu0
      %v628 = vpop.f32.mrb[0].mxu0
      %v629 = vadd.f32 0.0, %v628
      %v630 = vpop.f32.mrb[0].mxu0
      %631 = vmatprep.mubr.bf16.mxu0 0
      %632 = vmatmul.mubr.bf16.gmra.mrb[0].mxu0 %v485
      %v633 = vpop.f32.mrb[0].mxu0
      %v634 = vadd.f32 0.0, %v633
      %v635 = vpop.f32.mrb[0].mxu0
      %v636 = vpop.f32.mrb[0].mxu0
      %v637 = vadd.f32 0.0, %v636
      %v638 = vpop.f32.mrb[0].mxu0
      %639 = vmatprep.mubr.bf16.mxu0 0
      %640 = vmatmul.mubr.bf16.gmra.mrb[0].mxu0 %v488
      %v641 = vpop.f32.mrb[0].mxu0
      %v642 = vadd.f32 0.0, %v641
      %v643 = vpop.f32.mrb[0].mxu0
      %v644 = vpop.f32.mrb[0].mxu0
      %v645 = vadd.f32 0.0, %v644
      %v646 = vpop.f32.mrb[0].mxu0
      %647 = vmatprep.mubr.bf16.mxu0 0
      %648 = vmatmul.mubr.bf16.gmra.mrb[0].mxu0 %v491
      %v649 = vpop.f32.mrb[0].mxu0
      %v650 = vadd.f32 0.0, %v649
      %v651 = vpop.f32.mrb[0].mxu0
      %v652 = vpop.f32.mrb[0].mxu0
      %v653 = vadd.f32 0.0, %v652
      %v654 = vpop.f32.mrb[0].mxu0
      %655 = vmatprep.mubr.bf16.mxu0 0
      %656 = vmatmul.mubr.bf16.gmra.mrb[0].mxu0 %v494
      %v657 = vpop.f32.mrb[0].mxu0
      %v658 = vadd.f32 0.0, %v657
      %v659 = vpop.f32.mrb[0].mxu0
      %v660 = vpop.f32.mrb[0].mxu0
      %v661 = vadd.f32 0.0, %v660
      %v662 = vpop.f32.mrb[0].mxu0
      %663 = vmatprep.mubr.bf16.mxu0 0
      %664 = vmatmul.mubr.bf16.gmra.mrb[0].mxu0 %v497
      %v665 = vpop.f32.mrb[0].mxu0
      %v666 = vadd.f32 0.0, %v665
      %v667 = vpop.f32.mrb[0].mxu0
      %v668 = vpop.f32.mrb[0].mxu0
      %v669 = vadd.f32 0.0, %v668
      %v670 = vpop.f32.mrb[0].mxu0
      %671 = vdwg.mxu0
      %v674 = vunpack.c.l.b16 %v207
      %v675 = vunpack.c.l.b16 %v208
      %v676 = vpack.c.b16 %v675, %v674
      %v677 = vsel %vm447, %v283, 0
      %v679 = vsel %vm447, %v284, 0
      %v681 = vsel %vm447, %v285, 0
      %v683 = vsel %vm447, %v286, 0
      %v685 = vsel %vm447, %v287, 0
      %v687 = vsel %vm447, %v288, 0
      %v689 = vsel %vm447, %v289, 0
      %v691 = vsel %vm447, %v290, 0
      %v693 = vsel %vm447, %v291, 0
      %v695 = vsel %vm447, %v292, 0
      %v697 = vsel %vm447, %v293, 0
      %v699 = vsel %vm447, %v294, 0
      %v701 = vsel %vm447, %v295, 0
      %v703 = vsel %vm447, %v296, 0
      %v705 = vsel %vm447, %v297, 0
      %v707 = vsel %vm447, %v298, 0
      %v709 = vsel %vm447, %v299, 0
      %v712 = vsel %vm499, %v676, 0
      %714 = vmatprep.subr.bf16.mxu0 0
      %715 = vmatpush1.bf16.msra.mxu0 %v712
      %716 = vmatprep.subr.bf16.mxu0 0
      %717 = vmatpush1.bf16.msra.mxu0 0
      %718 = vmatprep.subr.bf16.mxu0 0
      %719 = vmatpush1.bf16.msra.mxu0 0
      %720 = vmatprep.subr.bf16.mxu0 0
      %721 = vmatpush1.bf16.msra.mxu0 0
      %722 = vmatprep.subr.bf16.mxu0 0
      %723 = vmatpush1.bf16.msra.mxu0 0
      %724 = vmatprep.subr.bf16.mxu0 0
      %725 = vmatpush1.bf16.msra.mxu0 0
      %726 = vmatprep.subr.bf16.mxu0 0
      %727 = vmatpush1.bf16.msra.mxu0 0
      %728 = vmatprep.subr.bf16.mxu0 0
      %729 = vmatpush1.bf16.msra.mxu0 0
      %730 = vmatprep.subr.bf16.mxu0 0
      %731 = vmatpush1.bf16.msra.mxu0 0
      %732 = vmatprep.subr.bf16.mxu0 0
      %733 = vmatpush1.bf16.msra.mxu0 0
      %734 = vmatprep.subr.bf16.mxu0 0
      %735 = vmatpush1.bf16.msra.mxu0 0
      %736 = vmatprep.subr.bf16.mxu0 0
      %737 = vmatpush1.bf16.msra.mxu0 0
      %738 = vmatprep.subr.bf16.mxu0 0
      %739 = vmatpush1.bf16.msra.mxu0 0
      %740 = vmatprep.subr.bf16.mxu0 0
      %741 = vmatpush1.bf16.msra.mxu0 0
      %742 = vmatprep.subr.bf16.mxu0 0
      %743 = vmatpush1.bf16.msra.mxu0 0
      %744 = vmatprep.subr.bf16.mxu0 0
      %745 = vmatpush1.bf16.msra.mxu0 0
      %746 = vmatprep.mubr.bf16.mxu0 0
      %747 = vmatmul.mubr.bf16.gmra.mrb[0].mxu0 %v677
      %v748 = vpop.f32.mrb[0].mxu0
      %v749 = vadd.f32 %v538, %v748
      %v750 = vpop.f32.mrb[0].mxu0
      %v751 = vpop.f32.mrb[0].mxu0
      %v752 = vadd.f32 %v541, %v751
      %v753 = vpop.f32.mrb[0].mxu0
      %754 = vmatprep.mubr.bf16.mxu0 0
      %755 = vmatmul.mubr.bf16.gmra.mrb[0].mxu0 %v679
      %v756 = vpop.f32.mrb[0].mxu0
      %v757 = vadd.f32 %v546, %v756
      %v758 = vpop.f32.mrb[0].mxu0
      %v759 = vpop.f32.mrb[0].mxu0
      %v760 = vadd.f32 %v549, %v759
      %v761 = vpop.f32.mrb[0].mxu0
      %762 = vmatprep.mubr.bf16.mxu0 0
      %763 = vmatmul.mubr.bf16.gmra.mrb[0].mxu0 %v681
      %v764 = vpop.f32.mrb[0].mxu0
      %v765 = vadd.f32 %v554, %v764
      %v766 = vpop.f32.mrb[0].mxu0
      %v767 = vpop.f32.mrb[0].mxu0
      %v768 = vadd.f32 %v557, %v767
      %v769 = vpop.f32.mrb[0].mxu0
      %770 = vmatprep.mubr.bf16.mxu0 0
      %771 = vmatmul.mubr.bf16.gmra.mrb[0].mxu0 %v683
      %v772 = vpop.f32.mrb[0].mxu0
      %v773 = vadd.f32 %v562, %v772
      %v774 = vpop.f32.mrb[0].mxu0
      %v775 = vpop.f32.mrb[0].mxu0
      %v776 = vadd.f32 %v565, %v775
      %v777 = vpop.f32.mrb[0].mxu0
      %778 = vmatprep.mubr.bf16.mxu0 0
      %779 = vmatmul.mubr.bf16.gmra.mrb[0].mxu0 %v685
      %v780 = vpop.f32.mrb[0].mxu0
      %v781 = vadd.f32 %v570, %v780
      %v782 = vpop.f32.mrb[0].mxu0
      %v783 = vpop.f32.mrb[0].mxu0
      %v784 = vadd.f32 %v573, %v783
      %v785 = vpop.f32.mrb[0].mxu0
      %786 = vmatprep.mubr.bf16.mxu0 0
      %787 = vmatmul.mubr.bf16.gmra.mrb[0].mxu0 %v687
      %v788 = vpop.f32.mrb[0].mxu0
      %v789 = vadd.f32 %v578, %v788
      %v790 = vpop.f32.mrb[0].mxu0
      %v791 = vpop.f32.mrb[0].mxu0
      %v792 = vadd.f32 %v581, %v791
      %v793 = vpop.f32.mrb[0].mxu0
      %794 = vmatprep.mubr.bf16.mxu0 0
      %795 = vmatmul.mubr.bf16.gmra.mrb[0].mxu0 %v689
      %v796 = vpop.f32.mrb[0].mxu0
      %v797 = vadd.f32 %v586, %v796
      %v798 = vpop.f32.mrb[0].mxu0
      %v799 = vpop.f32.mrb[0].mxu0
      %v800 = vadd.f32 %v589, %v799
      %v801 = vpop.f32.mrb[0].mxu0
      %802 = vmatprep.mubr.bf16.mxu0 0
      %803 = vmatmul.mubr.bf16.gmra.mrb[0].mxu0 %v691
      %v804 = vpop.f32.mrb[0].mxu0
      %v805 = vadd.f32 %v594, %v804
      %v806 = vpop.f32.mrb[0].mxu0
      %v807 = vpop.f32.mrb[0].mxu0
      %v808 = vadd.f32 %v597, %v807
      %v809 = vpop.f32.mrb[0].mxu0
      %810 = vmatprep.mubr.bf16.mxu0 0
      %811 = vmatmul.mubr.bf16.gmra.mrb[0].mxu0 %v693
      %v812 = vpop.f32.mrb[0].mxu0
      %v813 = vadd.f32 %v602, %v812
      %v814 = vpop.f32.mrb[0].mxu0
      %v815 = vpop.f32.mrb[0].mxu0
      %v816 = vadd.f32 %v605, %v815
      %v817 = vpop.f32.mrb[0].mxu0
      %818 = vmatprep.mubr.bf16.mxu0 0
      %819 = vmatmul.mubr.bf16.gmra.mrb[0].mxu0 %v695
      %v820 = vpop.f32.mrb[0].mxu0
      %v821 = vadd.f32 %v610, %v820
      %v822 = vpop.f32.mrb[0].mxu0
      %v823 = vpop.f32.mrb[0].mxu0
      %v824 = vadd.f32 %v613, %v823
      %v825 = vpop.f32.mrb[0].mxu0
      %826 = vmatprep.mubr.bf16.mxu0 0
      %827 = vmatmul.mubr.bf16.gmra.mrb[0].mxu0 %v697
      %v828 = vpop.f32.mrb[0].mxu0
      %v829 = vadd.f32 %v618, %v828
      %v830 = vpop.f32.mrb[0].mxu0
      %v831 = vpop.f32.mrb[0].mxu0
      %v832 = vadd.f32 %v621, %v831
      %v833 = vpop.f32.mrb[0].mxu0
      %834 = vmatprep.mubr.bf16.mxu0 0
      %835 = vmatmul.mubr.bf16.gmra.mrb[0].mxu0 %v699
      %v836 = vpop.f32.mrb[0].mxu0
      %v837 = vadd.f32 %v626, %v836
      %v838 = vpop.f32.mrb[0].mxu0
      %v839 = vpop.f32.mrb[0].mxu0
      %v840 = vadd.f32 %v629, %v839
      %v841 = vpop.f32.mrb[0].mxu0
      %842 = vmatprep.mubr.bf16.mxu0 0
      %843 = vmatmul.mubr.bf16.gmra.mrb[0].mxu0 %v701
      %v844 = vpop.f32.mrb[0].mxu0
      %v845 = vadd.f32 %v634, %v844
      %v846 = vpop.f32.mrb[0].mxu0
      %v847 = vpop.f32.mrb[0].mxu0
      %v848 = vadd.f32 %v637, %v847
      %v849 = vpop.f32.mrb[0].mxu0
      %850 = vmatprep.mubr.bf16.mxu0 0
      %851 = vmatmul.mubr.bf16.gmra.mrb[0].mxu0 %v703
      %v852 = vpop.f32.mrb[0].mxu0
      %v853 = vadd.f32 %v642, %v852
      %v854 = vpop.f32.mrb[0].mxu0
      %v855 = vpop.f32.mrb[0].mxu0
      %v856 = vadd.f32 %v645, %v855
      %v857 = vpop.f32.mrb[0].mxu0
      %858 = vmatprep.mubr.bf16.mxu0 0
      %859 = vmatmul.mubr.bf16.gmra.mrb[0].mxu0 %v705
      %v860 = vpop.f32.mrb[0].mxu0
      %v861 = vadd.f32 %v650, %v860
      %v862 = vpop.f32.mrb[0].mxu0
      %v863 = vpop.f32.mrb[0].mxu0
      %v864 = vadd.f32 %v653, %v863
      %v865 = vpop.f32.mrb[0].mxu0
      %866 = vmatprep.mubr.bf16.mxu0 0
      %867 = vmatmul.mubr.bf16.gmra.mrb[0].mxu0 %v707
      %v868 = vpop.f32.mrb[0].mxu0
      %v869 = vadd.f32 %v658, %v868
      %v870 = vpop.f32.mrb[0].mxu0
      %v871 = vpop.f32.mrb[0].mxu0
      %v872 = vadd.f32 %v661, %v871
      %v873 = vpop.f32.mrb[0].mxu0
      %874 = vmatprep.mubr.bf16.mxu0 0
      %875 = vmatmul.mubr.bf16.gmra.mrb[0].mxu0 %v709
      %v876 = vpop.f32.mrb[0].mxu0
      %v877 = vadd.f32 %v666, %v876
      %v878 = vpop.f32.mrb[0].mxu0
      %v879 = vpop.f32.mrb[0].mxu0
      %v880 = vadd.f32 %v669, %v879
      %v881 = vpop.f32.mrb[0].mxu0
      %882 = vdwg.mxu0
      %v883 = vld [vmem:[%s165 + $0x8] sm:$0xf]
      %v884 = vld [vmem:[%s165 + $0xc] sm:$0xf]
      %v885 = vld [vmem:[%s165 + $0x10] sm:$0xf]
      %v886 = vld [vmem:[%s165 + $0x14] sm:$0xf]
      %v887 = vld [vmem:[%s165 + $0x18] sm:$0xf]
      %v888 = vld [vmem:[%s165 + $0x1c] sm:$0xf]
      %v889 = vld [vmem:[%s165 + $0x20] sm:$0xf]
      %v890 = vld [vmem:[%s165 + $0x24] sm:$0xf]
      %v891 = vld [vmem:[%s165 + $0x28] sm:$0xf]
      %v892 = vld [vmem:[%s165 + $0x2c] sm:$0xf]
      %v893 = vld [vmem:[%s165 + $0x30] sm:$0xf]
      %v894 = vld [vmem:[%s165 + $0x34] sm:$0xf]
      %v895 = vld [vmem:[%s165 + $0x38] sm:$0xf]
      %v896 = vld [vmem:[%s165 + $0x3c] sm:$0xf]
      %v897 = vld [vmem:[%s165 + $0x40] sm:$0xf]
      %v898 = vld [vmem:[%s165 + $0x44] sm:$0xf]
      %v899 = vld [vmem:[%s165 + $0x48] sm:$0xf]
      %v900 = vld [vmem:[%s165 + $0x4c] sm:$0xf]
      %v901 = vld [vmem:[%s165 + $0x50] sm:$0xf]
      %v902 = vld [vmem:[%s165 + $0x54] sm:$0xf]
      %v903 = vld [vmem:[%s165 + $0x58] sm:$0xf]
      %v904 = vld [vmem:[%s165 + $0x5c] sm:$0xf]
      %v905 = vld [vmem:[%s165 + $0x60] sm:$0xf]
      %v906 = vld [vmem:[%s165 + $0x64] sm:$0xf]
      %v907 = vld [vmem:[%s165 + $0x68] sm:$0xf]
      %v908 = vld [vmem:[%s165 + $0x6c] sm:$0xf]
      %v909 = vld [vmem:[%s165 + $0x70] sm:$0xf]
      %v910 = vld [vmem:[%s165 + $0x74] sm:$0xf]
      %v911 = vld [vmem:[%s165 + $0x78] sm:$0xf]
      %v912 = vld [vmem:[%s165 + $0x7c] sm:$0xf]
      %v913 = vld [vmem:[%s165 + $0x80] sm:$0xf]
      %v914 = vld [vmem:[%s165 + $0x84] sm:$0xf]
      %v915 = vld [vmem:[%s165 + $0x88] sm:$0xf]
      %v916 = vld [vmem:[%s165 + $0x8c] sm:$0xf]
      %v917 = vld [vmem:[%s165 + $0x90] sm:$0x1]
      %s918 = scalar_lea.vmem %s1, 16
      %v919 = vld [vmem:[%s918] sm:$0xf]
      %v920 = vld [vmem:[%s918 + $0x4] sm:$0x3]
      %v956 = vunpack.c.l.b16 %v883
      %v957 = vunpack.c.l.b16 %v884
      %v958 = vunpack.c.l.b16 %v885
      %v959 = vunpack.c.l.b16 %v886
      %v960 = vunpack.c.l.b16 %v887
      %v961 = vunpack.c.l.b16 %v888
      %v962 = vunpack.c.l.b16 %v889
      %v963 = vunpack.c.l.b16 %v890
      %v964 = vunpack.c.l.b16 %v891
      %v965 = vunpack.c.l.b16 %v892
      %v966 = vunpack.c.l.b16 %v893
      %v967 = vunpack.c.l.b16 %v894
      %v968 = vunpack.c.l.b16 %v895
      %v969 = vunpack.c.l.b16 %v896
      %v970 = vunpack.c.l.b16 %v897
      %v971 = vunpack.c.l.b16 %v898
      %v972 = vunpack.c.l.b16 %v899
      %v973 = vunpack.c.l.b16 %v900
      %v974 = vunpack.c.l.b16 %v901
      %v975 = vunpack.c.l.b16 %v902
      %v976 = vunpack.c.l.b16 %v903
      %v977 = vunpack.c.l.b16 %v904
      %v978 = vunpack.c.l.b16 %v905
      %v979 = vunpack.c.l.b16 %v906
      %v980 = vunpack.c.l.b16 %v907
      %v981 = vunpack.c.l.b16 %v908
      %v982 = vunpack.c.l.b16 %v909
      %v983 = vunpack.c.l.b16 %v910
      %v984 = vunpack.c.l.b16 %v911
      %v985 = vunpack.c.l.b16 %v912
      %v986 = vunpack.c.l.b16 %v913
      %v987 = vunpack.c.l.b16 %v914
      %v988 = vunpack.c.l.b16 %v915
      %v989 = vunpack.c.l.b16 %v916
      %v990 = vunpack.c.l.b16 %v917
      %v991 = vpack.c.b16 %v957, %v956
      %v992 = vpack.c.b16 %v959, %v958
      %v993 = vpack.c.b16 %v961, %v960
      %v994 = vpack.c.b16 %v963, %v962
      %v995 = vpack.c.b16 %v965, %v964
      %v996 = vpack.c.b16 %v967, %v966
      %v997 = vpack.c.b16 %v969, %v968
      %v998 = vpack.c.b16 %v971, %v970
      %v999 = vpack.c.b16 %v973, %v972
      %v1000 = vpack.c.b16 %v975, %v974
      %v1001 = vpack.c.b16 %v977, %v976
      %v1002 = vpack.c.b16 %v979, %v978
      %v1003 = vpack.c.b16 %v981, %v980
      %v1004 = vpack.c.b16 %v983, %v982
      %v1005 = vpack.c.b16 %v985, %v984
      %v1006 = vpack.c.b16 %v987, %v986
      %v1007 = vpack.c.b16 %v989, %v988
      %v1008 = vpack.c.b16 %v990, %v990
      %v1010 = vshrl.u32 %v991, 16
      %v1012 = vshll.u32 %v991, 16
      %v1014 = vrot.slane %v1012, 1
      %v1015 = vor.u32 %v1010, %v1014
      %v1017 = vshll.u32 %v992, 16
      %v1019 = vrot.slane %v1017, 1
      %v1020 = vsel %vm301, %v1015, %v1019
      %v1021 = vshrl.u32 %v992, 16
      %v1023 = vor.u32 %v1021, %v1019
      %v1025 = vshll.u32 %v993, 16
      %v1027 = vrot.slane %v1025, 1
      %v1028 = vsel %vm301, %v1023, %v1027
      %v1029 = vshrl.u32 %v993, 16
      %v1031 = vor.u32 %v1029, %v1027
      %v1033 = vshll.u32 %v994, 16
      %v1035 = vrot.slane %v1033, 1
      %v1036 = vsel %vm301, %v1031, %v1035
      %v1037 = vshrl.u32 %v994, 16
      %v1039 = vor.u32 %v1037, %v1035
      %v1041 = vshll.u32 %v995, 16
      %v1043 = vrot.slane %v1041, 1
      %v1044 = vsel %vm301, %v1039, %v1043
      %v1045 = vshrl.u32 %v995, 16
      %v1047 = vor.u32 %v1045, %v1043
      %v1049 = vshll.u32 %v996, 16
      %v1051 = vrot.slane %v1049, 1
      %v1052 = vsel %vm301, %v1047, %v1051
      %v1053 = vshrl.u32 %v996, 16
      %v1055 = vor.u32 %v1053, %v1051
      %v1057 = vshll.u32 %v997, 16
      %v1059 = vrot.slane %v1057, 1
      %v1060 = vsel %vm301, %v1055, %v1059
      %v1061 = vshrl.u32 %v997, 16
      %v1063 = vor.u32 %v1061, %v1059
      %v1065 = vshll.u32 %v998, 16
      %v1067 = vrot.slane %v1065, 1
      %v1068 = vsel %vm301, %v1063, %v1067
      %v1069 = vshrl.u32 %v998, 16
      %v1071 = vor.u32 %v1069, %v1067
      %v1073 = vshll.u32 %v999, 16
      %v1075 = vrot.slane %v1073, 1
      %v1076 = vsel %vm301, %v1071, %v1075
      %v1077 = vshrl.u32 %v999, 16
      %v1079 = vor.u32 %v1077, %v1075
      %v1081 = vshll.u32 %v1000, 16
      %v1083 = vrot.slane %v1081, 1
      %v1084 = vsel %vm301, %v1079, %v1083
      %v1085 = vshrl.u32 %v1000, 16
      %v1087 = vor.u32 %v1085, %v1083
      %v1089 = vshll.u32 %v1001, 16
      %v1091 = vrot.slane %v1089, 1
      %v1092 = vsel %vm301, %v1087, %v1091
      %v1093 = vshrl.u32 %v1001, 16
      %v1095 = vor.u32 %v1093, %v1091
      %v1097 = vshll.u32 %v1002, 16
      %v1099 = vrot.slane %v1097, 1
      %v1100 = vsel %vm301, %v1095, %v1099
      %v1101 = vshrl.u32 %v1002, 16
      %v1103 = vor.u32 %v1101, %v1099
      %v1105 = vshll.u32 %v1003, 16
      %v1107 = vrot.slane %v1105, 1
      %v1108 = vsel %vm301, %v1103, %v1107
      %v1109 = vshrl.u32 %v1003, 16
      %v1111 = vor.u32 %v1109, %v1107
      %v1113 = vshll.u32 %v1004, 16
      %v1115 = vrot.slane %v1113, 1
      %v1116 = vsel %vm301, %v1111, %v1115
      %v1117 = vshrl.u32 %v1004, 16
      %v1119 = vor.u32 %v1117, %v1115
      %v1121 = vshll.u32 %v1005, 16
      %v1123 = vrot.slane %v1121, 1
      %v1124 = vsel %vm301, %v1119, %v1123
      %v1125 = vshrl.u32 %v1005, 16
      %v1127 = vor.u32 %v1125, %v1123
      %v1129 = vshll.u32 %v1006, 16
      %v1131 = vrot.slane %v1129, 1
      %v1132 = vsel %vm301, %v1127, %v1131
      %v1133 = vshrl.u32 %v1006, 16
      %v1135 = vor.u32 %v1133, %v1131
      %v1137 = vshll.u32 %v1007, 16
      %v1139 = vrot.slane %v1137, 1
      %v1140 = vsel %vm301, %v1135, %v1139
      %v1141 = vshrl.u32 %v1007, 16
      %v1143 = vor.u32 %v1141, %v1139
      %v1145 = vshll.u32 %v1008, 16
      %v1147 = vrot.slane %v1145, 1
      %v1148 = vsel %vm301, %v1143, %v1147
      %v1151 = vunpack.c.l.b16 %v919
      %v1152 = vunpack.c.l.b16 %v920
      %v1153 = vpack.c.b16 %v1152, %v1151
      %v1155 = vsel %vm447, %v1020, 0
      %v1158 = vsel %vm447, %v1028, 0
      %v1161 = vsel %vm447, %v1036, 0
      %v1164 = vsel %vm447, %v1044, 0
      %v1167 = vsel %vm447, %v1052, 0
      %v1170 = vsel %vm447, %v1060, 0
      %v1173 = vsel %vm447, %v1068, 0
      %v1176 = vsel %vm447, %v1076, 0
      %v1179 = vsel %vm447, %v1084, 0
      %v1182 = vsel %vm447, %v1092, 0
      %v1185 = vsel %vm447, %v1100, 0
      %v1188 = vsel %vm447, %v1108, 0
      %v1191 = vsel %vm447, %v1116, 0
      %v1194 = vsel %vm447, %v1124, 0
      %v1197 = vsel %vm447, %v1132, 0
      %v1200 = vsel %vm447, %v1140, 0
      %v1203 = vsel %vm447, %v1148, 0
      %v1206 = vsel %vm499, %v1153, 0
      %1208 = vmatprep.subr.bf16.mxu0 0
      %1209 = vmatpush1.bf16.msra.mxu0 %v1206
      %1210 = vmatprep.subr.bf16.mxu0 0
      %1211 = vmatpush1.bf16.msra.mxu0 0
      %1212 = vmatprep.subr.bf16.mxu0 0
      %1213 = vmatpush1.bf16.msra.mxu0 0
      %1214 = vmatprep.subr.bf16.mxu0 0
      %1215 = vmatpush1.bf16.msra.mxu0 0
      %1216 = vmatprep.subr.bf16.mxu0 0
      %1217 = vmatpush1.bf16.msra.mxu0 0
      %1218 = vmatprep.subr.bf16.mxu0 0
      %1219 = vmatpush1.bf16.msra.mxu0 0
      %1220 = vmatprep.subr.bf16.mxu0 0
      %1221 = vmatpush1.bf16.msra.mxu0 0
      %1222 = vmatprep.subr.bf16.mxu0 0
      %1223 = vmatpush1.bf16.msra.mxu0 0
      %1224 = vmatprep.subr.bf16.mxu0 0
      %1225 = vmatpush1.bf16.msra.mxu0 0
      %1226 = vmatprep.subr.bf16.mxu0 0
      %1227 = vmatpush1.bf16.msra.mxu0 0
      %1228 = vmatprep.subr.bf16.mxu0 0
      %1229 = vmatpush1.bf16.msra.mxu0 0
      %1230 = vmatprep.subr.bf16.mxu0 0
      %1231 = vmatpush1.bf16.msra.mxu0 0
      %1232 = vmatprep.subr.bf16.mxu0 0
      %1233 = vmatpush1.bf16.msra.mxu0 0
      %1234 = vmatprep.subr.bf16.mxu0 0
      %1235 = vmatpush1.bf16.msra.mxu0 0
      %1236 = vmatprep.subr.bf16.mxu0 0
      %1237 = vmatpush1.bf16.msra.mxu0 0
      %1238 = vmatprep.subr.bf16.mxu0 0
      %1239 = vmatpush1.bf16.msra.mxu0 0
      %1240 = vmatprep.mubr.bf16.mxu0 0
      %1241 = vmatmul.mubr.bf16.gmra.mrb[0].mxu0 %v1155
      %v1242 = vpop.f32.mrb[0].mxu0
      %v1243 = vadd.f32 0.0, %v1242
      %v1244 = vpop.f32.mrb[0].mxu0
      %v1245 = vpop.f32.mrb[0].mxu0
      %v1246 = vadd.f32 0.0, %v1245
      %v1247 = vpop.f32.mrb[0].mxu0
      %1248 = vmatprep.mubr.bf16.mxu0 0
      %1249 = vmatmul.mubr.bf16.gmra.mrb[0].mxu0 %v1158
      %v1250 = vpop.f32.mrb[0].mxu0
      %v1251 = vadd.f32 0.0, %v1250
      %v1252 = vpop.f32.mrb[0].mxu0
      %v1253 = vpop.f32.mrb[0].mxu0
      %v1254 = vadd.f32 0.0, %v1253
      %v1255 = vpop.f32.mrb[0].mxu0
      %1256 = vmatprep.mubr.bf16.mxu0 0
      %1257 = vmatmul.mubr.bf16.gmra.mrb[0].mxu0 %v1161
      %v1258 = vpop.f32.mrb[0].mxu0
      %v1259 = vadd.f32 0.0, %v1258
      %v1260 = vpop.f32.mrb[0].mxu0
      %v1261 = vpop.f32.mrb[0].mxu0
      %v1262 = vadd.f32 0.0, %v1261
      %v1263 = vpop.f32.mrb[0].mxu0
      %1264 = vmatprep.mubr.bf16.mxu0 0
      %1265 = vmatmul.mubr.bf16.gmra.mrb[0].mxu0 %v1164
      %v1266 = vpop.f32.mrb[0].mxu0
      %v1267 = vadd.f32 0.0, %v1266
      %v1268 = vpop.f32.mrb[0].mxu0
      %v1269 = vpop.f32.mrb[0].mxu0
      %v1270 = vadd.f32 0.0, %v1269
      %v1271 = vpop.f32.mrb[0].mxu0
      %1272 = vmatprep.mubr.bf16.mxu0 0
      %1273 = vmatmul.mubr.bf16.gmra.mrb[0].mxu0 %v1167
      %v1274 = vpop.f32.mrb[0].mxu0
      %v1275 = vadd.f32 0.0, %v1274
      %v1276 = vpop.f32.mrb[0].mxu0
      %v1277 = vpop.f32.mrb[0].mxu0
      %v1278 = vadd.f32 0.0, %v1277
      %v1279 = vpop.f32.mrb[0].mxu0
      %1280 = vmatprep.mubr.bf16.mxu0 0
      %1281 = vmatmul.mubr.bf16.gmra.mrb[0].mxu0 %v1170
      %v1282 = vpop.f32.mrb[0].mxu0
      %v1283 = vadd.f32 0.0, %v1282
      %v1284 = vpop.f32.mrb[0].mxu0
      %v1285 = vpop.f32.mrb[0].mxu0
      %v1286 = vadd.f32 0.0, %v1285
      %v1287 = vpop.f32.mrb[0].mxu0
      %1288 = vmatprep.mubr.bf16.mxu0 0
      %1289 = vmatmul.mubr.bf16.gmra.mrb[0].mxu0 %v1173
      %v1290 = vpop.f32.mrb[0].mxu0
      %v1291 = vadd.f32 0.0, %v1290
      %v1292 = vpop.f32.mrb[0].mxu0
      %v1293 = vpop.f32.mrb[0].mxu0
      %v1294 = vadd.f32 0.0, %v1293
      %v1295 = vpop.f32.mrb[0].mxu0
      %1296 = vmatprep.mubr.bf16.mxu0 0
      %1297 = vmatmul.mubr.bf16.gmra.mrb[0].mxu0 %v1176
      %v1298 = vpop.f32.mrb[0].mxu0
      %v1299 = vadd.f32 0.0, %v1298
      %v1300 = vpop.f32.mrb[0].mxu0
      %v1301 = vpop.f32.mrb[0].mxu0
      %v1302 = vadd.f32 0.0, %v1301
      %v1303 = vpop.f32.mrb[0].mxu0
      %1304 = vmatprep.mubr.bf16.mxu0 0
      %1305 = vmatmul.mubr.bf16.gmra.mrb[0].mxu0 %v1179
      %v1306 = vpop.f32.mrb[0].mxu0
      %v1307 = vadd.f32 0.0, %v1306
      %v1308 = vpop.f32.mrb[0].mxu0
      %v1309 = vpop.f32.mrb[0].mxu0
      %v1310 = vadd.f32 0.0, %v1309
      %v1311 = vpop.f32.mrb[0].mxu0
      %1312 = vmatprep.mubr.bf16.mxu0 0
      %1313 = vmatmul.mubr.bf16.gmra.mrb[0].mxu0 %v1182
      %v1314 = vpop.f32.mrb[0].mxu0
      %v1315 = vadd.f32 0.0, %v1314
      %v1316 = vpop.f32.mrb[0].mxu0
      %v1317 = vpop.f32.mrb[0].mxu0
      %v1318 = vadd.f32 0.0, %v1317
      %v1319 = vpop.f32.mrb[0].mxu0
      %1320 = vmatprep.mubr.bf16.mxu0 0
      %1321 = vmatmul.mubr.bf16.gmra.mrb[0].mxu0 %v1185
      %v1322 = vpop.f32.mrb[0].mxu0
      %v1323 = vadd.f32 0.0, %v1322
      %v1324 = vpop.f32.mrb[0].mxu0
      %v1325 = vpop.f32.mrb[0].mxu0
      %v1326 = vadd.f32 0.0, %v1325
      %v1327 = vpop.f32.mrb[0].mxu0
      %1328 = vmatprep.mubr.bf16.mxu0 0
      %1329 = vmatmul.mubr.bf16.gmra.mrb[0].mxu0 %v1188
      %v1330 = vpop.f32.mrb[0].mxu0
      %v1331 = vadd.f32 0.0, %v1330
      %v1332 = vpop.f32.mrb[0].mxu0
      %v1333 = vpop.f32.mrb[0].mxu0
      %v1334 = vadd.f32 0.0, %v1333
      %v1335 = vpop.f32.mrb[0].mxu0
      %1336 = vmatprep.mubr.bf16.mxu0 0
      %1337 = vmatmul.mubr.bf16.gmra.mrb[0].mxu0 %v1191
      %v1338 = vpop.f32.mrb[0].mxu0
      %v1339 = vadd.f32 0.0, %v1338
      %v1340 = vpop.f32.mrb[0].mxu0
      %v1341 = vpop.f32.mrb[0].mxu0
      %v1342 = vadd.f32 0.0, %v1341
      %v1343 = vpop.f32.mrb[0].mxu0
      %1344 = vmatprep.mubr.bf16.mxu0 0
      %1345 = vmatmul.mubr.bf16.gmra.mrb[0].mxu0 %v1194
      %v1346 = vpop.f32.mrb[0].mxu0
      %v1347 = vadd.f32 0.0, %v1346
      %v1348 = vpop.f32.mrb[0].mxu0
      %v1349 = vpop.f32.mrb[0].mxu0
      %v1350 = vadd.f32 0.0, %v1349
      %v1351 = vpop.f32.mrb[0].mxu0
      %1352 = vmatprep.mubr.bf16.mxu0 0
      %1353 = vmatmul.mubr.bf16.gmra.mrb[0].mxu0 %v1197
      %v1354 = vpop.f32.mrb[0].mxu0
      %v1355 = vadd.f32 0.0, %v1354
      %v1356 = vpop.f32.mrb[0].mxu0
      %v1357 = vpop.f32.mrb[0].mxu0
      %v1358 = vadd.f32 0.0, %v1357
      %v1359 = vpop.f32.mrb[0].mxu0
      %1360 = vmatprep.mubr.bf16.mxu0 0
      %1361 = vmatmul.mubr.bf16.gmra.mrb[0].mxu0 %v1200
      %v1362 = vpop.f32.mrb[0].mxu0
      %v1363 = vadd.f32 0.0, %v1362
      %v1364 = vpop.f32.mrb[0].mxu0
      %v1365 = vpop.f32.mrb[0].mxu0
      %v1366 = vadd.f32 0.0, %v1365
      %v1367 = vpop.f32.mrb[0].mxu0
      %1368 = vmatprep.mubr.bf16.mxu0 0
      %1369 = vmatmul.mubr.bf16.gmra.mrb[0].mxu0 %v1203
      %v1370 = vpop.f32.mrb[0].mxu0
      %v1371 = vadd.f32 0.0, %v1370
      %v1372 = vpop.f32.mrb[0].mxu0
      %v1373 = vpop.f32.mrb[0].mxu0
      %v1374 = vadd.f32 0.0, %v1373
      %v1375 = vpop.f32.mrb[0].mxu0
      %1376 = vdwg.mxu0
      %v1377 = vadd.f32 %v749, %v1243
      %v1378 = vadd.f32 %v752, %v1246
      %v1379 = vadd.f32 %v757, %v1251
      %v1380 = vadd.f32 %v760, %v1254
      %v1381 = vadd.f32 %v765, %v1259
      %v1382 = vadd.f32 %v768, %v1262
      %v1383 = vadd.f32 %v773, %v1267
      %v1384 = vadd.f32 %v776, %v1270
      %v1385 = vadd.f32 %v781, %v1275
      %v1386 = vadd.f32 %v784, %v1278
      %v1387 = vadd.f32 %v789, %v1283
      %v1388 = vadd.f32 %v792, %v1286
      %v1389 = vadd.f32 %v797, %v1291
      %v1390 = vadd.f32 %v800, %v1294
      %v1391 = vadd.f32 %v805, %v1299
      %v1392 = vadd.f32 %v808, %v1302
      %v1393 = vadd.f32 %v813, %v1307
      %v1394 = vadd.f32 %v816, %v1310
      %v1395 = vadd.f32 %v821, %v1315
      %v1396 = vadd.f32 %v824, %v1318
      %v1397 = vadd.f32 %v829, %v1323
      %v1398 = vadd.f32 %v832, %v1326
      %v1399 = vadd.f32 %v837, %v1331
      %v1400 = vadd.f32 %v840, %v1334
      %v1401 = vadd.f32 %v845, %v1339
      %v1402 = vadd.f32 %v848, %v1342
      %v1403 = vadd.f32 %v853, %v1347
      %v1404 = vadd.f32 %v856, %v1350
      %v1405 = vadd.f32 %v861, %v1355
      %v1406 = vadd.f32 %v864, %v1358
      %v1407 = vadd.f32 %v869, %v1363
      %v1408 = vadd.f32 %v872, %v1366
      %v1409 = vadd.f32 %v877, %v1371
      %v1410 = vadd.f32 %v880, %v1374
      %v1411 = vld [vmem:[%s165 + $0x8] sm:$0xe]
      %s1412 = scalar_lea.vmem %s1, 24
      %v1413 = vld [vmem:[%s1412] sm:$0xf]
      %v1414 = vld [vmem:[%s1412 + $0x4] sm:$0x3]
      %v1416 = vunpack.c.l.b16 %v1411
      %v1417 = vpack.c.b16 %v957, %v1416
      %vm1418 = vcmask 1046528
      %v1419 = vrot.slane %v1417, 1
      %v1420 = vrot.slane %v992, 1
      %v1421 = vsel %vm1418, %v1419, %v1420
      %v1422 = vrot.slane %v993, 1
      %v1423 = vsel %vm1418, %v1420, %v1422
      %v1424 = vrot.slane %v994, 1
      %v1425 = vsel %vm1418, %v1422, %v1424
      %v1426 = vrot.slane %v995, 1
      %v1427 = vsel %vm1418, %v1424, %v1426
      %v1428 = vrot.slane %v996, 1
      %v1429 = vsel %vm1418, %v1426, %v1428
      %v1430 = vrot.slane %v997, 1
      %v1431 = vsel %vm1418, %v1428, %v1430
      %v1432 = vrot.slane %v998, 1
      %v1433 = vsel %vm1418, %v1430, %v1432
      %v1434 = vrot.slane %v999, 1
      %v1435 = vsel %vm1418, %v1432, %v1434
      %v1436 = vrot.slane %v1000, 1
      %v1437 = vsel %vm1418, %v1434, %v1436
      %v1438 = vrot.slane %v1001, 1
      %v1439 = vsel %vm1418, %v1436, %v1438
      %v1440 = vrot.slane %v1002, 1
      %v1441 = vsel %vm1418, %v1438, %v1440
      %v1442 = vrot.slane %v1003, 1
      %v1443 = vsel %vm1418, %v1440, %v1442
      %v1444 = vrot.slane %v1004, 1
      %v1445 = vsel %vm1418, %v1442, %v1444
      %v1446 = vrot.slane %v1005, 1
      %v1447 = vsel %vm1418, %v1444, %v1446
      %v1448 = vrot.slane %v1006, 1
      %v1449 = vsel %vm1418, %v1446, %v1448
      %v1450 = vrot.slane %v1007, 1
      %v1451 = vsel %vm1418, %v1448, %v1450
      %v1452 = vrot.slane %v1008, 1
      %v1453 = vsel %vm1418, %v1450, %v1452
      %v1456 = vunpack.c.l.b16 %v1413
      %v1457 = vunpack.c.l.b16 %v1414
      %v1458 = vpack.c.b16 %v1457, %v1456
      %v1460 = vsel %vm447, %v1421, 0
      %v1463 = vsel %vm447, %v1423, 0
      %v1466 = vsel %vm447, %v1425, 0
      %v1469 = vsel %vm447, %v1427, 0
      %v1472 = vsel %vm447, %v1429, 0
      %v1475 = vsel %vm447, %v1431, 0
      %v1478 = vsel %vm447, %v1433, 0
      %v1481 = vsel %vm447, %v1435, 0
      %v1484 = vsel %vm447, %v1437, 0
      %v1487 = vsel %vm447, %v1439, 0
      %v1490 = vsel %vm447, %v1441, 0
      %v1493 = vsel %vm447, %v1443, 0
      %v1496 = vsel %vm447, %v1445, 0
      %v1499 = vsel %vm447, %v1447, 0
      %v1502 = vsel %vm447, %v1449, 0
      %v1505 = vsel %vm447, %v1451, 0
      %v1508 = vsel %vm447, %v1453, 0
      %v1511 = vsel %vm499, %v1458, 0
      %1513 = vmatprep.subr.bf16.mxu0 0
      %1514 = vmatpush1.bf16.msra.mxu0 %v1511
      %1515 = vmatprep.subr.bf16.mxu0 0
      %1516 = vmatpush1.bf16.msra.mxu0 0
      %1517 = vmatprep.subr.bf16.mxu0 0
      %1518 = vmatpush1.bf16.msra.mxu0 0
      %1519 = vmatprep.subr.bf16.mxu0 0
      %1520 = vmatpush1.bf16.msra.mxu0 0
      %1521 = vmatprep.subr.bf16.mxu0 0
      %1522 = vmatpush1.bf16.msra.mxu0 0
      %1523 = vmatprep.subr.bf16.mxu0 0
      %1524 = vmatpush1.bf16.msra.mxu0 0
      %1525 = vmatprep.subr.bf16.mxu0 0
      %1526 = vmatpush1.bf16.msra.mxu0 0
      %1527 = vmatprep.subr.bf16.mxu0 0
      %1528 = vmatpush1.bf16.msra.mxu0 0
      %1529 = vmatprep.subr.bf16.mxu0 0
      %1530 = vmatpush1.bf16.msra.mxu0 0
      %1531 = vmatprep.subr.bf16.mxu0 0
      %1532 = vmatpush1.bf16.msra.mxu0 0
      %1533 = vmatprep.subr.bf16.mxu0 0
      %1534 = vmatpush1.bf16.msra.mxu0 0
      %1535 = vmatprep.subr.bf16.mxu0 0
      %1536 = vmatpush1.bf16.msra.mxu0 0
      %1537 = vmatprep.subr.bf16.mxu0 0
      %1538 = vmatpush1.bf16.msra.mxu0 0
      %1539 = vmatprep.subr.bf16.mxu0 0
      %1540 = vmatpush1.bf16.msra.mxu0 0
      %1541 = vmatprep.subr.bf16.mxu0 0
      %1542 = vmatpush1.bf16.msra.mxu0 0
      %1543 = vmatprep.subr.bf16.mxu0 0
      %1544 = vmatpush1.bf16.msra.mxu0 0
      %1545 = vmatprep.mubr.bf16.mxu0 0
      %1546 = vmatmul.mubr.bf16.gmra.mrb[0].mxu0 %v1460
      %v1547 = vpop.f32.mrb[0].mxu0
      %v1548 = vadd.f32 0.0, %v1547
      %v1549 = vpop.f32.mrb[0].mxu0
      %v1550 = vpop.f32.mrb[0].mxu0
      %v1551 = vadd.f32 0.0, %v1550
      %v1552 = vpop.f32.mrb[0].mxu0
      %1553 = vmatprep.mubr.bf16.mxu0 0
      %1554 = vmatmul.mubr.bf16.gmra.mrb[0].mxu0 %v1463
      %v1555 = vpop.f32.mrb[0].mxu0
      %v1556 = vadd.f32 0.0, %v1555
      %v1557 = vpop.f32.mrb[0].mxu0
      %v1558 = vpop.f32.mrb[0].mxu0
      %v1559 = vadd.f32 0.0, %v1558
      %v1560 = vpop.f32.mrb[0].mxu0
      %1561 = vmatprep.mubr.bf16.mxu0 0
      %1562 = vmatmul.mubr.bf16.gmra.mrb[0].mxu0 %v1466
      %v1563 = vpop.f32.mrb[0].mxu0
      %v1564 = vadd.f32 0.0, %v1563
      %v1565 = vpop.f32.mrb[0].mxu0
      %v1566 = vpop.f32.mrb[0].mxu0
      %v1567 = vadd.f32 0.0, %v1566
      %v1568 = vpop.f32.mrb[0].mxu0
      %1569 = vmatprep.mubr.bf16.mxu0 0
      %1570 = vmatmul.mubr.bf16.gmra.mrb[0].mxu0 %v1469
      %v1571 = vpop.f32.mrb[0].mxu0
      %v1572 = vadd.f32 0.0, %v1571
      %v1573 = vpop.f32.mrb[0].mxu0
      %v1574 = vpop.f32.mrb[0].mxu0
      %v1575 = vadd.f32 0.0, %v1574
      %v1576 = vpop.f32.mrb[0].mxu0
      %1577 = vmatprep.mubr.bf16.mxu0 0
      %1578 = vmatmul.mubr.bf16.gmra.mrb[0].mxu0 %v1472
      %v1579 = vpop.f32.mrb[0].mxu0
      %v1580 = vadd.f32 0.0, %v1579
      %v1581 = vpop.f32.mrb[0].mxu0
      %v1582 = vpop.f32.mrb[0].mxu0
      %v1583 = vadd.f32 0.0, %v1582
      %v1584 = vpop.f32.mrb[0].mxu0
      %1585 = vmatprep.mubr.bf16.mxu0 0
      %1586 = vmatmul.mubr.bf16.gmra.mrb[0].mxu0 %v1475
      %v1587 = vpop.f32.mrb[0].mxu0
      %v1588 = vadd.f32 0.0, %v1587
      %v1589 = vpop.f32.mrb[0].mxu0
      %v1590 = vpop.f32.mrb[0].mxu0
      %v1591 = vadd.f32 0.0, %v1590
      %v1592 = vpop.f32.mrb[0].mxu0
      %1593 = vmatprep.mubr.bf16.mxu0 0
      %1594 = vmatmul.mubr.bf16.gmra.mrb[0].mxu0 %v1478
      %v1595 = vpop.f32.mrb[0].mxu0
      %v1596 = vadd.f32 0.0, %v1595
      %v1597 = vpop.f32.mrb[0].mxu0
      %v1598 = vpop.f32.mrb[0].mxu0
      %v1599 = vadd.f32 0.0, %v1598
      %v1600 = vpop.f32.mrb[0].mxu0
      %1601 = vmatprep.mubr.bf16.mxu0 0
      %1602 = vmatmul.mubr.bf16.gmra.mrb[0].mxu0 %v1481
      %v1603 = vpop.f32.mrb[0].mxu0
      %v1604 = vadd.f32 0.0, %v1603
      %v1605 = vpop.f32.mrb[0].mxu0
      %v1606 = vpop.f32.mrb[0].mxu0
      %v1607 = vadd.f32 0.0, %v1606
      %v1608 = vpop.f32.mrb[0].mxu0
      %1609 = vmatprep.mubr.bf16.mxu0 0
      %1610 = vmatmul.mubr.bf16.gmra.mrb[0].mxu0 %v1484
      %v1611 = vpop.f32.mrb[0].mxu0
      %v1612 = vadd.f32 0.0, %v1611
      %v1613 = vpop.f32.mrb[0].mxu0
      %v1614 = vpop.f32.mrb[0].mxu0
      %v1615 = vadd.f32 0.0, %v1614
      %v1616 = vpop.f32.mrb[0].mxu0
      %1617 = vmatprep.mubr.bf16.mxu0 0
      %1618 = vmatmul.mubr.bf16.gmra.mrb[0].mxu0 %v1487
      %v1619 = vpop.f32.mrb[0].mxu0
      %v1620 = vadd.f32 0.0, %v1619
      %v1621 = vpop.f32.mrb[0].mxu0
      %v1622 = vpop.f32.mrb[0].mxu0
      %v1623 = vadd.f32 0.0, %v1622
      %v1624 = vpop.f32.mrb[0].mxu0
      %1625 = vmatprep.mubr.bf16.mxu0 0
      %1626 = vmatmul.mubr.bf16.gmra.mrb[0].mxu0 %v1490
      %v1627 = vpop.f32.mrb[0].mxu0
      %v1628 = vadd.f32 0.0, %v1627
      %v1629 = vpop.f32.mrb[0].mxu0
      %v1630 = vpop.f32.mrb[0].mxu0
      %v1631 = vadd.f32 0.0, %v1630
      %v1632 = vpop.f32.mrb[0].mxu0
      %1633 = vmatprep.mubr.bf16.mxu0 0
      %1634 = vmatmul.mubr.bf16.gmra.mrb[0].mxu0 %v1493
      %v1635 = vpop.f32.mrb[0].mxu0
      %v1636 = vadd.f32 0.0, %v1635
      %v1637 = vpop.f32.mrb[0].mxu0
      %v1638 = vpop.f32.mrb[0].mxu0
      %v1639 = vadd.f32 0.0, %v1638
      %v1640 = vpop.f32.mrb[0].mxu0
      %1641 = vmatprep.mubr.bf16.mxu0 0
      %1642 = vmatmul.mubr.bf16.gmra.mrb[0].mxu0 %v1496
      %v1643 = vpop.f32.mrb[0].mxu0
      %v1644 = vadd.f32 0.0, %v1643
      %v1645 = vpop.f32.mrb[0].mxu0
      %v1646 = vpop.f32.mrb[0].mxu0
      %v1647 = vadd.f32 0.0, %v1646
      %v1648 = vpop.f32.mrb[0].mxu0
      %1649 = vmatprep.mubr.bf16.mxu0 0
      %1650 = vmatmul.mubr.bf16.gmra.mrb[0].mxu0 %v1499
      %v1651 = vpop.f32.mrb[0].mxu0
      %v1652 = vadd.f32 0.0, %v1651
      %v1653 = vpop.f32.mrb[0].mxu0
      %v1654 = vpop.f32.mrb[0].mxu0
      %v1655 = vadd.f32 0.0, %v1654
      %v1656 = vpop.f32.mrb[0].mxu0
      %1657 = vmatprep.mubr.bf16.mxu0 0
      %1658 = vmatmul.mubr.bf16.gmra.mrb[0].mxu0 %v1502
      %v1659 = vpop.f32.mrb[0].mxu0
      %v1660 = vadd.f32 0.0, %v1659
      %v1661 = vpop.f32.mrb[0].mxu0
      %v1662 = vpop.f32.mrb[0].mxu0
      %v1663 = vadd.f32 0.0, %v1662
      %v1664 = vpop.f32.mrb[0].mxu0
      %1665 = vmatprep.mubr.bf16.mxu0 0
      %1666 = vmatmul.mubr.bf16.gmra.mrb[0].mxu0 %v1505
      %v1667 = vpop.f32.mrb[0].mxu0
      %v1668 = vadd.f32 0.0, %v1667
      %v1669 = vpop.f32.mrb[0].mxu0
      %v1670 = vpop.f32.mrb[0].mxu0
      %v1671 = vadd.f32 0.0, %v1670
      %v1672 = vpop.f32.mrb[0].mxu0
      %1673 = vmatprep.mubr.bf16.mxu0 0
      %1674 = vmatmul.mubr.bf16.gmra.mrb[0].mxu0 %v1508
      %v1675 = vpop.f32.mrb[0].mxu0
      %v1676 = vadd.f32 0.0, %v1675
      %v1677 = vpop.f32.mrb[0].mxu0
      %v1678 = vpop.f32.mrb[0].mxu0
      %v1679 = vadd.f32 0.0, %v1678
      %v1680 = vpop.f32.mrb[0].mxu0
      %1681 = vdwg.mxu0
      %v1682 = vadd.f32 %v1377, %v1548
      %v1683 = vadd.f32 %v1378, %v1551
      %v1684 = vadd.f32 %v1379, %v1556
      %v1685 = vadd.f32 %v1380, %v1559
      %v1686 = vadd.f32 %v1381, %v1564
      %v1687 = vadd.f32 %v1382, %v1567
      %v1688 = vadd.f32 %v1383, %v1572
      %v1689 = vadd.f32 %v1384, %v1575
      %v1690 = vadd.f32 %v1385, %v1580
      %v1691 = vadd.f32 %v1386, %v1583
      %v1692 = vadd.f32 %v1387, %v1588
      %v1693 = vadd.f32 %v1388, %v1591
      %v1694 = vadd.f32 %v1389, %v1596
      %v1695 = vadd.f32 %v1390, %v1599
      %v1696 = vadd.f32 %v1391, %v1604
      %v1697 = vadd.f32 %v1392, %v1607
      %v1698 = vadd.f32 %v1393, %v1612
      %v1699 = vadd.f32 %v1394, %v1615
      %v1700 = vadd.f32 %v1395, %v1620
      %v1701 = vadd.f32 %v1396, %v1623
      %v1702 = vadd.f32 %v1397, %v1628
      %v1703 = vadd.f32 %v1398, %v1631
      %v1704 = vadd.f32 %v1399, %v1636
      %v1705 = vadd.f32 %v1400, %v1639
      %v1706 = vadd.f32 %v1401, %v1644
      %v1707 = vadd.f32 %v1402, %v1647
      %v1708 = vadd.f32 %v1403, %v1652
      %v1709 = vadd.f32 %v1404, %v1655
      %v1710 = vadd.f32 %v1405, %v1660
      %v1711 = vadd.f32 %v1406, %v1663
      %v1712 = vadd.f32 %v1407, %v1668
      %v1713 = vadd.f32 %v1408, %v1671
      %v1714 = vadd.f32 %v1409, %v1676
      %v1715 = vadd.f32 %v1410, %v1679
      %v1717 = vlaneseq
      %v1718 = vshrl.u32 %v1717, 7
      %v1719 = vsub.s32 0, %v1718
      %v1720 = vrot.slane %v172, %v1719
      %v1722 = vadd.f32 %v1682, %v1720
      %v1723 = vadd.f32 %v1683, %v1720
      %v1724 = vadd.f32 %v1684, %v1720
      %v1725 = vadd.f32 %v1685, %v1720
      %v1726 = vadd.f32 %v1686, %v1720
      %v1727 = vadd.f32 %v1687, %v1720
      %v1728 = vadd.f32 %v1688, %v1720
      %v1729 = vadd.f32 %v1689, %v1720
      %v1730 = vadd.f32 %v1690, %v1720
      %v1731 = vadd.f32 %v1691, %v1720
      %v1732 = vadd.f32 %v1692, %v1720
      %v1733 = vadd.f32 %v1693, %v1720
      %v1734 = vadd.f32 %v1694, %v1720
      %v1735 = vadd.f32 %v1695, %v1720
      %v1736 = vadd.f32 %v1696, %v1720
      %v1737 = vadd.f32 %v1697, %v1720
      %v1738 = vadd.f32 %v1698, %v1720
      %v1739 = vadd.f32 %v1699, %v1720
      %v1740 = vadd.f32 %v1700, %v1720
      %v1741 = vadd.f32 %v1701, %v1720
      %v1742 = vadd.f32 %v1702, %v1720
      %v1743 = vadd.f32 %v1703, %v1720
      %v1744 = vadd.f32 %v1704, %v1720
      %v1745 = vadd.f32 %v1705, %v1720
      %v1746 = vadd.f32 %v1706, %v1720
      %v1747 = vadd.f32 %v1707, %v1720
      %v1748 = vadd.f32 %v1708, %v1720
      %v1749 = vadd.f32 %v1709, %v1720
      %v1750 = vadd.f32 %v1710, %v1720
      %v1751 = vadd.f32 %v1711, %v1720
      %v1752 = vadd.f32 %v1712, %v1720
      %v1753 = vadd.f32 %v1713, %v1720
      %v1754 = vadd.f32 %v1714, %v1720
      %v1755 = vadd.f32 %v1715, %v1720
      %v1756 = vmul.f32 %v1722, 0.2
      %v1757 = vmul.f32 %v1723, 0.2
      %v1758 = vmul.f32 %v1724, 0.2
      %v1759 = vmul.f32 %v1725, 0.2
      %v1760 = vmul.f32 %v1726, 0.2
      %v1761 = vmul.f32 %v1727, 0.2
      %v1762 = vmul.f32 %v1728, 0.2
      %v1763 = vmul.f32 %v1729, 0.2
      %v1764 = vmul.f32 %v1730, 0.2
      %v1765 = vmul.f32 %v1731, 0.2
      %v1766 = vmul.f32 %v1732, 0.2
      %v1767 = vmul.f32 %v1733, 0.2
      %v1768 = vmul.f32 %v1734, 0.2
      %v1769 = vmul.f32 %v1735, 0.2
      %v1770 = vmul.f32 %v1736, 0.2
      %v1771 = vmul.f32 %v1737, 0.2
      %v1772 = vmul.f32 %v1738, 0.2
      %v1773 = vmul.f32 %v1739, 0.2
      %v1774 = vmul.f32 %v1740, 0.2
      %v1775 = vmul.f32 %v1741, 0.2
      %v1776 = vmul.f32 %v1742, 0.2
      %v1777 = vmul.f32 %v1743, 0.2
      %v1778 = vmul.f32 %v1744, 0.2
      %v1779 = vmul.f32 %v1745, 0.2
      %v1780 = vmul.f32 %v1746, 0.2
      %v1781 = vmul.f32 %v1747, 0.2
      %v1782 = vmul.f32 %v1748, 0.2
      %v1783 = vmul.f32 %v1749, 0.2
      %v1784 = vmul.f32 %v1750, 0.2
      %v1785 = vmul.f32 %v1751, 0.2
      %v1786 = vmul.f32 %v1752, 0.2
      %v1787 = vmul.f32 %v1753, 0.2
      %v1788 = vmul.f32 %v1754, 0.2
      %v1789 = vmul.f32 %v1755, 0.2
      %v1790 = vmax.f32 %v1722, %v1756
      %v1791 = vmax.f32 %v1723, %v1757
      %v1792 = vmax.f32 %v1724, %v1758
      %v1793 = vmax.f32 %v1725, %v1759
      %v1794 = vmax.f32 %v1726, %v1760
      %v1795 = vmax.f32 %v1727, %v1761
      %v1796 = vmax.f32 %v1728, %v1762
      %v1797 = vmax.f32 %v1729, %v1763
      %v1798 = vmax.f32 %v1730, %v1764
      %v1799 = vmax.f32 %v1731, %v1765
      %v1800 = vmax.f32 %v1732, %v1766
      %v1801 = vmax.f32 %v1733, %v1767
      %v1802 = vmax.f32 %v1734, %v1768
      %v1803 = vmax.f32 %v1735, %v1769
      %v1804 = vmax.f32 %v1736, %v1770
      %v1805 = vmax.f32 %v1737, %v1771
      %v1806 = vmax.f32 %v1738, %v1772
      %v1807 = vmax.f32 %v1739, %v1773
      %v1808 = vmax.f32 %v1740, %v1774
      %v1809 = vmax.f32 %v1741, %v1775
      %v1810 = vmax.f32 %v1742, %v1776
      %v1811 = vmax.f32 %v1743, %v1777
      %v1812 = vmax.f32 %v1744, %v1778
      %v1813 = vmax.f32 %v1745, %v1779
      %v1814 = vmax.f32 %v1746, %v1780
      %v1815 = vmax.f32 %v1747, %v1781
      %v1816 = vmax.f32 %v1748, %v1782
      %v1817 = vmax.f32 %v1749, %v1783
      %v1818 = vmax.f32 %v1750, %v1784
      %v1819 = vmax.f32 %v1751, %v1785
      %v1820 = vmax.f32 %v1752, %v1786
      %v1821 = vmax.f32 %v1753, %v1787
      %v1822 = vmax.f32 %v1754, %v1788
      %v1823 = vmax.f32 %v1755, %v1789
      %v1824 = vpack.c.bf16 %v1791, %v1790
      %v1825 = vpack.c.bf16 %v1793, %v1792
      %v1826 = vpack.c.bf16 %v1795, %v1794
      %v1827 = vpack.c.bf16 %v1797, %v1796
      %v1828 = vpack.c.bf16 %v1799, %v1798
      %v1829 = vpack.c.bf16 %v1801, %v1800
      %v1830 = vpack.c.bf16 %v1803, %v1802
      %v1831 = vpack.c.bf16 %v1805, %v1804
      %v1832 = vpack.c.bf16 %v1807, %v1806
      %v1833 = vpack.c.bf16 %v1809, %v1808
      %v1834 = vpack.c.bf16 %v1811, %v1810
      %v1835 = vpack.c.bf16 %v1813, %v1812
      %v1836 = vpack.c.bf16 %v1815, %v1814
      %v1837 = vpack.c.bf16 %v1817, %v1816
      %v1838 = vpack.c.bf16 %v1819, %v1818
      %v1839 = vpack.c.bf16 %v1821, %v1820
      %v1840 = vpack.c.bf16 %v1823, %v1822
      %v1858 = vunpack.c.l.b16 %v1824
      %v1859 = vunpack.c.h.b16 %v1824
      %v1860 = vunpack.c.l.b16 %v1825
      %v1861 = vunpack.c.h.b16 %v1825
      %v1862 = vunpack.c.l.b16 %v1826
      %v1863 = vunpack.c.h.b16 %v1826
      %v1864 = vunpack.c.l.b16 %v1827
      %v1865 = vunpack.c.h.b16 %v1827
      %v1866 = vunpack.c.l.b16 %v1828
      %v1867 = vunpack.c.h.b16 %v1828
      %v1868 = vunpack.c.l.b16 %v1829
      %v1869 = vunpack.c.h.b16 %v1829
      %v1870 = vunpack.c.l.b16 %v1830
      %v1871 = vunpack.c.h.b16 %v1830
      %v1872 = vunpack.c.l.b16 %v1831
      %v1873 = vunpack.c.h.b16 %v1831
      %v1874 = vunpack.c.l.b16 %v1832
      %v1875 = vunpack.c.h.b16 %v1832
      %v1876 = vunpack.c.l.b16 %v1833
      %v1877 = vunpack.c.h.b16 %v1833
      %v1878 = vunpack.c.l.b16 %v1834
      %v1879 = vunpack.c.h.b16 %v1834
      %v1880 = vunpack.c.l.b16 %v1835
      %v1881 = vunpack.c.h.b16 %v1835
      %v1882 = vunpack.c.l.b16 %v1836
      %v1883 = vunpack.c.h.b16 %v1836
      %v1884 = vunpack.c.l.b16 %v1837
      %v1885 = vunpack.c.h.b16 %v1837
      %v1886 = vunpack.c.l.b16 %v1838
      %v1887 = vunpack.c.h.b16 %v1838
      %v1888 = vunpack.c.l.b16 %v1839
      %v1889 = vunpack.c.h.b16 %v1839
      %v1890 = vunpack.c.l.b16 %v1840
      %v1891 = vunpack.c.h.b16 %v1840
      %v1892 = vpack.c.b16 %v1858, %v1858
      %v1893 = vpack.c.b16 %v1859, %v1859
      %v1894 = vpack.c.b16 %v1860, %v1860
      %v1895 = vpack.c.b16 %v1861, %v1861
      %v1896 = vpack.c.b16 %v1862, %v1862
      %v1897 = vpack.c.b16 %v1863, %v1863
      %v1898 = vpack.c.b16 %v1864, %v1864
      %v1899 = vpack.c.b16 %v1865, %v1865
      %v1900 = vpack.c.b16 %v1866, %v1866
      %v1901 = vpack.c.b16 %v1867, %v1867
      %v1902 = vpack.c.b16 %v1868, %v1868
      %v1903 = vpack.c.b16 %v1869, %v1869
      %v1904 = vpack.c.b16 %v1870, %v1870
      %v1905 = vpack.c.b16 %v1871, %v1871
      %v1906 = vpack.c.b16 %v1872, %v1872
      %v1907 = vpack.c.b16 %v1873, %v1873
      %v1908 = vpack.c.b16 %v1874, %v1874
      %v1909 = vpack.c.b16 %v1875, %v1875
      %v1910 = vpack.c.b16 %v1876, %v1876
      %v1911 = vpack.c.b16 %v1877, %v1877
      %v1912 = vpack.c.b16 %v1878, %v1878
      %v1913 = vpack.c.b16 %v1879, %v1879
      %v1914 = vpack.c.b16 %v1880, %v1880
      %v1915 = vpack.c.b16 %v1881, %v1881
      %v1916 = vpack.c.b16 %v1882, %v1882
      %v1917 = vpack.c.b16 %v1883, %v1883
      %v1918 = vpack.c.b16 %v1884, %v1884
      %v1919 = vpack.c.b16 %v1885, %v1885
      %v1920 = vpack.c.b16 %v1886, %v1886
      %v1921 = vpack.c.b16 %v1887, %v1887
      %v1922 = vpack.c.b16 %v1888, %v1888
      %v1923 = vpack.c.b16 %v1889, %v1889
      %v1924 = vpack.c.b16 %v1890, %v1890
      %v1925 = vpack.c.b16 %v1891, %v1891
      %vm1960 = vcmask 60416
      %1961 = vst.msk [vmem:[%s170] sm:$0xf] %vm1960, %v1892
      %1962 = vst.msk [vmem:[%s170 + $0x4] sm:$0xf] %vm1960, %v1893
      %1963 = vst.msk [vmem:[%s170 + $0x8] sm:$0xf] %vm1960, %v1894
      %1964 = vst.msk [vmem:[%s170 + $0xc] sm:$0xf] %vm1960, %v1895
      %1965 = vst.msk [vmem:[%s170 + $0x10] sm:$0xf] %vm1960, %v1896
      %1966 = vst.msk [vmem:[%s170 + $0x14] sm:$0xf] %vm1960, %v1897
      %1967 = vst.msk [vmem:[%s170 + $0x18] sm:$0xf] %vm1960, %v1898
      %1968 = vst.msk [vmem:[%s170 + $0x1c] sm:$0xf] %vm1960, %v1899
      %1969 = vst.msk [vmem:[%s170 + $0x20] sm:$0xf] %vm1960, %v1900
      %1970 = vst.msk [vmem:[%s170 + $0x24] sm:$0xf] %vm1960, %v1901
      %1971 = vst.msk [vmem:[%s170 + $0x28] sm:$0xf] %vm1960, %v1902
      %1972 = vst.msk [vmem:[%s170 + $0x2c] sm:$0xf] %vm1960, %v1903
      %1973 = vst.msk [vmem:[%s170 + $0x30] sm:$0xf] %vm1960, %v1904
      %1974 = vst.msk [vmem:[%s170 + $0x34] sm:$0xf] %vm1960, %v1905
      %1975 = vst.msk [vmem:[%s170 + $0x38] sm:$0xf] %vm1960, %v1906
      %1976 = vst.msk [vmem:[%s170 + $0x3c] sm:$0xf] %vm1960, %v1907
      %1977 = vst.msk [vmem:[%s170 + $0x40] sm:$0xf] %vm1960, %v1908
      %1978 = vst.msk [vmem:[%s170 + $0x44] sm:$0xf] %vm1960, %v1909
      %1979 = vst.msk [vmem:[%s170 + $0x48] sm:$0xf] %vm1960, %v1910
      %1980 = vst.msk [vmem:[%s170 + $0x4c] sm:$0xf] %vm1960, %v1911
      %1981 = vst.msk [vmem:[%s170 + $0x50] sm:$0xf] %vm1960, %v1912
      %1982 = vst.msk [vmem:[%s170 + $0x54] sm:$0xf] %vm1960, %v1913
      %1983 = vst.msk [vmem:[%s170 + $0x58] sm:$0xf] %vm1960, %v1914
      %1984 = vst.msk [vmem:[%s170 + $0x5c] sm:$0xf] %vm1960, %v1915
      %1985 = vst.msk [vmem:[%s170 + $0x60] sm:$0xf] %vm1960, %v1916
      %1986 = vst.msk [vmem:[%s170 + $0x64] sm:$0xf] %vm1960, %v1917
      %1987 = vst.msk [vmem:[%s170 + $0x68] sm:$0xf] %vm1960, %v1918
      %1988 = vst.msk [vmem:[%s170 + $0x6c] sm:$0xf] %vm1960, %v1919
      %1989 = vst.msk [vmem:[%s170 + $0x70] sm:$0xf] %vm1960, %v1920
      %1990 = vst.msk [vmem:[%s170 + $0x74] sm:$0xf] %vm1960, %v1921
      %1991 = vst.msk [vmem:[%s170 + $0x78] sm:$0xf] %vm1960, %v1922
      %1992 = vst.msk [vmem:[%s170 + $0x7c] sm:$0xf] %vm1960, %v1923
      %1993 = vst.msk [vmem:[%s170 + $0x80] sm:$0xf] %vm1960, %v1924
      %1994 = vst.msk [vmem:[%s170 + $0x84] sm:$0xf] %vm1960, %v1925
      %p1995 = scmp.lt.s32.totalorder %s14, 1
      %s1996 = scalar_select %p1995, %s14, 1
      %s1997 = smul.addr %s1996, 34
      %s1998 = smul.addr %s1997, 4
      %s1999 = scalar_lea.vmem %s3, %s1998
      // Predicated region
      $region33: #{discriminator_forward.5} parent=31 // pred_check
        %p2000 = pneg %p100
      $region34: #{discriminator_forward.5} parent=31 // pred_check_branch
        %2002 = sbr.rel (%p2000) target = $region36
      $region35: #{discriminator_forward.5} parent=31 // pred_region
        _
      $region36: #{discriminator_forward.5} parent=31 // pred_fallthru
        _
    $region32: #{discriminator_forward.5} parent=5 // pred_fallthru
      _
    %p2003 = scmp.le.s32.totalorder 2, %s9
    // Predicated region
    $region37: #{discriminator_forward.5} parent=5 // pred_check
      %p2004 = pneg %p2003
    $region38: #{discriminator_forward.5} parent=5 // pred_check_branch
      %2006 = sbr.rel (%p2004) target = $region40
    $region39: #{discriminator_forward.5} parent=5 // pred_region
      %s2007 = ssub.s32 %s9, 2
      // Predicated region
      $region41: #{discriminator_forward.5} parent=39 // pred_check
        %p2008 = pneg %p106
      $region42: #{discriminator_forward.5} parent=39 // pred_check_branch
        %2010 = sbr.rel (%p2008) target = $region44
      $region43: #{discriminator_forward.5} parent=39 // pred_region
        %p2011 = scmp.lt.s32.totalorder %s15, 1
        %s2012 = scalar_select %p2011, %s15, 1
        %s2013 = smul.addr %s2012, 34
        %s2014 = smul.addr %s2013, 4
        %s2015 = scalar_lea.vmem %s3, %s2014
      $region44: #{discriminator_forward.5} parent=39 // pred_fallthru
        _
    $region40: #{discriminator_forward.5} parent=5 // pred_fallthru
      _
  $region6: #{discriminator_forward.5} parent=0 // loop_footer
    %s13 = sadd.s32 1, %s9
  $region7: #{discriminator_forward.5} parent=0 // loop_footer_branch
    %8 = sbr.rel target = $region3
  $region8: #{discriminator_forward.5} parent=0 // loop_exit
    _

// kernel: discriminator_forward.6
$region0: #{discriminator_forward.6}
  #allocation0 [shape = 'u32[]', space=smem, size = 0x4, offset = 0x4, fixed_abs, tag = 'smem constant byte address 0x4 - core index']
  #allocation1 [shape = 'u32[144,128]{1,0:T(1,128)}', space=vmem, size = 0x12000, scoped, tag = 'internal scratch']
  %s0 = inlined_call_operand.vmem [shape: bf16[2,88,32], index: 0, kind: input, shape index: {}]
  %s1 = inlined_call_operand.vmem [shape: bf16[4,32,16], index: 1, kind: input, shape index: {}]
  %s2 = inlined_call_operand.vmem [shape: bf16[2,72,16], index: 2, kind: output, shape index: {}]
  %s3 = sld [smem:[#allocation0]]
  $region41: #{discriminator_forward.6} parent=0
    _
  %s5 = ssub.s32 1, %s3
  %s6 = scalar_select 0, %s5, %s3
  loop: start=0, step=1, limit=4
  $region2: #{discriminator_forward.6} parent=0 // loop_pre_header
    _
  $region3: #{discriminator_forward.6} parent=0 // loop_header
    %s8 = sphi 0, %s12
    %p9 = scmp.ge.s32.totalorder %s8, 4
    %s18 = sphi 0, %s20
    %s21 = sphi 0, %s18
    %s22 = sphi 0, %s21
    %s38 = sphi 0, %s22
    %s42 = sphi 0, %s42
    %s44 = sphi 0, %s42
    %s45 = sphi 0, %s44
    %s59 = sphi 0, %s45
    %s65 = sphi 0, %s67
    %s68 = sphi 0, %s65
    %s69 = sphi 0, %s68
    %s85 = sphi 0, %s69
  $region4: #{discriminator_forward.6} parent=0 // loop_header_branch
    %11 = sbr.rel (%p9) target = $region8
  $region5: #{discriminator_forward.6} parent=0 // loop_body
    %s13 = ssub.s32 %s8, 1
    %s14 = ssub.s32 %s8, 2
    %s15 = sadd.s32 %s8, 1
    %s16 = ssub.s32 %s8, %s15
    %p17 = scmp.eq.s32.totalorder %s16, 0
    %s19 = sadd.s32 %s18, 1
    %s20 = scalar_select %p17, %s18, %s19
    %p23 = pneg %p17
    %p24 = scmp.eq.s32.totalorder %s8, 1
    %p25 = por %p23, %p24
    %p26 = scmp.ne.s32.totalorder %s18, %s21
    %p27 = scmp.eq.s32.totalorder %s8, 0
    %p28 = por %p26, %p27
    %p29 = scmp.ne.s32.totalorder %s18, %s21
    %p30 = scmp.eq.s32.totalorder %s13, 1
    %p31 = por %p29, %p30
    %p32 = scmp.ne.s32.totalorder %s21, %s22
    %p33 = scmp.eq.s32.totalorder %s13, 0
    %p34 = por %p32, %p33
    %p35 = scmp.ne.s32.totalorder %s21, %s22
    %p36 = scmp.eq.s32.totalorder %s14, 1
    %p37 = por %p35, %p36
    %p39 = scmp.ne.s32.totalorder %s22, %s38
    %p40 = scmp.eq.s32.totalorder %s14, 0
    %p41 = por %p39, %p40
    %s43 = sadd.s32 %s42, 1
    %p46 = scmp.eq.s32.totalorder %s8, 1
    %p47 = scmp.ne.s32.totalorder %s42, %s44
    %p48 = scmp.eq.s32.totalorder %s8, 0
    %p49 = por %p47, %p48
    %p50 = scmp.ne.s32.totalorder %s42, %s44
    %p51 = scmp.eq.s32.totalorder %s13, 1
    %p52 = por %p50, %p51
    %p53 = scmp.ne.s32.totalorder %s44, %s45
    %p54 = scmp.eq.s32.totalorder %s13, 0
    %p55 = por %p53, %p54
    %p56 = scmp.ne.s32.totalorder %s44, %s45
    %p57 = scmp.eq.s32.totalorder %s14, 1
    %p58 = por %p56, %p57
    %p60 = scmp.ne.s32.totalorder %s45, %s59
    %p61 = scmp.eq.s32.totalorder %s14, 0
    %p62 = por %p60, %p61
    %s63 = ssub.s32 %s8, %s15
    %p64 = scmp.eq.s32.totalorder %s63, 0
    %s66 = sadd.s32 %s65, 1
    %s67 = scalar_select %p64, %s65, %s66
    %p70 = pneg %p64
    %p71 = scmp.eq.s32.totalorder %s8, 1
    %p72 = por %p70, %p71
    %p73 = scmp.ne.s32.totalorder %s65, %s68
    %p74 = scmp.eq.s32.totalorder %s8, 0
    %p75 = por %p73, %p74
    %p76 = scmp.ne.s32.totalorder %s65, %s68
    %p77 = scmp.eq.s32.totalorder %s13, 1
    %p78 = por %p76, %p77
    %p79 = scmp.ne.s32.totalorder %s68, %s69
    %p80 = scmp.eq.s32.totalorder %s13, 0
    %p81 = por %p79, %p80
    %p82 = scmp.ne.s32.totalorder %s68, %s69
    %p83 = scmp.eq.s32.totalorder %s14, 1
    %p84 = por %p82, %p83
    %p86 = scmp.ne.s32.totalorder %s69, %s85
    %p87 = scmp.eq.s32.totalorder %s14, 0
    %p88 = por %p86, %p87
    %p89 = scmp.le.s32.totalorder 1, %s8
    %p90 = scmp.lt.s32.totalorder %s8, 3
    %p91 = pnand %p89, %p90
    %p92 = pneg %p91
    // Predicated region
    $region9: #{discriminator_forward.6} parent=5 // pred_check
      _
    $region10: #{discriminator_forward.6} parent=5 // pred_check_branch
      %94 = sbr.rel (%p91) target = $region12
    $region11: #{discriminator_forward.6} parent=5 // pred_region
      %s95 = ssub.s32 %s8, 1
      // Predicated region
      $region13: #{discriminator_forward.6} parent=11 // pred_check
        %p96 = pneg %p55
      $region14: #{discriminator_forward.6} parent=11 // pred_check_branch
        %98 = sbr.rel (%p96) target = $region16
      $region15: #{discriminator_forward.6} parent=11 // pred_region
        _
      $region16: #{discriminator_forward.6} parent=11 // pred_fallthru
        _
    $region12: #{discriminator_forward.6} parent=5 // pred_fallthru
      _
    %p99 = scmp.lt.s32.totalorder %s8, 2
    // Predicated region
    $region17: #{discriminator_forward.6} parent=5 // pred_check
      %p100 = pneg %p99
    $region18: #{discriminator_forward.6} parent=5 // pred_check_branch
      %102 = sbr.rel (%p100) target = $region20
    $region19: #{discriminator_forward.6} parent=5 // pred_region
      // Predicated region
      $region21: #{discriminator_forward.6} parent=19 // pred_check
        %p103 = pneg %p28
      $region22: #{discriminator_forward.6} parent=19 // pred_check_branch
        %105 = sbr.rel (%p103) target = $region24
      $region23: #{discriminator_forward.6} parent=19 // pred_region
        %p106 = scmp.lt.s32.totalorder %s8, 1
        %s107 = scalar_select %p106, %s8, 1
        %s108 = smul.addr %s107, 11
        %s109 = smul.addr %s108, 4
        %s110 = scalar_lea.vmem %s0, %s109
      $region24: #{discriminator_forward.6} parent=19 // pred_fallthru
        _
    $region20: #{discriminator_forward.6} parent=5 // pred_fallthru
      _
    %p111 = scmp.le.s32.totalorder 1, %s8
    %p112 = scmp.lt.s32.totalorder %s8, 3
    %p113 = pnand %p111, %p112
    %p114 = pneg %p113
    // Predicated region
    $region25: #{discriminator_forward.6} parent=5 // pred_check
      _
    $region26: #{discriminator_forward.6} parent=5 // pred_check_branch
      %116 = sbr.rel (%p113) target = $region28
    $region27: #{discriminator_forward.6} parent=5 // pred_region
      %s117 = ssub.s32 %s8, 1
      %p118 = scmp.lt.s32.totalorder %s13, 1
      %s119 = scalar_select %p118, %s13, 1
      %s120 = smul.addr %s119, 11
      %s121 = smul.addr %s120, 4
      %s122 = scalar_lea.vmem %s0, %s121
      %p123 = pneg %p34
      %p124 = pneg %p31
      %p125 = pneg %p55
      %p126 = pneg %p52
      %p127 = pneg %p81
      %p128 = pneg %p78
      %p129 = scmp.lt.s32.totalorder %s13, 1
      %s130 = scalar_select %p129, %s13, 1
      %s131 = smul.addr %s130, 9
      %s132 = smul.addr %s131, 4
      %s133 = scalar_lea.vmem %s2, %s132
      %p134 = scmp.lt.s32.totalorder %s13, 1
      %s135 = scalar_select %p134, %s13, 1
      %s136 = smul.addr %s135, 11
      %s137 = smul.addr %s136, 4
      %s138 = scalar_lea.vmem %s0, %s137
      %p139 = scmp.lt.s32.totalorder %s13, 1
      %s140 = scalar_select %p139, %s13, 1
      %s141 = smul.addr %s140, 9
      %s142 = smul.addr %s141, 4
      %s143 = scalar_lea.vmem %s2, %s142
      %v145 = vld [vmem:[%s138] sm:$0xf]
      %v146 = vld [vmem:[%s138 + $0x4] sm:$0xf]
      %v147 = vld [vmem:[%s138 + $0x8] sm:$0xf]
      %v148 = vld [vmem:[%s138 + $0xc] sm:$0xf]
      %v149 = vld [vmem:[%s138 + $0x10] sm:$0xf]
      %v150 = vld [vmem:[%s138 + $0x14] sm:$0xf]
      %v151 = vld [vmem:[%s138 + $0x18] sm:$0xf]
      %v152 = vld [vmem:[%s138 + $0x1c] sm:$0xf]
      %v153 = vld [vmem:[%s138 + $0x20] sm:$0xf]
      %v154 = vld [vmem:[%s1] sm:$0xf]
      %v155 = vld [vmem:[%s1 + $0x4] sm:$0xf]
      %v156 = vld [vmem:[%s1 + $0x8] sm:$0xf]
      %v157 = vld [vmem:[%s1 + $0xc] sm:$0xf]
      %v158 = vld [vmem:[%s138 + $0x24] sm:$0x1]
      %s159 = scalar_lea.vmem %s1, 16
      %v160 = vld [vmem:[%s159] sm:$0xf]
      %v161 = vld [vmem:[%s159 + $0x4] sm:$0xf]
      %v162 = vld [vmem:[%s159 + $0x8] sm:$0xf]
      %v163 = vld [vmem:[%s159 + $0xc] sm:$0xf]
      %v174 = vunpack.c.l.b16 %v145
      %v175 = vunpack.c.l.b16 %v146
      %v176 = vunpack.c.l.b16 %v147
      %v177 = vunpack.c.l.b16 %v148
      %v178 = vunpack.c.l.b16 %v149
      %v179 = vunpack.c.l.b16 %v150
      %v180 = vunpack.c.l.b16 %v151
      %v181 = vunpack.c.l.b16 %v152
      %v182 = vunpack.c.l.b16 %v153
      %v183 = vunpack.c.l.b16 %v158
      %v184 = vpack.c.b16 %v175, %v174
      %v185 = vpack.c.b16 %v177, %v176
      %v186 = vpack.c.b16 %v179, %v178
      %v187 = vpack.c.b16 %v181, %v180
      %v188 = vpack.c.b16 %v183, %v182
      %vm189 = vsmask.f32 7424
      %v191 = vshrl.u32 %v184, 16
      %v193 = vshll.u32 %v184, 16
      %v195 = vrot.slane %v193, 1
      %v196 = vor.u32 %v191, %v195
      %v198 = vshll.u32 %v185, 16
      %v200 = vrot.slane %v198, 1
      %v201 = vsel %vm189, %v196, %v200
      %v202 = vshrl.u32 %v185, 16
      %v204 = vor.u32 %v202, %v200
      %v206 = vshll.u32 %v186, 16
      %v208 = vrot.slane %v206, 1
      %v209 = vsel %vm189, %v204, %v208
      %v210 = vshrl.u32 %v186, 16
      %v212 = vor.u32 %v210, %v208
      %v214 = vshll.u32 %v187, 16
      %v216 = vrot.slane %v214, 1
      %v217 = vsel %vm189, %v212, %v216
      %v218 = vshrl.u32 %v187, 16
      %v220 = vor.u32 %v218, %v216
      %v222 = vshll.u32 %v188, 16
      %v224 = vrot.slane %v222, 1
      %v225 = vsel %vm189, %v220, %v224
      %v226 = vshrl.u32 %v188, 16
      %v228 = vor.u32 %v226, %v224
      %v233 = vunpack.c.l.b16 %v160
      %v234 = vunpack.c.l.b16 %v161
      %v235 = vunpack.c.l.b16 %v162
      %v236 = vunpack.c.l.b16 %v163
      %v237 = vpack.c.b16 %v234, %v233
      %v238 = vpack.c.b16 %v236, %v235
      %vm241 = vcmask 261120
      %v243 = vsel %vm241, %v201, 0
      %v246 = vsel %vm241, %v209, 0
      %v249 = vsel %vm241, %v217, 0
      %v252 = vsel %vm241, %v225, 0
      %v255 = vsel %vm241, %v228, 0
      %257 = vmatprep.subr.bf16.mxu0 0
      %258 = vmatpush1.bf16.msra.mxu0 %v237
      %259 = vmatprep.subr.bf16.mxu0 0
      %260 = vmatpush1.bf16.msra.mxu0 %v238
      %261 = vmatprep.subr.bf16.mxu0 0
      %262 = vmatpush1.bf16.msra.mxu0 0
      %263 = vmatprep.subr.bf16.mxu0 0
      %264 = vmatpush1.bf16.msra.mxu0 0
      %265 = vmatprep.subr.bf16.mxu0 0
      %266 = vmatpush1.bf16.msra.mxu0 0
      %267 = vmatprep.subr.bf16.mxu0 0
      %268 = vmatpush1.bf16.msra.mxu0 0
      %269 = vmatprep.subr.bf16.mxu0 0
      %270 = vmatpush1.bf16.msra.mxu0 0
      %271 = vmatprep.subr.bf16.mxu0 0
      %272 = vmatpush1.bf16.msra.mxu0 0
      %273 = vmatprep.subr.bf16.mxu0 0
      %274 = vmatpush1.bf16.msra.mxu0 0
      %275 = vmatprep.subr.bf16.mxu0 0
      %276 = vmatpush1.bf16.msra.mxu0 0
      %277 = vmatprep.subr.bf16.mxu0 0
      %278 = vmatpush1.bf16.msra.mxu0 0
      %279 = vmatprep.subr.bf16.mxu0 0
      %280 = vmatpush1.bf16.msra.mxu0 0
      %281 = vmatprep.subr.bf16.mxu0 0
      %282 = vmatpush1.bf16.msra.mxu0 0
      %283 = vmatprep.subr.bf16.mxu0 0
      %284 = vmatpush1.bf16.msra.mxu0 0
      %285 = vmatprep.subr.bf16.mxu0 0
      %286 = vmatpush1.bf16.msra.mxu0 0
      %287 = vmatprep.subr.bf16.mxu0 0
      %288 = vmatpush1.bf16.msra.mxu0 0
      %289 = vmatprep.mubr.bf16.mxu0 0
      %290 = vmatmul.mubr.bf16.gmra.mrb[0].mxu0 %v243
      %v291 = vpop.f32.mrb[0].mxu0
      %v292 = vadd.f32 0.0, %v291
      %v293 = vpop.f32.mrb[0].mxu0
      %v294 = vpop.f32.mrb[0].mxu0
      %v295 = vadd.f32 0.0, %v294
      %v296 = vpop.f32.mrb[0].mxu0
      %297 = vmatprep.mubr.bf16.mxu0 0
      %298 = vmatmul.mubr.bf16.gmra.mrb[0].mxu0 %v246
      %v299 = vpop.f32.mrb[0].mxu0
      %v300 = vadd.f32 0.0, %v299
      %v301 = vpop.f32.mrb[0].mxu0
      %v302 = vpop.f32.mrb[0].mxu0
      %v303 = vadd.f32 0.0, %v302
      %v304 = vpop.f32.mrb[0].mxu0
      %305 = vmatprep.mubr.bf16.mxu0 0
      %306 = vmatmul.mubr.bf16.gmra.mrb[0].mxu0 %v249
      %v307 = vpop.f32.mrb[0].mxu0
      %v308 = vadd.f32 0.0, %v307
      %v309 = vpop.f32.mrb[0].mxu0
      %v310 = vpop.f32.mrb[0].mxu0
      %v311 = vadd.f32 0.0, %v310
      %v312 = vpop.f32.mrb[0].mxu0
      %313 = vmatprep.mubr.bf16.mxu0 0
      %314 = vmatmul.mubr.bf16.gmra.mrb[0].mxu0 %v252
      %v315 = vpop.f32.mrb[0].mxu0
      %v316 = vadd.f32 0.0, %v315
      %v317 = vpop.f32.mrb[0].mxu0
      %v318 = vpop.f32.mrb[0].mxu0
      %v319 = vadd.f32 0.0, %v318
      %v320 = vpop.f32.mrb[0].mxu0
      %321 = vmatprep.mubr.bf16.mxu0 0
      %322 = vmatmul.mubr.bf16.gmra.mrb[0].mxu0 %v255
      %v323 = vpop.f32.mrb[0].mxu0
      %v324 = vadd.f32 0.0, %v323
      %v325 = vpop.f32.mrb[0].mxu0
      %v326 = vpop.f32.mrb[0].mxu0
      %v327 = vpop.f32.mrb[0].mxu0
      %328 = vdwg.mxu0
      %v329 = vpack.c.b16 %v182, %v182
      %v334 = vunpack.c.l.b16 %v154
      %v335 = vunpack.c.l.b16 %v155
      %v336 = vunpack.c.l.b16 %v156
      %v337 = vunpack.c.l.b16 %v157
      %v338 = vpack.c.b16 %v335, %v334
      %v339 = vpack.c.b16 %v337, %v336
      %v342 = vsel %vm241, %v184, 0
      %v344 = vsel %vm241, %v185, 0
      %v346 = vsel %vm241, %v186, 0
      %v348 = vsel %vm241, %v187, 0
      %v351 = vsel %vm241, %v329, 0
      %353 = vmatprep.subr.bf16.mxu0 0
      %354 = vmatpush1.bf16.msra.mxu0 %v338
      %355 = vmatprep.subr.bf16.mxu0 0
      %356 = vmatpush1.bf16.msra.mxu0 %v339
      %357 = vmatprep.subr.bf16.mxu0 0
      %358 = vmatpush1.bf16.msra.mxu0 0
      %359 = vmatprep.subr.bf16.mxu0 0
      %360 = vmatpush1.bf16.msra.mxu0 0
      %361 = vmatprep.subr.bf16.mxu0 0
      %362 = vmatpush1.bf16.msra.mxu0 0
      %363 = vmatprep.subr.bf16.mxu0 0
      %364 = vmatpush1.bf16.msra.mxu0 0
      %365 = vmatprep.subr.bf16.mxu0 0
      %366 = vmatpush1.bf16.msra.mxu0 0
      %367 = vmatprep.subr.bf16.mxu0 0
      %368 = vmatpush1.bf16.msra.mxu0 0
      %369 = vmatprep.subr.bf16.mxu0 0
      %370 = vmatpush1.bf16.msra.mxu0 0
      %371 = vmatprep.subr.bf16.mxu0 0
      %372 = vmatpush1.bf16.msra.mxu0 0
      %373 = vmatprep.subr.bf16.mxu0 0
      %374 = vmatpush1.bf16.msra.mxu0 0
      %375 = vmatprep.subr.bf16.mxu0 0
      %376 = vmatpush1.bf16.msra.mxu0 0
      %377 = vmatprep.subr.bf16.mxu0 0
      %378 = vmatpush1.bf16.msra.mxu0 0
      %379 = vmatprep.subr.bf16.mxu0 0
      %380 = vmatpush1.bf16.msra.mxu0 0
      %381 = vmatprep.subr.bf16.mxu0 0
      %382 = vmatpush1.bf16.msra.mxu0 0
      %383 = vmatprep.subr.bf16.mxu0 0
      %384 = vmatpush1.bf16.msra.mxu0 0
      %385 = vmatprep.mubr.bf16.mxu0 0
      %386 = vmatmul.mubr.bf16.gmra.mrb[0].mxu0 %v342
      %v387 = vpop.f32.mrb[0].mxu0
      %v388 = vadd.f32 %v292, %v387
      %v389 = vpop.f32.mrb[0].mxu0
      %v390 = vpop.f32.mrb[0].mxu0
      %v391 = vadd.f32 %v295, %v390
      %v392 = vpop.f32.mrb[0].mxu0
      %393 = vmatprep.mubr.bf16.mxu0 0
      %394 = vmatmul.mubr.bf16.gmra.mrb[0].mxu0 %v344
      %v395 = vpop.f32.mrb[0].mxu0
      %v396 = vadd.f32 %v300, %v395
      %v397 = vpop.f32.mrb[0].mxu0
      %v398 = vpop.f32.mrb[0].mxu0
      %v399 = vadd.f32 %v303, %v398
      %v400 = vpop.f32.mrb[0].mxu0
      %401 = vmatprep.mubr.bf16.mxu0 0
      %402 = vmatmul.mubr.bf16.gmra.mrb[0].mxu0 %v346
      %v403 = vpop.f32.mrb[0].mxu0
      %v404 = vadd.f32 %v308, %v403
      %v405 = vpop.f32.mrb[0].mxu0
      %v406 = vpop.f32.mrb[0].mxu0
      %v407 = vadd.f32 %v311, %v406
      %v408 = vpop.f32.mrb[0].mxu0
      %409 = vmatprep.mubr.bf16.mxu0 0
      %410 = vmatmul.mubr.bf16.gmra.mrb[0].mxu0 %v348
      %v411 = vpop.f32.mrb[0].mxu0
      %v412 = vadd.f32 %v316, %v411
      %v413 = vpop.f32.mrb[0].mxu0
      %v414 = vpop.f32.mrb[0].mxu0
      %v415 = vadd.f32 %v319, %v414
      %v416 = vpop.f32.mrb[0].mxu0
      %417 = vmatprep.mubr.bf16.mxu0 0
      %418 = vmatmul.mubr.bf16.gmra.mrb[0].mxu0 %v351
      %v419 = vpop.f32.mrb[0].mxu0
      %v420 = vadd.f32 %v324, %v419
      %v421 = vpop.f32.mrb[0].mxu0
      %v422 = vpop.f32.mrb[0].mxu0
      %v423 = vpop.f32.mrb[0].mxu0
      %424 = vdwg.mxu0
      %v425 = vld [vmem:[%s138 + $0x4] sm:$0xf]
      %v426 = vld [vmem:[%s138 + $0x8] sm:$0xf]
      %v427 = vld [vmem:[%s138 + $0xc] sm:$0xf]
      %v428 = vld [vmem:[%s138 + $0x10] sm:$0xf]
      %v429 = vld [vmem:[%s138 + $0x14] sm:$0xf]
      %v430 = vld [vmem:[%s138 + $0x18] sm:$0xf]
      %v431 = vld [vmem:[%s138 + $0x1c] sm:$0xf]
      %v432 = vld [vmem:[%s138 + $0x20] sm:$0xf]
      %v433 = vld [vmem:[%s138 + $0x24] sm:$0xf]
      %v434 = vld [vmem:[%s138 + $0x28] sm:$0x1]
      %s435 = scalar_lea.vmem %s1, 32
      %v436 = vld [vmem:[%s435] sm:$0xf]
      %v437 = vld [vmem:[%s435 + $0x4] sm:$0xf]
      %v438 = vld [vmem:[%s435 + $0x8] sm:$0xf]
      %v439 = vld [vmem:[%s435 + $0xc] sm:$0xf]
      %v450 = vunpack.c.l.b16 %v425
      %v451 = vunpack.c.l.b16 %v426
      %v452 = vunpack.c.l.b16 %v427
      %v453 = vunpack.c.l.b16 %v428
      %v454 = vunpack.c.l.b16 %v429
      %v455 = vunpack.c.l.b16 %v430
      %v456 = vunpack.c.l.b16 %v431
      %v457 = vunpack.c.l.b16 %v432
      %v458 = vunpack.c.l.b16 %v433
      %v459 = vunpack.c.l.b16 %v434
      %v460 = vpack.c.b16 %v451, %v450
      %v461 = vpack.c.b16 %v453, %v452
      %v462 = vpack.c.b16 %v455, %v454
      %v463 = vpack.c.b16 %v457, %v456
      %v464 = vpack.c.b16 %v459, %v458
      %v466 = vshrl.u32 %v460, 16
      %v468 = vshll.u32 %v460, 16
      %v470 = vrot.slane %v468, 1
      %v471 = vor.u32 %v466, %v470
      %v473 = vshll.u32 %v461, 16
      %v475 = vrot.slane %v473, 1
      %v476 = vsel %vm189, %v471, %v475
      %v477 = vshrl.u32 %v461, 16
      %v479 = vor.u32 %v477, %v475
      %v481 = vshll.u32 %v462, 16
      %v483 = vrot.slane %v481, 1
      %v484 = vsel %vm189, %v479, %v483
      %v485 = vshrl.u32 %v462, 16
      %v487 = vor.u32 %v485, %v483
      %v489 = vshll.u32 %v463, 16
      %v491 = vrot.slane %v489, 1
      %v492 = vsel %vm189, %v487, %v491
      %v493 = vshrl.u32 %v463, 16
      %v495 = vor.u32 %v493, %v491
      %v497 = vshll.u32 %v464, 16
      %v499 = vrot.slane %v497, 1
      %v500 = vsel %vm189, %v495, %v499
      %v501 = vshrl.u32 %v464, 16
      %v503 = vor.u32 %v501, %v499
      %v508 = vunpack.c.l.b16 %v436
      %v509 = vunpack.c.l.b16 %v437
      %v510 = vunpack.c.l.b16 %v438
      %v511 = vunpack.c.l.b16 %v439
      %v512 = vpack.c.b16 %v509, %v508
      %v513 = vpack.c.b16 %v511, %v510
      %v517 = vsel %vm241, %v476, 0
      %v520 = vsel %vm241, %v484, 0
      %v523 = vsel %vm241, %v492, 0
      %v526 = vsel %vm241, %v500, 0
      %v529 = vsel %vm241, %v503, 0
      %531 = vmatprep.subr.bf16.mxu0 0
      %532 = vmatpush1.bf16.msra.mxu0 %v512
      %533 = vmatprep.subr.bf16.mxu0 0
      %534 = vmatpush1.bf16.msra.mxu0 %v513
      %535 = vmatprep.subr.bf16.mxu0 0
      %536 = vmatpush1.bf16.msra.mxu0 0
      %537 = vmatprep.subr.bf16.mxu0 0
      %538 = vmatpush1.bf16.msra.mxu0 0
      %539 = vmatprep.subr.bf16.mxu0 0
      %540 = vmatpush1.bf16.msra.mxu0 0
      %541 = vmatprep.subr.bf16.mxu0 0
      %542 = vmatpush1.bf16.msra.mxu0 0
      %543 = vmatprep.subr.bf16.mxu0 0
      %544 = vmatpush1.bf16.msra.mxu0 0
      %545 = vmatprep.subr.bf16.mxu0 0
      %546 = vmatpush1.bf16.msra.mxu0 0
      %547 = vmatprep.subr.bf16.mxu0 0
      %548 = vmatpush1.bf16.msra.mxu0 0
      %549 = vmatprep.subr.bf16.mxu0 0
      %550 = vmatpush1.bf16.msra.mxu0 0
      %551 = vmatprep.subr.bf16.mxu0 0
      %552 = vmatpush1.bf16.msra.mxu0 0
      %553 = vmatprep.subr.bf16.mxu0 0
      %554 = vmatpush1.bf16.msra.mxu0 0
      %555 = vmatprep.subr.bf16.mxu0 0
      %556 = vmatpush1.bf16.msra.mxu0 0
      %557 = vmatprep.subr.bf16.mxu0 0
      %558 = vmatpush1.bf16.msra.mxu0 0
      %559 = vmatprep.subr.bf16.mxu0 0
      %560 = vmatpush1.bf16.msra.mxu0 0
      %561 = vmatprep.subr.bf16.mxu0 0
      %562 = vmatpush1.bf16.msra.mxu0 0
      %563 = vmatprep.mubr.bf16.mxu0 0
      %564 = vmatmul.mubr.bf16.gmra.mrb[0].mxu0 %v517
      %v565 = vpop.f32.mrb[0].mxu0
      %v566 = vadd.f32 0.0, %v565
      %v567 = vpop.f32.mrb[0].mxu0
      %v568 = vpop.f32.mrb[0].mxu0
      %v569 = vadd.f32 0.0, %v568
      %v570 = vpop.f32.mrb[0].mxu0
      %571 = vmatprep.mubr.bf16.mxu0 0
      %572 = vmatmul.mubr.bf16.gmra.mrb[0].mxu0 %v520
      %v573 = vpop.f32.mrb[0].mxu0
      %v574 = vadd.f32 0.0, %v573
      %v575 = vpop.f32.mrb[0].mxu0
      %v576 = vpop.f32.mrb[0].mxu0
      %v577 = vadd.f32 0.0, %v576
      %v578 = vpop.f32.mrb[0].mxu0
      %579 = vmatprep.mubr.bf16.mxu0 0
      %580 = vmatmul.mubr.bf16.gmra.mrb[0].mxu0 %v523
      %v581 = vpop.f32.mrb[0].mxu0
      %v582 = vadd.f32 0.0, %v581
      %v583 = vpop.f32.mrb[0].mxu0
      %v584 = vpop.f32.mrb[0].mxu0
      %v585 = vadd.f32 0.0, %v584
      %v586 = vpop.f32.mrb[0].mxu0
      %587 = vmatprep.mubr.bf16.mxu0 0
      %588 = vmatmul.mubr.bf16.gmra.mrb[0].mxu0 %v526
      %v589 = vpop.f32.mrb[0].mxu0
      %v590 = vadd.f32 0.0, %v589
      %v591 = vpop.f32.mrb[0].mxu0
      %v592 = vpop.f32.mrb[0].mxu0
      %v593 = vadd.f32 0.0, %v592
      %v594 = vpop.f32.mrb[0].mxu0
      %595 = vmatprep.mubr.bf16.mxu0 0
      %596 = vmatmul.mubr.bf16.gmra.mrb[0].mxu0 %v529
      %v597 = vpop.f32.mrb[0].mxu0
      %v598 = vadd.f32 0.0, %v597
      %v599 = vpop.f32.mrb[0].mxu0
      %v600 = vpop.f32.mrb[0].mxu0
      %v601 = vpop.f32.mrb[0].mxu0
      %602 = vdwg.mxu0
      %v603 = vadd.f32 %v388, %v566
      %v604 = vadd.f32 %v391, %v569
      %v605 = vadd.f32 %v396, %v574
      %v606 = vadd.f32 %v399, %v577
      %v607 = vadd.f32 %v404, %v582
      %v608 = vadd.f32 %v407, %v585
      %v609 = vadd.f32 %v412, %v590
      %v610 = vadd.f32 %v415, %v593
      %v611 = vadd.f32 %v420, %v598
      %v612 = vld [vmem:[%s138 + $0x4] sm:$0xe]
      %s613 = scalar_lea.vmem %s1, 48
      %v614 = vld [vmem:[%s613] sm:$0xf]
      %v615 = vld [vmem:[%s613 + $0x4] sm:$0xf]
      %v616 = vld [vmem:[%s613 + $0x8] sm:$0xf]
      %v617 = vld [vmem:[%s613 + $0xc] sm:$0xf]
      %v619 = vunpack.c.l.b16 %v612
      %v620 = vpack.c.b16 %v451, %v619
      %vm621 = vcmask 1046528
      %v622 = vrot.slane %v620, 1
      %v623 = vrot.slane %v461, 1
      %v624 = vsel %vm621, %v622, %v623
      %v625 = vrot.slane %v462, 1
      %v626 = vsel %vm621, %v623, %v625
      %v627 = vrot.slane %v463, 1
      %v628 = vsel %vm621, %v625, %v627
      %v629 = vrot.slane %v464, 1
      %v630 = vsel %vm621, %v627, %v629
      %v635 = vunpack.c.l.b16 %v614
      %v636 = vunpack.c.l.b16 %v615
      %v637 = vunpack.c.l.b16 %v616
      %v638 = vunpack.c.l.b16 %v617
      %v639 = vpack.c.b16 %v636, %v635
      %v640 = vpack.c.b16 %v638, %v637
      %v644 = vsel %vm241, %v624, 0
      %v647 = vsel %vm241, %v626, 0
      %v650 = vsel %vm241, %v628, 0
      %v653 = vsel %vm241, %v630, 0
      %v656 = vsel %vm241, %v629, 0
      %658 = vmatprep.subr.bf16.mxu0 0
      %659 = vmatpush1.bf16.msra.mxu0 %v639
      %660 = vmatprep.subr.bf16.mxu0 0
      %661 = vmatpush1.bf16.msra.mxu0 %v640
      %662 = vmatprep.subr.bf16.mxu0 0
      %663 = vmatpush1.bf16.msra.mxu0 0
      %664 = vmatprep.subr.bf16.mxu0 0
      %665 = vmatpush1.bf16.msra.mxu0 0
      %666 = vmatprep.subr.bf16.mxu0 0
      %667 = vmatpush1.bf16.msra.mxu0 0
      %668 = vmatprep.subr.bf16.mxu0 0
      %669 = vmatpush1.bf16.msra.mxu0 0
      %670 = vmatprep.subr.bf16.mxu0 0
      %671 = vmatpush1.bf16.msra.mxu0 0
      %672 = vmatprep.subr.bf16.mxu0 0
      %673 = vmatpush1.bf16.msra.mxu0 0
      %674 = vmatprep.subr.bf16.mxu0 0
      %675 = vmatpush1.bf16.msra.mxu0 0
      %676 = vmatprep.subr.bf16.mxu0 0
      %677 = vmatpush1.bf16.msra.mxu0 0
      %678 = vmatprep.subr.bf16.mxu0 0
      %679 = vmatpush1.bf16.msra.mxu0 0
      %680 = vmatprep.subr.bf16.mxu0 0
      %681 = vmatpush1.bf16.msra.mxu0 0
      %682 = vmatprep.subr.bf16.mxu0 0
      %683 = vmatpush1.bf16.msra.mxu0 0
      %684 = vmatprep.subr.bf16.mxu0 0
      %685 = vmatpush1.bf16.msra.mxu0 0
      %686 = vmatprep.subr.bf16.mxu0 0
      %687 = vmatpush1.bf16.msra.mxu0 0
      %688 = vmatprep.subr.bf16.mxu0 0
      %689 = vmatpush1.bf16.msra.mxu0 0
      %690 = vmatprep.mubr.bf16.mxu0 0
      %691 = vmatmul.mubr.bf16.gmra.mrb[0].mxu0 %v644
      %v692 = vpop.f32.mrb[0].mxu0
      %v693 = vadd.f32 0.0, %v692
      %v694 = vpop.f32.mrb[0].mxu0
      %v695 = vpop.f32.mrb[0].mxu0
      %v696 = vadd.f32 0.0, %v695
      %v697 = vpop.f32.mrb[0].mxu0
      %698 = vmatprep.mubr.bf16.mxu0 0
      %699 = vmatmul.mubr.bf16.gmra.mrb[0].mxu0 %v647
      %v700 = vpop.f32.mrb[0].mxu0
      %v701 = vadd.f32 0.0, %v700
      %v702 = vpop.f32.mrb[0].mxu0
      %v703 = vpop.f32.mrb[0].mxu0
      %v704 = vadd.f32 0.0, %v703
      %v705 = vpop.f32.mrb[0].mxu0
      %706 = vmatprep.mubr.bf16.mxu0 0
      %707 = vmatmul.mubr.bf16.gmra.mrb[0].mxu0 %v650
      %v708 = vpop.f32.mrb[0].mxu0
      %v709 = vadd.f32 0.0, %v708
      %v710 = vpop.f32.mrb[0].mxu0
      %v711 = vpop.f32.mrb[0].mxu0
      %v712 = vadd.f32 0.0, %v711
      %v713 = vpop.f32.mrb[0].mxu0
      %714 = vmatprep.mubr.bf16.mxu0 0
      %715 = vmatmul.mubr.bf16.gmra.mrb[0].mxu0 %v653
      %v716 = vpop.f32.mrb[0].mxu0
      %v717 = vadd.f32 0.0, %v716
      %v718 = vpop.f32.mrb[0].mxu0
      %v719 = vpop.f32.mrb[0].mxu0
      %v720 = vadd.f32 0.0, %v719
      %v721 = vpop.f32.mrb[0].mxu0
      %722 = vmatprep.mubr.bf16.mxu0 0
      %723 = vmatmul.mubr.bf16.gmra.mrb[0].mxu0 %v656
      %v724 = vpop.f32.mrb[0].mxu0
      %v725 = vadd.f32 0.0, %v724
      %v726 = vpop.f32.mrb[0].mxu0
      %v727 = vpop.f32.mrb[0].mxu0
      %v728 = vpop.f32.mrb[0].mxu0
      %729 = vdwg.mxu0
      %v730 = vadd.f32 %v603, %v693
      %v731 = vadd.f32 %v604, %v696
      %v732 = vadd.f32 %v605, %v701
      %v733 = vadd.f32 %v606, %v704
      %v734 = vadd.f32 %v607, %v709
      %v735 = vadd.f32 %v608, %v712
      %v736 = vadd.f32 %v609, %v717
      %v737 = vadd.f32 %v610, %v720
      %v738 = vadd.f32 %v611, %v725
      %v739 = vlaneseq
      %v740 = vshrl.u32 %v739, 7
      %v741 = vadd.s32 %v740, 8
      %v742 = vadd.s32 %v740, 16
      %v743 = vadd.s32 %v740, 24
      %v744 = vadd.s32 %v740, 32
      %v745 = vadd.s32 %v740, 40
      %v746 = vadd.s32 %v740, 48
      %v747 = vadd.s32 %v740, 56
      %v748 = vadd.s32 %v740, 64
      %vm749 = vcmp.lt.s32.totalorder %v740, 0
      %v750 = vsub.s32 0, %v740
      %v751 = vsel %vm749, %v750, %v740
      %v752 = vmul.u32.u64.compose %v751, 3817748708
      %v753 = vextract.low.u32 %v752
      %v754 = vextract.high.u32 %v752
      %v755 = vshrl.u32 %v754, 3
      %v756 = vmul.u32 %v755, 9
      %v757 = vsub.s32 %v751, %v756
      %v758 = vsub.s32 0, %v757
      %v759 = vsel %vm749, %v758, %v757
      %vm760 = vcmp.lt.s32.totalorder %v741, 0
      %v761 = vsub.s32 0, %v741
      %v762 = vsel %vm760, %v761, %v741
      %v763 = vmul.u32.u64.compose %v762, 3817748708
      %v764 = vextract.low.u32 %v763
      %v765 = vextract.high.u32 %v763
      %v766 = vshrl.u32 %v765, 3
      %v767 = vmul.u32 %v766, 9
      %v768 = vsub.s32 %v762, %v767
      %v769 = vsub.s32 0, %v768
      %v770 = vsel %vm760, %v769, %v768
      %vm771 = vcmp.lt.s32.totalorder %v742, 0
      %v772 = vsub.s32 0, %v742
      %v773 = vsel %vm771, %v772, %v742
      %v774 = vmul.u32.u64.compose %v773, 3817748708
      %v775 = vextract.low.u32 %v774
      %v776 = vextract.high.u32 %v774
      %v777 = vshrl.u32 %v776, 3
      %v778 = vmul.u32 %v777, 9
      %v779 = vsub.s32 %v773, %v778
      %v780 = vsub.s32 0, %v779
      %v781 = vsel %vm771, %v780, %v779
      %vm782 = vcmp.lt.s32.totalorder %v743, 0
      %v783 = vsub.s32 0, %v743
      %v784 = vsel %vm782, %v783, %v743
      %v785 = vmul.u32.u64.compose %v784, 3817748708
      %v786 = vextract.low.u32 %v785
      %v787 = vextract.high.u32 %v785
      %v788 = vshrl.u32 %v787, 3
      %v789 = vmul.u32 %v788, 9
      %v790 = vsub.s32 %v784, %v789
      %v791 = vsub.s32 0, %v790
      %v792 = vsel %vm782, %v791, %v790
      %vm793 = vcmp.lt.s32.totalorder %v744, 0
      %v794 = vsub.s32 0, %v744
      %v795 = vsel %vm793, %v794, %v744
      %v796 = vmul.u32.u64.compose %v795, 3817748708
      %v797 = vextract.low.u32 %v796
      %v798 = vextract.high.u32 %v796
      %v799 = vshrl.u32 %v798, 3
      %v800 = vmul.u32 %v799, 9
      %v801 = vsub.s32 %v795, %v800
      %v802 = vsub.s32 0, %v801
      %v803 = vsel %vm793, %v802, %v801
      %vm804 = vcmp.lt.s32.totalorder %v745, 0
      %v805 = vsub.s32 0, %v745
      %v806 = vsel %vm804, %v805, %v745
      %v807 = vmul.u32.u64.compose %v806, 3817748708
      %v808 = vextract.low.u32 %v807
      %v809 = vextract.high.u32 %v807
      %v810 = vshrl.u32 %v809, 3
      %v811 = vmul.u32 %v810, 9
      %v812 = vsub.s32 %v806, %v811
      %v813 = vsub.s32 0, %v812
      %v814 = vsel %vm804, %v813, %v812
      %vm815 = vcmp.lt.s32.totalorder %v746, 0
      %v816 = vsub.s32 0, %v746
      %v817 = vsel %vm815, %v816, %v746
      %v818 = vmul.u32.u64.compose %v817, 3817748708
      %v819 = vextract.low.u32 %v818
      %v820 = vextract.high.u32 %v818
      %v821 = vshrl.u32 %v820, 3
      %v822 = vmul.u32 %v821, 9
      %v823 = vsub.s32 %v817, %v822
      %v824 = vsub.s32 0, %v823
      %v825 = vsel %vm815, %v824, %v823
      %vm826 = vcmp.lt.s32.totalorder %v747, 0
      %v827 = vsub.s32 0, %v747
      %v828 = vsel %vm826, %v827, %v747
      %v829 = vmul.u32.u64.compose %v828, 3817748708
      %v830 = vextract.low.u32 %v829
      %v831 = vextract.high.u32 %v829
      %v832 = vshrl.u32 %v831, 3
      %v833 = vmul.u32 %v832, 9
      %v834 = vsub.s32 %v828, %v833
      %v835 = vsub.s32 0, %v834
      %v836 = vsel %vm826, %v835, %v834
      %vm837 = vcmp.lt.s32.totalorder %v748, 0
      %v838 = vsub.s32 0, %v748
      %v839 = vsel %vm837, %v838, %v748
      %v840 = vmul.u32.u64.compose %v839, 3817748708
      %v841 = vextract.low.u32 %v840
      %v842 = vextract.high.u32 %v840
      %v843 = vshrl.u32 %v842, 3
      %v844 = vmul.u32 %v843, 9
      %v845 = vsub.s32 %v839, %v844
      %v846 = vsub.s32 0, %v845
      %v847 = vsel %vm837, %v846, %v845
      %vm848 = vcmp.ne.s32.totalorder %v759, 0
      %vm849 = vcmp.ne.s32.totalorder %v770, 0
      %vm850 = vcmp.ne.s32.totalorder %v781, 0
      %vm851 = vcmp.ne.s32.totalorder %v792, 0
      %vm852 = vcmp.ne.s32.totalorder %v803, 0
      %vm853 = vcmp.ne.s32.totalorder %v814, 0
      %vm854 = vcmp.ne.s32.totalorder %v825, 0
      %vm855 = vcmp.ne.s32.totalorder %v836, 0
      %vm856 = vcmp.ne.s32.totalorder %v847, 0
      %vm857 = vcmp.lt.s32.totalorder %v759, 0
      %vm858 = vcmp.lt.s32.totalorder %v770, 0
      %vm859 = vcmp.lt.s32.totalorder %v781, 0
      %vm860 = vcmp.lt.s32.totalorder %v792, 0
      %vm861 = vcmp.lt.s32.totalorder %v803, 0
      %vm862 = vcmp.lt.s32.totalorder %v814, 0
      %vm863 = vcmp.lt.s32.totalorder %v825, 0
      %vm864 = vcmp.lt.s32.totalorder %v836, 0
      %vm865 = vcmp.lt.s32.totalorder %v847, 0
      %vm866 = vmand %vm857, %vm848
      %vm867 = vmand %vm858, %vm849
      %vm868 = vmand %vm859, %vm850
      %vm869 = vmand %vm860, %vm851
      %vm870 = vmand %vm861, %vm852
      %vm871 = vmand %vm862, %vm853
      %vm872 = vmand %vm863, %vm854
      %vm873 = vmand %vm864, %vm855
      %vm874 = vmand %vm865, %vm856
      %v875 = vadd.s32 %v759, 9
      %v876 = vadd.s32 %v770, 9
      %v877 = vadd.s32 %v781, 9
      %v878 = vadd.s32 %v792, 9
      %v879 = vadd.s32 %v803, 9
      %v880 = vadd.s32 %v814, 9
      %v881 = vadd.s32 %v825, 9
      %v882 = vadd.s32 %v836, 9
      %v883 = vadd.s32 %v847, 9
      %v884 = vsel %vm866, %v875, %v759
      %v885 = vsel %vm867, %v876, %v770
      %v886 = vsel %vm868, %v877, %v781
      %v887 = vsel %vm869, %v878, %v792
      %v888 = vsel %vm870, %v879, %v803
      %v889 = vsel %vm871, %v880, %v814
      %v890 = vsel %vm872, %v881, %v825
      %v891 = vsel %vm873, %v882, %v836
      %v892 = vsel %vm874, %v883, %v847
      %vm893 = vcmp.lt.s32.totalorder %v884, 8
      %vm894 = vcmp.lt.s32.totalorder %v885, 8
      %vm895 = vcmp.lt.s32.totalorder %v886, 8
      %vm896 = vcmp.lt.s32.totalorder %v887, 8
      %vm897 = vcmp.lt.s32.totalorder %v888, 8
      %vm898 = vcmp.lt.s32.totalorder %v889, 8
      %vm899 = vcmp.lt.s32.totalorder %v890, 8
      %vm900 = vcmp.lt.s32.totalorder %v891, 8
      %vm901 = vcmp.lt.s32.totalorder %v892, 8
      %v902 = vsel %vm893, 1, 0
      %v903 = vsel %vm894, 1, 0
      %v904 = vsel %vm895, 1, 0
      %v905 = vsel %vm896, 1, 0
      %v906 = vsel %vm897, 1, 0
      %v907 = vsel %vm898, 1, 0
      %v908 = vsel %vm899, 1, 0
      %v909 = vsel %vm900, 1, 0
      %v910 = vsel %vm901, 1, 0
      %vm911 = vcmp.eq.s32.totalorder %v902, 1
      %vm912 = vcmp.eq.s32.totalorder %v903, 1
      %vm913 = vcmp.eq.s32.totalorder %v904, 1
      %vm914 = vcmp.eq.s32.totalorder %v905, 1
      %vm915 = vcmp.eq.s32.totalorder %v906, 1
      %vm916 = vcmp.eq.s32.totalorder %v907, 1
      %vm917 = vcmp.eq.s32.totalorder %v908, 1
      %vm918 = vcmp.eq.s32.totalorder %v909, 1
      %vm919 = vcmp.eq.s32.totalorder %v910, 1
      %v920 = vsel %vm911, %v730, 0.0
      %v921 = vsel %vm912, %v731, 0.0
      %v922 = vsel %vm913, %v732, 0.0
      %v923 = vsel %vm914, %v733, 0.0
      %v924 = vsel %vm915, %v734, 0.0
      %v925 = vsel %vm916, %v735, 0.0
      %v926 = vsel %vm917, %v736, 0.0
      %v927 = vsel %vm918, %v737, 0.0
      %v928 = vsel %vm919, %v738, 0.0
      %vm929 = vcmask 130048
      %v930 = vsel %vm929, %v920, 0.0
      %v931 = vsel %vm929, %v921, 0.0
      %v932 = vadd.f32 %v930, %v931
      %v933 = vsel %vm929, %v922, 0.0
      %v934 = vadd.f32 %v932, %v933
      %v935 = vsel %vm929, %v923, 0.0
      %v936 = vadd.f32 %v934, %v935
      %v937 = vsel %vm929, %v924, 0.0
      %v938 = vadd.f32 %v936, %v937
      %v939 = vsel %vm929, %v925, 0.0
      %v940 = vadd.f32 %v938, %v939
      %v941 = vsel %vm929, %v926, 0.0
      %v942 = vadd.f32 %v940, %v941
      %v943 = vsel %vm929, %v927, 0.0
      %v944 = vadd.f32 %v942, %v943
      %v945 = vsel %vm929, %v928, 0.0
      %v946 = vadd.f32 %v944, %v945
      %v947 = vrot.slane %v946, 4
      %v948 = vadd.f32 %v946, %v947
      %v949 = vrot.slane %v948, 2
      %v950 = vadd.f32 %v948, %v949
      %v951 = vrot.slane %v950, 1
      %v952 = vadd.f32 %v950, %v951
      %v953 = vmul.f32 %v952, 0.015625
      %v954 = vsub.f32 %v730, %v953
      %v955 = vsub.f32 %v731, %v953
      %v956 = vsub.f32 %v732, %v953
      %v957 = vsub.f32 %v733, %v953
      %v958 = vsub.f32 %v734, %v953
      %v959 = vsub.f32 %v735, %v953
      %v960 = vsub.f32 %v736, %v953
      %v961 = vsub.f32 %v737, %v953
      %v962 = vsub.f32 %v738, %v953
      %v963 = vsel %vm911, %v954, 0.0
      %v964 = vsel %vm912, %v955, 0.0
      %v965 = vsel %vm913, %v956, 0.0
      %v966 = vsel %vm914, %v957, 0.0
      %v967 = vsel %vm915, %v958, 0.0
      %v968 = vsel %vm916, %v959, 0.0
      %v969 = vsel %vm917, %v960, 0.0
      %v970 = vsel %vm918, %v961, 0.0
      %v971 = vsel %vm919, %v962, 0.0
      %v972 = vmul.f32 %v963, %v963
      %v973 = vmul.f32 %v964, %v964
      %v974 = vmul.f32 %v965, %v965
      %v975 = vmul.f32 %v966, %v966
      %v976 = vmul.f32 %v967, %v967
      %v977 = vmul.f32 %v968, %v968
      %v978 = vmul.f32 %v969, %v969
      %v979 = vmul.f32 %v970, %v970
      %v980 = vmul.f32 %v971, %v971
      %v981 = vsel %vm929, %v972, 0.0
      %v982 = vsel %vm929, %v973, 0.0
      %v983 = vadd.f32 %v981, %v982
      %v984 = vsel %vm929, %v974, 0.0
      %v985 = vadd.f32 %v983, %v984
      %v986 = vsel %vm929, %v975, 0.0
      %v987 = vadd.f32 %v985, %v986
      %v988 = vsel %vm929, %v976, 0.0
      %v989 = vadd.f32 %v987, %v988
      %v990 = vsel %vm929, %v977, 0.0
      %v991 = vadd.f32 %v989, %v990
      %v992 = vsel %vm929, %v978, 0.0
      %v993 = vadd.f32 %v991, %v992
      %v994 = vsel %vm929, %v979, 0.0
      %v995 = vadd.f32 %v993, %v994
      %v996 = vsel %vm929, %v980, 0.0
      %v997 = vadd.f32 %v995, %v996
      %v998 = vrot.slane %v997, 4
      %v999 = vadd.f32 %v997, %v998
      %v1000 = vrot.slane %v999, 2
      %v1001 = vadd.f32 %v999, %v1000
      %v1002 = vrot.slane %v1001, 1
      %v1003 = vadd.f32 %v1001, %v1002
      %v1004 = vmul.f32 %v1003, 0.015625
      %v1005 = vadd.f32 %v1004, 1e-05
      %v1006 = vrsqrt.pop %v1005
      %v1007 = vmul.f32 %v954, %v1006
      %v1008 = vmul.f32 %v955, %v1006
      %v1009 = vmul.f32 %v956, %v1006
      %v1010 = vmul.f32 %v957, %v1006
      %v1011 = vmul.f32 %v958, %v1006
      %v1012 = vmul.f32 %v959, %v1006
      %v1013 = vmul.f32 %v960, %v1006
      %v1014 = vmul.f32 %v961, %v1006
      %v1015 = vmul.f32 %v962, %v1006
      %v1016 = vmul.f32 %v1007, 0.2
      %v1017 = vmul.f32 %v1008, 0.2
      %v1018 = vmul.f32 %v1009, 0.2
      %v1019 = vmul.f32 %v1010, 0.2
      %v1020 = vmul.f32 %v1011, 0.2
      %v1021 = vmul.f32 %v1012, 0.2
      %v1022 = vmul.f32 %v1013, 0.2
      %v1023 = vmul.f32 %v1014, 0.2
      %v1024 = vmul.f32 %v1015, 0.2
      %v1025 = vmax.f32 %v1007, %v1016
      %v1026 = vmax.f32 %v1008, %v1017
      %v1027 = vmax.f32 %v1009, %v1018
      %v1028 = vmax.f32 %v1010, %v1019
      %v1029 = vmax.f32 %v1011, %v1020
      %v1030 = vmax.f32 %v1012, %v1021
      %v1031 = vmax.f32 %v1013, %v1022
      %v1032 = vmax.f32 %v1014, %v1023
      %v1033 = vmax.f32 %v1015, %v1024
      %v1034 = vpack.c.bf16 %v1026, %v1025
      %v1035 = vpack.c.bf16 %v1028, %v1027
      %v1036 = vpack.c.bf16 %v1030, %v1029
      %v1037 = vpack.c.bf16 %v1032, %v1031
      %v1038 = vpack.c.bf16 %v1033, %v1033
      %v1044 = vunpack.c.l.b16 %v1034
      %v1045 = vunpack.c.h.b16 %v1034
      %v1046 = vunpack.c.l.b16 %v1035
      %v1047 = vunpack.c.h.b16 %v1035
      %v1048 = vunpack.c.l.b16 %v1036
      %v1049 = vunpack.c.h.b16 %v1036
      %v1050 = vunpack.c.l.b16 %v1037
      %v1051 = vunpack.c.h.b16 %v1037
      %v1052 = vunpack.c.l.b16 %v1038
      %v1053 = vpack.c.b16 %v1044, %v1044
      %v1054 = vpack.c.b16 %v1045, %v1045
      %v1055 = vpack.c.b16 %v1046, %v1046
      %v1056 = vpack.c.b16 %v1047, %v1047
      %v1057 = vpack.c.b16 %v1048, %v1048
      %v1058 = vpack.c.b16 %v1049, %v1049
      %v1059 = vpack.c.b16 %v1050, %v1050
      %v1060 = vpack.c.b16 %v1051, %v1051
      %v1061 = vpack.c.b16 %v1052, %v1052
      %vm1071 = vcmask 125952
      %1072 = vst.msk [vmem:[%s143] sm:$0xf] %vm1071, %v1053
      %1073 = vst.msk [vmem:[%s143 + $0x4] sm:$0xf] %vm1071, %v1054
      %1074 = vst.msk [vmem:[%s143 + $0x8] sm:$0xf] %vm1071, %v1055
      %1075 = vst.msk [vmem:[%s143 + $0xc] sm:$0xf] %vm1071, %v1056
      %1076 = vst.msk [vmem:[%s143 + $0x10] sm:$0xf] %vm1071, %v1057
      %1077 = vst.msk [vmem:[%s143 + $0x14] sm:$0xf] %vm1071, %v1058
      %1078 = vst.msk [vmem:[%s143 + $0x18] sm:$0xf] %vm1071, %v1059
      %1079 = vst.msk [vmem:[%s143 + $0x1c] sm:$0xf] %vm1071, %v1060
      %1080 = vst.msk [vmem:[%s143 + $0x20] sm:$0xf] %vm1071, %v1061
      %p1081 = scmp.lt.s32.totalorder %s13, 1
      %s1082 = scalar_select %p1081, %s13, 1
      %s1083 = smul.addr %s1082, 9
      %s1084 = smul.addr %s1083, 4
      %s1085 = scalar_lea.vmem %s2, %s1084
      // Predicated region
      $region29: #{discriminator_forward.6} parent=27 // pred_check
        %p1086 = pneg %p78
      $region30: #{discriminator_forward.6} parent=27 // pred_check_branch
        %1088 = sbr.rel (%p1086) target = $region32
      $region31: #{discriminator_forward.6} parent=27 // pred_region
        _
      $region32: #{discriminator_forward.6} parent=27 // pred_fallthru
        _
    $region28: #{discriminator_forward.6} parent=5 // pred_fallthru
      _
    %p1089 = scmp.le.s32.totalorder 2, %s8
    // Predicated region
    $region33: #{discriminator_forward.6} parent=5 // pred_check
      %p1090 = pneg %p1089
    $region34: #{discriminator_forward.6} parent=5 // pred_check_branch
      %1092 = sbr.rel (%p1090) target = $region36
    $region35: #{discriminator_forward.6} parent=5 // pred_region
      %s1093 = ssub.s32 %s8, 2
      // Predicated region
      $region37: #{discriminator_forward.6} parent=35 // pred_check
        %p1094 = pneg %p84
      $region38: #{discriminator_forward.6} parent=35 // pred_check_branch
        %1096 = sbr.rel (%p1094) target = $region40
      $region39: #{discriminator_forward.6} parent=35 // pred_region
        %p1097 = scmp.lt.s32.totalorder %s14, 1
        %s1098 = scalar_select %p1097, %s14, 1
        %s1099 = smul.addr %s1098, 9
        %s1100 = smul.addr %s1099, 4
        %s1101 = scalar_lea.vmem %s2, %s1100
      $region40: #{discriminator_forward.6} parent=35 // pred_fallthru
        _
    $region36: #{discriminator_forward.6} parent=5 // pred_fallthru
      _
  $region6: #{discriminator_forward.6} parent=0 // loop_footer
    %s12 = sadd.s32 1, %s8
  $region7: #{discriminator_forward.6} parent=0 // loop_footer_branch
    %7 = sbr.rel target = $region3
  $region8: #{discriminator_forward.6} parent=0 // loop_exit
    _

// kernel: discriminator_forward.7
$region0: #{discriminator_forward.7}
  #allocation0 [shape = 'u32[]', space=smem, size = 0x4, offset = 0x4, fixed_abs, tag = 'smem constant byte address 0x4 - core index']
  #allocation1 [shape = 'u32[144,128]{1,0:T(1,128)}', space=vmem, size = 0x12000, scoped, tag = 'internal scratch']
  %s0 = inlined_call_operand.vmem [shape: bf16[2,32,64], index: 0, kind: input, shape index: {}]
  %s1 = inlined_call_operand.vmem [shape: bf16[4,64,32], index: 1, kind: input, shape index: {}]
  %s2 = inlined_call_operand.vmem [shape: bf16[2,20,32], index: 2, kind: output, shape index: {}]
  %s3 = sld [smem:[#allocation0]]
  $region41: #{discriminator_forward.7} parent=0
    _
  %s5 = ssub.s32 1, %s3
  %s6 = scalar_select 0, %s5, %s3
  loop: start=0, step=1, limit=4
  $region2: #{discriminator_forward.7} parent=0 // loop_pre_header
    _
  $region3: #{discriminator_forward.7} parent=0 // loop_header
    %s8 = sphi 0, %s12
    %p9 = scmp.ge.s32.totalorder %s8, 4
    %s18 = sphi 0, %s20
    %s21 = sphi 0, %s18
    %s22 = sphi 0, %s21
    %s38 = sphi 0, %s22
    %s42 = sphi 0, %s42
    %s44 = sphi 0, %s42
    %s45 = sphi 0, %s44
    %s59 = sphi 0, %s45
    %s65 = sphi 0, %s67
    %s68 = sphi 0, %s65
    %s69 = sphi 0, %s68
    %s85 = sphi 0, %s69
  $region4: #{discriminator_forward.7} parent=0 // loop_header_branch
    %11 = sbr.rel (%p9) target = $region8
  $region5: #{discriminator_forward.7} parent=0 // loop_body
    %s13 = ssub.s32 %s8, 1
    %s14 = ssub.s32 %s8, 2
    %s15 = sadd.s32 %s8, 1
    %s16 = ssub.s32 %s8, %s15
    %p17 = scmp.eq.s32.totalorder %s16, 0
    %s19 = sadd.s32 %s18, 1
    %s20 = scalar_select %p17, %s18, %s19
    %p23 = pneg %p17
    %p24 = scmp.eq.s32.totalorder %s8, 1
    %p25 = por %p23, %p24
    %p26 = scmp.ne.s32.totalorder %s18, %s21
    %p27 = scmp.eq.s32.totalorder %s8, 0
    %p28 = por %p26, %p27
    %p29 = scmp.ne.s32.totalorder %s18, %s21
    %p30 = scmp.eq.s32.totalorder %s13, 1
    %p31 = por %p29, %p30
    %p32 = scmp.ne.s32.totalorder %s21, %s22
    %p33 = scmp.eq.s32.totalorder %s13, 0
    %p34 = por %p32, %p33
    %p35 = scmp.ne.s32.totalorder %s21, %s22
    %p36 = scmp.eq.s32.totalorder %s14, 1
    %p37 = por %p35, %p36
    %p39 = scmp.ne.s32.totalorder %s22, %s38
    %p40 = scmp.eq.s32.totalorder %s14, 0
    %p41 = por %p39, %p40
    %s43 = sadd.s32 %s42, 1
    %p46 = scmp.eq.s32.totalorder %s8, 1
    %p47 = scmp.ne.s32.totalorder %s42, %s44
    %p48 = scmp.eq.s32.totalorder %s8, 0
    %p49 = por %p47, %p48
    %p50 = scmp.ne.s32.totalorder %s42, %s44
    %p51 = scmp.eq.s32.totalorder %s13, 1
    %p52 = por %p50, %p51
    %p53 = scmp.ne.s32.totalorder %s44, %s45
    %p54 = scmp.eq.s32.totalorder %s13, 0
    %p55 = por %p53, %p54
    %p56 = scmp.ne.s32.totalorder %s44, %s45
    %p57 = scmp.eq.s32.totalorder %s14, 1
    %p58 = por %p56, %p57
    %p60 = scmp.ne.s32.totalorder %s45, %s59
    %p61 = scmp.eq.s32.totalorder %s14, 0
    %p62 = por %p60, %p61
    %s63 = ssub.s32 %s8, %s15
    %p64 = scmp.eq.s32.totalorder %s63, 0
    %s66 = sadd.s32 %s65, 1
    %s67 = scalar_select %p64, %s65, %s66
    %p70 = pneg %p64
    %p71 = scmp.eq.s32.totalorder %s8, 1
    %p72 = por %p70, %p71
    %p73 = scmp.ne.s32.totalorder %s65, %s68
    %p74 = scmp.eq.s32.totalorder %s8, 0
    %p75 = por %p73, %p74
    %p76 = scmp.ne.s32.totalorder %s65, %s68
    %p77 = scmp.eq.s32.totalorder %s13, 1
    %p78 = por %p76, %p77
    %p79 = scmp.ne.s32.totalorder %s68, %s69
    %p80 = scmp.eq.s32.totalorder %s13, 0
    %p81 = por %p79, %p80
    %p82 = scmp.ne.s32.totalorder %s68, %s69
    %p83 = scmp.eq.s32.totalorder %s14, 1
    %p84 = por %p82, %p83
    %p86 = scmp.ne.s32.totalorder %s69, %s85
    %p87 = scmp.eq.s32.totalorder %s14, 0
    %p88 = por %p86, %p87
    %p89 = scmp.le.s32.totalorder 1, %s8
    %p90 = scmp.lt.s32.totalorder %s8, 3
    %p91 = pnand %p89, %p90
    %p92 = pneg %p91
    // Predicated region
    $region9: #{discriminator_forward.7} parent=5 // pred_check
      _
    $region10: #{discriminator_forward.7} parent=5 // pred_check_branch
      %94 = sbr.rel (%p91) target = $region12
    $region11: #{discriminator_forward.7} parent=5 // pred_region
      %s95 = ssub.s32 %s8, 1
      // Predicated region
      $region13: #{discriminator_forward.7} parent=11 // pred_check
        %p96 = pneg %p55
      $region14: #{discriminator_forward.7} parent=11 // pred_check_branch
        %98 = sbr.rel (%p96) target = $region16
      $region15: #{discriminator_forward.7} parent=11 // pred_region
        _
      $region16: #{discriminator_forward.7} parent=11 // pred_fallthru
        _
    $region12: #{discriminator_forward.7} parent=5 // pred_fallthru
      _
    %p99 = scmp.lt.s32.totalorder %s8, 2
    // Predicated region
    $region17: #{discriminator_forward.7} parent=5 // pred_check
      %p100 = pneg %p99
    $region18: #{discriminator_forward.7} parent=5 // pred_check_branch
      %102 = sbr.rel (%p100) target = $region20
    $region19: #{discriminator_forward.7} parent=5 // pred_region
      // Predicated region
      $region21: #{discriminator_forward.7} parent=19 // pred_check
        %p103 = pneg %p28
      $region22: #{discriminator_forward.7} parent=19 // pred_check_branch
        %105 = sbr.rel (%p103) target = $region24
      $region23: #{discriminator_forward.7} parent=19 // pred_region
        %p106 = scmp.lt.s32.totalorder %s8, 1
        %s107 = scalar_select %p106, %s8, 1
        %s108 = smul.addr %s107, 4
        %s109 = smul.addr %s108, 4
        %s110 = scalar_lea.vmem %s0, %s109
      $region24: #{discriminator_forward.7} parent=19 // pred_fallthru
        _
    $region20: #{discriminator_forward.7} parent=5 // pred_fallthru
      _
    %p111 = scmp.le.s32.totalorder 1, %s8
    %p112 = scmp.lt.s32.totalorder %s8, 3
    %p113 = pnand %p111, %p112
    %p114 = pneg %p113
    // Predicated region
    $region25: #{discriminator_forward.7} parent=5 // pred_check
      _
    $region26: #{discriminator_forward.7} parent=5 // pred_check_branch
      %116 = sbr.rel (%p113) target = $region28
    $region27: #{discriminator_forward.7} parent=5 // pred_region
      %s117 = ssub.s32 %s8, 1
      %p118 = scmp.lt.s32.totalorder %s13, 1
      %s119 = scalar_select %p118, %s13, 1
      %s120 = smul.addr %s119, 4
      %s121 = smul.addr %s120, 4
      %s122 = scalar_lea.vmem %s0, %s121
      %p123 = pneg %p34
      %p124 = pneg %p31
      %p125 = pneg %p55
      %p126 = pneg %p52
      %p127 = pneg %p81
      %p128 = pneg %p78
      %p129 = scmp.lt.s32.totalorder %s13, 1
      %s130 = scalar_select %p129, %s13, 1
      %s131 = smul.addr %s130, 3
      %s132 = smul.addr %s131, 4
      %s133 = scalar_lea.vmem %s2, %s132
      %p134 = scmp.lt.s32.totalorder %s13, 1
      %s135 = scalar_select %p134, %s13, 1
      %s136 = smul.addr %s135, 4
      %s137 = smul.addr %s136, 4
      %s138 = scalar_lea.vmem %s0, %s137
      %p139 = scmp.lt.s32.totalorder %s13, 1
      %s140 = scalar_select %p139, %s13, 1
      %s141 = smul.addr %s140, 3
      %s142 = smul.addr %s141, 4
      %s143 = scalar_lea.vmem %s2, %s142
      %v145 = vld [vmem:[%s138] sm:$0xf]
      %v146 = vld [vmem:[%s138 + $0x4] sm:$0xf]
      %v147 = vld [vmem:[%s138 + $0x8] sm:$0x3]
      %v148 = vld [vmem:[%s1] sm:$0xf]
      %v149 = vld [vmem:[%s1 + $0x4] sm:$0xf]
      %v150 = vld [vmem:[%s1 + $0x8] sm:$0xf]
      %v151 = vld [vmem:[%s1 + $0xc] sm:$0xf]
      %v152 = vld [vmem:[%s1 + $0x10] sm:$0xf]
      %v153 = vld [vmem:[%s1 + $0x14] sm:$0xf]
      %v154 = vld [vmem:[%s1 + $0x18] sm:$0xf]
      %v155 = vld [vmem:[%s1 + $0x1c] sm:$0xf]
      %v156 = vld [vmem:[%s138 + $0x8] sm:$0x7]
      %s157 = scalar_lea.vmem %s1, 32
      %v158 = vld [vmem:[%s157] sm:$0xf]
      %v159 = vld [vmem:[%s157 + $0x4] sm:$0xf]
      %v160 = vld [vmem:[%s157 + $0x8] sm:$0xf]
      %v161 = vld [vmem:[%s157 + $0xc] sm:$0xf]
      %v162 = vld [vmem:[%s157 + $0x10] sm:$0xf]
      %v163 = vld [vmem:[%s157 + $0x14] sm:$0xf]
      %v164 = vld [vmem:[%s157 + $0x18] sm:$0xf]
      %v165 = vld [vmem:[%s157 + $0x1c] sm:$0xf]
      %v169 = vunpack.c.l.b16 %v145
      %v170 = vunpack.c.l.b16 %v146
      %v171 = vunpack.c.l.b16 %v156
      %v172 = vpack.c.b16 %v170, %v169
      %v173 = vpack.c.b16 %v171, %v171
      %vm174 = vsmask.f32 7424
      %v176 = vshrl.u32 %v172, 16
      %v178 = vshll.u32 %v172, 16
      %v180 = vrot.slane %v178, 1
      %v181 = vor.u32 %v176, %v180
      %v183 = vshll.u32 %v173, 16
      %v185 = vrot.slane %v183, 1
      %v186 = vsel %vm174, %v181, %v185
      %v187 = vshrl.u32 %v173, 16
      %v189 = vor.u32 %v187, %v185
      %v198 = vunpack.c.l.b16 %v158
      %v199 = vunpack.c.l.b16 %v159
      %v200 = vunpack.c.l.b16 %v160
      %v201 = vunpack.c.l.b16 %v161
      %v202 = vunpack.c.l.b16 %v162
      %v203 = vunpack.c.l.b16 %v163
      %v204 = vunpack.c.l.b16 %v164
      %v205 = vunpack.c.l.b16 %v165
      %v206 = vpack.c.b16 %v199, %v198
      %v207 = vpack.c.b16 %v201, %v200
      %v208 = vpack.c.b16 %v203, %v202
      %v209 = vpack.c.b16 %v205, %v204
      %vm214 = vcmask 523264
      %v216 = vsel %vm214, %v186, 0
      %v219 = vsel %vm214, %v189, 0
      %221 = vmatprep.subr.bf16.mxu0 0
      %222 = vmatpush1.bf16.msra.mxu0 %v206
      %223 = vmatprep.subr.bf16.mxu0 0
      %224 = vmatpush1.bf16.msra.mxu0 %v207
      %225 = vmatprep.subr.bf16.mxu0 0
      %226 = vmatpush1.bf16.msra.mxu0 %v208
      %227 = vmatprep.subr.bf16.mxu0 0
      %228 = vmatpush1.bf16.msra.mxu0 %v209
      %229 = vmatprep.subr.bf16.mxu0 0
      %230 = vmatpush1.bf16.msra.mxu0 0
      %231 = vmatprep.subr.bf16.mxu0 0
      %232 = vmatpush1.bf16.msra.mxu0 0
      %233 = vmatprep.subr.bf16.mxu0 0
      %234 = vmatpush1.bf16.msra.mxu0 0
      %235 = vmatprep.subr.bf16.mxu0 0
      %236 = vmatpush1.bf16.msra.mxu0 0
      %237 = vmatprep.subr.bf16.mxu0 0
      %238 = vmatpush1.bf16.msra.mxu0 0
      %239 = vmatprep.subr.bf16.mxu0 0
      %240 = vmatpush1.bf16.msra.mxu0 0
      %241 = vmatprep.subr.bf16.mxu0 0
      %242 = vmatpush1.bf16.msra.mxu0 0
      %243 = vmatprep.subr.bf16.mxu0 0
      %244 = vmatpush1.bf16.msra.mxu0 0
      %245 = vmatprep.subr.bf16.mxu0 0
      %246 = vmatpush1.bf16.msra.mxu0 0
      %247 = vmatprep.subr.bf16.mxu0 0
      %248 = vmatpush1.bf16.msra.mxu0 0
      %249 = vmatprep.subr.bf16.mxu0 0
      %250 = vmatpush1.bf16.msra.mxu0 0
      %251 = vmatprep.subr.bf16.mxu0 0
      %252 = vmatpush1.bf16.msra.mxu0 0
      %253 = vmatprep.mubr.bf16.mxu0 0
      %254 = vmatmul.mubr.bf16.gmra.mrb[0].mxu0 %v216
      %v255 = vpop.f32.mrb[0].mxu0
      %v256 = vadd.f32 0.0, %v255
      %v257 = vpop.f32.mrb[0].mxu0
      %v258 = vpop.f32.mrb[0].mxu0
      %v259 = vadd.f32 0.0, %v258
      %v260 = vpop.f32.mrb[0].mxu0
      %261 = vmatprep.mubr.bf16.mxu0 0
      %262 = vmatmul.mubr.bf16.gmra.mrb[0].mxu0 %v219
      %v263 = vpop.f32.mrb[0].mxu0
      %v264 = vadd.f32 0.0, %v263
      %v265 = vpop.f32.mrb[0].mxu0
      %v266 = vpop.f32.mrb[0].mxu0
      %v267 = vpop.f32.mrb[0].mxu0
      %268 = vdwg.mxu0
      %v270 = vunpack.c.l.b16 %v147
      %v271 = vpack.c.b16 %v270, %v270
      %v280 = vunpack.c.l.b16 %v148
      %v281 = vunpack.c.l.b16 %v149
      %v282 = vunpack.c.l.b16 %v150
      %v283 = vunpack.c.l.b16 %v151
      %v284 = vunpack.c.l.b16 %v152
      %v285 = vunpack.c.l.b16 %v153
      %v286 = vunpack.c.l.b16 %v154
      %v287 = vunpack.c.l.b16 %v155
      %v288 = vpack.c.b16 %v281, %v280
      %v289 = vpack.c.b16 %v283, %v282
      %v290 = vpack.c.b16 %v285, %v284
      %v291 = vpack.c.b16 %v287, %v286
      %v296 = vsel %vm214, %v172, 0
      %v299 = vsel %vm214, %v271, 0
      %301 = vmatprep.subr.bf16.mxu0 0
      %302 = vmatpush1.bf16.msra.mxu0 %v288
      %303 = vmatprep.subr.bf16.mxu0 0
      %304 = vmatpush1.bf16.msra.mxu0 %v289
      %305 = vmatprep.subr.bf16.mxu0 0
      %306 = vmatpush1.bf16.msra.mxu0 %v290
      %307 = vmatprep.subr.bf16.mxu0 0
      %308 = vmatpush1.bf16.msra.mxu0 %v291
      %309 = vmatprep.subr.bf16.mxu0 0
      %310 = vmatpush1.bf16.msra.mxu0 0
      %311 = vmatprep.subr.bf16.mxu0 0
      %312 = vmatpush1.bf16.msra.mxu0 0
      %313 = vmatprep.subr.bf16.mxu0 0
      %314 = vmatpush1.bf16.msra.mxu0 0
      %315 = vmatprep.subr.bf16.mxu0 0
      %316 = vmatpush1.bf16.msra.mxu0 0
      %317 = vmatprep.subr.bf16.mxu0 0
      %318 = vmatpush1.bf16.msra.mxu0 0
      %319 = vmatprep.subr.bf16.mxu0 0
      %320 = vmatpush1.bf16.msra.mxu0 0
      %321 = vmatprep.subr.bf16.mxu0 0
      %322 = vmatpush1.bf16.msra.mxu0 0
      %323 = vmatprep.subr.bf16.mxu0 0
      %324 = vmatpush1.bf16.msra.mxu0 0
      %325 = vmatprep.subr.bf16.mxu0 0
      %326 = vmatpush1.bf16.msra.mxu0 0
      %327 = vmatprep.subr.bf16.mxu0 0
      %328 = vmatpush1.bf16.msra.mxu0 0
      %329 = vmatprep.subr.bf16.mxu0 0
      %330 = vmatpush1.bf16.msra.mxu0 0
      %331 = vmatprep.subr.bf16.mxu0 0
      %332 = vmatpush1.bf16.msra.mxu0 0
      %333 = vmatprep.mubr.bf16.mxu0 0
      %334 = vmatmul.mubr.bf16.gmra.mrb[0].mxu0 %v296
      %v335 = vpop.f32.mrb[0].mxu0
      %v336 = vadd.f32 %v256, %v335
      %v337 = vpop.f32.mrb[0].mxu0
      %v338 = vpop.f32.mrb[0].mxu0
      %v339 = vadd.f32 %v259, %v338
      %v340 = vpop.f32.mrb[0].mxu0
      %341 = vmatprep.mubr.bf16.mxu0 0
      %342 = vmatmul.mubr.bf16.gmra.mrb[0].mxu0 %v299
      %v343 = vpop.f32.mrb[0].mxu0
      %v344 = vadd.f32 %v264, %v343
      %v345 = vpop.f32.mrb[0].mxu0
      %v346 = vpop.f32.mrb[0].mxu0
      %v347 = vpop.f32.mrb[0].mxu0
      %348 = vdwg.mxu0
      %v349 = vld [vmem:[%s138] sm:$0xc]
      %v350 = vld [vmem:[%s138 + $0x4] sm:$0xf]
      %v351 = vld [vmem:[%s138 + $0x8] sm:$0xf]
      %v352 = vld [vmem:[%s138 + $0xc] sm:$0x1]
      %s353 = scalar_lea.vmem %s1, 64
      %v354 = vld [vmem:[%s353] sm:$0xf]
      %v355 = vld [vmem:[%s353 + $0x4] sm:$0xf]
      %v356 = vld [vmem:[%s353 + $0x8] sm:$0xf]
      %v357 = vld [vmem:[%s353 + $0xc] sm:$0xf]
      %v358 = vld [vmem:[%s353 + $0x10] sm:$0xf]
      %v359 = vld [vmem:[%s353 + $0x14] sm:$0xf]
      %v360 = vld [vmem:[%s353 + $0x18] sm:$0xf]
      %v361 = vld [vmem:[%s353 + $0x1c] sm:$0xf]
      %v366 = vunpack.c.l.b16 %v349
      %v367 = vunpack.c.l.b16 %v350
      %v368 = vunpack.c.l.b16 %v351
      %v369 = vunpack.c.l.b16 %v352
      %v370 = vpack.c.b16 %v367, %v366
      %v371 = vpack.c.b16 %v369, %v368
      %vm372 = vsmask.f32 5376
      %v374 = vshrl.u32 %v370, 16
      %v376 = vrot.slane %v374, 2
      %v377 = vshll.u32 %v370, 16
      %v379 = vrot.slane %v377, 3
      %v380 = vor.u32 %v376, %v379
      %v382 = vshrl.u32 %v371, 16
      %v384 = vrot.slane %v382, 2
      %v385 = vshll.u32 %v371, 16
      %v387 = vrot.slane %v385, 3
      %v388 = vor.u32 %v384, %v387
      %v389 = vsel %vm372, %v380, %v388
      %v398 = vunpack.c.l.b16 %v354
      %v399 = vunpack.c.l.b16 %v355
      %v400 = vunpack.c.l.b16 %v356
      %v401 = vunpack.c.l.b16 %v357
      %v402 = vunpack.c.l.b16 %v358
      %v403 = vunpack.c.l.b16 %v359
      %v404 = vunpack.c.l.b16 %v360
      %v405 = vunpack.c.l.b16 %v361
      %v406 = vpack.c.b16 %v399, %v398
      %v407 = vpack.c.b16 %v401, %v400
      %v408 = vpack.c.b16 %v403, %v402
      %v409 = vpack.c.b16 %v405, %v404
      %v415 = vsel %vm214, %v389, 0
      %v418 = vsel %vm214, %v388, 0
      %420 = vmatprep.subr.bf16.mxu0 0
      %421 = vmatpush1.bf16.msra.mxu0 %v406
      %422 = vmatprep.subr.bf16.mxu0 0
      %423 = vmatpush1.bf16.msra.mxu0 %v407
      %424 = vmatprep.subr.bf16.mxu0 0
      %425 = vmatpush1.bf16.msra.mxu0 %v408
      %426 = vmatprep.subr.bf16.mxu0 0
      %427 = vmatpush1.bf16.msra.mxu0 %v409
      %428 = vmatprep.subr.bf16.mxu0 0
      %429 = vmatpush1.bf16.msra.mxu0 0
      %430 = vmatprep.subr.bf16.mxu0 0
      %431 = vmatpush1.bf16.msra.mxu0 0
      %432 = vmatprep.subr.bf16.mxu0 0
      %433 = vmatpush1.bf16.msra.mxu0 0
      %434 = vmatprep.subr.bf16.mxu0 0
      %435 = vmatpush1.bf16.msra.mxu0 0
      %436 = vmatprep.subr.bf16.mxu0 0
      %437 = vmatpush1.bf16.msra.mxu0 0
      %438 = vmatprep.subr.bf16.mxu0 0
      %439 = vmatpush1.bf16.msra.mxu0 0
      %440 = vmatprep.subr.bf16.mxu0 0
      %441 = vmatpush1.bf16.msra.mxu0 0
      %442 = vmatprep.subr.bf16.mxu0 0
      %443 = vmatpush1.bf16.msra.mxu0 0
      %444 = vmatprep.subr.bf16.mxu0 0
      %445 = vmatpush1.bf16.msra.mxu0 0
      %446 = vmatprep.subr.bf16.mxu0 0
      %447 = vmatpush1.bf16.msra.mxu0 0
      %448 = vmatprep.subr.bf16.mxu0 0
      %449 = vmatpush1.bf16.msra.mxu0 0
      %450 = vmatprep.subr.bf16.mxu0 0
      %451 = vmatpush1.bf16.msra.mxu0 0
      %452 = vmatprep.mubr.bf16.mxu0 0
      %453 = vmatmul.mubr.bf16.gmra.mrb[0].mxu0 %v415
      %v454 = vpop.f32.mrb[0].mxu0
      %v455 = vadd.f32 0.0, %v454
      %v456 = vpop.f32.mrb[0].mxu0
      %v457 = vpop.f32.mrb[0].mxu0
      %v458 = vadd.f32 0.0, %v457
      %v459 = vpop.f32.mrb[0].mxu0
      %460 = vmatprep.mubr.bf16.mxu0 0
      %461 = vmatmul.mubr.bf16.gmra.mrb[0].mxu0 %v418
      %v462 = vpop.f32.mrb[0].mxu0
      %v463 = vadd.f32 0.0, %v462
      %v464 = vpop.f32.mrb[0].mxu0
      %v465 = vpop.f32.mrb[0].mxu0
      %v466 = vpop.f32.mrb[0].mxu0
      %467 = vdwg.mxu0
      %v468 = vadd.f32 %v336, %v455
      %v469 = vadd.f32 %v339, %v458
      %v470 = vadd.f32 %v344, %v463
      %v471 = vld [vmem:[%s138] sm:$0x8]
      %s472 = scalar_lea.vmem %s1, 96
      %v473 = vld [vmem:[%s472] sm:$0xf]
      %v474 = vld [vmem:[%s472 + $0x4] sm:$0xf]
      %v475 = vld [vmem:[%s472 + $0x8] sm:$0xf]
      %v476 = vld [vmem:[%s472 + $0xc] sm:$0xf]
      %v477 = vld [vmem:[%s472 + $0x10] sm:$0xf]
      %v478 = vld [vmem:[%s472 + $0x14] sm:$0xf]
      %v479 = vld [vmem:[%s472 + $0x18] sm:$0xf]
      %v480 = vld [vmem:[%s472 + $0x1c] sm:$0xf]
      %v482 = vunpack.c.l.b16 %v471
      %v483 = vpack.c.b16 %v367, %v482
      %vm484 = vcmask 1044480
      %v485 = vrot.slane %v483, 3
      %v486 = vrot.slane %v371, 3
      %v487 = vsel %vm484, %v485, %v486
      %v496 = vunpack.c.l.b16 %v473
      %v497 = vunpack.c.l.b16 %v474
      %v498 = vunpack.c.l.b16 %v475
      %v499 = vunpack.c.l.b16 %v476
      %v500 = vunpack.c.l.b16 %v477
      %v501 = vunpack.c.l.b16 %v478
      %v502 = vunpack.c.l.b16 %v479
      %v503 = vunpack.c.l.b16 %v480
      %v504 = vpack.c.b16 %v497, %v496
      %v505 = vpack.c.b16 %v499, %v498
      %v506 = vpack.c.b16 %v501, %v500
      %v507 = vpack.c.b16 %v503, %v502
      %v513 = vsel %vm214, %v487, 0
      %v516 = vsel %vm214, %v486, 0
      %518 = vmatprep.subr.bf16.mxu0 0
      %519 = vmatpush1.bf16.msra.mxu0 %v504
      %520 = vmatprep.subr.bf16.mxu0 0
      %521 = vmatpush1.bf16.msra.mxu0 %v505
      %522 = vmatprep.subr.bf16.mxu0 0
      %523 = vmatpush1.bf16.msra.mxu0 %v506
      %524 = vmatprep.subr.bf16.mxu0 0
      %525 = vmatpush1.bf16.msra.mxu0 %v507
      %526 = vmatprep.subr.bf16.mxu0 0
      %527 = vmatpush1.bf16.msra.mxu0 0
      %528 = vmatprep.subr.bf16.mxu0 0
      %529 = vmatpush1.bf16.msra.mxu0 0
      %530 = vmatprep.subr.bf16.mxu0 0
      %531 = vmatpush1.bf16.msra.mxu0 0
      %532 = vmatprep.subr.bf16.mxu0 0
      %533 = vmatpush1.bf16.msra.mxu0 0
      %534 = vmatprep.subr.bf16.mxu0 0
      %535 = vmatpush1.bf16.msra.mxu0 0
      %536 = vmatprep.subr.bf16.mxu0 0
      %537 = vmatpush1.bf16.msra.mxu0 0
      %538 = vmatprep.subr.bf16.mxu0 0
      %539 = vmatpush1.bf16.msra.mxu0 0
      %540 = vmatprep.subr.bf16.mxu0 0
      %541 = vmatpush1.bf16.msra.mxu0 0
      %542 = vmatprep.subr.bf16.mxu0 0
      %543 = vmatpush1.bf16.msra.mxu0 0
      %544 = vmatprep.subr.bf16.mxu0 0
      %545 = vmatpush1.bf16.msra.mxu0 0
      %546 = vmatprep.subr.bf16.mxu0 0
      %547 = vmatpush1.bf16.msra.mxu0 0
      %548 = vmatprep.subr.bf16.mxu0 0
      %549 = vmatpush1.bf16.msra.mxu0 0
      %550 = vmatprep.mubr.bf16.mxu0 0
      %551 = vmatmul.mubr.bf16.gmra.mrb[0].mxu0 %v513
      %v552 = vpop.f32.mrb[0].mxu0
      %v553 = vadd.f32 0.0, %v552
      %v554 = vpop.f32.mrb[0].mxu0
      %v555 = vpop.f32.mrb[0].mxu0
      %v556 = vadd.f32 0.0, %v555
      %v557 = vpop.f32.mrb[0].mxu0
      %558 = vmatprep.mubr.bf16.mxu0 0
      %559 = vmatmul.mubr.bf16.gmra.mrb[0].mxu0 %v516
      %v560 = vpop.f32.mrb[0].mxu0
      %v561 = vadd.f32 0.0, %v560
      %v562 = vpop.f32.mrb[0].mxu0
      %v563 = vpop.f32.mrb[0].mxu0
      %v564 = vpop.f32.mrb[0].mxu0
      %565 = vdwg.mxu0
      %v566 = vadd.f32 %v468, %v553
      %v567 = vadd.f32 %v469, %v556
      %v568 = vadd.f32 %v470, %v561
      %v569 = vlaneseq
      %v570 = vshrl.u32 %v569, 7
      %v571 = vadd.s32 %v570, 8
      %v572 = vadd.s32 %v570, 16
      %vm573 = vcmp.lt.s32.totalorder %v570, 0
      %v574 = vsub.s32 0, %v570
      %v575 = vsel %vm573, %v574, %v570
      %v576 = vmul.u32.u64.compose %v575, 3435973837
      %v577 = vextract.low.u32 %v576
      %v578 = vextract.high.u32 %v576
      %v579 = vshrl.u32 %v578, 2
      %v580 = vmul.u32 %v579, 5
      %v581 = vsub.s32 %v575, %v580
      %v582 = vsub.s32 0, %v581
      %v583 = vsel %vm573, %v582, %v581
      %vm584 = vcmp.lt.s32.totalorder %v571, 0
      %v585 = vsub.s32 0, %v571
      %v586 = vsel %vm584, %v585, %v571
      %v587 = vmul.u32.u64.compose %v586, 3435973837
      %v588 = vextract.low.u32 %v587
      %v589 = vextract.high.u32 %v587
      %v590 = vshrl.u32 %v589, 2
      %v591 = vmul.u32 %v590, 5
      %v592 = vsub.s32 %v586, %v591
      %v593 = vsub.s32 0, %v592
      %v594 = vsel %vm584, %v593, %v592
      %vm595 = vcmp.lt.s32.totalorder %v572, 0
      %v596 = vsub.s32 0, %v572
      %v597 = vsel %vm595, %v596, %v572
      %v598 = vmul.u32.u64.compose %v597, 3435973837
      %v599 = vextract.low.u32 %v598
      %v600 = vextract.high.u32 %v598
      %v601 = vshrl.u32 %v600, 2
      %v602 = vmul.u32 %v601, 5
      %v603 = vsub.s32 %v597, %v602
      %v604 = vsub.s32 0, %v603
      %v605 = vsel %vm595, %v604, %v603
      %vm606 = vcmp.ne.s32.totalorder %v583, 0
      %vm607 = vcmp.ne.s32.totalorder %v594, 0
      %vm608 = vcmp.ne.s32.totalorder %v605, 0
      %vm609 = vcmp.lt.s32.totalorder %v583, 0
      %vm610 = vcmp.lt.s32.totalorder %v594, 0
      %vm611 = vcmp.lt.s32.totalorder %v605, 0
      %vm612 = vmand %vm609, %vm606
      %vm613 = vmand %vm610, %vm607
      %vm614 = vmand %vm611, %vm608
      %v615 = vadd.s32 %v583, 5
      %v616 = vadd.s32 %v594, 5
      %v617 = vadd.s32 %v605, 5
      %v618 = vsel %vm612, %v615, %v583
      %v619 = vsel %vm613, %v616, %v594
      %v620 = vsel %vm614, %v617, %v605
      %vm621 = vcmp.lt.s32.totalorder %v618, 4
      %vm622 = vcmp.lt.s32.totalorder %v619, 4
      %vm623 = vcmp.lt.s32.totalorder %v620, 4
      %v624 = vsel %vm621, 1, 0
      %v625 = vsel %vm622, 1, 0
      %v626 = vsel %vm623, 1, 0
      %vm627 = vcmp.eq.s32.totalorder %v624, 1
      %vm628 = vcmp.eq.s32.totalorder %v625, 1
      %vm629 = vcmp.eq.s32.totalorder %v626, 1
      %v630 = vsel %vm627, %v566, 0.0
      %v631 = vsel %vm628, %v567, 0.0
      %v632 = vsel %vm629, %v568, 0.0
      %vm633 = vcmask 261120
      %v634 = vsel %vm633, %v630, 0.0
      %v635 = vsel %vm633, %v631, 0.0
      %v636 = vadd.f32 %v634, %v635
      %vm637 = vcmask 257024
      %v638 = vsel %vm637, %v632, 0.0
      %v639 = vadd.f32 %v636, %v638
      %v640 = vrot.slane %v639, 4
      %v641 = vadd.f32 %v639, %v640
      %v642 = vrot.slane %v641, 2
      %v643 = vadd.f32 %v641, %v642
      %v644 = vrot.slane %v643, 1
      %v645 = vadd.f32 %v643, %v644
      %v646 = vmul.f32 %v645, 0.0625
      %v647 = vsub.f32 %v566, %v646
      %v648 = vsub.f32 %v567, %v646
      %v649 = vsub.f32 %v568, %v646
      %v650 = vsel %vm627, %v647, 0.0
      %v651 = vsel %vm628, %v648, 0.0
      %v652 = vsel %vm629, %v649, 0.0
      %v653 = vmul.f32 %v650, %v650
      %v654 = vmul.f32 %v651, %v651
      %v655 = vmul.f32 %v652, %v652
      %v656 = vsel %vm633, %v653, 0.0
      %v657 = vsel %vm633, %v654, 0.0
      %v658 = vadd.f32 %v656, %v657
      %v659 = vsel %vm637, %v655, 0.0
      %v660 = vadd.f32 %v658, %v659
      %v661 = vrot.slane %v660, 4
      %v662 = vadd.f32 %v660, %v661
      %v663 = vrot.slane %v662, 2
      %v664 = vadd.f32 %v662, %v663
      %v665 = vrot.slane %v664, 1
      %v666 = vadd.f32 %v664, %v665
      %v667 = vmul.f32 %v666, 0.0625
      %v668 = vadd.f32 %v667, 1e-05
      %v669 = vrsqrt.pop %v668
      %v670 = vmul.f32 %v647, %v669
      %v671 = vmul.f32 %v648, %v669
      %v672 = vmul.f32 %v649, %v669
      %v673 = vmul.f32 %v670, 0.2
      %v674 = vmul.f32 %v671, 0.2
      %v675 = vmul.f32 %v672, 0.2
      %v676 = vmax.f32 %v670, %v673
      %v677 = vmax.f32 %v671, %v674
      %v678 = vmax.f32 %v672, %v675
      %v679 = vpack.c.bf16 %v677, %v676
      %v680 = vpack.c.bf16 %v678, %v678
      %v683 = vunpack.c.l.b16 %v679
      %v684 = vunpack.c.h.b16 %v679
      %v685 = vunpack.c.l.b16 %v680
      %v686 = vpack.c.b16 %v683, %v683
      %v687 = vpack.c.b16 %v684, %v684
      %v688 = vpack.c.b16 %v685, %v685
      %692 = vst.msk [vmem:[%s143] sm:$0xf] %vm637, %v686
      %693 = vst.msk [vmem:[%s143 + $0x4] sm:$0xf] %vm637, %v687
      %vm694 = vcmask 254976
      %695 = vst.msk [vmem:[%s143 + $0x8] sm:$0x3] %vm694, %v688
      %p696 = scmp.lt.s32.totalorder %s13, 1
      %s697 = scalar_select %p696, %s13, 1
      %s698 = smul.addr %s697, 3
      %s699 = smul.addr %s698, 4
      %s700 = scalar_lea.vmem %s2, %s699
      // Predicated region
      $region29: #{discriminator_forward.7} parent=27 // pred_check
        %p701 = pneg %p78
      $region30: #{discriminator_forward.7} parent=27 // pred_check_branch
        %703 = sbr.rel (%p701) target = $region32
      $region31: #{discriminator_forward.7} parent=27 // pred_region
        _
      $region32: #{discriminator_forward.7} parent=27 // pred_fallthru
        _
    $region28: #{discriminator_forward.7} parent=5 // pred_fallthru
      _
    %p704 = scmp.le.s32.totalorder 2, %s8
    // Predicated region
    $region33: #{discriminator_forward.7} parent=5 // pred_check
      %p705 = pneg %p704
    $region34: #{discriminator_forward.7} parent=5 // pred_check_branch
      %707 = sbr.rel (%p705) target = $region36
    $region35: #{discriminator_forward.7} parent=5 // pred_region
      %s708 = ssub.s32 %s8, 2
      // Predicated region
      $region37: #{discriminator_forward.7} parent=35 // pred_check
        %p709 = pneg %p84
      $region38: #{discriminator_forward.7} parent=35 // pred_check_branch
        %711 = sbr.rel (%p709) target = $region40
      $region39: #{discriminator_forward.7} parent=35 // pred_region
        %p712 = scmp.lt.s32.totalorder %s14, 1
        %s713 = scalar_select %p712, %s14, 1
        %s714 = smul.addr %s713, 3
        %s715 = smul.addr %s714, 4
        %s716 = scalar_lea.vmem %s2, %s715
      $region40: #{discriminator_forward.7} parent=35 // pred_fallthru
        _
    $region36: #{discriminator_forward.7} parent=5 // pred_fallthru
      _
  $region6: #{discriminator_forward.7} parent=0 // loop_footer
    %s12 = sadd.s32 1, %s8
  $region7: #{discriminator_forward.7} parent=0 // loop_footer_branch
    %7 = sbr.rel target = $region3
  $region8: #{discriminator_forward.7} parent=0 // loop_exit
    _

// kernel: discriminator_forward.8
$region0: #{discriminator_forward.8}
  #allocation0 [shape = 'u32[]', space=smem, size = 0x4, offset = 0x4, fixed_abs, tag = 'smem constant byte address 0x4 - core index']
  #allocation1 [shape = 'u32[144,128]{1,0:T(1,128)}', space=vmem, size = 0x12000, scoped, tag = 'internal scratch']
  %s0 = inlined_call_operand.vmem [shape: bf16[2,40,32], index: 0, kind: input, shape index: {}]
  %s1 = inlined_call_operand.vmem [shape: bf16[16,32,64], index: 1, kind: input, shape index: {}]
  %s2 = inlined_call_operand.vmem [shape: bf16[2,18,64], index: 2, kind: output, shape index: {}]
  %s3 = sld [smem:[#allocation0]]
  $region41: #{discriminator_forward.8} parent=0
    _
  %s5 = ssub.s32 1, %s3
  %s6 = scalar_select 0, %s5, %s3
  loop: start=0, step=1, limit=4
  $region2: #{discriminator_forward.8} parent=0 // loop_pre_header
    _
  $region3: #{discriminator_forward.8} parent=0 // loop_header
    %s8 = sphi 0, %s12
    %p9 = scmp.ge.s32.totalorder %s8, 4
    %s18 = sphi 0, %s20
    %s21 = sphi 0, %s18
    %s22 = sphi 0, %s21
    %s38 = sphi 0, %s22
    %s42 = sphi 0, %s42
    %s44 = sphi 0, %s42
    %s45 = sphi 0, %s44
    %s59 = sphi 0, %s45
    %s65 = sphi 0, %s67
    %s68 = sphi 0, %s65
    %s69 = sphi 0, %s68
    %s85 = sphi 0, %s69
  $region4: #{discriminator_forward.8} parent=0 // loop_header_branch
    %11 = sbr.rel (%p9) target = $region8
  $region5: #{discriminator_forward.8} parent=0 // loop_body
    %s13 = ssub.s32 %s8, 1
    %s14 = ssub.s32 %s8, 2
    %s15 = sadd.s32 %s8, 1
    %s16 = ssub.s32 %s8, %s15
    %p17 = scmp.eq.s32.totalorder %s16, 0
    %s19 = sadd.s32 %s18, 1
    %s20 = scalar_select %p17, %s18, %s19
    %p23 = pneg %p17
    %p24 = scmp.eq.s32.totalorder %s8, 1
    %p25 = por %p23, %p24
    %p26 = scmp.ne.s32.totalorder %s18, %s21
    %p27 = scmp.eq.s32.totalorder %s8, 0
    %p28 = por %p26, %p27
    %p29 = scmp.ne.s32.totalorder %s18, %s21
    %p30 = scmp.eq.s32.totalorder %s13, 1
    %p31 = por %p29, %p30
    %p32 = scmp.ne.s32.totalorder %s21, %s22
    %p33 = scmp.eq.s32.totalorder %s13, 0
    %p34 = por %p32, %p33
    %p35 = scmp.ne.s32.totalorder %s21, %s22
    %p36 = scmp.eq.s32.totalorder %s14, 1
    %p37 = por %p35, %p36
    %p39 = scmp.ne.s32.totalorder %s22, %s38
    %p40 = scmp.eq.s32.totalorder %s14, 0
    %p41 = por %p39, %p40
    %s43 = sadd.s32 %s42, 1
    %p46 = scmp.eq.s32.totalorder %s8, 1
    %p47 = scmp.ne.s32.totalorder %s42, %s44
    %p48 = scmp.eq.s32.totalorder %s8, 0
    %p49 = por %p47, %p48
    %p50 = scmp.ne.s32.totalorder %s42, %s44
    %p51 = scmp.eq.s32.totalorder %s13, 1
    %p52 = por %p50, %p51
    %p53 = scmp.ne.s32.totalorder %s44, %s45
    %p54 = scmp.eq.s32.totalorder %s13, 0
    %p55 = por %p53, %p54
    %p56 = scmp.ne.s32.totalorder %s44, %s45
    %p57 = scmp.eq.s32.totalorder %s14, 1
    %p58 = por %p56, %p57
    %p60 = scmp.ne.s32.totalorder %s45, %s59
    %p61 = scmp.eq.s32.totalorder %s14, 0
    %p62 = por %p60, %p61
    %s63 = ssub.s32 %s8, %s15
    %p64 = scmp.eq.s32.totalorder %s63, 0
    %s66 = sadd.s32 %s65, 1
    %s67 = scalar_select %p64, %s65, %s66
    %p70 = pneg %p64
    %p71 = scmp.eq.s32.totalorder %s8, 1
    %p72 = por %p70, %p71
    %p73 = scmp.ne.s32.totalorder %s65, %s68
    %p74 = scmp.eq.s32.totalorder %s8, 0
    %p75 = por %p73, %p74
    %p76 = scmp.ne.s32.totalorder %s65, %s68
    %p77 = scmp.eq.s32.totalorder %s13, 1
    %p78 = por %p76, %p77
    %p79 = scmp.ne.s32.totalorder %s68, %s69
    %p80 = scmp.eq.s32.totalorder %s13, 0
    %p81 = por %p79, %p80
    %p82 = scmp.ne.s32.totalorder %s68, %s69
    %p83 = scmp.eq.s32.totalorder %s14, 1
    %p84 = por %p82, %p83
    %p86 = scmp.ne.s32.totalorder %s69, %s85
    %p87 = scmp.eq.s32.totalorder %s14, 0
    %p88 = por %p86, %p87
    %p89 = scmp.le.s32.totalorder 1, %s8
    %p90 = scmp.lt.s32.totalorder %s8, 3
    %p91 = pnand %p89, %p90
    %p92 = pneg %p91
    // Predicated region
    $region9: #{discriminator_forward.8} parent=5 // pred_check
      _
    $region10: #{discriminator_forward.8} parent=5 // pred_check_branch
      %94 = sbr.rel (%p91) target = $region12
    $region11: #{discriminator_forward.8} parent=5 // pred_region
      %s95 = ssub.s32 %s8, 1
      // Predicated region
      $region13: #{discriminator_forward.8} parent=11 // pred_check
        %p96 = pneg %p55
      $region14: #{discriminator_forward.8} parent=11 // pred_check_branch
        %98 = sbr.rel (%p96) target = $region16
      $region15: #{discriminator_forward.8} parent=11 // pred_region
        _
      $region16: #{discriminator_forward.8} parent=11 // pred_fallthru
        _
    $region12: #{discriminator_forward.8} parent=5 // pred_fallthru
      _
    %p99 = scmp.lt.s32.totalorder %s8, 2
    // Predicated region
    $region17: #{discriminator_forward.8} parent=5 // pred_check
      %p100 = pneg %p99
    $region18: #{discriminator_forward.8} parent=5 // pred_check_branch
      %102 = sbr.rel (%p100) target = $region20
    $region19: #{discriminator_forward.8} parent=5 // pred_region
      // Predicated region
      $region21: #{discriminator_forward.8} parent=19 // pred_check
        %p103 = pneg %p28
      $region22: #{discriminator_forward.8} parent=19 // pred_check_branch
        %105 = sbr.rel (%p103) target = $region24
      $region23: #{discriminator_forward.8} parent=19 // pred_region
        %p106 = scmp.lt.s32.totalorder %s8, 1
        %s107 = scalar_select %p106, %s8, 1
        %s108 = smul.addr %s107, 5
        %s109 = smul.addr %s108, 4
        %s110 = scalar_lea.vmem %s0, %s109
      $region24: #{discriminator_forward.8} parent=19 // pred_fallthru
        _
    $region20: #{discriminator_forward.8} parent=5 // pred_fallthru
      _
    %p111 = scmp.le.s32.totalorder 1, %s8
    %p112 = scmp.lt.s32.totalorder %s8, 3
    %p113 = pnand %p111, %p112
    %p114 = pneg %p113
    // Predicated region
    $region25: #{discriminator_forward.8} parent=5 // pred_check
      _
    $region26: #{discriminator_forward.8} parent=5 // pred_check_branch
      %116 = sbr.rel (%p113) target = $region28
    $region27: #{discriminator_forward.8} parent=5 // pred_region
      %s117 = ssub.s32 %s8, 1
      %p118 = scmp.lt.s32.totalorder %s13, 1
      %s119 = scalar_select %p118, %s13, 1
      %s120 = smul.addr %s119, 5
      %s121 = smul.addr %s120, 4
      %s122 = scalar_lea.vmem %s0, %s121
      %p123 = pneg %p34
      %p124 = pneg %p31
      %p125 = pneg %p55
      %p126 = pneg %p52
      %p127 = pneg %p81
      %p128 = pneg %p78
      %p129 = scmp.lt.s32.totalorder %s13, 1
      %s130 = scalar_select %p129, %s13, 1
      %s131 = smul.addr %s130, 3
      %s132 = smul.addr %s131, 4
      %s133 = scalar_lea.vmem %s2, %s132
      %p134 = scmp.lt.s32.totalorder %s13, 1
      %s135 = scalar_select %p134, %s13, 1
      %s136 = smul.addr %s135, 5
      %s137 = smul.addr %s136, 4
      %s138 = scalar_lea.vmem %s0, %s137
      %p139 = scmp.lt.s32.totalorder %s13, 1
      %s140 = scalar_select %p139, %s13, 1
      %s141 = smul.addr %s140, 3
      %s142 = smul.addr %s141, 4
      %s143 = scalar_lea.vmem %s2, %s142
      %v145 = vld [vmem:[%s138] sm:$0xf]
      %v146 = vld [vmem:[%s138 + $0x4] sm:$0xf]
      %v147 = vld [vmem:[%s138 + $0x8] sm:$0x1]
      %v148 = vld [vmem:[%s1] sm:$0xf]
      %v149 = vld [vmem:[%s1 + $0x4] sm:$0xf]
      %v150 = vld [vmem:[%s1 + $0x8] sm:$0xf]
      %v151 = vld [vmem:[%s1 + $0xc] sm:$0xf]
      %v152 = vld [vmem:[%s138 + $0x8] sm:$0x3]
      %s153 = scalar_lea.vmem %s1, 16
      %v154 = vld [vmem:[%s153] sm:$0xf]
      %v155 = vld [vmem:[%s153 + $0x4] sm:$0xf]
      %v156 = vld [vmem:[%s153 + $0x8] sm:$0xf]
      %v157 = vld [vmem:[%s153 + $0xc] sm:$0xf]
      %v161 = vunpack.c.l.b16 %v145
      %v162 = vunpack.c.l.b16 %v146
      %v163 = vunpack.c.l.b16 %v152
      %v164 = vpack.c.b16 %v162, %v161
      %v165 = vpack.c.b16 %v163, %v163
      %vm166 = vsmask.f32 7424
      %v168 = vshrl.u32 %v164, 16
      %v170 = vshll.u32 %v164, 16
      %v172 = vrot.slane %v170, 1
      %v173 = vor.u32 %v168, %v172
      %v175 = vshll.u32 %v165, 16
      %v177 = vrot.slane %v175, 1
      %v178 = vsel %vm166, %v173, %v177
      %v179 = vshrl.u32 %v165, 16
      %v181 = vor.u32 %v179, %v177
      %v186 = vunpack.c.l.b16 %v154
      %v187 = vunpack.c.l.b16 %v155
      %v188 = vunpack.c.l.b16 %v156
      %v189 = vunpack.c.l.b16 %v157
      %v190 = vpack.c.b16 %v187, %v186
      %v191 = vpack.c.b16 %v189, %v188
      %vm194 = vcmask 261120
      %v196 = vsel %vm194, %v178, 0
      %v199 = vsel %vm194, %v181, 0
      %201 = vmatprep.subr.bf16.mxu0 0
      %202 = vmatpush1.bf16.msra.mxu0 %v190
      %203 = vmatprep.subr.bf16.mxu0 0
      %204 = vmatpush1.bf16.msra.mxu0 %v191
      %205 = vmatprep.subr.bf16.mxu0 0
      %206 = vmatpush1.bf16.msra.mxu0 0
      %207 = vmatprep.subr.bf16.mxu0 0
      %208 = vmatpush1.bf16.msra.mxu0 0
      %209 = vmatprep.subr.bf16.mxu0 0
      %210 = vmatpush1.bf16.msra.mxu0 0
      %211 = vmatprep.subr.bf16.mxu0 0
      %212 = vmatpush1.bf16.msra.mxu0 0
      %213 = vmatprep.subr.bf16.mxu0 0
      %214 = vmatpush1.bf16.msra.mxu0 0
      %215 = vmatprep.subr.bf16.mxu0 0
      %216 = vmatpush1.bf16.msra.mxu0 0
      %217 = vmatprep.subr.bf16.mxu0 0
      %218 = vmatpush1.bf16.msra.mxu0 0
      %219 = vmatprep.subr.bf16.mxu0 0
      %220 = vmatpush1.bf16.msra.mxu0 0
      %221 = vmatprep.subr.bf16.mxu0 0
      %222 = vmatpush1.bf16.msra.mxu0 0
      %223 = vmatprep.subr.bf16.mxu0 0
      %224 = vmatpush1.bf16.msra.mxu0 0
      %225 = vmatprep.subr.bf16.mxu0 0
      %226 = vmatpush1.bf16.msra.mxu0 0
      %227 = vmatprep.subr.bf16.mxu0 0
      %228 = vmatpush1.bf16.msra.mxu0 0
      %229 = vmatprep.subr.bf16.mxu0 0
      %230 = vmatpush1.bf16.msra.mxu0 0
      %231 = vmatprep.subr.bf16.mxu0 0
      %232 = vmatpush1.bf16.msra.mxu0 0
      %233 = vmatprep.mubr.bf16.mxu0 0
      %234 = vmatmul.mubr.bf16.gmra.mrb[0].mxu0 %v196
      %v235 = vpop.f32.mrb[0].mxu0
      %v236 = vadd.f32 0.0, %v235
      %v237 = vpop.f32.mrb[0].mxu0
      %v238 = vpop.f32.mrb[0].mxu0
      %v239 = vadd.f32 0.0, %v238
      %v240 = vpop.f32.mrb[0].mxu0
      %241 = vmatprep.mubr.bf16.mxu0 0
      %242 = vmatmul.mubr.bf16.gmra.mrb[0].mxu0 %v199
      %v243 = vpop.f32.mrb[0].mxu0
      %v244 = vadd.f32 0.0, %v243
      %v245 = vpop.f32.mrb[0].mxu0
      %v246 = vpop.f32.mrb[0].mxu0
      %v247 = vpop.f32.mrb[0].mxu0
      %248 = vdwg.mxu0
      %v250 = vunpack.c.l.b16 %v147
      %v251 = vpack.c.b16 %v250, %v250
      %v256 = vunpack.c.l.b16 %v148
      %v257 = vunpack.c.l.b16 %v149
      %v258 = vunpack.c.l.b16 %v150
      %v259 = vunpack.c.l.b16 %v151
      %v260 = vpack.c.b16 %v257, %v256
      %v261 = vpack.c.b16 %v259, %v258
      %v264 = vsel %vm194, %v164, 0
      %v267 = vsel %vm194, %v251, 0
      %269 = vmatprep.subr.bf16.mxu0 0
      %270 = vmatpush1.bf16.msra.mxu0 %v260
      %271 = vmatprep.subr.bf16.mxu0 0
      %272 = vmatpush1.bf16.msra.mxu0 %v261
      %273 = vmatprep.subr.bf16.mxu0 0
      %274 = vmatpush1.bf16.msra.mxu0 0
      %275 = vmatprep.subr.bf16.mxu0 0
      %276 = vmatpush1.bf16.msra.mxu0 0
      %277 = vmatprep.subr.bf16.mxu0 0
      %278 = vmatpush1.bf16.msra.mxu0 0
      %279 = vmatprep.subr.bf16.mxu0 0
      %280 = vmatpush1.bf16.msra.mxu0 0
      %281 = vmatprep.subr.bf16.mxu0 0
      %282 = vmatpush1.bf16.msra.mxu0 0
      %283 = vmatprep.subr.bf16.mxu0 0
      %284 = vmatpush1.bf16.msra.mxu0 0
      %285 = vmatprep.subr.bf16.mxu0 0
      %286 = vmatpush1.bf16.msra.mxu0 0
      %287 = vmatprep.subr.bf16.mxu0 0
      %288 = vmatpush1.bf16.msra.mxu0 0
      %289 = vmatprep.subr.bf16.mxu0 0
      %290 = vmatpush1.bf16.msra.mxu0 0
      %291 = vmatprep.subr.bf16.mxu0 0
      %292 = vmatpush1.bf16.msra.mxu0 0
      %293 = vmatprep.subr.bf16.mxu0 0
      %294 = vmatpush1.bf16.msra.mxu0 0
      %295 = vmatprep.subr.bf16.mxu0 0
      %296 = vmatpush1.bf16.msra.mxu0 0
      %297 = vmatprep.subr.bf16.mxu0 0
      %298 = vmatpush1.bf16.msra.mxu0 0
      %299 = vmatprep.subr.bf16.mxu0 0
      %300 = vmatpush1.bf16.msra.mxu0 0
      %301 = vmatprep.mubr.bf16.mxu0 0
      %302 = vmatmul.mubr.bf16.gmra.mrb[0].mxu0 %v264
      %v303 = vpop.f32.mrb[0].mxu0
      %v304 = vadd.f32 %v236, %v303
      %v305 = vpop.f32.mrb[0].mxu0
      %v306 = vpop.f32.mrb[0].mxu0
      %v307 = vadd.f32 %v239, %v306
      %v308 = vpop.f32.mrb[0].mxu0
      %309 = vmatprep.mubr.bf16.mxu0 0
      %310 = vmatmul.mubr.bf16.gmra.mrb[0].mxu0 %v267
      %v311 = vpop.f32.mrb[0].mxu0
      %v312 = vadd.f32 %v244, %v311
      %v313 = vpop.f32.mrb[0].mxu0
      %v314 = vpop.f32.mrb[0].mxu0
      %v315 = vpop.f32.mrb[0].mxu0
      %316 = vdwg.mxu0
      %v317 = vld [vmem:[%s138] sm:$0xe]
      %s318 = scalar_lea.vmem %s1, 32
      %v319 = vld [vmem:[%s318] sm:$0xf]
      %v320 = vld [vmem:[%s318 + $0x4] sm:$0xf]
      %v321 = vld [vmem:[%s318 + $0x8] sm:$0xf]
      %v322 = vld [vmem:[%s318 + $0xc] sm:$0xf]
      %v324 = vunpack.c.l.b16 %v317
      %v325 = vpack.c.b16 %v162, %v324
      %vm326 = vcmask 1046528
      %v327 = vrot.slane %v325, 1
      %v328 = vrot.slane %v165, 1
      %v329 = vsel %vm326, %v327, %v328
      %v334 = vunpack.c.l.b16 %v319
      %v335 = vunpack.c.l.b16 %v320
      %v336 = vunpack.c.l.b16 %v321
      %v337 = vunpack.c.l.b16 %v322
      %v338 = vpack.c.b16 %v335, %v334
      %v339 = vpack.c.b16 %v337, %v336
      %v343 = vsel %vm194, %v329, 0
      %v346 = vsel %vm194, %v328, 0
      %348 = vmatprep.subr.bf16.mxu0 0
      %349 = vmatpush1.bf16.msra.mxu0 %v338
      %350 = vmatprep.subr.bf16.mxu0 0
      %351 = vmatpush1.bf16.msra.mxu0 %v339
      %352 = vmatprep.subr.bf16.mxu0 0
      %353 = vmatpush1.bf16.msra.mxu0 0
      %354 = vmatprep.subr.bf16.mxu0 0
      %355 = vmatpush1.bf16.msra.mxu0 0
      %356 = vmatprep.subr.bf16.mxu0 0
      %357 = vmatpush1.bf16.msra.mxu0 0
      %358 = vmatprep.subr.bf16.mxu0 0
      %359 = vmatpush1.bf16.msra.mxu0 0
      %360 = vmatprep.subr.bf16.mxu0 0
      %361 = vmatpush1.bf16.msra.mxu0 0
      %362 = vmatprep.subr.bf16.mxu0 0
      %363 = vmatpush1.bf16.msra.mxu0 0
      %364 = vmatprep.subr.bf16.mxu0 0
      %365 = vmatpush1.bf16.msra.mxu0 0
      %366 = vmatprep.subr.bf16.mxu0 0
      %367 = vmatpush1.bf16.msra.mxu0 0
      %368 = vmatprep.subr.bf16.mxu0 0
      %369 = vmatpush1.bf16.msra.mxu0 0
      %370 = vmatprep.subr.bf16.mxu0 0
      %371 = vmatpush1.bf16.msra.mxu0 0
      %372 = vmatprep.subr.bf16.mxu0 0
      %373 = vmatpush1.bf16.msra.mxu0 0
      %374 = vmatprep.subr.bf16.mxu0 0
      %375 = vmatpush1.bf16.msra.mxu0 0
      %376 = vmatprep.subr.bf16.mxu0 0
      %377 = vmatpush1.bf16.msra.mxu0 0
      %378 = vmatprep.subr.bf16.mxu0 0
      %379 = vmatpush1.bf16.msra.mxu0 0
      %380 = vmatprep.mubr.bf16.mxu0 0
      %381 = vmatmul.mubr.bf16.gmra.mrb[0].mxu0 %v343
      %v382 = vpop.f32.mrb[0].mxu0
      %v383 = vadd.f32 0.0, %v382
      %v384 = vpop.f32.mrb[0].mxu0
      %v385 = vpop.f32.mrb[0].mxu0
      %v386 = vadd.f32 0.0, %v385
      %v387 = vpop.f32.mrb[0].mxu0
      %388 = vmatprep.mubr.bf16.mxu0 0
      %389 = vmatmul.mubr.bf16.gmra.mrb[0].mxu0 %v346
      %v390 = vpop.f32.mrb[0].mxu0
      %v391 = vadd.f32 0.0, %v390
      %v392 = vpop.f32.mrb[0].mxu0
      %v393 = vpop.f32.mrb[0].mxu0
      %v394 = vpop.f32.mrb[0].mxu0
      %395 = vdwg.mxu0
      %v396 = vadd.f32 %v304, %v383
      %v397 = vadd.f32 %v307, %v386
      %v398 = vadd.f32 %v312, %v391
      %v399 = vld [vmem:[%s138 + $0x8] sm:$0x7]
      %s400 = scalar_lea.vmem %s1, 48
      %v401 = vld [vmem:[%s400] sm:$0xf]
      %v402 = vld [vmem:[%s400 + $0x4] sm:$0xf]
      %v403 = vld [vmem:[%s400 + $0x8] sm:$0xf]
      %v404 = vld [vmem:[%s400 + $0xc] sm:$0xf]
      %v406 = vunpack.c.l.b16 %v399
      %v407 = vpack.c.b16 %v406, %v406
      %vm408 = vsmask.f32 6400
      %v410 = vshrl.u32 %v325, 16
      %v412 = vrot.slane %v410, 1
      %v413 = vshll.u32 %v325, 16
      %v415 = vrot.slane %v413, 2
      %v416 = vor.u32 %v412, %v415
      %v418 = vshrl.u32 %v407, 16
      %v420 = vrot.slane %v418, 1
      %v421 = vshll.u32 %v407, 16
      %v423 = vrot.slane %v421, 2
      %v424 = vor.u32 %v420, %v423
      %v425 = vsel %vm408, %v416, %v424
      %v430 = vunpack.c.l.b16 %v401
      %v431 = vunpack.c.l.b16 %v402
      %v432 = vunpack.c.l.b16 %v403
      %v433 = vunpack.c.l.b16 %v404
      %v434 = vpack.c.b16 %v431, %v430
      %v435 = vpack.c.b16 %v433, %v432
      %v439 = vsel %vm194, %v425, 0
      %v442 = vsel %vm194, %v424, 0
      %444 = vmatprep.subr.bf16.mxu0 0
      %445 = vmatpush1.bf16.msra.mxu0 %v434
      %446 = vmatprep.subr.bf16.mxu0 0
      %447 = vmatpush1.bf16.msra.mxu0 %v435
      %448 = vmatprep.subr.bf16.mxu0 0
      %449 = vmatpush1.bf16.msra.mxu0 0
      %450 = vmatprep.subr.bf16.mxu0 0
      %451 = vmatpush1.bf16.msra.mxu0 0
      %452 = vmatprep.subr.bf16.mxu0 0
      %453 = vmatpush1.bf16.msra.mxu0 0
      %454 = vmatprep.subr.bf16.mxu0 0
      %455 = vmatpush1.bf16.msra.mxu0 0
      %456 = vmatprep.subr.bf16.mxu0 0
      %457 = vmatpush1.bf16.msra.mxu0 0
      %458 = vmatprep.subr.bf16.mxu0 0
      %459 = vmatpush1.bf16.msra.mxu0 0
      %460 = vmatprep.subr.bf16.mxu0 0
      %461 = vmatpush1.bf16.msra.mxu0 0
      %462 = vmatprep.subr.bf16.mxu0 0
      %463 = vmatpush1.bf16.msra.mxu0 0
      %464 = vmatprep.subr.bf16.mxu0 0
      %465 = vmatpush1.bf16.msra.mxu0 0
      %466 = vmatprep.subr.bf16.mxu0 0
      %467 = vmatpush1.bf16.msra.mxu0 0
      %468 = vmatprep.subr.bf16.mxu0 0
      %469 = vmatpush1.bf16.msra.mxu0 0
      %470 = vmatprep.subr.bf16.mxu0 0
      %471 = vmatpush1.bf16.msra.mxu0 0
      %472 = vmatprep.subr.bf16.mxu0 0
      %473 = vmatpush1.bf16.msra.mxu0 0
      %474 = vmatprep.subr.bf16.mxu0 0
      %475 = vmatpush1.bf16.msra.mxu0 0
      %476 = vmatprep.mubr.bf16.mxu0 0
      %477 = vmatmul.mubr.bf16.gmra.mrb[0].mxu0 %v439
      %v478 = vpop.f32.mrb[0].mxu0
      %v479 = vadd.f32 0.0, %v478
      %v480 = vpop.f32.mrb[0].mxu0
      %v481 = vpop.f32.mrb[0].mxu0
      %v482 = vadd.f32 0.0, %v481
      %v483 = vpop.f32.mrb[0].mxu0
      %484 = vmatprep.mubr.bf16.mxu0 0
      %485 = vmatmul.mubr.bf16.gmra.mrb[0].mxu0 %v442
      %v486 = vpop.f32.mrb[0].mxu0
      %v487 = vadd.f32 0.0, %v486
      %v488 = vpop.f32.mrb[0].mxu0
      %v489 = vpop.f32.mrb[0].mxu0
      %v490 = vpop.f32.mrb[0].mxu0
      %491 = vdwg.mxu0
      %v492 = vadd.f32 %v396, %v479
      %v493 = vadd.f32 %v397, %v482
      %v494 = vadd.f32 %v398, %v487
      %v495 = vld [vmem:[%s138] sm:$0x8]
      %v496 = vld [vmem:[%s138 + $0x8] sm:$0xf]
      %s497 = scalar_lea.vmem %s1, 64
      %v498 = vld [vmem:[%s497] sm:$0xf]
      %v499 = vld [vmem:[%s497 + $0x4] sm:$0xf]
      %v500 = vld [vmem:[%s497 + $0x8] sm:$0xf]
      %v501 = vld [vmem:[%s497 + $0xc] sm:$0xf]
      %v504 = vunpack.c.l.b16 %v495
      %v505 = vunpack.c.l.b16 %v496
      %v506 = vpack.c.b16 %v162, %v504
      %v507 = vpack.c.b16 %v505, %v505
      %vm508 = vcmask 1044480
      %v509 = vrot.slane %v506, 3
      %v510 = vrot.slane %v507, 3
      %v511 = vsel %vm508, %v509, %v510
      %v516 = vunpack.c.l.b16 %v498
      %v517 = vunpack.c.l.b16 %v499
      %v518 = vunpack.c.l.b16 %v500
      %v519 = vunpack.c.l.b16 %v501
      %v520 = vpack.c.b16 %v517, %v516
      %v521 = vpack.c.b16 %v519, %v518
      %v525 = vsel %vm194, %v511, 0
      %v528 = vsel %vm194, %v510, 0
      %530 = vmatprep.subr.bf16.mxu0 0
      %531 = vmatpush1.bf16.msra.mxu0 %v520
      %532 = vmatprep.subr.bf16.mxu0 0
      %533 = vmatpush1.bf16.msra.mxu0 %v521
      %534 = vmatprep.subr.bf16.mxu0 0
      %535 = vmatpush1.bf16.msra.mxu0 0
      %536 = vmatprep.subr.bf16.mxu0 0
      %537 = vmatpush1.bf16.msra.mxu0 0
      %538 = vmatprep.subr.bf16.mxu0 0
      %539 = vmatpush1.bf16.msra.mxu0 0
      %540 = vmatprep.subr.bf16.mxu0 0
      %541 = vmatpush1.bf16.msra.mxu0 0
      %542 = vmatprep.subr.bf16.mxu0 0
      %543 = vmatpush1.bf16.msra.mxu0 0
      %544 = vmatprep.subr.bf16.mxu0 0
      %545 = vmatpush1.bf16.msra.mxu0 0
      %546 = vmatprep.subr.bf16.mxu0 0
      %547 = vmatpush1.bf16.msra.mxu0 0
      %548 = vmatprep.subr.bf16.mxu0 0
      %549 = vmatpush1.bf16.msra.mxu0 0
      %550 = vmatprep.subr.bf16.mxu0 0
      %551 = vmatpush1.bf16.msra.mxu0 0
      %552 = vmatprep.subr.bf16.mxu0 0
      %553 = vmatpush1.bf16.msra.mxu0 0
      %554 = vmatprep.subr.bf16.mxu0 0
      %555 = vmatpush1.bf16.msra.mxu0 0
      %556 = vmatprep.subr.bf16.mxu0 0
      %557 = vmatpush1.bf16.msra.mxu0 0
      %558 = vmatprep.subr.bf16.mxu0 0
      %559 = vmatpush1.bf16.msra.mxu0 0
      %560 = vmatprep.subr.bf16.mxu0 0
      %561 = vmatpush1.bf16.msra.mxu0 0
      %562 = vmatprep.mubr.bf16.mxu0 0
      %563 = vmatmul.mubr.bf16.gmra.mrb[0].mxu0 %v525
      %v564 = vpop.f32.mrb[0].mxu0
      %v565 = vadd.f32 0.0, %v564
      %v566 = vpop.f32.mrb[0].mxu0
      %v567 = vpop.f32.mrb[0].mxu0
      %v568 = vadd.f32 0.0, %v567
      %v569 = vpop.f32.mrb[0].mxu0
      %570 = vmatprep.mubr.bf16.mxu0 0
      %571 = vmatmul.mubr.bf16.gmra.mrb[0].mxu0 %v528
      %v572 = vpop.f32.mrb[0].mxu0
      %v573 = vadd.f32 0.0, %v572
      %v574 = vpop.f32.mrb[0].mxu0
      %v575 = vpop.f32.mrb[0].mxu0
      %v576 = vpop.f32.mrb[0].mxu0
      %577 = vdwg.mxu0
      %v578 = vadd.f32 %v492, %v565
      %v579 = vadd.f32 %v493, %v568
      %v580 = vadd.f32 %v494, %v573
      %v581 = vld [vmem:[%s138] sm:$0x8]
      %v582 = vld [vmem:[%s138 + $0x4] sm:$0xf]
      %v583 = vld [vmem:[%s138 + $0x8] sm:$0xf]
      %v584 = vld [vmem:[%s138 + $0xc] sm:$0x1]
      %s585 = scalar_lea.vmem %s1, 80
      %v586 = vld [vmem:[%s585] sm:$0xf]
      %v587 = vld [vmem:[%s585 + $0x4] sm:$0xf]
      %v588 = vld [vmem:[%s585 + $0x8] sm:$0xf]
      %v589 = vld [vmem:[%s585 + $0xc] sm:$0xf]
      %v594 = vunpack.c.l.b16 %v581
      %v595 = vunpack.c.l.b16 %v582
      %v596 = vunpack.c.l.b16 %v583
      %v597 = vunpack.c.l.b16 %v584
      %v598 = vpack.c.b16 %v595, %v594
      %v599 = vpack.c.b16 %v597, %v596
      %vm600 = vsmask.f32 4352
      %v602 = vshrl.u32 %v598, 16
      %v604 = vrot.slane %v602, 3
      %v605 = vshll.u32 %v598, 16
      %v607 = vrot.slane %v605, 4
      %v608 = vor.u32 %v604, %v607
      %v610 = vshrl.u32 %v599, 16
      %v612 = vrot.slane %v610, 3
      %v613 = vshll.u32 %v599, 16
      %v615 = vrot.slane %v613, 4
      %v616 = vor.u32 %v612, %v615
      %v617 = vsel %vm600, %v608, %v616
      %v622 = vunpack.c.l.b16 %v586
      %v623 = vunpack.c.l.b16 %v587
      %v624 = vunpack.c.l.b16 %v588
      %v625 = vunpack.c.l.b16 %v589
      %v626 = vpack.c.b16 %v623, %v622
      %v627 = vpack.c.b16 %v625, %v624
      %v631 = vsel %vm194, %v617, 0
      %v634 = vsel %vm194, %v616, 0
      %636 = vmatprep.subr.bf16.mxu0 0
      %637 = vmatpush1.bf16.msra.mxu0 %v626
      %638 = vmatprep.subr.bf16.mxu0 0
      %639 = vmatpush1.bf16.msra.mxu0 %v627
      %640 = vmatprep.subr.bf16.mxu0 0
      %641 = vmatpush1.bf16.msra.mxu0 0
      %642 = vmatprep.subr.bf16.mxu0 0
      %643 = vmatpush1.bf16.msra.mxu0 0
      %644 = vmatprep.subr.bf16.mxu0 0
      %645 = vmatpush1.bf16.msra.mxu0 0
      %646 = vmatprep.subr.bf16.mxu0 0
      %647 = vmatpush1.bf16.msra.mxu0 0
      %648 = vmatprep.subr.bf16.mxu0 0
      %649 = vmatpush1.bf16.msra.mxu0 0
      %650 = vmatprep.subr.bf16.mxu0 0
      %651 = vmatpush1.bf16.msra.mxu0 0
      %652 = vmatprep.subr.bf16.mxu0 0
      %653 = vmatpush1.bf16.msra.mxu0 0
      %654 = vmatprep.subr.bf16.mxu0 0
      %655 = vmatpush1.bf16.msra.mxu0 0
      %656 = vmatprep.subr.bf16.mxu0 0
      %657 = vmatpush1.bf16.msra.mxu0 0
      %658 = vmatprep.subr.bf16.mxu0 0
      %659 = vmatpush1.bf16.msra.mxu0 0
      %660 = vmatprep.subr.bf16.mxu0 0
      %661 = vmatpush1.bf16.msra.mxu0 0
      %662 = vmatprep.subr.bf16.mxu0 0
      %663 = vmatpush1.bf16.msra.mxu0 0
      %664 = vmatprep.subr.bf16.mxu0 0
      %665 = vmatpush1.bf16.msra.mxu0 0
      %666 = vmatprep.subr.bf16.mxu0 0
      %667 = vmatpush1.bf16.msra.mxu0 0
      %668 = vmatprep.mubr.bf16.mxu0 0
      %669 = vmatmul.mubr.bf16.gmra.mrb[0].mxu0 %v631
      %v670 = vpop.f32.mrb[0].mxu0
      %v671 = vadd.f32 0.0, %v670
      %v672 = vpop.f32.mrb[0].mxu0
      %v673 = vpop.f32.mrb[0].mxu0
      %v674 = vadd.f32 0.0, %v673
      %v675 = vpop.f32.mrb[0].mxu0
      %676 = vmatprep.mubr.bf16.mxu0 0
      %677 = vmatmul.mubr.bf16.gmra.mrb[0].mxu0 %v634
      %v678 = vpop.f32.mrb[0].mxu0
      %v679 = vadd.f32 0.0, %v678
      %v680 = vpop.f32.mrb[0].mxu0
      %v681 = vpop.f32.mrb[0].mxu0
      %v682 = vpop.f32.mrb[0].mxu0
      %683 = vdwg.mxu0
      %v684 = vadd.f32 %v578, %v671
      %v685 = vadd.f32 %v579, %v674
      %v686 = vadd.f32 %v580, %v679
      %s687 = scalar_lea.vmem %s1, 96
      %v688 = vld [vmem:[%s687] sm:$0xf]
      %v689 = vld [vmem:[%s687 + $0x4] sm:$0xf]
      %v690 = vld [vmem:[%s687 + $0x8] sm:$0xf]
      %v691 = vld [vmem:[%s687 + $0xc] sm:$0xf]
      %v692 = vpack.c.b16 %v596, %v595
      %v693 = vpack.c.b16 %v597, %v597
      %v698 = vunpack.c.l.b16 %v688
      %v699 = vunpack.c.l.b16 %v689
      %v700 = vunpack.c.l.b16 %v690
      %v701 = vunpack.c.l.b16 %v691
      %v702 = vpack.c.b16 %v699, %v698
      %v703 = vpack.c.b16 %v701, %v700
      %v707 = vsel %vm194, %v692, 0
      %v710 = vsel %vm194, %v693, 0
      %712 = vmatprep.subr.bf16.mxu0 0
      %713 = vmatpush1.bf16.msra.mxu0 %v702
      %714 = vmatprep.subr.bf16.mxu0 0
      %715 = vmatpush1.bf16.msra.mxu0 %v703
      %716 = vmatprep.subr.bf16.mxu0 0
      %717 = vmatpush1.bf16.msra.mxu0 0
      %718 = vmatprep.subr.bf16.mxu0 0
      %719 = vmatpush1.bf16.msra.mxu0 0
      %720 = vmatprep.subr.bf16.mxu0 0
      %721 = vmatpush1.bf16.msra.mxu0 0
      %722 = vmatprep.subr.bf16.mxu0 0
      %723 = vmatpush1.bf16.msra.mxu0 0
      %724 = vmatprep.subr.bf16.mxu0 0
      %725 = vmatpush1.bf16.msra.mxu0 0
      %726 = vmatprep.subr.bf16.mxu0 0
      %727 = vmatpush1.bf16.msra.mxu0 0
      %728 = vmatprep.subr.bf16.mxu0 0
      %729 = vmatpush1.bf16.msra.mxu0 0
      %730 = vmatprep.subr.bf16.mxu0 0
      %731 = vmatpush1.bf16.msra.mxu0 0
      %732 = vmatprep.subr.bf16.mxu0 0
      %733 = vmatpush1.bf16.msra.mxu0 0
      %734 = vmatprep.subr.bf16.mxu0 0
      %735 = vmatpush1.bf16.msra.mxu0 0
      %736 = vmatprep.subr.bf16.mxu0 0
      %737 = vmatpush1.bf16.msra.mxu0 0
      %738 = vmatprep.subr.bf16.mxu0 0
      %739 = vmatpush1.bf16.msra.mxu0 0
      %740 = vmatprep.subr.bf16.mxu0 0
      %741 = vmatpush1.bf16.msra.mxu0 0
      %742 = vmatprep.subr.bf16.mxu0 0
      %743 = vmatpush1.bf16.msra.mxu0 0
      %744 = vmatprep.mubr.bf16.mxu0 0
      %745 = vmatmul.mubr.bf16.gmra.mrb[0].mxu0 %v707
      %v746 = vpop.f32.mrb[0].mxu0
      %v747 = vadd.f32 0.0, %v746
      %v748 = vpop.f32.mrb[0].mxu0
      %v749 = vpop.f32.mrb[0].mxu0
      %v750 = vadd.f32 0.0, %v749
      %v751 = vpop.f32.mrb[0].mxu0
      %752 = vmatprep.mubr.bf16.mxu0 0
      %753 = vmatmul.mubr.bf16.gmra.mrb[0].mxu0 %v710
      %v754 = vpop.f32.mrb[0].mxu0
      %v755 = vadd.f32 0.0, %v754
      %v756 = vpop.f32.mrb[0].mxu0
      %v757 = vpop.f32.mrb[0].mxu0
      %v758 = vpop.f32.mrb[0].mxu0
      %759 = vdwg.mxu0
      %v760 = vadd.f32 %v684, %v747
      %v761 = vadd.f32 %v685, %v750
      %v762 = vadd.f32 %v686, %v755
      %v763 = vld [vmem:[%s138 + $0xc] sm:$0x3]
      %s764 = scalar_lea.vmem %s1, 112
      %v765 = vld [vmem:[%s764] sm:$0xf]
      %v766 = vld [vmem:[%s764 + $0x4] sm:$0xf]
      %v767 = vld [vmem:[%s764 + $0x8] sm:$0xf]
      %v768 = vld [vmem:[%s764 + $0xc] sm:$0xf]
      %v770 = vunpack.c.l.b16 %v763
      %v771 = vpack.c.b16 %v770, %v770
      %v772 = vshrl.u32 %v692, 16
      %v774 = vshll.u32 %v692, 16
      %v776 = vrot.slane %v774, 1
      %v777 = vor.u32 %v772, %v776
      %v779 = vshll.u32 %v771, 16
      %v781 = vrot.slane %v779, 1
      %v782 = vsel %vm166, %v777, %v781
      %v783 = vshrl.u32 %v771, 16
      %v785 = vor.u32 %v783, %v781
      %v790 = vunpack.c.l.b16 %v765
      %v791 = vunpack.c.l.b16 %v766
      %v792 = vunpack.c.l.b16 %v767
      %v793 = vunpack.c.l.b16 %v768
      %v794 = vpack.c.b16 %v791, %v790
      %v795 = vpack.c.b16 %v793, %v792
      %v799 = vsel %vm194, %v782, 0
      %v802 = vsel %vm194, %v785, 0
      %804 = vmatprep.subr.bf16.mxu0 0
      %805 = vmatpush1.bf16.msra.mxu0 %v794
      %806 = vmatprep.subr.bf16.mxu0 0
      %807 = vmatpush1.bf16.msra.mxu0 %v795
      %808 = vmatprep.subr.bf16.mxu0 0
      %809 = vmatpush1.bf16.msra.mxu0 0
      %810 = vmatprep.subr.bf16.mxu0 0
      %811 = vmatpush1.bf16.msra.mxu0 0
      %812 = vmatprep.subr.bf16.mxu0 0
      %813 = vmatpush1.bf16.msra.mxu0 0
      %814 = vmatprep.subr.bf16.mxu0 0
      %815 = vmatpush1.bf16.msra.mxu0 0
      %816 = vmatprep.subr.bf16.mxu0 0
      %817 = vmatpush1.bf16.msra.mxu0 0
      %818 = vmatprep.subr.bf16.mxu0 0
      %819 = vmatpush1.bf16.msra.mxu0 0
      %820 = vmatprep.subr.bf16.mxu0 0
      %821 = vmatpush1.bf16.msra.mxu0 0
      %822 = vmatprep.subr.bf16.mxu0 0
      %823 = vmatpush1.bf16.msra.mxu0 0
      %824 = vmatprep.subr.bf16.mxu0 0
      %825 = vmatpush1.bf16.msra.mxu0 0
      %826 = vmatprep.subr.bf16.mxu0 0
      %827 = vmatpush1.bf16.msra.mxu0 0
      %828 = vmatprep.subr.bf16.mxu0 0
      %829 = vmatpush1.bf16.msra.mxu0 0
      %830 = vmatprep.subr.bf16.mxu0 0
      %831 = vmatpush1.bf16.msra.mxu0 0
      %832 = vmatprep.subr.bf16.mxu0 0
      %833 = vmatpush1.bf16.msra.mxu0 0
      %834 = vmatprep.subr.bf16.mxu0 0
      %835 = vmatpush1.bf16.msra.mxu0 0
      %836 = vmatprep.mubr.bf16.mxu0 0
      %837 = vmatmul.mubr.bf16.gmra.mrb[0].mxu0 %v799
      %v838 = vpop.f32.mrb[0].mxu0
      %v839 = vadd.f32 0.0, %v838
      %v840 = vpop.f32.mrb[0].mxu0
      %v841 = vpop.f32.mrb[0].mxu0
      %v842 = vadd.f32 0.0, %v841
      %v843 = vpop.f32.mrb[0].mxu0
      %844 = vmatprep.mubr.bf16.mxu0 0
      %845 = vmatmul.mubr.bf16.gmra.mrb[0].mxu0 %v802
      %v846 = vpop.f32.mrb[0].mxu0
      %v847 = vadd.f32 0.0, %v846
      %v848 = vpop.f32.mrb[0].mxu0
      %v849 = vpop.f32.mrb[0].mxu0
      %v850 = vpop.f32.mrb[0].mxu0
      %851 = vdwg.mxu0
      %v852 = vadd.f32 %v760, %v839
      %v853 = vadd.f32 %v761, %v842
      %v854 = vadd.f32 %v762, %v847
      %v855 = vld [vmem:[%s138 + $0x4] sm:$0xc]
      %v856 = vld [vmem:[%s138 + $0xc] sm:$0x7]
      %s857 = scalar_lea.vmem %s1, 128
      %v858 = vld [vmem:[%s857] sm:$0xf]
      %v859 = vld [vmem:[%s857 + $0x4] sm:$0xf]
      %v860 = vld [vmem:[%s857 + $0x8] sm:$0xf]
      %v861 = vld [vmem:[%s857 + $0xc] sm:$0xf]
      %v864 = vunpack.c.l.b16 %v855
      %v865 = vunpack.c.l.b16 %v856
      %v866 = vpack.c.b16 %v596, %v864
      %v867 = vpack.c.b16 %v865, %v865
      %vm868 = vcmask 1045504
      %v869 = vrot.slane %v866, 2
      %v870 = vrot.slane %v867, 2
      %v871 = vsel %vm868, %v869, %v870
      %v876 = vunpack.c.l.b16 %v858
      %v877 = vunpack.c.l.b16 %v859
      %v878 = vunpack.c.l.b16 %v860
      %v879 = vunpack.c.l.b16 %v861
      %v880 = vpack.c.b16 %v877, %v876
      %v881 = vpack.c.b16 %v879, %v878
      %v885 = vsel %vm194, %v871, 0
      %v888 = vsel %vm194, %v870, 0
      %890 = vmatprep.subr.bf16.mxu0 0
      %891 = vmatpush1.bf16.msra.mxu0 %v880
      %892 = vmatprep.subr.bf16.mxu0 0
      %893 = vmatpush1.bf16.msra.mxu0 %v881
      %894 = vmatprep.subr.bf16.mxu0 0
      %895 = vmatpush1.bf16.msra.mxu0 0
      %896 = vmatprep.subr.bf16.mxu0 0
      %897 = vmatpush1.bf16.msra.mxu0 0
      %898 = vmatprep.subr.bf16.mxu0 0
      %899 = vmatpush1.bf16.msra.mxu0 0
      %900 = vmatprep.subr.bf16.mxu0 0
      %901 = vmatpush1.bf16.msra.mxu0 0
      %902 = vmatprep.subr.bf16.mxu0 0
      %903 = vmatpush1.bf16.msra.mxu0 0
      %904 = vmatprep.subr.bf16.mxu0 0
      %905 = vmatpush1.bf16.msra.mxu0 0
      %906 = vmatprep.subr.bf16.mxu0 0
      %907 = vmatpush1.bf16.msra.mxu0 0
      %908 = vmatprep.subr.bf16.mxu0 0
      %909 = vmatpush1.bf16.msra.mxu0 0
      %910 = vmatprep.subr.bf16.mxu0 0
      %911 = vmatpush1.bf16.msra.mxu0 0
      %912 = vmatprep.subr.bf16.mxu0 0
      %913 = vmatpush1.bf16.msra.mxu0 0
      %914 = vmatprep.subr.bf16.mxu0 0
      %915 = vmatpush1.bf16.msra.mxu0 0
      %916 = vmatprep.subr.bf16.mxu0 0
      %917 = vmatpush1.bf16.msra.mxu0 0
      %918 = vmatprep.subr.bf16.mxu0 0
      %919 = vmatpush1.bf16.msra.mxu0 0
      %920 = vmatprep.subr.bf16.mxu0 0
      %921 = vmatpush1.bf16.msra.mxu0 0
      %922 = vmatprep.mubr.bf16.mxu0 0
      %923 = vmatmul.mubr.bf16.gmra.mrb[0].mxu0 %v885
      %v924 = vpop.f32.mrb[0].mxu0
      %v925 = vadd.f32 0.0, %v924
      %v926 = vpop.f32.mrb[0].mxu0
      %v927 = vpop.f32.mrb[0].mxu0
      %v928 = vadd.f32 0.0, %v927
      %v929 = vpop.f32.mrb[0].mxu0
      %930 = vmatprep.mubr.bf16.mxu0 0
      %931 = vmatmul.mubr.bf16.gmra.mrb[0].mxu0 %v888
      %v932 = vpop.f32.mrb[0].mxu0
      %v933 = vadd.f32 0.0, %v932
      %v934 = vpop.f32.mrb[0].mxu0
      %v935 = vpop.f32.mrb[0].mxu0
      %v936 = vpop.f32.mrb[0].mxu0
      %937 = vdwg.mxu0
      %v938 = vadd.f32 %v852, %v925
      %v939 = vadd.f32 %v853, %v928
      %v940 = vadd.f32 %v854, %v933
      %v941 = vld [vmem:[%s138 + $0xc] sm:$0xf]
      %s942 = scalar_lea.vmem %s1, 144
      %v943 = vld [vmem:[%s942] sm:$0xf]
      %v944 = vld [vmem:[%s942 + $0x4] sm:$0xf]
      %v945 = vld [vmem:[%s942 + $0x8] sm:$0xf]
      %v946 = vld [vmem:[%s942 + $0xc] sm:$0xf]
      %v948 = vunpack.c.l.b16 %v941
      %v949 = vpack.c.b16 %v948, %v948
      %vm950 = vsmask.f32 5376
      %v952 = vshrl.u32 %v866, 16
      %v954 = vrot.slane %v952, 2
      %v955 = vshll.u32 %v866, 16
      %v957 = vrot.slane %v955, 3
      %v958 = vor.u32 %v954, %v957
      %v960 = vshrl.u32 %v949, 16
      %v962 = vrot.slane %v960, 2
      %v963 = vshll.u32 %v949, 16
      %v965 = vrot.slane %v963, 3
      %v966 = vor.u32 %v962, %v965
      %v967 = vsel %vm950, %v958, %v966
      %v972 = vunpack.c.l.b16 %v943
      %v973 = vunpack.c.l.b16 %v944
      %v974 = vunpack.c.l.b16 %v945
      %v975 = vunpack.c.l.b16 %v946
      %v976 = vpack.c.b16 %v973, %v972
      %v977 = vpack.c.b16 %v975, %v974
      %v981 = vsel %vm194, %v967, 0
      %v984 = vsel %vm194, %v966, 0
      %986 = vmatprep.subr.bf16.mxu0 0
      %987 = vmatpush1.bf16.msra.mxu0 %v976
      %988 = vmatprep.subr.bf16.mxu0 0
      %989 = vmatpush1.bf16.msra.mxu0 %v977
      %990 = vmatprep.subr.bf16.mxu0 0
      %991 = vmatpush1.bf16.msra.mxu0 0
      %992 = vmatprep.subr.bf16.mxu0 0
      %993 = vmatpush1.bf16.msra.mxu0 0
      %994 = vmatprep.subr.bf16.mxu0 0
      %995 = vmatpush1.bf16.msra.mxu0 0
      %996 = vmatprep.subr.bf16.mxu0 0
      %997 = vmatpush1.bf16.msra.mxu0 0
      %998 = vmatprep.subr.bf16.mxu0 0
      %999 = vmatpush1.bf16.msra.mxu0 0
      %1000 = vmatprep.subr.bf16.mxu0 0
      %1001 = vmatpush1.bf16.msra.mxu0 0
      %1002 = vmatprep.subr.bf16.mxu0 0
      %1003 = vmatpush1.bf16.msra.mxu0 0
      %1004 = vmatprep.subr.bf16.mxu0 0
      %1005 = vmatpush1.bf16.msra.mxu0 0
      %1006 = vmatprep.subr.bf16.mxu0 0
      %1007 = vmatpush1.bf16.msra.mxu0 0
      %1008 = vmatprep.subr.bf16.mxu0 0
      %1009 = vmatpush1.bf16.msra.mxu0 0
      %1010 = vmatprep.subr.bf16.mxu0 0
      %1011 = vmatpush1.bf16.msra.mxu0 0
      %1012 = vmatprep.subr.bf16.mxu0 0
      %1013 = vmatpush1.bf16.msra.mxu0 0
      %1014 = vmatprep.subr.bf16.mxu0 0
      %1015 = vmatpush1.bf16.msra.mxu0 0
      %1016 = vmatprep.subr.bf16.mxu0 0
      %1017 = vmatpush1.bf16.msra.mxu0 0
      %1018 = vmatprep.mubr.bf16.mxu0 0
      %1019 = vmatmul.mubr.bf16.gmra.mrb[0].mxu0 %v981
      %v1020 = vpop.f32.mrb[0].mxu0
      %v1021 = vadd.f32 0.0, %v1020
      %v1022 = vpop.f32.mrb[0].mxu0
      %v1023 = vpop.f32.mrb[0].mxu0
      %v1024 = vadd.f32 0.0, %v1023
      %v1025 = vpop.f32.mrb[0].mxu0
      %1026 = vmatprep.mubr.bf16.mxu0 0
      %1027 = vmatmul.mubr.bf16.gmra.mrb[0].mxu0 %v984
      %v1028 = vpop.f32.mrb[0].mxu0
      %v1029 = vadd.f32 0.0, %v1028
      %v1030 = vpop.f32.mrb[0].mxu0
      %v1031 = vpop.f32.mrb[0].mxu0
      %v1032 = vpop.f32.mrb[0].mxu0
      %1033 = vdwg.mxu0
      %v1034 = vadd.f32 %v938, %v1021
      %v1035 = vadd.f32 %v939, %v1024
      %v1036 = vadd.f32 %v940, %v1029
      %v1037 = vld [vmem:[%s138 + $0x4] sm:$0x8]
      %s1038 = scalar_lea.vmem %s1, 160
      %v1039 = vld [vmem:[%s1038] sm:$0xf]
      %v1040 = vld [vmem:[%s1038 + $0x4] sm:$0xf]
      %v1041 = vld [vmem:[%s1038 + $0x8] sm:$0xf]
      %v1042 = vld [vmem:[%s1038 + $0xc] sm:$0xf]
      %v1044 = vunpack.c.l.b16 %v1037
      %v1045 = vpack.c.b16 %v596, %v1044
      %v1046 = vrot.slane %v1045, 3
      %v1047 = vrot.slane %v949, 3
      %v1048 = vsel %vm508, %v1046, %v1047
      %v1053 = vunpack.c.l.b16 %v1039
      %v1054 = vunpack.c.l.b16 %v1040
      %v1055 = vunpack.c.l.b16 %v1041
      %v1056 = vunpack.c.l.b16 %v1042
      %v1057 = vpack.c.b16 %v1054, %v1053
      %v1058 = vpack.c.b16 %v1056, %v1055
      %v1062 = vsel %vm194, %v1048, 0
      %v1065 = vsel %vm194, %v1047, 0
      %1067 = vmatprep.subr.bf16.mxu0 0
      %1068 = vmatpush1.bf16.msra.mxu0 %v1057
      %1069 = vmatprep.subr.bf16.mxu0 0
      %1070 = vmatpush1.bf16.msra.mxu0 %v1058
      %1071 = vmatprep.subr.bf16.mxu0 0
      %1072 = vmatpush1.bf16.msra.mxu0 0
      %1073 = vmatprep.subr.bf16.mxu0 0
      %1074 = vmatpush1.bf16.msra.mxu0 0
      %1075 = vmatprep.subr.bf16.mxu0 0
      %1076 = vmatpush1.bf16.msra.mxu0 0
      %1077 = vmatprep.subr.bf16.mxu0 0
      %1078 = vmatpush1.bf16.msra.mxu0 0
      %1079 = vmatprep.subr.bf16.mxu0 0
      %1080 = vmatpush1.bf16.msra.mxu0 0
      %1081 = vmatprep.subr.bf16.mxu0 0
      %1082 = vmatpush1.bf16.msra.mxu0 0
      %1083 = vmatprep.subr.bf16.mxu0 0
      %1084 = vmatpush1.bf16.msra.mxu0 0
      %1085 = vmatprep.subr.bf16.mxu0 0
      %1086 = vmatpush1.bf16.msra.mxu0 0
      %1087 = vmatprep.subr.bf16.mxu0 0
      %1088 = vmatpush1.bf16.msra.mxu0 0
      %1089 = vmatprep.subr.bf16.mxu0 0
      %1090 = vmatpush1.bf16.msra.mxu0 0
      %1091 = vmatprep.subr.bf16.mxu0 0
      %1092 = vmatpush1.bf16.msra.mxu0 0
      %1093 = vmatprep.subr.bf16.mxu0 0
      %1094 = vmatpush1.bf16.msra.mxu0 0
      %1095 = vmatprep.subr.bf16.mxu0 0
      %1096 = vmatpush1.bf16.msra.mxu0 0
      %1097 = vmatprep.subr.bf16.mxu0 0
      %1098 = vmatpush1.bf16.msra.mxu0 0
      %1099 = vmatprep.mubr.bf16.mxu0 0
      %1100 = vmatmul.mubr.bf16.gmra.mrb[0].mxu0 %v1062
      %v1101 = vpop.f32.mrb[0].mxu0
      %v1102 = vadd.f32 0.0, %v1101
      %v1103 = vpop.f32.mrb[0].mxu0
      %v1104 = vpop.f32.mrb[0].mxu0
      %v1105 = vadd.f32 0.0, %v1104
      %v1106 = vpop.f32.mrb[0].mxu0
      %1107 = vmatprep.mubr.bf16.mxu0 0
      %1108 = vmatmul.mubr.bf16.gmra.mrb[0].mxu0 %v1065
      %v1109 = vpop.f32.mrb[0].mxu0
      %v1110 = vadd.f32 0.0, %v1109
      %v1111 = vpop.f32.mrb[0].mxu0
      %v1112 = vpop.f32.mrb[0].mxu0
      %v1113 = vpop.f32.mrb[0].mxu0
      %1114 = vdwg.mxu0
      %v1115 = vadd.f32 %v1034, %v1102
      %v1116 = vadd.f32 %v1035, %v1105
      %v1117 = vadd.f32 %v1036, %v1110
      %v1118 = vld [vmem:[%s138 + $0x4] sm:$0x8]
      %v1119 = vld [vmem:[%s138 + $0x8] sm:$0xf]
      %v1120 = vld [vmem:[%s138 + $0xc] sm:$0xf]
      %v1121 = vld [vmem:[%s138 + $0x10] sm:$0x1]
      %s1122 = scalar_lea.vmem %s1, 176
      %v1123 = vld [vmem:[%s1122] sm:$0xf]
      %v1124 = vld [vmem:[%s1122 + $0x4] sm:$0xf]
      %v1125 = vld [vmem:[%s1122 + $0x8] sm:$0xf]
      %v1126 = vld [vmem:[%s1122 + $0xc] sm:$0xf]
      %v1131 = vunpack.c.l.b16 %v1118
      %v1132 = vunpack.c.l.b16 %v1119
      %v1133 = vunpack.c.l.b16 %v1120
      %v1134 = vunpack.c.l.b16 %v1121
      %v1135 = vpack.c.b16 %v1132, %v1131
      %v1136 = vpack.c.b16 %v1134, %v1133
      %v1138 = vshrl.u32 %v1135, 16
      %v1140 = vrot.slane %v1138, 3
      %v1141 = vshll.u32 %v1135, 16
      %v1143 = vrot.slane %v1141, 4
      %v1144 = vor.u32 %v1140, %v1143
      %v1146 = vshrl.u32 %v1136, 16
      %v1148 = vrot.slane %v1146, 3
      %v1149 = vshll.u32 %v1136, 16
      %v1151 = vrot.slane %v1149, 4
      %v1152 = vor.u32 %v1148, %v1151
      %v1153 = vsel %vm600, %v1144, %v1152
      %v1158 = vunpack.c.l.b16 %v1123
      %v1159 = vunpack.c.l.b16 %v1124
      %v1160 = vunpack.c.l.b16 %v1125
      %v1161 = vunpack.c.l.b16 %v1126
      %v1162 = vpack.c.b16 %v1159, %v1158
      %v1163 = vpack.c.b16 %v1161, %v1160
      %v1167 = vsel %vm194, %v1153, 0
      %v1170 = vsel %vm194, %v1152, 0
      %1172 = vmatprep.subr.bf16.mxu0 0
      %1173 = vmatpush1.bf16.msra.mxu0 %v1162
      %1174 = vmatprep.subr.bf16.mxu0 0
      %1175 = vmatpush1.bf16.msra.mxu0 %v1163
      %1176 = vmatprep.subr.bf16.mxu0 0
      %1177 = vmatpush1.bf16.msra.mxu0 0
      %1178 = vmatprep.subr.bf16.mxu0 0
      %1179 = vmatpush1.bf16.msra.mxu0 0
      %1180 = vmatprep.subr.bf16.mxu0 0
      %1181 = vmatpush1.bf16.msra.mxu0 0
      %1182 = vmatprep.subr.bf16.mxu0 0
      %1183 = vmatpush1.bf16.msra.mxu0 0
      %1184 = vmatprep.subr.bf16.mxu0 0
      %1185 = vmatpush1.bf16.msra.mxu0 0
      %1186 = vmatprep.subr.bf16.mxu0 0
      %1187 = vmatpush1.bf16.msra.mxu0 0
      %1188 = vmatprep.subr.bf16.mxu0 0
      %1189 = vmatpush1.bf16.msra.mxu0 0
      %1190 = vmatprep.subr.bf16.mxu0 0
      %1191 = vmatpush1.bf16.msra.mxu0 0
      %1192 = vmatprep.subr.bf16.mxu0 0
      %1193 = vmatpush1.bf16.msra.mxu0 0
      %1194 = vmatprep.subr.bf16.mxu0 0
      %1195 = vmatpush1.bf16.msra.mxu0 0
      %1196 = vmatprep.subr.bf16.mxu0 0
      %1197 = vmatpush1.bf16.msra.mxu0 0
      %1198 = vmatprep.subr.bf16.mxu0 0
      %1199 = vmatpush1.bf16.msra.mxu0 0
      %1200 = vmatprep.subr.bf16.mxu0 0
      %1201 = vmatpush1.bf16.msra.mxu0 0
      %1202 = vmatprep.subr.bf16.mxu0 0
      %1203 = vmatpush1.bf16.msra.mxu0 0
      %1204 = vmatprep.mubr.bf16.mxu0 0
      %1205 = vmatmul.mubr.bf16.gmra.mrb[0].mxu0 %v1167
      %v1206 = vpop.f32.mrb[0].mxu0
      %v1207 = vadd.f32 0.0, %v1206
      %v1208 = vpop.f32.mrb[0].mxu0
      %v1209 = vpop.f32.mrb[0].mxu0
      %v1210 = vadd.f32 0.0, %v1209
      %v1211 = vpop.f32.mrb[0].mxu0
      %1212 = vmatprep.mubr.bf16.mxu0 0
      %1213 = vmatmul.mubr.bf16.gmra.mrb[0].mxu0 %v1170
      %v1214 = vpop.f32.mrb[0].mxu0
      %v1215 = vadd.f32 0.0, %v1214
      %v1216 = vpop.f32.mrb[0].mxu0
      %v1217 = vpop.f32.mrb[0].mxu0
      %v1218 = vpop.f32.mrb[0].mxu0
      %1219 = vdwg.mxu0
      %v1220 = vadd.f32 %v1115, %v1207
      %v1221 = vadd.f32 %v1116, %v1210
      %v1222 = vadd.f32 %v1117, %v1215
      %v1223 = vld [vmem:[%s138 + $0x8] sm:$0xe]
      %v1224 = vld [vmem:[%s138 + $0x10] sm:$0x3]
      %s1225 = scalar_lea.vmem %s1, 192
      %v1226 = vld [vmem:[%s1225] sm:$0xf]
      %v1227 = vld [vmem:[%s1225 + $0x4] sm:$0xf]
      %v1228 = vld [vmem:[%s1225 + $0x8] sm:$0xf]
      %v1229 = vld [vmem:[%s1225 + $0xc] sm:$0xf]
      %v1232 = vunpack.c.l.b16 %v1223
      %v1233 = vunpack.c.l.b16 %v1224
      %v1234 = vpack.c.b16 %v1133, %v1232
      %v1235 = vpack.c.b16 %v1233, %v1233
      %v1236 = vrot.slane %v1234, 1
      %v1237 = vrot.slane %v1235, 1
      %v1238 = vsel %vm326, %v1236, %v1237
      %v1243 = vunpack.c.l.b16 %v1226
      %v1244 = vunpack.c.l.b16 %v1227
      %v1245 = vunpack.c.l.b16 %v1228
      %v1246 = vunpack.c.l.b16 %v1229
      %v1247 = vpack.c.b16 %v1244, %v1243
      %v1248 = vpack.c.b16 %v1246, %v1245
      %v1252 = vsel %vm194, %v1238, 0
      %v1255 = vsel %vm194, %v1237, 0
      %1257 = vmatprep.subr.bf16.mxu0 0
      %1258 = vmatpush1.bf16.msra.mxu0 %v1247
      %1259 = vmatprep.subr.bf16.mxu0 0
      %1260 = vmatpush1.bf16.msra.mxu0 %v1248
      %1261 = vmatprep.subr.bf16.mxu0 0
      %1262 = vmatpush1.bf16.msra.mxu0 0
      %1263 = vmatprep.subr.bf16.mxu0 0
      %1264 = vmatpush1.bf16.msra.mxu0 0
      %1265 = vmatprep.subr.bf16.mxu0 0
      %1266 = vmatpush1.bf16.msra.mxu0 0
      %1267 = vmatprep.subr.bf16.mxu0 0
      %1268 = vmatpush1.bf16.msra.mxu0 0
      %1269 = vmatprep.subr.bf16.mxu0 0
      %1270 = vmatpush1.bf16.msra.mxu0 0
      %1271 = vmatprep.subr.bf16.mxu0 0
      %1272 = vmatpush1.bf16.msra.mxu0 0
      %1273 = vmatprep.subr.bf16.mxu0 0
      %1274 = vmatpush1.bf16.msra.mxu0 0
      %1275 = vmatprep.subr.bf16.mxu0 0
      %1276 = vmatpush1.bf16.msra.mxu0 0
      %1277 = vmatprep.subr.bf16.mxu0 0
      %1278 = vmatpush1.bf16.msra.mxu0 0
      %1279 = vmatprep.subr.bf16.mxu0 0
      %1280 = vmatpush1.bf16.msra.mxu0 0
      %1281 = vmatprep.subr.bf16.mxu0 0
      %1282 = vmatpush1.bf16.msra.mxu0 0
      %1283 = vmatprep.subr.bf16.mxu0 0
      %1284 = vmatpush1.bf16.msra.mxu0 0
      %1285 = vmatprep.subr.bf16.mxu0 0
      %1286 = vmatpush1.bf16.msra.mxu0 0
      %1287 = vmatprep.subr.bf16.mxu0 0
      %1288 = vmatpush1.bf16.msra.mxu0 0
      %1289 = vmatprep.mubr.bf16.mxu0 0
      %1290 = vmatmul.mubr.bf16.gmra.mrb[0].mxu0 %v1252
      %v1291 = vpop.f32.mrb[0].mxu0
      %v1292 = vadd.f32 0.0, %v1291
      %v1293 = vpop.f32.mrb[0].mxu0
      %v1294 = vpop.f32.mrb[0].mxu0
      %v1295 = vadd.f32 0.0, %v1294
      %v1296 = vpop.f32.mrb[0].mxu0
      %1297 = vmatprep.mubr.bf16.mxu0 0
      %1298 = vmatmul.mubr.bf16.gmra.mrb[0].mxu0 %v1255
      %v1299 = vpop.f32.mrb[0].mxu0
      %v1300 = vadd.f32 0.0, %v1299
      %v1301 = vpop.f32.mrb[0].mxu0
      %v1302 = vpop.f32.mrb[0].mxu0
      %v1303 = vpop.f32.mrb[0].mxu0
      %1304 = vdwg.mxu0
      %v1305 = vadd.f32 %v1220, %v1292
      %v1306 = vadd.f32 %v1221, %v1295
      %v1307 = vadd.f32 %v1222, %v1300
      %v1308 = vld [vmem:[%s138 + $0x10] sm:$0x7]
      %s1309 = scalar_lea.vmem %s1, 208
      %v1310 = vld [vmem:[%s1309] sm:$0xf]
      %v1311 = vld [vmem:[%s1309 + $0x4] sm:$0xf]
      %v1312 = vld [vmem:[%s1309 + $0x8] sm:$0xf]
      %v1313 = vld [vmem:[%s1309 + $0xc] sm:$0xf]
      %v1315 = vunpack.c.l.b16 %v1308
      %v1316 = vpack.c.b16 %v1315, %v1315
      %v1318 = vshrl.u32 %v1234, 16
      %v1320 = vrot.slane %v1318, 1
      %v1321 = vshll.u32 %v1234, 16
      %v1323 = vrot.slane %v1321, 2
      %v1324 = vor.u32 %v1320, %v1323
      %v1326 = vshrl.u32 %v1316, 16
      %v1328 = vrot.slane %v1326, 1
      %v1329 = vshll.u32 %v1316, 16
      %v1331 = vrot.slane %v1329, 2
      %v1332 = vor.u32 %v1328, %v1331
      %v1333 = vsel %vm408, %v1324, %v1332
      %v1338 = vunpack.c.l.b16 %v1310
      %v1339 = vunpack.c.l.b16 %v1311
      %v1340 = vunpack.c.l.b16 %v1312
      %v1341 = vunpack.c.l.b16 %v1313
      %v1342 = vpack.c.b16 %v1339, %v1338
      %v1343 = vpack.c.b16 %v1341, %v1340
      %v1347 = vsel %vm194, %v1333, 0
      %v1350 = vsel %vm194, %v1332, 0
      %1352 = vmatprep.subr.bf16.mxu0 0
      %1353 = vmatpush1.bf16.msra.mxu0 %v1342
      %1354 = vmatprep.subr.bf16.mxu0 0
      %1355 = vmatpush1.bf16.msra.mxu0 %v1343
      %1356 = vmatprep.subr.bf16.mxu0 0
      %1357 = vmatpush1.bf16.msra.mxu0 0
      %1358 = vmatprep.subr.bf16.mxu0 0
      %1359 = vmatpush1.bf16.msra.mxu0 0
      %1360 = vmatprep.subr.bf16.mxu0 0
      %1361 = vmatpush1.bf16.msra.mxu0 0
      %1362 = vmatprep.subr.bf16.mxu0 0
      %1363 = vmatpush1.bf16.msra.mxu0 0
      %1364 = vmatprep.subr.bf16.mxu0 0
      %1365 = vmatpush1.bf16.msra.mxu0 0
      %1366 = vmatprep.subr.bf16.mxu0 0
      %1367 = vmatpush1.bf16.msra.mxu0 0
      %1368 = vmatprep.subr.bf16.mxu0 0
      %1369 = vmatpush1.bf16.msra.mxu0 0
      %1370 = vmatprep.subr.bf16.mxu0 0
      %1371 = vmatpush1.bf16.msra.mxu0 0
      %1372 = vmatprep.subr.bf16.mxu0 0
      %1373 = vmatpush1.bf16.msra.mxu0 0
      %1374 = vmatprep.subr.bf16.mxu0 0
      %1375 = vmatpush1.bf16.msra.mxu0 0
      %1376 = vmatprep.subr.bf16.mxu0 0
      %1377 = vmatpush1.bf16.msra.mxu0 0
      %1378 = vmatprep.subr.bf16.mxu0 0
      %1379 = vmatpush1.bf16.msra.mxu0 0
      %1380 = vmatprep.subr.bf16.mxu0 0
      %1381 = vmatpush1.bf16.msra.mxu0 0
      %1382 = vmatprep.subr.bf16.mxu0 0
      %1383 = vmatpush1.bf16.msra.mxu0 0
      %1384 = vmatprep.mubr.bf16.mxu0 0
      %1385 = vmatmul.mubr.bf16.gmra.mrb[0].mxu0 %v1347
      %v1386 = vpop.f32.mrb[0].mxu0
      %v1387 = vadd.f32 0.0, %v1386
      %v1388 = vpop.f32.mrb[0].mxu0
      %v1389 = vpop.f32.mrb[0].mxu0
      %v1390 = vadd.f32 0.0, %v1389
      %v1391 = vpop.f32.mrb[0].mxu0
      %1392 = vmatprep.mubr.bf16.mxu0 0
      %1393 = vmatmul.mubr.bf16.gmra.mrb[0].mxu0 %v1350
      %v1394 = vpop.f32.mrb[0].mxu0
      %v1395 = vadd.f32 0.0, %v1394
      %v1396 = vpop.f32.mrb[0].mxu0
      %v1397 = vpop.f32.mrb[0].mxu0
      %v1398 = vpop.f32.mrb[0].mxu0
      %1399 = vdwg.mxu0
      %v1400 = vadd.f32 %v1305, %v1387
      %v1401 = vadd.f32 %v1306, %v1390
      %v1402 = vadd.f32 %v1307, %v1395
      %v1403 = vld [vmem:[%s138 + $0x8] sm:$0xc]
      %s1404 = scalar_lea.vmem %s1, 224
      %v1405 = vld [vmem:[%s1404] sm:$0xf]
      %v1406 = vld [vmem:[%s1404 + $0x4] sm:$0xf]
      %v1407 = vld [vmem:[%s1404 + $0x8] sm:$0xf]
      %v1408 = vld [vmem:[%s1404 + $0xc] sm:$0xf]
      %v1410 = vunpack.c.l.b16 %v1403
      %v1411 = vpack.c.b16 %v1133, %v1410
      %v1412 = vrot.slane %v1411, 2
      %v1413 = vrot.slane %v1316, 2
      %v1414 = vsel %vm868, %v1412, %v1413
      %v1419 = vunpack.c.l.b16 %v1405
      %v1420 = vunpack.c.l.b16 %v1406
      %v1421 = vunpack.c.l.b16 %v1407
      %v1422 = vunpack.c.l.b16 %v1408
      %v1423 = vpack.c.b16 %v1420, %v1419
      %v1424 = vpack.c.b16 %v1422, %v1421
      %v1428 = vsel %vm194, %v1414, 0
      %v1431 = vsel %vm194, %v1413, 0
      %1433 = vmatprep.subr.bf16.mxu0 0
      %1434 = vmatpush1.bf16.msra.mxu0 %v1423
      %1435 = vmatprep.subr.bf16.mxu0 0
      %1436 = vmatpush1.bf16.msra.mxu0 %v1424
      %1437 = vmatprep.subr.bf16.mxu0 0
      %1438 = vmatpush1.bf16.msra.mxu0 0
      %1439 = vmatprep.subr.bf16.mxu0 0
      %1440 = vmatpush1.bf16.msra.mxu0 0
      %1441 = vmatprep.subr.bf16.mxu0 0
      %1442 = vmatpush1.bf16.msra.mxu0 0
      %1443 = vmatprep.subr.bf16.mxu0 0
      %1444 = vmatpush1.bf16.msra.mxu0 0
      %1445 = vmatprep.subr.bf16.mxu0 0
      %1446 = vmatpush1.bf16.msra.mxu0 0
      %1447 = vmatprep.subr.bf16.mxu0 0
      %1448 = vmatpush1.bf16.msra.mxu0 0
      %1449 = vmatprep.subr.bf16.mxu0 0
      %1450 = vmatpush1.bf16.msra.mxu0 0
      %1451 = vmatprep.subr.bf16.mxu0 0
      %1452 = vmatpush1.bf16.msra.mxu0 0
      %1453 = vmatprep.subr.bf16.mxu0 0
      %1454 = vmatpush1.bf16.msra.mxu0 0
      %1455 = vmatprep.subr.bf16.mxu0 0
      %1456 = vmatpush1.bf16.msra.mxu0 0
      %1457 = vmatprep.subr.bf16.mxu0 0
      %1458 = vmatpush1.bf16.msra.mxu0 0
      %1459 = vmatprep.subr.bf16.mxu0 0
      %1460 = vmatpush1.bf16.msra.mxu0 0
      %1461 = vmatprep.subr.bf16.mxu0 0
      %1462 = vmatpush1.bf16.msra.mxu0 0
      %1463 = vmatprep.subr.bf16.mxu0 0
      %1464 = vmatpush1.bf16.msra.mxu0 0
      %1465 = vmatprep.mubr.bf16.mxu0 0
      %1466 = vmatmul.mubr.bf16.gmra.mrb[0].mxu0 %v1428
      %v1467 = vpop.f32.mrb[0].mxu0
      %v1468 = vadd.f32 0.0, %v1467
      %v1469 = vpop.f32.mrb[0].mxu0
      %v1470 = vpop.f32.mrb[0].mxu0
      %v1471 = vadd.f32 0.0, %v1470
      %v1472 = vpop.f32.mrb[0].mxu0
      %1473 = vmatprep.mubr.bf16.mxu0 0
      %1474 = vmatmul.mubr.bf16.gmra.mrb[0].mxu0 %v1431
      %v1475 = vpop.f32.mrb[0].mxu0
      %v1476 = vadd.f32 0.0, %v1475
      %v1477 = vpop.f32.mrb[0].mxu0
      %v1478 = vpop.f32.mrb[0].mxu0
      %v1479 = vpop.f32.mrb[0].mxu0
      %1480 = vdwg.mxu0
      %v1481 = vadd.f32 %v1400, %v1468
      %v1482 = vadd.f32 %v1401, %v1471
      %v1483 = vadd.f32 %v1402, %v1476
      %v1484 = vld [vmem:[%s138 + $0x10] sm:$0xf]
      %s1485 = scalar_lea.vmem %s1, 240
      %v1486 = vld [vmem:[%s1485] sm:$0xf]
      %v1487 = vld [vmem:[%s1485 + $0x4] sm:$0xf]
      %v1488 = vld [vmem:[%s1485 + $0x8] sm:$0xf]
      %v1489 = vld [vmem:[%s1485 + $0xc] sm:$0xf]
      %v1491 = vunpack.c.l.b16 %v1484
      %v1492 = vpack.c.b16 %v1491, %v1491
      %v1494 = vshrl.u32 %v1411, 16
      %v1496 = vrot.slane %v1494, 2
      %v1497 = vshll.u32 %v1411, 16
      %v1499 = vrot.slane %v1497, 3
      %v1500 = vor.u32 %v1496, %v1499
      %v1502 = vshrl.u32 %v1492, 16
      %v1504 = vrot.slane %v1502, 2
      %v1505 = vshll.u32 %v1492, 16
      %v1507 = vrot.slane %v1505, 3
      %v1508 = vor.u32 %v1504, %v1507
      %v1509 = vsel %vm950, %v1500, %v1508
      %v1514 = vunpack.c.l.b16 %v1486
      %v1515 = vunpack.c.l.b16 %v1487
      %v1516 = vunpack.c.l.b16 %v1488
      %v1517 = vunpack.c.l.b16 %v1489
      %v1518 = vpack.c.b16 %v1515, %v1514
      %v1519 = vpack.c.b16 %v1517, %v1516
      %v1523 = vsel %vm194, %v1509, 0
      %v1526 = vsel %vm194, %v1508, 0
      %1528 = vmatprep.subr.bf16.mxu0 0
      %1529 = vmatpush1.bf16.msra.mxu0 %v1518
      %1530 = vmatprep.subr.bf16.mxu0 0
      %1531 = vmatpush1.bf16.msra.mxu0 %v1519
      %1532 = vmatprep.subr.bf16.mxu0 0
      %1533 = vmatpush1.bf16.msra.mxu0 0
      %1534 = vmatprep.subr.bf16.mxu0 0
      %1535 = vmatpush1.bf16.msra.mxu0 0
      %1536 = vmatprep.subr.bf16.mxu0 0
      %1537 = vmatpush1.bf16.msra.mxu0 0
      %1538 = vmatprep.subr.bf16.mxu0 0
      %1539 = vmatpush1.bf16.msra.mxu0 0
      %1540 = vmatprep.subr.bf16.mxu0 0
      %1541 = vmatpush1.bf16.msra.mxu0 0
      %1542 = vmatprep.subr.bf16.mxu0 0
      %1543 = vmatpush1.bf16.msra.mxu0 0
      %1544 = vmatprep.subr.bf16.mxu0 0
      %1545 = vmatpush1.bf16.msra.mxu0 0
      %1546 = vmatprep.subr.bf16.mxu0 0
      %1547 = vmatpush1.bf16.msra.mxu0 0
      %1548 = vmatprep.subr.bf16.mxu0 0
      %1549 = vmatpush1.bf16.msra.mxu0 0
      %1550 = vmatprep.subr.bf16.mxu0 0
      %1551 = vmatpush1.bf16.msra.mxu0 0
      %1552 = vmatprep.subr.bf16.mxu0 0
      %1553 = vmatpush1.bf16.msra.mxu0 0
      %1554 = vmatprep.subr.bf16.mxu0 0
      %1555 = vmatpush1.bf16.msra.mxu0 0
      %1556 = vmatprep.subr.bf16.mxu0 0
      %1557 = vmatpush1.bf16.msra.mxu0 0
      %1558 = vmatprep.subr.bf16.mxu0 0
      %1559 = vmatpush1.bf16.msra.mxu0 0
      %1560 = vmatprep.mubr.bf16.mxu0 0
      %1561 = vmatmul.mubr.bf16.gmra.mrb[0].mxu0 %v1523
      %v1562 = vpop.f32.mrb[0].mxu0
      %v1563 = vadd.f32 0.0, %v1562
      %v1564 = vpop.f32.mrb[0].mxu0
      %v1565 = vpop.f32.mrb[0].mxu0
      %v1566 = vadd.f32 0.0, %v1565
      %v1567 = vpop.f32.mrb[0].mxu0
      %1568 = vmatprep.mubr.bf16.mxu0 0
      %1569 = vmatmul.mubr.bf16.gmra.mrb[0].mxu0 %v1526
      %v1570 = vpop.f32.mrb[0].mxu0
      %v1571 = vadd.f32 0.0, %v1570
      %v1572 = vpop.f32.mrb[0].mxu0
      %v1573 = vpop.f32.mrb[0].mxu0
      %v1574 = vpop.f32.mrb[0].mxu0
      %1575 = vdwg.mxu0
      %v1576 = vadd.f32 %v1481, %v1563
      %v1577 = vadd.f32 %v1482, %v1566
      %v1578 = vadd.f32 %v1483, %v1571
      %v1579 = vlaneseq
      %v1580 = vshrl.u32 %v1579, 7
      %v1581 = vadd.s32 %v1580, 8
      %v1582 = vadd.s32 %v1580, 16
      %vm1583 = vcmp.lt.s32.totalorder %v1580, 0
      %v1584 = vsub.s32 0, %v1580
      %v1585 = vsel %vm1583, %v1584, %v1580
      %v1586 = vmul.u32.u64.compose %v1585, 2863311531
      %v1587 = vextract.low.u32 %v1586
      %v1588 = vextract.high.u32 %v1586
      %v1589 = vshrl.u32 %v1588, 2
      %v1590 = vmul.u32 %v1589, 6
      %v1591 = vsub.s32 %v1585, %v1590
      %v1592 = vsub.s32 0, %v1591
      %v1593 = vsel %vm1583, %v1592, %v1591
      %vm1594 = vcmp.lt.s32.totalorder %v1581, 0
      %v1595 = vsub.s32 0, %v1581
      %v1596 = vsel %vm1594, %v1595, %v1581
      %v1597 = vmul.u32.u64.compose %v1596, 2863311531
      %v1598 = vextract.low.u32 %v1597
      %v1599 = vextract.high.u32 %v1597
      %v1600 = vshrl.u32 %v1599, 2
      %v1601 = vmul.u32 %v1600, 6
      %v1602 = vsub.s32 %v1596, %v1601
      %v1603 = vsub.s32 0, %v1602
      %v1604 = vsel %vm1594, %v1603, %v1602
      %vm1605 = vcmp.lt.s32.totalorder %v1582, 0
      %v1606 = vsub.s32 0, %v1582
      %v1607 = vsel %vm1605, %v1606, %v1582
      %v1608 = vmul.u32.u64.compose %v1607, 2863311531
      %v1609 = vextract.low.u32 %v1608
      %v1610 = vextract.high.u32 %v1608
      %v1611 = vshrl.u32 %v1610, 2
      %v1612 = vmul.u32 %v1611, 6
      %v1613 = vsub.s32 %v1607, %v1612
      %v1614 = vsub.s32 0, %v1613
      %v1615 = vsel %vm1605, %v1614, %v1613
      %vm1616 = vcmp.ne.s32.totalorder %v1593, 0
      %vm1617 = vcmp.ne.s32.totalorder %v1604, 0
      %vm1618 = vcmp.ne.s32.totalorder %v1615, 0
      %vm1619 = vcmp.lt.s32.totalorder %v1593, 0
      %vm1620 = vcmp.lt.s32.totalorder %v1604, 0
      %vm1621 = vcmp.lt.s32.totalorder %v1615, 0
      %vm1622 = vmand %vm1619, %vm1616
      %vm1623 = vmand %vm1620, %vm1617
      %vm1624 = vmand %vm1621, %vm1618
      %v1625 = vadd.s32 %v1593, 6
      %v1626 = vadd.s32 %v1604, 6
      %v1627 = vadd.s32 %v1615, 6
      %v1628 = vsel %vm1622, %v1625, %v1593
      %v1629 = vsel %vm1623, %v1626, %v1604
      %v1630 = vsel %vm1624, %v1627, %v1615
      %vm1631 = vcmp.lt.s32.totalorder %v1628, 3
      %vm1632 = vcmp.lt.s32.totalorder %v1629, 3
      %vm1633 = vcmp.lt.s32.totalorder %v1630, 3
      %v1634 = vsel %vm1631, 1, 0
      %v1635 = vsel %vm1632, 1, 0
      %v1636 = vsel %vm1633, 1, 0
      %vm1637 = vcmp.eq.s32.totalorder %v1634, 1
      %vm1638 = vcmp.eq.s32.totalorder %v1635, 1
      %vm1639 = vcmp.eq.s32.totalorder %v1636, 1
      %v1640 = vsel %vm1637, %v1576, 0.0
      %v1641 = vsel %vm1638, %v1577, 0.0
      %v1642 = vsel %vm1639, %v1578, 0.0
      %vm1643 = vcmask 523264
      %v1644 = vsel %vm1643, %v1640, 0.0
      %v1645 = vsel %vm1643, %v1641, 0.0
      %v1646 = vadd.f32 %v1644, %v1645
      %vm1647 = vcmask 517120
      %v1648 = vsel %vm1647, %v1642, 0.0
      %v1649 = vadd.f32 %v1646, %v1648
      %v1650 = vrot.slane %v1649, 4
      %v1651 = vadd.f32 %v1649, %v1650
      %v1652 = vrot.slane %v1651, 2
      %v1653 = vadd.f32 %v1651, %v1652
      %v1654 = vrot.slane %v1653, 1
      %v1655 = vadd.f32 %v1653, %v1654
      %v1656 = vmul.f32 %v1655, 0.11111111
      %v1657 = vsub.f32 %v1576, %v1656
      %v1658 = vsub.f32 %v1577, %v1656
      %v1659 = vsub.f32 %v1578, %v1656
      %v1660 = vsel %vm1637, %v1657, 0.0
      %v1661 = vsel %vm1638, %v1658, 0.0
      %v1662 = vsel %vm1639, %v1659, 0.0
      %v1663 = vmul.f32 %v1660, %v1660
      %v1664 = vmul.f32 %v1661, %v1661
      %v1665 = vmul.f32 %v1662, %v1662
      %v1666 = vsel %vm1643, %v1663, 0.0
      %v1667 = vsel %vm1643, %v1664, 0.0
      %v1668 = vadd.f32 %v1666, %v1667
      %v1669 = vsel %vm1647, %v1665, 0.0
      %v1670 = vadd.f32 %v1668, %v1669
      %v1671 = vrot.slane %v1670, 4
      %v1672 = vadd.f32 %v1670, %v1671
      %v1673 = vrot.slane %v1672, 2
      %v1674 = vadd.f32 %v1672, %v1673
      %v1675 = vrot.slane %v1674, 1
      %v1676 = vadd.f32 %v1674, %v1675
      %v1677 = vmul.f32 %v1676, 0.11111111
      %v1678 = vadd.f32 %v1677, 1e-05
      %v1679 = vrsqrt.pop %v1678
      %v1680 = vmul.f32 %v1657, %v1679
      %v1681 = vmul.f32 %v1658, %v1679
      %v1682 = vmul.f32 %v1659, %v1679
      %v1683 = vmul.f32 %v1680, 0.2
      %v1684 = vmul.f32 %v1681, 0.2
      %v1685 = vmul.f32 %v1682, 0.2
      %v1686 = vmax.f32 %v1680, %v1683
      %v1687 = vmax.f32 %v1681, %v1684
      %v1688 = vmax.f32 %v1682, %v1685
      %v1689 = vpack.c.bf16 %v1687, %v1686
      %v1690 = vpack.c.bf16 %v1688, %v1688
      %v1693 = vunpack.c.l.b16 %v1689
      %v1694 = vunpack.c.h.b16 %v1689
      %v1695 = vunpack.c.l.b16 %v1690
      %v1696 = vpack.c.b16 %v1693, %v1693
      %v1697 = vpack.c.b16 %v1694, %v1694
      %v1698 = vpack.c.b16 %v1695, %v1695
      %vm1702 = vcmask 519168
      %1703 = vst.msk [vmem:[%s143] sm:$0xf] %vm1702, %v1696
      %1704 = vst.msk [vmem:[%s143 + $0x4] sm:$0xf] %vm1702, %v1697
      %vm1705 = vcmask 516096
      %1706 = vst.msk [vmem:[%s143 + $0x8] sm:$0x1] %vm1705, %v1698
      %p1707 = scmp.lt.s32.totalorder %s13, 1
      %s1708 = scalar_select %p1707, %s13, 1
      %s1709 = smul.addr %s1708, 3
      %s1710 = smul.addr %s1709, 4
      %s1711 = scalar_lea.vmem %s2, %s1710
      // Predicated region
      $region29: #{discriminator_forward.8} parent=27 // pred_check
        %p1712 = pneg %p78
      $region30: #{discriminator_forward.8} parent=27 // pred_check_branch
        %1714 = sbr.rel (%p1712) target = $region32
      $region31: #{discriminator_forward.8} parent=27 // pred_region
        _
      $region32: #{discriminator_forward.8} parent=27 // pred_fallthru
        _
    $region28: #{discriminator_forward.8} parent=5 // pred_fallthru
      _
    %p1715 = scmp.le.s32.totalorder 2, %s8
    // Predicated region
    $region33: #{discriminator_forward.8} parent=5 // pred_check
      %p1716 = pneg %p1715
    $region34: #{discriminator_forward.8} parent=5 // pred_check_branch
      %1718 = sbr.rel (%p1716) target = $region36
    $region35: #{discriminator_forward.8} parent=5 // pred_region
      %s1719 = ssub.s32 %s8, 2
      // Predicated region
      $region37: #{discriminator_forward.8} parent=35 // pred_check
        %p1720 = pneg %p84
      $region38: #{discriminator_forward.8} parent=35 // pred_check_branch
        %1722 = sbr.rel (%p1720) target = $region40
      $region39: #{discriminator_forward.8} parent=35 // pred_region
        %p1723 = scmp.lt.s32.totalorder %s14, 1
        %s1724 = scalar_select %p1723, %s14, 1
        %s1725 = smul.addr %s1724, 3
        %s1726 = smul.addr %s1725, 4
        %s1727 = scalar_lea.vmem %s2, %s1726
      $region40: #{discriminator_forward.8} parent=35 // pred_fallthru
        _
    $region36: #{discriminator_forward.8} parent=5 // pred_fallthru
      _
  $region6: #{discriminator_forward.8} parent=0 // loop_footer
    %s12 = sadd.s32 1, %s8
  $region7: #{discriminator_forward.8} parent=0 // loop_footer_branch
    %7 = sbr.rel target = $region3
  $region8: #{discriminator_forward.8} parent=0 // loop_exit
    _

// kernel: discriminator_forward.9
$region0: #{discriminator_forward.9}
  #allocation0 [shape = 'u32[]', space=smem, size = 0x4, offset = 0x4, fixed_abs, tag = 'smem constant byte address 0x4 - core index']
  #allocation1 [shape = 'u32[144,128]{1,0:T(1,128)}', space=vmem, size = 0x12000, scoped, tag = 'internal scratch']
  #allocation2 [shape = 'f32[1,1]{1,0:T(1,128)S(1)}', space=vmem, size = 0x200, scoped, tag = 'scoped memory for discriminator_forward.9']
  %s0 = inlined_call_operand.vmem [shape: bf16[2,32,64], index: 0, kind: input, shape index: {}]
  %s1 = inlined_call_operand.vmem [shape: bf16[16,64,1], index: 1, kind: input, shape index: {}]
  %s2 = inlined_call_operand.<no memory space> [shape: f32[1,1], index: 2, kind: input, shape index: {}]
  %s3 = inlined_call_operand.vmem [shape: f32[2,10,1], index: 3, kind: output, shape index: {}]
  %s4 = sld [smem:[#allocation0]]
  $region45: #{discriminator_forward.9} parent=0
    _
  %s6 = ssub.s32 1, %s4
  %s7 = scalar_select 0, %s6, %s4
  %v8 = vstv %s2
  %9 = vst [vmem:[#allocation2] sm:$0x1] %v8
  loop: start=0, step=1, limit=4
  $region2: #{discriminator_forward.9} parent=0 // loop_pre_header
    _
  $region3: #{discriminator_forward.9} parent=0 // loop_header
    %s11 = sphi 0, %s15
    %p12 = scmp.ge.s32.totalorder %s11, 4
    %s21 = sphi 0, %s23
    %s24 = sphi 0, %s21
    %s25 = sphi 0, %s24
    %s41 = sphi 0, %s25
    %s45 = sphi 0, %s45
    %s47 = sphi 0, %s45
    %s48 = sphi 0, %s47
    %s62 = sphi 0, %s48
    %s66 = sphi 0, %s66
    %s68 = sphi 0, %s66
    %s69 = sphi 0, %s68
    %s83 = sphi 0, %s69
    %s89 = sphi 0, %s91
    %s92 = sphi 0, %s89
    %s93 = sphi 0, %s92
    %s109 = sphi 0, %s93
  $region4: #{discriminator_forward.9} parent=0 // loop_header_branch
    %14 = sbr.rel (%p12) target = $region8
  $region5: #{discriminator_forward.9} parent=0 // loop_body
    %s16 = ssub.s32 %s11, 1
    %s17 = ssub.s32 %s11, 2
    %s18 = sadd.s32 %s11, 1
    %s19 = ssub.s32 %s11, %s18
    %p20 = scmp.eq.s32.totalorder %s19, 0
    %s22 = sadd.s32 %s21, 1
    %s23 = scalar_select %p20, %s21, %s22
    %p26 = pneg %p20
    %p27 = scmp.eq.s32.totalorder %s11, 1
    %p28 = por %p26, %p27
    %p29 = scmp.ne.s32.totalorder %s21, %s24
    %p30 = scmp.eq.s32.totalorder %s11, 0
    %p31 = por %p29, %p30
    %p32 = scmp.ne.s32.totalorder %s21, %s24
    %p33 = scmp.eq.s32.totalorder %s16, 1
    %p34 = por %p32, %p33
    %p35 = scmp.ne.s32.totalorder %s24, %s25
    %p36 = scmp.eq.s32.totalorder %s16, 0
    %p37 = por %p35, %p36
    %p38 = scmp.ne.s32.totalorder %s24, %s25
    %p39 = scmp.eq.s32.totalorder %s17, 1
    %p40 = por %p38, %p39
    %p42 = scmp.ne.s32.totalorder %s25, %s41
    %p43 = scmp.eq.s32.totalorder %s17, 0
    %p44 = por %p42, %p43
    %s46 = sadd.s32 %s45, 1
    %p49 = scmp.eq.s32.totalorder %s11, 1
    %p50 = scmp.ne.s32.totalorder %s45, %s47
    %p51 = scmp.eq.s32.totalorder %s11, 0
    %p52 = por %p50, %p51
    %p53 = scmp.ne.s32.totalorder %s45, %s47
    %p54 = scmp.eq.s32.totalorder %s16, 1
    %p55 = por %p53, %p54
    %p56 = scmp.ne.s32.totalorder %s47, %s48
    %p57 = scmp.eq.s32.totalorder %s16, 0
    %p58 = por %p56, %p57
    %p59 = scmp.ne.s32.totalorder %s47, %s48
    %p60 = scmp.eq.s32.totalorder %s17, 1
    %p61 = por %p59, %p60
    %p63 = scmp.ne.s32.totalorder %s48, %s62
    %p64 = scmp.eq.s32.totalorder %s17, 0
    %p65 = por %p63, %p64
    %s67 = sadd.s32 %s66, 1
    %p70 = scmp.eq.s32.totalorder %s11, 1
    %p71 = scmp.ne.s32.totalorder %s66, %s68
    %p72 = scmp.eq.s32.totalorder %s11, 0
    %p73 = por %p71, %p72
    %p74 = scmp.ne.s32.totalorder %s66, %s68
    %p75 = scmp.eq.s32.totalorder %s16, 1
    %p76 = por %p74, %p75
    %p77 = scmp.ne.s32.totalorder %s68, %s69
    %p78 = scmp.eq.s32.totalorder %s16, 0
    %p79 = por %p77, %p78
    %p80 = scmp.ne.s32.totalorder %s68, %s69
    %p81 = scmp.eq.s32.totalorder %s17, 1
    %p82 = por %p80, %p81
    %p84 = scmp.ne.s32.totalorder %s69, %s83
    %p85 = scmp.eq.s32.totalorder %s17, 0
    %p86 = por %p84, %p85
    %s87 = ssub.s32 %s11, %s18
    %p88 = scmp.eq.s32.totalorder %s87, 0
    %s90 = sadd.s32 %s89, 1
    %s91 = scalar_select %p88, %s89, %s90
    %p94 = pneg %p88
    %p95 = scmp.eq.s32.totalorder %s11, 1
    %p96 = por %p94, %p95
    %p97 = scmp.ne.s32.totalorder %s89, %s92
    %p98 = scmp.eq.s32.totalorder %s11, 0
    %p99 = por %p97, %p98
    %p100 = scmp.ne.s32.totalorder %s89, %s92
    %p101 = scmp.eq.s32.totalorder %s16, 1
    %p102 = por %p100, %p101
    %p103 = scmp.ne.s32.totalorder %s92, %s93
    %p104 = scmp.eq.s32.totalorder %s16, 0
    %p105 = por %p103, %p104
    %p106 = scmp.ne.s32.totalorder %s92, %s93
    %p107 = scmp.eq.s32.totalorder %s17, 1
    %p108 = por %p106, %p107
    %p110 = scmp.ne.s32.totalorder %s93, %s109
    %p111 = scmp.eq.s32.totalorder %s17, 0
    %p112 = por %p110, %p111
    %p113 = scmp.le.s32.totalorder 1, %s11
    %p114 = scmp.lt.s32.totalorder %s11, 3
    %p115 = pnand %p113, %p114
    %p116 = pneg %p115
    // Predicated region
    $region9: #{discriminator_forward.9} parent=5 // pred_check
      _
    $region10: #{discriminator_forward.9} parent=5 // pred_check_branch
      %118 = sbr.rel (%p115) target = $region12
    $region11: #{discriminator_forward.9} parent=5 // pred_region
      %s119 = ssub.s32 %s11, 1
      // Predicated region
      $region13: #{discriminator_forward.9} parent=11 // pred_check
        %p120 = pneg %p58
      $region14: #{discriminator_forward.9} parent=11 // pred_check_branch
        %122 = sbr.rel (%p120) target = $region16
      $region15: #{discriminator_forward.9} parent=11 // pred_region
        _
      $region16: #{discriminator_forward.9} parent=11 // pred_fallthru
        _
      // Predicated region
      $region17: #{discriminator_forward.9} parent=11 // pred_check
        %p123 = pneg %p79
      $region18: #{discriminator_forward.9} parent=11 // pred_check_branch
        %125 = sbr.rel (%p123) target = $region20
      $region19: #{discriminator_forward.9} parent=11 // pred_region
        _
      $region20: #{discriminator_forward.9} parent=11 // pred_fallthru
        _
    $region12: #{discriminator_forward.9} parent=5 // pred_fallthru
      _
    %p126 = scmp.lt.s32.totalorder %s11, 2
    // Predicated region
    $region21: #{discriminator_forward.9} parent=5 // pred_check
      %p127 = pneg %p126
    $region22: #{discriminator_forward.9} parent=5 // pred_check_branch
      %129 = sbr.rel (%p127) target = $region24
    $region23: #{discriminator_forward.9} parent=5 // pred_region
      // Predicated region
      $region25: #{discriminator_forward.9} parent=23 // pred_check
        %p130 = pneg %p31
      $region26: #{discriminator_forward.9} parent=23 // pred_check_branch
        %132 = sbr.rel (%p130) target = $region28
      $region27: #{discriminator_forward.9} parent=23 // pred_region
        %p133 = scmp.lt.s32.totalorder %s11, 1
        %s134 = scalar_select %p133, %s11, 1
        %s135 = smul.addr %s134, 4
        %s136 = smul.addr %s135, 4
        %s137 = scalar_lea.vmem %s0, %s136
      $region28: #{discriminator_forward.9} parent=23 // pred_fallthru
        _
    $region24: #{discriminator_forward.9} parent=5 // pred_fallthru
      _
    %p138 = scmp.le.s32.totalorder 1, %s11
    %p139 = scmp.lt.s32.totalorder %s11, 3
    %p140 = pnand %p138, %p139
    %p141 = pneg %p140
    // Predicated region
    $region29: #{discriminator_forward.9} parent=5 // pred_check
      _
    $region30: #{discriminator_forward.9} parent=5 // pred_check_branch
      %143 = sbr.rel (%p140) target = $region32
    $region31: #{discriminator_forward.9} parent=5 // pred_region
      %s144 = ssub.s32 %s11, 1
      %p145 = scmp.lt.s32.totalorder %s16, 1
      %s146 = scalar_select %p145, %s16, 1
      %s147 = smul.addr %s146, 4
      %s148 = smul.addr %s147, 4
      %s149 = scalar_lea.vmem %s0, %s148
      %p150 = pneg %p37
      %p151 = pneg %p34
      %p152 = pneg %p58
      %p153 = pneg %p55
      %p154 = pneg %p79
      %p155 = pneg %p76
      %p156 = pneg %p105
      %p157 = pneg %p102
      %p158 = scmp.lt.s32.totalorder %s16, 1
      %s159 = scalar_select %p158, %s16, 1
      %s160 = smul.addr %s159, 2
      %s161 = smul.addr %s160, 8
      %s162 = scalar_lea.vmem %s3, %s161
      %p163 = scmp.lt.s32.totalorder %s16, 1
      %s164 = scalar_select %p163, %s16, 1
      %s165 = smul.addr %s164, 4
      %s166 = smul.addr %s165, 4
      %s167 = scalar_lea.vmem %s0, %s166
      %p168 = scmp.lt.s32.totalorder %s16, 1
      %s169 = scalar_select %p168, %s16, 1
      %s170 = smul.addr %s169, 2
      %s171 = smul.addr %s170, 8
      %s172 = scalar_lea.vmem %s3, %s171
      %v174 = vld [vmem:[#allocation2] sm:$0x1]
      %v175 = vld [vmem:[%s167] sm:$0xf]
      %v176 = vld [vmem:[%s167 + $0x4] sm:$0x1]
      %v177 = vld [vmem:[%s1] sm:$0xf]
      %v178 = vld [vmem:[%s1 + $0x4] sm:$0xf]
      %v179 = vld [vmem:[%s1 + $0x8] sm:$0xf]
      %v180 = vld [vmem:[%s1 + $0xc] sm:$0xf]
      %v181 = vld [vmem:[%s1 + $0x10] sm:$0xf]
      %v182 = vld [vmem:[%s1 + $0x14] sm:$0xf]
      %v183 = vld [vmem:[%s1 + $0x18] sm:$0xf]
      %v184 = vld [vmem:[%s1 + $0x1c] sm:$0xf]
      %v185 = vld [vmem:[%s167 + $0x4] sm:$0x3]
      %s186 = scalar_lea.vmem %s1, 32
      %v187 = vld [vmem:[%s186] sm:$0xf]
      %v188 = vld [vmem:[%s186 + $0x4] sm:$0xf]
      %v189 = vld [vmem:[%s186 + $0x8] sm:$0xf]
      %v190 = vld [vmem:[%s186 + $0xc] sm:$0xf]
      %v191 = vld [vmem:[%s186 + $0x10] sm:$0xf]
      %v192 = vld [vmem:[%s186 + $0x14] sm:$0xf]
      %v193 = vld [vmem:[%s186 + $0x18] sm:$0xf]
      %v194 = vld [vmem:[%s186 + $0x1c] sm:$0xf]
      %v197 = vunpack.c.l.b16 %v175
      %v198 = vunpack.c.l.b16 %v185
      %v199 = vpack.c.b16 %v198, %v197
      %v201 = vshrl.u32 %v199, 16
      %v203 = vshll.u32 %v199, 16
      %v205 = vrot.slane %v203, 1
      %v206 = vor.u32 %v201, %v205
      %v215 = vunpack.c.l.b16 %v187
      %v216 = vunpack.c.l.b16 %v188
      %v217 = vunpack.c.l.b16 %v189
      %v218 = vunpack.c.l.b16 %v190
      %v219 = vunpack.c.l.b16 %v191
      %v220 = vunpack.c.l.b16 %v192
      %v221 = vunpack.c.l.b16 %v193
      %v222 = vunpack.c.l.b16 %v194
      %v223 = vpack.c.b16 %v216, %v215
      %v224 = vpack.c.b16 %v218, %v217
      %v225 = vpack.c.b16 %v220, %v219
      %v226 = vpack.c.b16 %v222, %v221
      %vm231 = vcmask 523264
      %v233 = vsel %vm231, %v206, 0
      %235 = vmatprep.subr.bf16.mxu0 0
      %236 = vmatpush1.bf16.msra.mxu0 %v223
      %237 = vmatprep.subr.bf16.mxu0 0
      %238 = vmatpush1.bf16.msra.mxu0 %v224
      %239 = vmatprep.subr.bf16.mxu0 0
      %240 = vmatpush1.bf16.msra.mxu0 %v225
      %241 = vmatprep.subr.bf16.mxu0 0
      %242 = vmatpush1.bf16.msra.mxu0 %v226
      %243 = vmatprep.subr.bf16.mxu0 0
      %244 = vmatpush1.bf16.msra.mxu0 0
      %245 = vmatprep.subr.bf16.mxu0 0
      %246 = vmatpush1.bf16.msra.mxu0 0
      %247 = vmatprep.subr.bf16.mxu0 0
      %248 = vmatpush1.bf16.msra.mxu0 0
      %249 = vmatprep.subr.bf16.mxu0 0
      %250 = vmatpush1.bf16.msra.mxu0 0
      %251 = vmatprep.subr.bf16.mxu0 0
      %252 = vmatpush1.bf16.msra.mxu0 0
      %253 = vmatprep.subr.bf16.mxu0 0
      %254 = vmatpush1.bf16.msra.mxu0 0
      %255 = vmatprep.subr.bf16.mxu0 0
      %256 = vmatpush1.bf16.msra.mxu0 0
      %257 = vmatprep.subr.bf16.mxu0 0
      %258 = vmatpush1.bf16.msra.mxu0 0
      %259 = vmatprep.subr.bf16.mxu0 0
      %260 = vmatpush1.bf16.msra.mxu0 0
      %261 = vmatprep.subr.bf16.mxu0 0
      %262 = vmatpush1.bf16.msra.mxu0 0
      %263 = vmatprep.subr.bf16.mxu0 0
      %264 = vmatpush1.bf16.msra.mxu0 0
      %265 = vmatprep.subr.bf16.mxu0 0
      %266 = vmatpush1.bf16.msra.mxu0 0
      %267 = vmatprep.mubr.bf16.mxu0 0
      %268 = vmatmul.mubr.bf16.gmra.mrb[0].mxu0 %v233
      %v269 = vpop.f32.mrb[0].mxu0
      %v270 = vadd.f32 0.0, %v269
      %v271 = vpop.f32.mrb[0].mxu0
      %v272 = vpop.f32.mrb[0].mxu0
      %v273 = vadd.f32 0.0, %v272
      %v274 = vpop.f32.mrb[0].mxu0
      %275 = vdwg.mxu0
      %v277 = vunpack.c.l.b16 %v176
      %v278 = vpack.c.b16 %v277, %v197
      %v287 = vunpack.c.l.b16 %v177
      %v288 = vunpack.c.l.b16 %v178
      %v289 = vunpack.c.l.b16 %v179
      %v290 = vunpack.c.l.b16 %v180
      %v291 = vunpack.c.l.b16 %v181
      %v292 = vunpack.c.l.b16 %v182
      %v293 = vunpack.c.l.b16 %v183
      %v294 = vunpack.c.l.b16 %v184
      %v295 = vpack.c.b16 %v288, %v287
      %v296 = vpack.c.b16 %v290, %v289
      %v297 = vpack.c.b16 %v292, %v291
      %v298 = vpack.c.b16 %v294, %v293
      %v304 = vsel %vm231, %v278, 0
      %306 = vmatprep.subr.bf16.mxu0 0
      %307 = vmatpush1.bf16.msra.mxu0 %v295
      %308 = vmatprep.subr.bf16.mxu0 0
      %309 = vmatpush1.bf16.msra.mxu0 %v296
      %310 = vmatprep.subr.bf16.mxu0 0
      %311 = vmatpush1.bf16.msra.mxu0 %v297
      %312 = vmatprep.subr.bf16.mxu0 0
      %313 = vmatpush1.bf16.msra.mxu0 %v298
      %314 = vmatprep.subr.bf16.mxu0 0
      %315 = vmatpush1.bf16.msra.mxu0 0
      %316 = vmatprep.subr.bf16.mxu0 0
      %317 = vmatpush1.bf16.msra.mxu0 0
      %318 = vmatprep.subr.bf16.mxu0 0
      %319 = vmatpush1.bf16.msra.mxu0 0
      %320 = vmatprep.subr.bf16.mxu0 0
      %321 = vmatpush1.bf16.msra.mxu0 0
      %322 = vmatprep.subr.bf16.mxu0 0
      %323 = vmatpush1.bf16.msra.mxu0 0
      %324 = vmatprep.subr.bf16.mxu0 0
      %325 = vmatpush1.bf16.msra.mxu0 0
      %326 = vmatprep.subr.bf16.mxu0 0
      %327 = vmatpush1.bf16.msra.mxu0 0
      %328 = vmatprep.subr.bf16.mxu0 0
      %329 = vmatpush1.bf16.msra.mxu0 0
      %330 = vmatprep.subr.bf16.mxu0 0
      %331 = vmatpush1.bf16.msra.mxu0 0
      %332 = vmatprep.subr.bf16.mxu0 0
      %333 = vmatpush1.bf16.msra.mxu0 0
      %334 = vmatprep.subr.bf16.mxu0 0
      %335 = vmatpush1.bf16.msra.mxu0 0
      %336 = vmatprep.subr.bf16.mxu0 0
      %337 = vmatpush1.bf16.msra.mxu0 0
      %338 = vmatprep.mubr.bf16.mxu0 0
      %339 = vmatmul.mubr.bf16.gmra.mrb[0].mxu0 %v304
      %v340 = vpop.f32.mrb[0].mxu0
      %v341 = vadd.f32 %v270, %v340
      %v342 = vpop.f32.mrb[0].mxu0
      %v343 = vpop.f32.mrb[0].mxu0
      %v344 = vadd.f32 %v273, %v343
      %v345 = vpop.f32.mrb[0].mxu0
      %346 = vdwg.mxu0
      %v347 = vld [vmem:[%s167] sm:$0xe]
      %s348 = scalar_lea.vmem %s1, 64
      %v349 = vld [vmem:[%s348] sm:$0xf]
      %v350 = vld [vmem:[%s348 + $0x4] sm:$0xf]
      %v351 = vld [vmem:[%s348 + $0x8] sm:$0xf]
      %v352 = vld [vmem:[%s348 + $0xc] sm:$0xf]
      %v353 = vld [vmem:[%s348 + $0x10] sm:$0xf]
      %v354 = vld [vmem:[%s348 + $0x14] sm:$0xf]
      %v355 = vld [vmem:[%s348 + $0x18] sm:$0xf]
      %v356 = vld [vmem:[%s348 + $0x1c] sm:$0xf]
      %v358 = vunpack.c.l.b16 %v347
      %v359 = vpack.c.b16 %v198, %v358
      %v360 = vrot.slane %v359, 1
      %v369 = vunpack.c.l.b16 %v349
      %v370 = vunpack.c.l.b16 %v350
      %v371 = vunpack.c.l.b16 %v351
      %v372 = vunpack.c.l.b16 %v352
      %v373 = vunpack.c.l.b16 %v353
      %v374 = vunpack.c.l.b16 %v354
      %v375 = vunpack.c.l.b16 %v355
      %v376 = vunpack.c.l.b16 %v356
      %v377 = vpack.c.b16 %v370, %v369
      %v378 = vpack.c.b16 %v372, %v371
      %v379 = vpack.c.b16 %v374, %v373
      %v380 = vpack.c.b16 %v376, %v375
      %v386 = vsel %vm231, %v360, 0
      %388 = vmatprep.subr.bf16.mxu0 0
      %389 = vmatpush1.bf16.msra.mxu0 %v377
      %390 = vmatprep.subr.bf16.mxu0 0
      %391 = vmatpush1.bf16.msra.mxu0 %v378
      %392 = vmatprep.subr.bf16.mxu0 0
      %393 = vmatpush1.bf16.msra.mxu0 %v379
      %394 = vmatprep.subr.bf16.mxu0 0
      %395 = vmatpush1.bf16.msra.mxu0 %v380
      %396 = vmatprep.subr.bf16.mxu0 0
      %397 = vmatpush1.bf16.msra.mxu0 0
      %398 = vmatprep.subr.bf16.mxu0 0
      %399 = vmatpush1.bf16.msra.mxu0 0
      %400 = vmatprep.subr.bf16.mxu0 0
      %401 = vmatpush1.bf16.msra.mxu0 0
      %402 = vmatprep.subr.bf16.mxu0 0
      %403 = vmatpush1.bf16.msra.mxu0 0
      %404 = vmatprep.subr.bf16.mxu0 0
      %405 = vmatpush1.bf16.msra.mxu0 0
      %406 = vmatprep.subr.bf16.mxu0 0
      %407 = vmatpush1.bf16.msra.mxu0 0
      %408 = vmatprep.subr.bf16.mxu0 0
      %409 = vmatpush1.bf16.msra.mxu0 0
      %410 = vmatprep.subr.bf16.mxu0 0
      %411 = vmatpush1.bf16.msra.mxu0 0
      %412 = vmatprep.subr.bf16.mxu0 0
      %413 = vmatpush1.bf16.msra.mxu0 0
      %414 = vmatprep.subr.bf16.mxu0 0
      %415 = vmatpush1.bf16.msra.mxu0 0
      %416 = vmatprep.subr.bf16.mxu0 0
      %417 = vmatpush1.bf16.msra.mxu0 0
      %418 = vmatprep.subr.bf16.mxu0 0
      %419 = vmatpush1.bf16.msra.mxu0 0
      %420 = vmatprep.mubr.bf16.mxu0 0
      %421 = vmatmul.mubr.bf16.gmra.mrb[0].mxu0 %v386
      %v422 = vpop.f32.mrb[0].mxu0
      %v423 = vadd.f32 0.0, %v422
      %v424 = vpop.f32.mrb[0].mxu0
      %v425 = vpop.f32.mrb[0].mxu0
      %v426 = vadd.f32 0.0, %v425
      %v427 = vpop.f32.mrb[0].mxu0
      %428 = vdwg.mxu0
      %v429 = vadd.f32 %v341, %v423
      %v430 = vadd.f32 %v344, %v426
      %v431 = vld [vmem:[%s167 + $0x4] sm:$0x7]
      %s432 = scalar_lea.vmem %s1, 96
      %v433 = vld [vmem:[%s432] sm:$0xf]
      %v434 = vld [vmem:[%s432 + $0x4] sm:$0xf]
      %v435 = vld [vmem:[%s432 + $0x8] sm:$0xf]
      %v436 = vld [vmem:[%s432 + $0xc] sm:$0xf]
      %v437 = vld [vmem:[%s432 + $0x10] sm:$0xf]
      %v438 = vld [vmem:[%s432 + $0x14] sm:$0xf]
      %v439 = vld [vmem:[%s432 + $0x18] sm:$0xf]
      %v440 = vld [vmem:[%s432 + $0x1c] sm:$0xf]
      %v442 = vunpack.c.l.b16 %v431
      %v443 = vpack.c.b16 %v442, %v358
      %v445 = vshrl.u32 %v443, 16
      %v447 = vrot.slane %v445, 1
      %v448 = vshll.u32 %v443, 16
      %v450 = vrot.slane %v448, 2
      %v451 = vor.u32 %v447, %v450
      %v460 = vunpack.c.l.b16 %v433
      %v461 = vunpack.c.l.b16 %v434
      %v462 = vunpack.c.l.b16 %v435
      %v463 = vunpack.c.l.b16 %v436
      %v464 = vunpack.c.l.b16 %v437
      %v465 = vunpack.c.l.b16 %v438
      %v466 = vunpack.c.l.b16 %v439
      %v467 = vunpack.c.l.b16 %v440
      %v468 = vpack.c.b16 %v461, %v460
      %v469 = vpack.c.b16 %v463, %v462
      %v470 = vpack.c.b16 %v465, %v464
      %v471 = vpack.c.b16 %v467, %v466
      %v477 = vsel %vm231, %v451, 0
      %479 = vmatprep.subr.bf16.mxu0 0
      %480 = vmatpush1.bf16.msra.mxu0 %v468
      %481 = vmatprep.subr.bf16.mxu0 0
      %482 = vmatpush1.bf16.msra.mxu0 %v469
      %483 = vmatprep.subr.bf16.mxu0 0
      %484 = vmatpush1.bf16.msra.mxu0 %v470
      %485 = vmatprep.subr.bf16.mxu0 0
      %486 = vmatpush1.bf16.msra.mxu0 %v471
      %487 = vmatprep.subr.bf16.mxu0 0
      %488 = vmatpush1.bf16.msra.mxu0 0
      %489 = vmatprep.subr.bf16.mxu0 0
      %490 = vmatpush1.bf16.msra.mxu0 0
      %491 = vmatprep.subr.bf16.mxu0 0
      %492 = vmatpush1.bf16.msra.mxu0 0
      %493 = vmatprep.subr.bf16.mxu0 0
      %494 = vmatpush1.bf16.msra.mxu0 0
      %495 = vmatprep.subr.bf16.mxu0 0
      %496 = vmatpush1.bf16.msra.mxu0 0
      %497 = vmatprep.subr.bf16.mxu0 0
      %498 = vmatpush1.bf16.msra.mxu0 0
      %499 = vmatprep.subr.bf16.mxu0 0
      %500 = vmatpush1.bf16.msra.mxu0 0
      %501 = vmatprep.subr.bf16.mxu0 0
      %502 = vmatpush1.bf16.msra.mxu0 0
      %503 = vmatprep.subr.bf16.mxu0 0
      %504 = vmatpush1.bf16.msra.mxu0 0
      %505 = vmatprep.subr.bf16.mxu0 0
      %506 = vmatpush1.bf16.msra.mxu0 0
      %507 = vmatprep.subr.bf16.mxu0 0
      %508 = vmatpush1.bf16.msra.mxu0 0
      %509 = vmatprep.subr.bf16.mxu0 0
      %510 = vmatpush1.bf16.msra.mxu0 0
      %511 = vmatprep.mubr.bf16.mxu0 0
      %512 = vmatmul.mubr.bf16.gmra.mrb[0].mxu0 %v477
      %v513 = vpop.f32.mrb[0].mxu0
      %v514 = vadd.f32 0.0, %v513
      %v515 = vpop.f32.mrb[0].mxu0
      %v516 = vpop.f32.mrb[0].mxu0
      %v517 = vadd.f32 0.0, %v516
      %v518 = vpop.f32.mrb[0].mxu0
      %519 = vdwg.mxu0
      %v520 = vadd.f32 %v429, %v514
      %v521 = vadd.f32 %v430, %v517
      %v522 = vld [vmem:[%s167] sm:$0xc]
      %v523 = vld [vmem:[%s167 + $0x4] sm:$0xf]
      %s524 = scalar_lea.vmem %s1, 128
      %v525 = vld [vmem:[%s524] sm:$0xf]
      %v526 = vld [vmem:[%s524 + $0x4] sm:$0xf]
      %v527 = vld [vmem:[%s524 + $0x8] sm:$0xf]
      %v528 = vld [vmem:[%s524 + $0xc] sm:$0xf]
      %v529 = vld [vmem:[%s524 + $0x10] sm:$0xf]
      %v530 = vld [vmem:[%s524 + $0x14] sm:$0xf]
      %v531 = vld [vmem:[%s524 + $0x18] sm:$0xf]
      %v532 = vld [vmem:[%s524 + $0x1c] sm:$0xf]
      %v535 = vunpack.c.l.b16 %v522
      %v536 = vunpack.c.l.b16 %v523
      %v537 = vpack.c.b16 %v536, %v535
      %v539 = vshrl.u32 %v537, 16
      %v541 = vrot.slane %v539, 2
      %v542 = vshll.u32 %v537, 16
      %v544 = vrot.slane %v542, 3
      %v545 = vor.u32 %v541, %v544
      %v554 = vunpack.c.l.b16 %v525
      %v555 = vunpack.c.l.b16 %v526
      %v556 = vunpack.c.l.b16 %v527
      %v557 = vunpack.c.l.b16 %v528
      %v558 = vunpack.c.l.b16 %v529
      %v559 = vunpack.c.l.b16 %v530
      %v560 = vunpack.c.l.b16 %v531
      %v561 = vunpack.c.l.b16 %v532
      %v562 = vpack.c.b16 %v555, %v554
      %v563 = vpack.c.b16 %v557, %v556
      %v564 = vpack.c.b16 %v559, %v558
      %v565 = vpack.c.b16 %v561, %v560
      %v571 = vsel %vm231, %v545, 0
      %573 = vmatprep.subr.bf16.mxu0 0
      %574 = vmatpush1.bf16.msra.mxu0 %v562
      %575 = vmatprep.subr.bf16.mxu0 0
      %576 = vmatpush1.bf16.msra.mxu0 %v563
      %577 = vmatprep.subr.bf16.mxu0 0
      %578 = vmatpush1.bf16.msra.mxu0 %v564
      %579 = vmatprep.subr.bf16.mxu0 0
      %580 = vmatpush1.bf16.msra.mxu0 %v565
      %581 = vmatprep.subr.bf16.mxu0 0
      %582 = vmatpush1.bf16.msra.mxu0 0
      %583 = vmatprep.subr.bf16.mxu0 0
      %584 = vmatpush1.bf16.msra.mxu0 0
      %585 = vmatprep.subr.bf16.mxu0 0
      %586 = vmatpush1.bf16.msra.mxu0 0
      %587 = vmatprep.subr.bf16.mxu0 0
      %588 = vmatpush1.bf16.msra.mxu0 0
      %589 = vmatprep.subr.bf16.mxu0 0
      %590 = vmatpush1.bf16.msra.mxu0 0
      %591 = vmatprep.subr.bf16.mxu0 0
      %592 = vmatpush1.bf16.msra.mxu0 0
      %593 = vmatprep.subr.bf16.mxu0 0
      %594 = vmatpush1.bf16.msra.mxu0 0
      %595 = vmatprep.subr.bf16.mxu0 0
      %596 = vmatpush1.bf16.msra.mxu0 0
      %597 = vmatprep.subr.bf16.mxu0 0
      %598 = vmatpush1.bf16.msra.mxu0 0
      %599 = vmatprep.subr.bf16.mxu0 0
      %600 = vmatpush1.bf16.msra.mxu0 0
      %601 = vmatprep.subr.bf16.mxu0 0
      %602 = vmatpush1.bf16.msra.mxu0 0
      %603 = vmatprep.subr.bf16.mxu0 0
      %604 = vmatpush1.bf16.msra.mxu0 0
      %605 = vmatprep.mubr.bf16.mxu0 0
      %606 = vmatmul.mubr.bf16.gmra.mrb[0].mxu0 %v571
      %v607 = vpop.f32.mrb[0].mxu0
      %v608 = vadd.f32 0.0, %v607
      %v609 = vpop.f32.mrb[0].mxu0
      %v610 = vpop.f32.mrb[0].mxu0
      %v611 = vadd.f32 0.0, %v610
      %v612 = vpop.f32.mrb[0].mxu0
      %613 = vdwg.mxu0
      %v614 = vadd.f32 %v520, %v608
      %v615 = vadd.f32 %v521, %v611
      %v616 = vld [vmem:[%s167] sm:$0x8]
      %s617 = scalar_lea.vmem %s1, 160
      %v618 = vld [vmem:[%s617] sm:$0xf]
      %v619 = vld [vmem:[%s617 + $0x4] sm:$0xf]
      %v620 = vld [vmem:[%s617 + $0x8] sm:$0xf]
      %v621 = vld [vmem:[%s617 + $0xc] sm:$0xf]
      %v622 = vld [vmem:[%s617 + $0x10] sm:$0xf]
      %v623 = vld [vmem:[%s617 + $0x14] sm:$0xf]
      %v624 = vld [vmem:[%s617 + $0x18] sm:$0xf]
      %v625 = vld [vmem:[%s617 + $0x1c] sm:$0xf]
      %v627 = vunpack.c.l.b16 %v616
      %v628 = vpack.c.b16 %v536, %v627
      %v629 = vrot.slane %v628, 3
      %v638 = vunpack.c.l.b16 %v618
      %v639 = vunpack.c.l.b16 %v619
      %v640 = vunpack.c.l.b16 %v620
      %v641 = vunpack.c.l.b16 %v621
      %v642 = vunpack.c.l.b16 %v622
      %v643 = vunpack.c.l.b16 %v623
      %v644 = vunpack.c.l.b16 %v624
      %v645 = vunpack.c.l.b16 %v625
      %v646 = vpack.c.b16 %v639, %v638
      %v647 = vpack.c.b16 %v641, %v640
      %v648 = vpack.c.b16 %v643, %v642
      %v649 = vpack.c.b16 %v645, %v644
      %v655 = vsel %vm231, %v629, 0
      %657 = vmatprep.subr.bf16.mxu0 0
      %658 = vmatpush1.bf16.msra.mxu0 %v646
      %659 = vmatprep.subr.bf16.mxu0 0
      %660 = vmatpush1.bf16.msra.mxu0 %v647
      %661 = vmatprep.subr.bf16.mxu0 0
      %662 = vmatpush1.bf16.msra.mxu0 %v648
      %663 = vmatprep.subr.bf16.mxu0 0
      %664 = vmatpush1.bf16.msra.mxu0 %v649
      %665 = vmatprep.subr.bf16.mxu0 0
      %666 = vmatpush1.bf16.msra.mxu0 0
      %667 = vmatprep.subr.bf16.mxu0 0
      %668 = vmatpush1.bf16.msra.mxu0 0
      %669 = vmatprep.subr.bf16.mxu0 0
      %670 = vmatpush1.bf16.msra.mxu0 0
      %671 = vmatprep.subr.bf16.mxu0 0
      %672 = vmatpush1.bf16.msra.mxu0 0
      %673 = vmatprep.subr.bf16.mxu0 0
      %674 = vmatpush1.bf16.msra.mxu0 0
      %675 = vmatprep.subr.bf16.mxu0 0
      %676 = vmatpush1.bf16.msra.mxu0 0
      %677 = vmatprep.subr.bf16.mxu0 0
      %678 = vmatpush1.bf16.msra.mxu0 0
      %679 = vmatprep.subr.bf16.mxu0 0
      %680 = vmatpush1.bf16.msra.mxu0 0
      %681 = vmatprep.subr.bf16.mxu0 0
      %682 = vmatpush1.bf16.msra.mxu0 0
      %683 = vmatprep.subr.bf16.mxu0 0
      %684 = vmatpush1.bf16.msra.mxu0 0
      %685 = vmatprep.subr.bf16.mxu0 0
      %686 = vmatpush1.bf16.msra.mxu0 0
      %687 = vmatprep.subr.bf16.mxu0 0
      %688 = vmatpush1.bf16.msra.mxu0 0
      %689 = vmatprep.mubr.bf16.mxu0 0
      %690 = vmatmul.mubr.bf16.gmra.mrb[0].mxu0 %v655
      %v691 = vpop.f32.mrb[0].mxu0
      %v692 = vadd.f32 0.0, %v691
      %v693 = vpop.f32.mrb[0].mxu0
      %v694 = vpop.f32.mrb[0].mxu0
      %v695 = vadd.f32 0.0, %v694
      %v696 = vpop.f32.mrb[0].mxu0
      %697 = vdwg.mxu0
      %v698 = vadd.f32 %v614, %v692
      %v699 = vadd.f32 %v615, %v695
      %v700 = vld [vmem:[%s167] sm:$0x8]
      %v701 = vld [vmem:[%s167 + $0x4] sm:$0xf]
      %v702 = vld [vmem:[%s167 + $0x8] sm:$0x1]
      %s703 = scalar_lea.vmem %s1, 192
      %v704 = vld [vmem:[%s703] sm:$0xf]
      %v705 = vld [vmem:[%s703 + $0x4] sm:$0xf]
      %v706 = vld [vmem:[%s703 + $0x8] sm:$0xf]
      %v707 = vld [vmem:[%s703 + $0xc] sm:$0xf]
      %v708 = vld [vmem:[%s703 + $0x10] sm:$0xf]
      %v709 = vld [vmem:[%s703 + $0x14] sm:$0xf]
      %v710 = vld [vmem:[%s703 + $0x18] sm:$0xf]
      %v711 = vld [vmem:[%s703 + $0x1c] sm:$0xf]
      %v715 = vunpack.c.l.b16 %v700
      %v716 = vunpack.c.l.b16 %v701
      %v717 = vunpack.c.l.b16 %v702
      %v718 = vpack.c.b16 %v716, %v715
      %v719 = vpack.c.b16 %v717, %v717
      %vm720 = vsmask.f32 4352
      %v722 = vshrl.u32 %v718, 16
      %v724 = vrot.slane %v722, 3
      %v725 = vshll.u32 %v718, 16
      %v727 = vrot.slane %v725, 4
      %v728 = vor.u32 %v724, %v727
      %v730 = vshll.u32 %v719, 16
      %v732 = vrot.slane %v730, 4
      %v733 = vsel %vm720, %v728, %v732
      %v742 = vunpack.c.l.b16 %v704
      %v743 = vunpack.c.l.b16 %v705
      %v744 = vunpack.c.l.b16 %v706
      %v745 = vunpack.c.l.b16 %v707
      %v746 = vunpack.c.l.b16 %v708
      %v747 = vunpack.c.l.b16 %v709
      %v748 = vunpack.c.l.b16 %v710
      %v749 = vunpack.c.l.b16 %v711
      %v750 = vpack.c.b16 %v743, %v742
      %v751 = vpack.c.b16 %v745, %v744
      %v752 = vpack.c.b16 %v747, %v746
      %v753 = vpack.c.b16 %v749, %v748
      %v759 = vsel %vm231, %v733, 0
      %761 = vmatprep.subr.bf16.mxu0 0
      %762 = vmatpush1.bf16.msra.mxu0 %v750
      %763 = vmatprep.subr.bf16.mxu0 0
      %764 = vmatpush1.bf16.msra.mxu0 %v751
      %765 = vmatprep.subr.bf16.mxu0 0
      %766 = vmatpush1.bf16.msra.mxu0 %v752
      %767 = vmatprep.subr.bf16.mxu0 0
      %768 = vmatpush1.bf16.msra.mxu0 %v753
      %769 = vmatprep.subr.bf16.mxu0 0
      %770 = vmatpush1.bf16.msra.mxu0 0
      %771 = vmatprep.subr.bf16.mxu0 0
      %772 = vmatpush1.bf16.msra.mxu0 0
      %773 = vmatprep.subr.bf16.mxu0 0
      %774 = vmatpush1.bf16.msra.mxu0 0
      %775 = vmatprep.subr.bf16.mxu0 0
      %776 = vmatpush1.bf16.msra.mxu0 0
      %777 = vmatprep.subr.bf16.mxu0 0
      %778 = vmatpush1.bf16.msra.mxu0 0
      %779 = vmatprep.subr.bf16.mxu0 0
      %780 = vmatpush1.bf16.msra.mxu0 0
      %781 = vmatprep.subr.bf16.mxu0 0
      %782 = vmatpush1.bf16.msra.mxu0 0
      %783 = vmatprep.subr.bf16.mxu0 0
      %784 = vmatpush1.bf16.msra.mxu0 0
      %785 = vmatprep.subr.bf16.mxu0 0
      %786 = vmatpush1.bf16.msra.mxu0 0
      %787 = vmatprep.subr.bf16.mxu0 0
      %788 = vmatpush1.bf16.msra.mxu0 0
      %789 = vmatprep.subr.bf16.mxu0 0
      %790 = vmatpush1.bf16.msra.mxu0 0
      %791 = vmatprep.subr.bf16.mxu0 0
      %792 = vmatpush1.bf16.msra.mxu0 0
      %793 = vmatprep.mubr.bf16.mxu0 0
      %794 = vmatmul.mubr.bf16.gmra.mrb[0].mxu0 %v759
      %v795 = vpop.f32.mrb[0].mxu0
      %v796 = vadd.f32 0.0, %v795
      %v797 = vpop.f32.mrb[0].mxu0
      %v798 = vpop.f32.mrb[0].mxu0
      %v799 = vadd.f32 0.0, %v798
      %v800 = vpop.f32.mrb[0].mxu0
      %801 = vdwg.mxu0
      %v802 = vadd.f32 %v698, %v796
      %v803 = vadd.f32 %v699, %v799
      %s804 = scalar_lea.vmem %s1, 224
      %v805 = vld [vmem:[%s804] sm:$0xf]
      %v806 = vld [vmem:[%s804 + $0x4] sm:$0xf]
      %v807 = vld [vmem:[%s804 + $0x8] sm:$0xf]
      %v808 = vld [vmem:[%s804 + $0xc] sm:$0xf]
      %v809 = vld [vmem:[%s804 + $0x10] sm:$0xf]
      %v810 = vld [vmem:[%s804 + $0x14] sm:$0xf]
      %v811 = vld [vmem:[%s804 + $0x18] sm:$0xf]
      %v812 = vld [vmem:[%s804 + $0x1c] sm:$0xf]
      %v813 = vpack.c.b16 %v717, %v716
      %v822 = vunpack.c.l.b16 %v805
      %v823 = vunpack.c.l.b16 %v806
      %v824 = vunpack.c.l.b16 %v807
      %v825 = vunpack.c.l.b16 %v808
      %v826 = vunpack.c.l.b16 %v809
      %v827 = vunpack.c.l.b16 %v810
      %v828 = vunpack.c.l.b16 %v811
      %v829 = vunpack.c.l.b16 %v812
      %v830 = vpack.c.b16 %v823, %v822
      %v831 = vpack.c.b16 %v825, %v824
      %v832 = vpack.c.b16 %v827, %v826
      %v833 = vpack.c.b16 %v829, %v828
      %v839 = vsel %vm231, %v813, 0
      %841 = vmatprep.subr.bf16.mxu0 0
      %842 = vmatpush1.bf16.msra.mxu0 %v830
      %843 = vmatprep.subr.bf16.mxu0 0
      %844 = vmatpush1.bf16.msra.mxu0 %v831
      %845 = vmatprep.subr.bf16.mxu0 0
      %846 = vmatpush1.bf16.msra.mxu0 %v832
      %847 = vmatprep.subr.bf16.mxu0 0
      %848 = vmatpush1.bf16.msra.mxu0 %v833
      %849 = vmatprep.subr.bf16.mxu0 0
      %850 = vmatpush1.bf16.msra.mxu0 0
      %851 = vmatprep.subr.bf16.mxu0 0
      %852 = vmatpush1.bf16.msra.mxu0 0
      %853 = vmatprep.subr.bf16.mxu0 0
      %854 = vmatpush1.bf16.msra.mxu0 0
      %855 = vmatprep.subr.bf16.mxu0 0
      %856 = vmatpush1.bf16.msra.mxu0 0
      %857 = vmatprep.subr.bf16.mxu0 0
      %858 = vmatpush1.bf16.msra.mxu0 0
      %859 = vmatprep.subr.bf16.mxu0 0
      %860 = vmatpush1.bf16.msra.mxu0 0
      %861 = vmatprep.subr.bf16.mxu0 0
      %862 = vmatpush1.bf16.msra.mxu0 0
      %863 = vmatprep.subr.bf16.mxu0 0
      %864 = vmatpush1.bf16.msra.mxu0 0
      %865 = vmatprep.subr.bf16.mxu0 0
      %866 = vmatpush1.bf16.msra.mxu0 0
      %867 = vmatprep.subr.bf16.mxu0 0
      %868 = vmatpush1.bf16.msra.mxu0 0
      %869 = vmatprep.subr.bf16.mxu0 0
      %870 = vmatpush1.bf16.msra.mxu0 0
      %871 = vmatprep.subr.bf16.mxu0 0
      %872 = vmatpush1.bf16.msra.mxu0 0
      %873 = vmatprep.mubr.bf16.mxu0 0
      %874 = vmatmul.mubr.bf16.gmra.mrb[0].mxu0 %v839
      %v875 = vpop.f32.mrb[0].mxu0
      %v876 = vadd.f32 0.0, %v875
      %v877 = vpop.f32.mrb[0].mxu0
      %v878 = vpop.f32.mrb[0].mxu0
      %v879 = vadd.f32 0.0, %v878
      %v880 = vpop.f32.mrb[0].mxu0
      %881 = vdwg.mxu0
      %v882 = vadd.f32 %v802, %v876
      %v883 = vadd.f32 %v803, %v879
      %v884 = vld [vmem:[%s167 + $0x4] sm:$0xe]
      %v885 = vld [vmem:[%s167 + $0x8] sm:$0x3]
      %s886 = scalar_lea.vmem %s1, 256
      %v887 = vld [vmem:[%s886] sm:$0xf]
      %v888 = vld [vmem:[%s886 + $0x4] sm:$0xf]
      %v889 = vld [vmem:[%s886 + $0x8] sm:$0xf]
      %v890 = vld [vmem:[%s886 + $0xc] sm:$0xf]
      %v891 = vld [vmem:[%s886 + $0x10] sm:$0xf]
      %v892 = vld [vmem:[%s886 + $0x14] sm:$0xf]
      %v893 = vld [vmem:[%s886 + $0x18] sm:$0xf]
      %v894 = vld [vmem:[%s886 + $0x1c] sm:$0xf]
      %v897 = vunpack.c.l.b16 %v884
      %v898 = vunpack.c.l.b16 %v885
      %v899 = vpack.c.b16 %v898, %v897
      %v900 = vrot.slane %v899, 1
      %v909 = vunpack.c.l.b16 %v887
      %v910 = vunpack.c.l.b16 %v888
      %v911 = vunpack.c.l.b16 %v889
      %v912 = vunpack.c.l.b16 %v890
      %v913 = vunpack.c.l.b16 %v891
      %v914 = vunpack.c.l.b16 %v892
      %v915 = vunpack.c.l.b16 %v893
      %v916 = vunpack.c.l.b16 %v894
      %v917 = vpack.c.b16 %v910, %v909
      %v918 = vpack.c.b16 %v912, %v911
      %v919 = vpack.c.b16 %v914, %v913
      %v920 = vpack.c.b16 %v916, %v915
      %v926 = vsel %vm231, %v900, 0
      %928 = vmatprep.subr.bf16.mxu0 0
      %929 = vmatpush1.bf16.msra.mxu0 %v917
      %930 = vmatprep.subr.bf16.mxu0 0
      %931 = vmatpush1.bf16.msra.mxu0 %v918
      %932 = vmatprep.subr.bf16.mxu0 0
      %933 = vmatpush1.bf16.msra.mxu0 %v919
      %934 = vmatprep.subr.bf16.mxu0 0
      %935 = vmatpush1.bf16.msra.mxu0 %v920
      %936 = vmatprep.subr.bf16.mxu0 0
      %937 = vmatpush1.bf16.msra.mxu0 0
      %938 = vmatprep.subr.bf16.mxu0 0
      %939 = vmatpush1.bf16.msra.mxu0 0
      %940 = vmatprep.subr.bf16.mxu0 0
      %941 = vmatpush1.bf16.msra.mxu0 0
      %942 = vmatprep.subr.bf16.mxu0 0
      %943 = vmatpush1.bf16.msra.mxu0 0
      %944 = vmatprep.subr.bf16.mxu0 0
      %945 = vmatpush1.bf16.msra.mxu0 0
      %946 = vmatprep.subr.bf16.mxu0 0
      %947 = vmatpush1.bf16.msra.mxu0 0
      %948 = vmatprep.subr.bf16.mxu0 0
      %949 = vmatpush1.bf16.msra.mxu0 0
      %950 = vmatprep.subr.bf16.mxu0 0
      %951 = vmatpush1.bf16.msra.mxu0 0
      %952 = vmatprep.subr.bf16.mxu0 0
      %953 = vmatpush1.bf16.msra.mxu0 0
      %954 = vmatprep.subr.bf16.mxu0 0
      %955 = vmatpush1.bf16.msra.mxu0 0
      %956 = vmatprep.subr.bf16.mxu0 0
      %957 = vmatpush1.bf16.msra.mxu0 0
      %958 = vmatprep.subr.bf16.mxu0 0
      %959 = vmatpush1.bf16.msra.mxu0 0
      %960 = vmatprep.mubr.bf16.mxu0 0
      %961 = vmatmul.mubr.bf16.gmra.mrb[0].mxu0 %v926
      %v962 = vpop.f32.mrb[0].mxu0
      %v963 = vadd.f32 0.0, %v962
      %v964 = vpop.f32.mrb[0].mxu0
      %v965 = vpop.f32.mrb[0].mxu0
      %v966 = vadd.f32 0.0, %v965
      %v967 = vpop.f32.mrb[0].mxu0
      %968 = vdwg.mxu0
      %v969 = vadd.f32 %v882, %v963
      %v970 = vadd.f32 %v883, %v966
      %v971 = vld [vmem:[%s167 + $0x8] sm:$0x7]
      %s972 = scalar_lea.vmem %s1, 288
      %v973 = vld [vmem:[%s972] sm:$0xf]
      %v974 = vld [vmem:[%s972 + $0x4] sm:$0xf]
      %v975 = vld [vmem:[%s972 + $0x8] sm:$0xf]
      %v976 = vld [vmem:[%s972 + $0xc] sm:$0xf]
      %v977 = vld [vmem:[%s972 + $0x10] sm:$0xf]
      %v978 = vld [vmem:[%s972 + $0x14] sm:$0xf]
      %v979 = vld [vmem:[%s972 + $0x18] sm:$0xf]
      %v980 = vld [vmem:[%s972 + $0x1c] sm:$0xf]
      %v982 = vunpack.c.l.b16 %v971
      %v983 = vpack.c.b16 %v982, %v897
      %v985 = vshrl.u32 %v983, 16
      %v987 = vrot.slane %v985, 1
      %v988 = vshll.u32 %v983, 16
      %v990 = vrot.slane %v988, 2
      %v991 = vor.u32 %v987, %v990
      %v1000 = vunpack.c.l.b16 %v973
      %v1001 = vunpack.c.l.b16 %v974
      %v1002 = vunpack.c.l.b16 %v975
      %v1003 = vunpack.c.l.b16 %v976
      %v1004 = vunpack.c.l.b16 %v977
      %v1005 = vunpack.c.l.b16 %v978
      %v1006 = vunpack.c.l.b16 %v979
      %v1007 = vunpack.c.l.b16 %v980
      %v1008 = vpack.c.b16 %v1001, %v1000
      %v1009 = vpack.c.b16 %v1003, %v1002
      %v1010 = vpack.c.b16 %v1005, %v1004
      %v1011 = vpack.c.b16 %v1007, %v1006
      %v1017 = vsel %vm231, %v991, 0
      %1019 = vmatprep.subr.bf16.mxu0 0
      %1020 = vmatpush1.bf16.msra.mxu0 %v1008
      %1021 = vmatprep.subr.bf16.mxu0 0
      %1022 = vmatpush1.bf16.msra.mxu0 %v1009
      %1023 = vmatprep.subr.bf16.mxu0 0
      %1024 = vmatpush1.bf16.msra.mxu0 %v1010
      %1025 = vmatprep.subr.bf16.mxu0 0
      %1026 = vmatpush1.bf16.msra.mxu0 %v1011
      %1027 = vmatprep.subr.bf16.mxu0 0
      %1028 = vmatpush1.bf16.msra.mxu0 0
      %1029 = vmatprep.subr.bf16.mxu0 0
      %1030 = vmatpush1.bf16.msra.mxu0 0
      %1031 = vmatprep.subr.bf16.mxu0 0
      %1032 = vmatpush1.bf16.msra.mxu0 0
      %1033 = vmatprep.subr.bf16.mxu0 0
      %1034 = vmatpush1.bf16.msra.mxu0 0
      %1035 = vmatprep.subr.bf16.mxu0 0
      %1036 = vmatpush1.bf16.msra.mxu0 0
      %1037 = vmatprep.subr.bf16.mxu0 0
      %1038 = vmatpush1.bf16.msra.mxu0 0
      %1039 = vmatprep.subr.bf16.mxu0 0
      %1040 = vmatpush1.bf16.msra.mxu0 0
      %1041 = vmatprep.subr.bf16.mxu0 0
      %1042 = vmatpush1.bf16.msra.mxu0 0
      %1043 = vmatprep.subr.bf16.mxu0 0
      %1044 = vmatpush1.bf16.msra.mxu0 0
      %1045 = vmatprep.subr.bf16.mxu0 0
      %1046 = vmatpush1.bf16.msra.mxu0 0
      %1047 = vmatprep.subr.bf16.mxu0 0
      %1048 = vmatpush1.bf16.msra.mxu0 0
      %1049 = vmatprep.subr.bf16.mxu0 0
      %1050 = vmatpush1.bf16.msra.mxu0 0
      %1051 = vmatprep.mubr.bf16.mxu0 0
      %1052 = vmatmul.mubr.bf16.gmra.mrb[0].mxu0 %v1017
      %v1053 = vpop.f32.mrb[0].mxu0
      %v1054 = vadd.f32 0.0, %v1053
      %v1055 = vpop.f32.mrb[0].mxu0
      %v1056 = vpop.f32.mrb[0].mxu0
      %v1057 = vadd.f32 0.0, %v1056
      %v1058 = vpop.f32.mrb[0].mxu0
      %1059 = vdwg.mxu0
      %v1060 = vadd.f32 %v969, %v1054
      %v1061 = vadd.f32 %v970, %v1057
      %v1062 = vld [vmem:[%s167 + $0x4] sm:$0xc]
      %s1063 = scalar_lea.vmem %s1, 320
      %v1064 = vld [vmem:[%s1063] sm:$0xf]
      %v1065 = vld [vmem:[%s1063 + $0x4] sm:$0xf]
      %v1066 = vld [vmem:[%s1063 + $0x8] sm:$0xf]
      %v1067 = vld [vmem:[%s1063 + $0xc] sm:$0xf]
      %v1068 = vld [vmem:[%s1063 + $0x10] sm:$0xf]
      %v1069 = vld [vmem:[%s1063 + $0x14] sm:$0xf]
      %v1070 = vld [vmem:[%s1063 + $0x18] sm:$0xf]
      %v1071 = vld [vmem:[%s1063 + $0x1c] sm:$0xf]
      %v1073 = vunpack.c.l.b16 %v1062
      %v1074 = vpack.c.b16 %v982, %v1073
      %v1075 = vrot.slane %v1074, 2
      %v1084 = vunpack.c.l.b16 %v1064
      %v1085 = vunpack.c.l.b16 %v1065
      %v1086 = vunpack.c.l.b16 %v1066
      %v1087 = vunpack.c.l.b16 %v1067
      %v1088 = vunpack.c.l.b16 %v1068
      %v1089 = vunpack.c.l.b16 %v1069
      %v1090 = vunpack.c.l.b16 %v1070
      %v1091 = vunpack.c.l.b16 %v1071
      %v1092 = vpack.c.b16 %v1085, %v1084
      %v1093 = vpack.c.b16 %v1087, %v1086
      %v1094 = vpack.c.b16 %v1089, %v1088
      %v1095 = vpack.c.b16 %v1091, %v1090
      %v1101 = vsel %vm231, %v1075, 0
      %1103 = vmatprep.subr.bf16.mxu0 0
      %1104 = vmatpush1.bf16.msra.mxu0 %v1092
      %1105 = vmatprep.subr.bf16.mxu0 0
      %1106 = vmatpush1.bf16.msra.mxu0 %v1093
      %1107 = vmatprep.subr.bf16.mxu0 0
      %1108 = vmatpush1.bf16.msra.mxu0 %v1094
      %1109 = vmatprep.subr.bf16.mxu0 0
      %1110 = vmatpush1.bf16.msra.mxu0 %v1095
      %1111 = vmatprep.subr.bf16.mxu0 0
      %1112 = vmatpush1.bf16.msra.mxu0 0
      %1113 = vmatprep.subr.bf16.mxu0 0
      %1114 = vmatpush1.bf16.msra.mxu0 0
      %1115 = vmatprep.subr.bf16.mxu0 0
      %1116 = vmatpush1.bf16.msra.mxu0 0
      %1117 = vmatprep.subr.bf16.mxu0 0
      %1118 = vmatpush1.bf16.msra.mxu0 0
      %1119 = vmatprep.subr.bf16.mxu0 0
      %1120 = vmatpush1.bf16.msra.mxu0 0
      %1121 = vmatprep.subr.bf16.mxu0 0
      %1122 = vmatpush1.bf16.msra.mxu0 0
      %1123 = vmatprep.subr.bf16.mxu0 0
      %1124 = vmatpush1.bf16.msra.mxu0 0
      %1125 = vmatprep.subr.bf16.mxu0 0
      %1126 = vmatpush1.bf16.msra.mxu0 0
      %1127 = vmatprep.subr.bf16.mxu0 0
      %1128 = vmatpush1.bf16.msra.mxu0 0
      %1129 = vmatprep.subr.bf16.mxu0 0
      %1130 = vmatpush1.bf16.msra.mxu0 0
      %1131 = vmatprep.subr.bf16.mxu0 0
      %1132 = vmatpush1.bf16.msra.mxu0 0
      %1133 = vmatprep.subr.bf16.mxu0 0
      %1134 = vmatpush1.bf16.msra.mxu0 0
      %1135 = vmatprep.mubr.bf16.mxu0 0
      %1136 = vmatmul.mubr.bf16.gmra.mrb[0].mxu0 %v1101
      %v1137 = vpop.f32.mrb[0].mxu0
      %v1138 = vadd.f32 0.0, %v1137
      %v1139 = vpop.f32.mrb[0].mxu0
      %v1140 = vpop.f32.mrb[0].mxu0
      %v1141 = vadd.f32 0.0, %v1140
      %v1142 = vpop.f32.mrb[0].mxu0
      %1143 = vdwg.mxu0
      %v1144 = vadd.f32 %v1060, %v1138
      %v1145 = vadd.f32 %v1061, %v1141
      %v1146 = vld [vmem:[%s167 + $0x8] sm:$0xf]
      %s1147 = scalar_lea.vmem %s1, 352
      %v1148 = vld [vmem:[%s1147] sm:$0xf]
      %v1149 = vld [vmem:[%s1147 + $0x4] sm:$0xf]
      %v1150 = vld [vmem:[%s1147 + $0x8] sm:$0xf]
      %v1151 = vld [vmem:[%s1147 + $0xc] sm:$0xf]
      %v1152 = vld [vmem:[%s1147 + $0x10] sm:$0xf]
      %v1153 = vld [vmem:[%s1147 + $0x14] sm:$0xf]
      %v1154 = vld [vmem:[%s1147 + $0x18] sm:$0xf]
      %v1155 = vld [vmem:[%s1147 + $0x1c] sm:$0xf]
      %v1157 = vunpack.c.l.b16 %v1146
      %v1158 = vpack.c.b16 %v1157, %v1073
      %v1160 = vshrl.u32 %v1158, 16
      %v1162 = vrot.slane %v1160, 2
      %v1163 = vshll.u32 %v1158, 16
      %v1165 = vrot.slane %v1163, 3
      %v1166 = vor.u32 %v1162, %v1165
      %v1175 = vunpack.c.l.b16 %v1148
      %v1176 = vunpack.c.l.b16 %v1149
      %v1177 = vunpack.c.l.b16 %v1150
      %v1178 = vunpack.c.l.b16 %v1151
      %v1179 = vunpack.c.l.b16 %v1152
      %v1180 = vunpack.c.l.b16 %v1153
      %v1181 = vunpack.c.l.b16 %v1154
      %v1182 = vunpack.c.l.b16 %v1155
      %v1183 = vpack.c.b16 %v1176, %v1175
      %v1184 = vpack.c.b16 %v1178, %v1177
      %v1185 = vpack.c.b16 %v1180, %v1179
      %v1186 = vpack.c.b16 %v1182, %v1181
      %v1192 = vsel %vm231, %v1166, 0
      %1194 = vmatprep.subr.bf16.mxu0 0
      %1195 = vmatpush1.bf16.msra.mxu0 %v1183
      %1196 = vmatprep.subr.bf16.mxu0 0
      %1197 = vmatpush1.bf16.msra.mxu0 %v1184
      %1198 = vmatprep.subr.bf16.mxu0 0
      %1199 = vmatpush1.bf16.msra.mxu0 %v1185
      %1200 = vmatprep.subr.bf16.mxu0 0
      %1201 = vmatpush1.bf16.msra.mxu0 %v1186
      %1202 = vmatprep.subr.bf16.mxu0 0
      %1203 = vmatpush1.bf16.msra.mxu0 0
      %1204 = vmatprep.subr.bf16.mxu0 0
      %1205 = vmatpush1.bf16.msra.mxu0 0
      %1206 = vmatprep.subr.bf16.mxu0 0
      %1207 = vmatpush1.bf16.msra.mxu0 0
      %1208 = vmatprep.subr.bf16.mxu0 0
      %1209 = vmatpush1.bf16.msra.mxu0 0
      %1210 = vmatprep.subr.bf16.mxu0 0
      %1211 = vmatpush1.bf16.msra.mxu0 0
      %1212 = vmatprep.subr.bf16.mxu0 0
      %1213 = vmatpush1.bf16.msra.mxu0 0
      %1214 = vmatprep.subr.bf16.mxu0 0
      %1215 = vmatpush1.bf16.msra.mxu0 0
      %1216 = vmatprep.subr.bf16.mxu0 0
      %1217 = vmatpush1.bf16.msra.mxu0 0
      %1218 = vmatprep.subr.bf16.mxu0 0
      %1219 = vmatpush1.bf16.msra.mxu0 0
      %1220 = vmatprep.subr.bf16.mxu0 0
      %1221 = vmatpush1.bf16.msra.mxu0 0
      %1222 = vmatprep.subr.bf16.mxu0 0
      %1223 = vmatpush1.bf16.msra.mxu0 0
      %1224 = vmatprep.subr.bf16.mxu0 0
      %1225 = vmatpush1.bf16.msra.mxu0 0
      %1226 = vmatprep.mubr.bf16.mxu0 0
      %1227 = vmatmul.mubr.bf16.gmra.mrb[0].mxu0 %v1192
      %v1228 = vpop.f32.mrb[0].mxu0
      %v1229 = vadd.f32 0.0, %v1228
      %v1230 = vpop.f32.mrb[0].mxu0
      %v1231 = vpop.f32.mrb[0].mxu0
      %v1232 = vadd.f32 0.0, %v1231
      %v1233 = vpop.f32.mrb[0].mxu0
      %1234 = vdwg.mxu0
      %v1235 = vadd.f32 %v1144, %v1229
      %v1236 = vadd.f32 %v1145, %v1232
      %v1237 = vld [vmem:[%s167 + $0x4] sm:$0x8]
      %v1238 = vld [vmem:[%s167 + $0x8] sm:$0xf]
      %v1239 = vld [vmem:[%s167 + $0xc] sm:$0x1]
      %s1240 = scalar_lea.vmem %s1, 384
      %v1241 = vld [vmem:[%s1240] sm:$0xf]
      %v1242 = vld [vmem:[%s1240 + $0x4] sm:$0xf]
      %v1243 = vld [vmem:[%s1240 + $0x8] sm:$0xf]
      %v1244 = vld [vmem:[%s1240 + $0xc] sm:$0xf]
      %v1245 = vld [vmem:[%s1240 + $0x10] sm:$0xf]
      %v1246 = vld [vmem:[%s1240 + $0x14] sm:$0xf]
      %v1247 = vld [vmem:[%s1240 + $0x18] sm:$0xf]
      %v1248 = vld [vmem:[%s1240 + $0x1c] sm:$0xf]
      %v1252 = vunpack.c.l.b16 %v1237
      %v1253 = vunpack.c.l.b16 %v1238
      %v1254 = vunpack.c.l.b16 %v1239
      %v1255 = vpack.c.b16 %v1253, %v1252
      %v1256 = vpack.c.b16 %v1254, %v1254
      %v1258 = vshrl.u32 %v1255, 16
      %v1260 = vrot.slane %v1258, 3
      %v1261 = vshll.u32 %v1255, 16
      %v1263 = vrot.slane %v1261, 4
      %v1264 = vor.u32 %v1260, %v1263
      %v1266 = vshll.u32 %v1256, 16
      %v1268 = vrot.slane %v1266, 4
      %v1269 = vsel %vm720, %v1264, %v1268
      %v1278 = vunpack.c.l.b16 %v1241
      %v1279 = vunpack.c.l.b16 %v1242
      %v1280 = vunpack.c.l.b16 %v1243
      %v1281 = vunpack.c.l.b16 %v1244
      %v1282 = vunpack.c.l.b16 %v1245
      %v1283 = vunpack.c.l.b16 %v1246
      %v1284 = vunpack.c.l.b16 %v1247
      %v1285 = vunpack.c.l.b16 %v1248
      %v1286 = vpack.c.b16 %v1279, %v1278
      %v1287 = vpack.c.b16 %v1281, %v1280
      %v1288 = vpack.c.b16 %v1283, %v1282
      %v1289 = vpack.c.b16 %v1285, %v1284
      %v1295 = vsel %vm231, %v1269, 0
      %1297 = vmatprep.subr.bf16.mxu0 0
      %1298 = vmatpush1.bf16.msra.mxu0 %v1286
      %1299 = vmatprep.subr.bf16.mxu0 0
      %1300 = vmatpush1.bf16.msra.mxu0 %v1287
      %1301 = vmatprep.subr.bf16.mxu0 0
      %1302 = vmatpush1.bf16.msra.mxu0 %v1288
      %1303 = vmatprep.subr.bf16.mxu0 0
      %1304 = vmatpush1.bf16.msra.mxu0 %v1289
      %1305 = vmatprep.subr.bf16.mxu0 0
      %1306 = vmatpush1.bf16.msra.mxu0 0
      %1307 = vmatprep.subr.bf16.mxu0 0
      %1308 = vmatpush1.bf16.msra.mxu0 0
      %1309 = vmatprep.subr.bf16.mxu0 0
      %1310 = vmatpush1.bf16.msra.mxu0 0
      %1311 = vmatprep.subr.bf16.mxu0 0
      %1312 = vmatpush1.bf16.msra.mxu0 0
      %1313 = vmatprep.subr.bf16.mxu0 0
      %1314 = vmatpush1.bf16.msra.mxu0 0
      %1315 = vmatprep.subr.bf16.mxu0 0
      %1316 = vmatpush1.bf16.msra.mxu0 0
      %1317 = vmatprep.subr.bf16.mxu0 0
      %1318 = vmatpush1.bf16.msra.mxu0 0
      %1319 = vmatprep.subr.bf16.mxu0 0
      %1320 = vmatpush1.bf16.msra.mxu0 0
      %1321 = vmatprep.subr.bf16.mxu0 0
      %1322 = vmatpush1.bf16.msra.mxu0 0
      %1323 = vmatprep.subr.bf16.mxu0 0
      %1324 = vmatpush1.bf16.msra.mxu0 0
      %1325 = vmatprep.subr.bf16.mxu0 0
      %1326 = vmatpush1.bf16.msra.mxu0 0
      %1327 = vmatprep.subr.bf16.mxu0 0
      %1328 = vmatpush1.bf16.msra.mxu0 0
      %1329 = vmatprep.mubr.bf16.mxu0 0
      %1330 = vmatmul.mubr.bf16.gmra.mrb[0].mxu0 %v1295
      %v1331 = vpop.f32.mrb[0].mxu0
      %v1332 = vadd.f32 0.0, %v1331
      %v1333 = vpop.f32.mrb[0].mxu0
      %v1334 = vpop.f32.mrb[0].mxu0
      %v1335 = vadd.f32 0.0, %v1334
      %v1336 = vpop.f32.mrb[0].mxu0
      %1337 = vdwg.mxu0
      %v1338 = vadd.f32 %v1235, %v1332
      %v1339 = vadd.f32 %v1236, %v1335
      %s1340 = scalar_lea.vmem %s1, 416
      %v1341 = vld [vmem:[%s1340] sm:$0xf]
      %v1342 = vld [vmem:[%s1340 + $0x4] sm:$0xf]
      %v1343 = vld [vmem:[%s1340 + $0x8] sm:$0xf]
      %v1344 = vld [vmem:[%s1340 + $0xc] sm:$0xf]
      %v1345 = vld [vmem:[%s1340 + $0x10] sm:$0xf]
      %v1346 = vld [vmem:[%s1340 + $0x14] sm:$0xf]
      %v1347 = vld [vmem:[%s1340 + $0x18] sm:$0xf]
      %v1348 = vld [vmem:[%s1340 + $0x1c] sm:$0xf]
      %v1349 = vpack.c.b16 %v1254, %v1253
      %v1358 = vunpack.c.l.b16 %v1341
      %v1359 = vunpack.c.l.b16 %v1342
      %v1360 = vunpack.c.l.b16 %v1343
      %v1361 = vunpack.c.l.b16 %v1344
      %v1362 = vunpack.c.l.b16 %v1345
      %v1363 = vunpack.c.l.b16 %v1346
      %v1364 = vunpack.c.l.b16 %v1347
      %v1365 = vunpack.c.l.b16 %v1348
      %v1366 = vpack.c.b16 %v1359, %v1358
      %v1367 = vpack.c.b16 %v1361, %v1360
      %v1368 = vpack.c.b16 %v1363, %v1362
      %v1369 = vpack.c.b16 %v1365, %v1364
      %v1375 = vsel %vm231, %v1349, 0
      %1377 = vmatprep.subr.bf16.mxu0 0
      %1378 = vmatpush1.bf16.msra.mxu0 %v1366
      %1379 = vmatprep.subr.bf16.mxu0 0
      %1380 = vmatpush1.bf16.msra.mxu0 %v1367
      %1381 = vmatprep.subr.bf16.mxu0 0
      %1382 = vmatpush1.bf16.msra.mxu0 %v1368
      %1383 = vmatprep.subr.bf16.mxu0 0
      %1384 = vmatpush1.bf16.msra.mxu0 %v1369
      %1385 = vmatprep.subr.bf16.mxu0 0
      %1386 = vmatpush1.bf16.msra.mxu0 0
      %1387 = vmatprep.subr.bf16.mxu0 0
      %1388 = vmatpush1.bf16.msra.mxu0 0
      %1389 = vmatprep.subr.bf16.mxu0 0
      %1390 = vmatpush1.bf16.msra.mxu0 0
      %1391 = vmatprep.subr.bf16.mxu0 0
      %1392 = vmatpush1.bf16.msra.mxu0 0
      %1393 = vmatprep.subr.bf16.mxu0 0
      %1394 = vmatpush1.bf16.msra.mxu0 0
      %1395 = vmatprep.subr.bf16.mxu0 0
      %1396 = vmatpush1.bf16.msra.mxu0 0
      %1397 = vmatprep.subr.bf16.mxu0 0
      %1398 = vmatpush1.bf16.msra.mxu0 0
      %1399 = vmatprep.subr.bf16.mxu0 0
      %1400 = vmatpush1.bf16.msra.mxu0 0
      %1401 = vmatprep.subr.bf16.mxu0 0
      %1402 = vmatpush1.bf16.msra.mxu0 0
      %1403 = vmatprep.subr.bf16.mxu0 0
      %1404 = vmatpush1.bf16.msra.mxu0 0
      %1405 = vmatprep.subr.bf16.mxu0 0
      %1406 = vmatpush1.bf16.msra.mxu0 0
      %1407 = vmatprep.subr.bf16.mxu0 0
      %1408 = vmatpush1.bf16.msra.mxu0 0
      %1409 = vmatprep.mubr.bf16.mxu0 0
      %1410 = vmatmul.mubr.bf16.gmra.mrb[0].mxu0 %v1375
      %v1411 = vpop.f32.mrb[0].mxu0
      %v1412 = vadd.f32 0.0, %v1411
      %v1413 = vpop.f32.mrb[0].mxu0
      %v1414 = vpop.f32.mrb[0].mxu0
      %v1415 = vadd.f32 0.0, %v1414
      %v1416 = vpop.f32.mrb[0].mxu0
      %1417 = vdwg.mxu0
      %v1418 = vadd.f32 %v1338, %v1412
      %v1419 = vadd.f32 %v1339, %v1415
      %v1420 = vld [vmem:[%s167 + $0xc] sm:$0x3]
      %s1421 = scalar_lea.vmem %s1, 448
      %v1422 = vld [vmem:[%s1421] sm:$0xf]
      %v1423 = vld [vmem:[%s1421 + $0x4] sm:$0xf]
      %v1424 = vld [vmem:[%s1421 + $0x8] sm:$0xf]
      %v1425 = vld [vmem:[%s1421 + $0xc] sm:$0xf]
      %v1426 = vld [vmem:[%s1421 + $0x10] sm:$0xf]
      %v1427 = vld [vmem:[%s1421 + $0x14] sm:$0xf]
      %v1428 = vld [vmem:[%s1421 + $0x18] sm:$0xf]
      %v1429 = vld [vmem:[%s1421 + $0x1c] sm:$0xf]
      %v1431 = vunpack.c.l.b16 %v1420
      %v1432 = vpack.c.b16 %v1431, %v1253
      %v1434 = vshrl.u32 %v1432, 16
      %v1436 = vshll.u32 %v1432, 16
      %v1438 = vrot.slane %v1436, 1
      %v1439 = vor.u32 %v1434, %v1438
      %v1448 = vunpack.c.l.b16 %v1422
      %v1449 = vunpack.c.l.b16 %v1423
      %v1450 = vunpack.c.l.b16 %v1424
      %v1451 = vunpack.c.l.b16 %v1425
      %v1452 = vunpack.c.l.b16 %v1426
      %v1453 = vunpack.c.l.b16 %v1427
      %v1454 = vunpack.c.l.b16 %v1428
      %v1455 = vunpack.c.l.b16 %v1429
      %v1456 = vpack.c.b16 %v1449, %v1448
      %v1457 = vpack.c.b16 %v1451, %v1450
      %v1458 = vpack.c.b16 %v1453, %v1452
      %v1459 = vpack.c.b16 %v1455, %v1454
      %v1465 = vsel %vm231, %v1439, 0
      %1467 = vmatprep.subr.bf16.mxu0 0
      %1468 = vmatpush1.bf16.msra.mxu0 %v1456
      %1469 = vmatprep.subr.bf16.mxu0 0
      %1470 = vmatpush1.bf16.msra.mxu0 %v1457
      %1471 = vmatprep.subr.bf16.mxu0 0
      %1472 = vmatpush1.bf16.msra.mxu0 %v1458
      %1473 = vmatprep.subr.bf16.mxu0 0
      %1474 = vmatpush1.bf16.msra.mxu0 %v1459
      %1475 = vmatprep.subr.bf16.mxu0 0
      %1476 = vmatpush1.bf16.msra.mxu0 0
      %1477 = vmatprep.subr.bf16.mxu0 0
      %1478 = vmatpush1.bf16.msra.mxu0 0
      %1479 = vmatprep.subr.bf16.mxu0 0
      %1480 = vmatpush1.bf16.msra.mxu0 0
      %1481 = vmatprep.subr.bf16.mxu0 0
      %1482 = vmatpush1.bf16.msra.mxu0 0
      %1483 = vmatprep.subr.bf16.mxu0 0
      %1484 = vmatpush1.bf16.msra.mxu0 0
      %1485 = vmatprep.subr.bf16.mxu0 0
      %1486 = vmatpush1.bf16.msra.mxu0 0
      %1487 = vmatprep.subr.bf16.mxu0 0
      %1488 = vmatpush1.bf16.msra.mxu0 0
      %1489 = vmatprep.subr.bf16.mxu0 0
      %1490 = vmatpush1.bf16.msra.mxu0 0
      %1491 = vmatprep.subr.bf16.mxu0 0
      %1492 = vmatpush1.bf16.msra.mxu0 0
      %1493 = vmatprep.subr.bf16.mxu0 0
      %1494 = vmatpush1.bf16.msra.mxu0 0
      %1495 = vmatprep.subr.bf16.mxu0 0
      %1496 = vmatpush1.bf16.msra.mxu0 0
      %1497 = vmatprep.subr.bf16.mxu0 0
      %1498 = vmatpush1.bf16.msra.mxu0 0
      %1499 = vmatprep.mubr.bf16.mxu0 0
      %1500 = vmatmul.mubr.bf16.gmra.mrb[0].mxu0 %v1465
      %v1501 = vpop.f32.mrb[0].mxu0
      %v1502 = vadd.f32 0.0, %v1501
      %v1503 = vpop.f32.mrb[0].mxu0
      %v1504 = vpop.f32.mrb[0].mxu0
      %v1505 = vadd.f32 0.0, %v1504
      %v1506 = vpop.f32.mrb[0].mxu0
      %1507 = vdwg.mxu0
      %v1508 = vadd.f32 %v1418, %v1502
      %v1509 = vadd.f32 %v1419, %v1505
      %v1510 = vld [vmem:[%s167 + $0x8] sm:$0xe]
      %s1511 = scalar_lea.vmem %s1, 480
      %v1512 = vld [vmem:[%s1511] sm:$0xf]
      %v1513 = vld [vmem:[%s1511 + $0x4] sm:$0xf]
      %v1514 = vld [vmem:[%s1511 + $0x8] sm:$0xf]
      %v1515 = vld [vmem:[%s1511 + $0xc] sm:$0xf]
      %v1516 = vld [vmem:[%s1511 + $0x10] sm:$0xf]
      %v1517 = vld [vmem:[%s1511 + $0x14] sm:$0xf]
      %v1518 = vld [vmem:[%s1511 + $0x18] sm:$0xf]
      %v1519 = vld [vmem:[%s1511 + $0x1c] sm:$0xf]
      %v1521 = vunpack.c.l.b16 %v1510
      %v1522 = vpack.c.b16 %v1431, %v1521
      %v1523 = vrot.slane %v1522, 1
      %v1532 = vunpack.c.l.b16 %v1512
      %v1533 = vunpack.c.l.b16 %v1513
      %v1534 = vunpack.c.l.b16 %v1514
      %v1535 = vunpack.c.l.b16 %v1515
      %v1536 = vunpack.c.l.b16 %v1516
      %v1537 = vunpack.c.l.b16 %v1517
      %v1538 = vunpack.c.l.b16 %v1518
      %v1539 = vunpack.c.l.b16 %v1519
      %v1540 = vpack.c.b16 %v1533, %v1532
      %v1541 = vpack.c.b16 %v1535, %v1534
      %v1542 = vpack.c.b16 %v1537, %v1536
      %v1543 = vpack.c.b16 %v1539, %v1538
      %v1549 = vsel %vm231, %v1523, 0
      %1551 = vmatprep.subr.bf16.mxu0 0
      %1552 = vmatpush1.bf16.msra.mxu0 %v1540
      %1553 = vmatprep.subr.bf16.mxu0 0
      %1554 = vmatpush1.bf16.msra.mxu0 %v1541
      %1555 = vmatprep.subr.bf16.mxu0 0
      %1556 = vmatpush1.bf16.msra.mxu0 %v1542
      %1557 = vmatprep.subr.bf16.mxu0 0
      %1558 = vmatpush1.bf16.msra.mxu0 %v1543
      %1559 = vmatprep.subr.bf16.mxu0 0
      %1560 = vmatpush1.bf16.msra.mxu0 0
      %1561 = vmatprep.subr.bf16.mxu0 0
      %1562 = vmatpush1.bf16.msra.mxu0 0
      %1563 = vmatprep.subr.bf16.mxu0 0
      %1564 = vmatpush1.bf16.msra.mxu0 0
      %1565 = vmatprep.subr.bf16.mxu0 0
      %1566 = vmatpush1.bf16.msra.mxu0 0
      %1567 = vmatprep.subr.bf16.mxu0 0
      %1568 = vmatpush1.bf16.msra.mxu0 0
      %1569 = vmatprep.subr.bf16.mxu0 0
      %1570 = vmatpush1.bf16.msra.mxu0 0
      %1571 = vmatprep.subr.bf16.mxu0 0
      %1572 = vmatpush1.bf16.msra.mxu0 0
      %1573 = vmatprep.subr.bf16.mxu0 0
      %1574 = vmatpush1.bf16.msra.mxu0 0
      %1575 = vmatprep.subr.bf16.mxu0 0
      %1576 = vmatpush1.bf16.msra.mxu0 0
      %1577 = vmatprep.subr.bf16.mxu0 0
      %1578 = vmatpush1.bf16.msra.mxu0 0
      %1579 = vmatprep.subr.bf16.mxu0 0
      %1580 = vmatpush1.bf16.msra.mxu0 0
      %1581 = vmatprep.subr.bf16.mxu0 0
      %1582 = vmatpush1.bf16.msra.mxu0 0
      %1583 = vmatprep.mubr.bf16.mxu0 0
      %1584 = vmatmul.mubr.bf16.gmra.mrb[0].mxu0 %v1549
      %v1585 = vpop.f32.mrb[0].mxu0
      %v1586 = vadd.f32 0.0, %v1585
      %v1587 = vpop.f32.mrb[0].mxu0
      %v1588 = vpop.f32.mrb[0].mxu0
      %v1589 = vadd.f32 0.0, %v1588
      %v1590 = vpop.f32.mrb[0].mxu0
      %1591 = vdwg.mxu0
      %v1592 = vadd.f32 %v1508, %v1586
      %v1593 = vadd.f32 %v1509, %v1589
      %v1595 = vlaneseq
      %v1596 = vshrl.u32 %v1595, 7
      %v1597 = vsub.s32 0, %v1596
      %v1598 = vrot.slane %v174, %v1597
      %v1600 = vadd.f32 %v1592, %v1598
      %v1601 = vadd.f32 %v1593, %v1598
      %v1602 = vsub.f32 0.0, %v1600
      %v1603 = vsub.f32 0.0, %v1601
      %v1604 = vmul.f32 %v1602, 1.442695
      %v1605 = vpow.pop %v1604
      %v1606 = vmul.f32 %v1603, 1.442695
      %v1607 = vpow.pop %v1606
      %v1608 = vadd.f32 %v1605, 1.0
      %v1609 = vadd.f32 %v1607, 1.0
      %v1610 = vrcp.pop %v1608
      %v1611 = vmul.f32 1.0, %v1610
      %v1612 = vrcp.pop %v1609
      %v1613 = vmul.f32 1.0, %v1612
      %vm1614 = vcmask 7168
      %1615 = vst.msk [vmem:[%s172] sm:$0xff] %vm1614, %v1611
      %vm1616 = vcmask 1024
      %1617 = vst.msk [vmem:[%s172 + $0x8] sm:$0x3] %vm1616, %v1613
      %p1618 = scmp.lt.s32.totalorder %s16, 1
      %s1619 = scalar_select %p1618, %s16, 1
      %s1620 = smul.addr %s1619, 2
      %s1621 = smul.addr %s1620, 8
      %s1622 = scalar_lea.vmem %s3, %s1621
      // Predicated region
      $region33: #{discriminator_forward.9} parent=31 // pred_check
        %p1623 = pneg %p102
      $region34: #{discriminator_forward.9} parent=31 // pred_check_branch
        %1625 = sbr.rel (%p1623) target = $region36
      $region35: #{discriminator_forward.9} parent=31 // pred_region
        _
      $region36: #{discriminator_forward.9} parent=31 // pred_fallthru
        _
    $region32: #{discriminator_forward.9} parent=5 // pred_fallthru
      _
    %p1626 = scmp.le.s32.totalorder 2, %s11
    // Predicated region
    $region37: #{discriminator_forward.9} parent=5 // pred_check
      %p1627 = pneg %p1626
    $region38: #{discriminator_forward.9} parent=5 // pred_check_branch
      %1629 = sbr.rel (%p1627) target = $region40
    $region39: #{discriminator_forward.9} parent=5 // pred_region
      %s1630 = ssub.s32 %s11, 2
      // Predicated region
      $region41: #{discriminator_forward.9} parent=39 // pred_check
        %p1631 = pneg %p108
      $region42: #{discriminator_forward.9} parent=39 // pred_check_branch
        %1633 = sbr.rel (%p1631) target = $region44
      $region43: #{discriminator_forward.9} parent=39 // pred_region
        %p1634 = scmp.lt.s32.totalorder %s17, 1
        %s1635 = scalar_select %p1634, %s17, 1
        %s1636 = smul.addr %s1635, 2
        %s1637 = smul.addr %s1636, 8
        %s1638 = scalar_lea.vmem %s3, %s1637
      $region44: #{discriminator_forward.9} parent=39 // pred_fallthru
        _
    $region40: #{discriminator_forward.9} parent=5 // pred_fallthru
      _
  $region6: #{discriminator_forward.9} parent=0 // loop_footer
    %s15 = sadd.s32 1, %s11
  $region7: #{discriminator_forward.9} parent=0 // loop_footer_branch
    %10 = sbr.rel target = $region3
  $region8: #{discriminator_forward.9} parent=0 // loop_exit
    _

</llo_original>
